<compile_context>
chip_gen: v7x
topology: tpu7x:2x2x1
jax: 0.10.0
libtpu: 0.0.40
codegen_flags: <defaults>
</compile_context>

<pallas_src>
import jax
import jax.numpy as jnp
from jax.experimental import pallas as pl
from jax.experimental.pallas import tpu as pltpu


NUM_CLASSES = 5
D_IN = 256 * 10      # 2560
D_HID = 256 * 5      # 1280
D_OUT_PAD = 128      # classifier head padded to one full lane width


# ----------------------------------------------------------------------------
# Fused classifier kernel: ReLU(x @ W1 + b1) @ W2 + b2
# ----------------------------------------------------------------------------
def _ecg_classifier_kernel(x_ref, w1_ref, b1_ref, w2_ref, b2_ref, o_ref):
    # fc1: Linear(2560, 1280) — bf16 MXU matmul, f32 accumulation.
    h = jnp.dot(x_ref[...].astype(jnp.bfloat16), w1_ref[...],
                preferred_element_type=jnp.float32)
    h = jnp.maximum(h + b1_ref[...], 0.0)          # bias + ReLU epilogue
    # Dropout: eval-mode identity (see TODO at top of file).
    # fc2: Linear(1280, num_classes) — columns zero-padded to 128 lanes.
    out = jnp.dot(h.astype(jnp.bfloat16), w2_ref[...],
                  preferred_element_type=jnp.float32)
    o_ref[...] = out + b2_ref[...]


def ecg_classifier_forward(x, params):
    """x: (N, 2560) f32 -> logits (N, NUM_CLASSES) f32."""
    n, d_in = x.shape
    assert d_in == D_IN, (n, d_in)
    d_hid = params["w1t"].shape[1]
    d_out_pad = params["w2t"].shape[1]

    out_pad = pl.pallas_call(
        _ecg_classifier_kernel,
        out_shape=jax.ShapeDtypeStruct((n, d_out_pad), jnp.float32),
        grid=(1,),
        in_specs=[
            pl.BlockSpec((n, d_in), lambda i: (0, 0)),          # x (f32)
            pl.BlockSpec((d_in, d_hid), lambda i: (0, 0)),      # W1^T (bf16)
            pl.BlockSpec((1, d_hid), lambda i: (0, 0)),         # b1 (f32)
            pl.BlockSpec((d_hid, d_out_pad), lambda i: (0, 0)),  # W2^T padded (bf16)
            pl.BlockSpec((1, d_out_pad), lambda i: (0, 0)),     # b2 padded (f32)
        ],
        out_specs=pl.BlockSpec((n, d_out_pad), lambda i: (0, 0)),
        compiler_params=pltpu.CompilerParams(
            dimension_semantics=("arbitrary",),
            vmem_limit_bytes=32 * 1024 * 1024,   # ~14 MB worst case; safe on v5e/v6e/v7x
        ),
    )(x, params["w1t"], params["b1"], params["w2t"], params["b2"])

    return out_pad[:, :NUM_CLASSES]


# ----------------------------------------------------------------------------
# Parameters (deterministic init, PyTorch Linear-like uniform fan-in init).
# Pre-transposed, pre-cast to bf16, fc2 padded to 128 output columns — all
# done ONCE here, never per forward call.
# ----------------------------------------------------------------------------
def init_params(key, num_classes=NUM_CLASSES):
    k1, k2, k3, k4 = jax.random.split(key, 4)
    lim1 = 1.0 / (D_IN ** 0.5)
    lim2 = 1.0 / (D_HID ** 0.5)
    w1t = jax.random.uniform(k1, (D_IN, D_HID), jnp.float32, -lim1, lim1)
    b1 = jax.random.uniform(k2, (1, D_HID), jnp.float32, -lim1, lim1)
    w2t = jax.random.uniform(k3, (D_HID, num_classes), jnp.float32, -lim2, lim2)
    b2 = jax.random.uniform(k4, (1, num_classes), jnp.float32, -lim2, lim2)

    w2t_pad = jnp.zeros((D_HID, D_OUT_PAD), jnp.float32).at[:, :num_classes].set(w2t)
    b2_pad = jnp.zeros((1, D_OUT_PAD), jnp.float32).at[:, :num_classes].set(b2)

    return {
        "w1t": w1t.astype(jnp.bfloat16),     # (2560, 1280) bf16
        "b1": b1,                            # (1, 1280) f32
        "w2t": w2t_pad.astype(jnp.bfloat16),  # (1280, 128) bf16 (cols >=5 are zero)
        "b2": b2_pad,                        # (1, 128) f32 (cols >=5 are zero)
    }


# ----------------------------------------------------------------------------
# Pure-JAX reference (same bf16 weights) for a correctness sanity check.
# ----------------------------------------------------------------------------
def reference_forward(x, params):
    h = jnp.dot(x.astype(jnp.bfloat16), params["w1t"],
                preferred_element_type=jnp.float32)
    h = jnp.maximum(h + params["b1"], 0.0)
    out = jnp.dot(h.astype(jnp.bfloat16), params["w2t"],
                  preferred_element_type=jnp.float32)
    out = out + params["b2"]
    return out[:, :NUM_CLASSES]


if __name__ == "__main__":
    key = jax.random.PRNGKey(0)
    kx, kp = jax.random.split(key)
    batch = 2
    x = jax.random.normal(kx, (batch, D_IN), jnp.float32)   # (N, 2560)
    params = init_params(kp)

    out = jax.jit(ecg_classifier_forward)(x, params)
    out = jax.block_until_ready(out)

    assert out.shape == (batch, NUM_CLASSES), out.shape
    assert bool(jnp.all(jnp.isfinite(out)))

    ref = jax.jit(reference_forward)(x, params)
    ref = jax.block_until_ready(ref)
    assert bool(jnp.allclose(out, ref, atol=5e-2, rtol=5e-2)), (out, ref)

    print("KERNEL_OK")
</pallas_src>

<mosaic_0001>
module attributes {stable_mosaic.version = 11 : i64} {
  func.func @_ecg_classifier_kernel(%arg0: i32, %arg1: memref<2x2560xf32, #tpu.memory_space<vmem>>, %arg2: memref<2560x1280xbf16, #tpu.memory_space<vmem>>, %arg3: memref<1x1280xf32, #tpu.memory_space<vmem>>, %arg4: memref<1280x128xbf16, #tpu.memory_space<vmem>>, %arg5: memref<1x128xf32, #tpu.memory_space<vmem>>, %arg6: memref<2x128xf32, #tpu.memory_space<vmem>>) attributes {dimension_semantics = [#tpu.dimension_semantics<arbitrary>], iteration_bounds = array<i64: 1>, scalar_prefetch = 0 : i64, scratch_operands = 0 : i64, tpu.core_type = #tpu.core_type<tc>, window_params = [{pipeline_mode = #tpu.pipeline_mode<synchronous>, transform_indices = @transform_0, window_bounds = array<i64: 2, 2560>}, {pipeline_mode = #tpu.pipeline_mode<synchronous>, transform_indices = @transform_1, window_bounds = array<i64: 2560, 1280>}, {pipeline_mode = #tpu.pipeline_mode<synchronous>, transform_indices = @transform_2, window_bounds = array<i64: 1, 1280>}, {pipeline_mode = #tpu.pipeline_mode<synchronous>, transform_indices = @transform_3, window_bounds = array<i64: 1280, 128>}, {pipeline_mode = #tpu.pipeline_mode<synchronous>, transform_indices = @transform_4, window_bounds = array<i64: 1, 128>}, {pipeline_mode = #tpu.pipeline_mode<synchronous>, transform_indices = @transform_5, window_bounds = array<i64: 2, 128>}]} {
    %c0 = arith.constant 0 : index
    %c0_0 = arith.constant 0 : index
    %0 = vector.load %arg1[%c0, %c0_0] : memref<2x2560xf32, #tpu.memory_space<vmem>>, vector<2x2560xf32>
    %1 = arith.truncf %0 : vector<2x2560xf32> to vector<2x2560xbf16>
    %c0_1 = arith.constant 0 : index
    %c0_2 = arith.constant 0 : index
    %2 = vector.load %arg2[%c0_1, %c0_2] : memref<2560x1280xbf16, #tpu.memory_space<vmem>>, vector<2560x1280xbf16>
    %cst = arith.constant dense<0.000000e+00> : vector<2x1280xf32>
    %3 = tpu.matmul %1, %2, %cst {dimension_numbers = #tpu.dot_dimension_numbers<[1], [0], [0], [1], [0, 0, 1, 1], [], []>} : vector<2x2560xbf16>, vector<2560x1280xbf16>, vector<2x1280xf32> -> vector<2x1280xf32>
    %c0_3 = arith.constant 0 : index
    %c0_4 = arith.constant 0 : index
    %4 = vector.load %arg3[%c0_3, %c0_4] : memref<1x1280xf32, #tpu.memory_space<vmem>>, vector<1x1280xf32>
    %5 = vector.broadcast %4 : vector<1x1280xf32> to vector<2x1280xf32>
    %6 = arith.addf %3, %5 : vector<2x1280xf32>
    %cst_5 = arith.constant 0.000000e+00 : f32
    %7 = vector.broadcast %cst_5 : f32 to vector<2x1280xf32>
    %8 = arith.maximumf %6, %7 : vector<2x1280xf32>
    %9 = arith.truncf %8 : vector<2x1280xf32> to vector<2x1280xbf16>
    %c0_6 = arith.constant 0 : index
    %c0_7 = arith.constant 0 : index
    %10 = vector.load %arg4[%c0_6, %c0_7] : memref<1280x128xbf16, #tpu.memory_space<vmem>>, vector<1280x128xbf16>
    %cst_8 = arith.constant dense<0.000000e+00> : vector<2x128xf32>
    %11 = tpu.matmul %9, %10, %cst_8 {dimension_numbers = #tpu.dot_dimension_numbers<[1], [0], [0], [1], [0, 0, 1, 1], [], []>} : vector<2x1280xbf16>, vector<1280x128xbf16>, vector<2x128xf32> -> vector<2x128xf32>
    %c0_9 = arith.constant 0 : index
    %c0_10 = arith.constant 0 : index
    %12 = vector.load %arg5[%c0_9, %c0_10] : memref<1x128xf32, #tpu.memory_space<vmem>>, vector<1x128xf32>
    %13 = vector.broadcast %12 : vector<1x128xf32> to vector<2x128xf32>
    %14 = arith.addf %11, %13 : vector<2x128xf32>
    %c0_11 = arith.constant 0 : index
    %c0_12 = arith.constant 0 : index
    %15 = vector.load %arg6[%c0_11, %c0_12] : memref<2x128xf32, #tpu.memory_space<vmem>>, vector<2x128xf32>
    tpu.vector_store %arg6[%c0_11, %c0_12], %14 {strides = array<i32>} : memref<2x128xf32, #tpu.memory_space<vmem>>, vector<2x128xf32>,
    return
  }
  func.func @transform_0(%arg0: i32) -> (i32, i32) {
    %c0_i32 = arith.constant 0 : i32
    %c0_i32_0 = arith.constant 0 : i32
    %c0_i32_1 = arith.constant 0 : i32
    return %c0_i32, %c0_i32_0 : i32, i32
  }
  func.func @transform_1(%arg0: i32) -> (i32, i32) {
    %c0_i32 = arith.constant 0 : i32
    %c0_i32_0 = arith.constant 0 : i32
    %c0_i32_1 = arith.constant 0 : i32
    return %c0_i32, %c0_i32_0 : i32, i32
  }
  func.func @transform_2(%arg0: i32) -> (i32, i32) {
    %c0_i32 = arith.constant 0 : i32
    %c0_i32_0 = arith.constant 0 : i32
    %c0_i32_1 = arith.constant 0 : i32
    return %c0_i32, %c0_i32_0 : i32, i32
  }
  func.func @transform_3(%arg0: i32) -> (i32, i32) {
    %c0_i32 = arith.constant 0 : i32
    %c0_i32_0 = arith.constant 0 : i32
    %c0_i32_1 = arith.constant 0 : i32
    return %c0_i32, %c0_i32_0 : i32, i32
  }
  func.func @transform_4(%arg0: i32) -> (i32, i32) {
    %c0_i32 = arith.constant 0 : i32
    %c0_i32_0 = arith.constant 0 : i32
    %c0_i32_1 = arith.constant 0 : i32
    return %c0_i32, %c0_i32_0 : i32, i32
  }
  func.func @transform_5(%arg0: i32) -> (i32, i32) {
    %c0_i32 = arith.constant 0 : i32
    %c0_i32_0 = arith.constant 0 : i32
    %c0_i32_1 = arith.constant 0 : i32
    return %c0_i32, %c0_i32_0 : i32, i32
  }
}

</mosaic_0001>

<llo_original>
// kernel: ecg_classifier_forward.1
$region0: #{ecg_classifier_forward.1}
  #allocation0 [shape = 'u32[]', space=smem, size = 0x4, offset = 0x4, fixed_abs, tag = 'smem constant byte address 0x4 - core index']
  #allocation1 [shape = 'u32[144,128]{1,0:T(1,128)}', space=vmem, size = 0x12000, scoped, tag = 'internal scratch']
  %s0 = inlined_call_operand.hbm [shape: f32[2,2560], index: 0, kind: input, shape index: {}]
  %s1 = inlined_call_operand.hbm [shape: bf16[2560,1280], index: 1, kind: input, shape index: {}]
  %s2 = inlined_call_operand.hbm [shape: f32[1,1280], index: 2, kind: input, shape index: {}]
  %s3 = inlined_call_operand.hbm [shape: bf16[1280,128], index: 3, kind: input, shape index: {}]
  %s4 = inlined_call_operand.hbm [shape: f32[1,128], index: 4, kind: input, shape index: {}]
  %s5 = inlined_call_operand.hbm [shape: f32[2,128], index: 5, kind: output, shape index: {}]
  %s6 = sld [smem:[#allocation0]]
  $region50: #{ecg_classifier_forward.1} parent=0
    _
  %s8 = ssub.s32 1, %s6
  %s9 = scalar_select 0, %s8, %s6
  $region1: #{ecg_classifier_forward.1} parent=0
    #allocation2 [shape = 'u8[20480]{0}', space=vmem, size = 0x5000, scoped, tag = 'input window, operand 0, single buffered']
    #allocation3 [shape = 's32[1]{0}', space=sflag, size = 0x4, scoped, tag = 'scoped memory for ecg_classifier_forward.1']
    #allocation4 [shape = 's32[1]{0}', space=sflag, size = 0x4, scoped, tag = 'scoped memory for ecg_classifier_forward.1']
    #allocation5 [shape = 'u8[6553600]{0}', space=vmem, size = 0x640000, scoped, tag = 'input window, operand 1, single buffered']
    #allocation6 [shape = 's32[1]{0}', space=sflag, size = 0x4, scoped, tag = 'scoped memory for ecg_classifier_forward.1']
    #allocation7 [shape = 'u8[5120]{0}', space=vmem, size = 0x1400, scoped, tag = 'input window, operand 2, single buffered']
    #allocation8 [shape = 'u8[327680]{0}', space=vmem, size = 0x50000, scoped, tag = 'input window, operand 3, single buffered']
    #allocation9 [shape = 's32[1]{0}', space=sflag, size = 0x4, scoped, tag = 'scoped memory for ecg_classifier_forward.1']
    #allocation10 [shape = 'u8[512]{0}', space=vmem, size = 0x400, scoped, tag = 'input window, operand 4, single buffered']
    #allocation11 [shape = 'u8[1024]{0}', space=vmem, size = 0x400, scoped, tag = 'output window, operand 0, single buffered']
    %10 = vsyncpa [#allocation3], 0
    %11 = vsyncpa [#allocation6], 0
    %12 = vsyncpa [#allocation9], 0
    %13 = vsyncpa [#allocation4], 0
    // Predicated region
    $region2: #{ecg_classifier_forward.1} parent=1 // pred_check
      _
    $region3: #{ecg_classifier_forward.1} parent=1 // pred_check_branch
      %15 = sbr.rel (0) target = $region5
    $region4: #{ecg_classifier_forward.1} parent=1 // pred_region
      %s17 = ssub.s32 640, 640
      %18 = vsyncadd [#allocation3], %s17
      %s20 = sshll.u32 [#allocation2], 4
      %s21 = int_to_ptr.vmem [resolvable:$true] %s20
      %23 = dma.hbm_to_vmem [thread:$0]  %s0, 640, %s21, [#allocation3]
    $region5: #{ecg_classifier_forward.1} parent=1 // pred_fallthru
      _
    // Predicated region
    $region6: #{ecg_classifier_forward.1} parent=1 // pred_check
      _
    $region7: #{ecg_classifier_forward.1} parent=1 // pred_check_branch
      %25 = sbr.rel (0) target = $region9
    $region8: #{ecg_classifier_forward.1} parent=1 // pred_region
      %s27 = ssub.s32 204800, 204800
      %28 = vsyncadd [#allocation6], %s27
      %s29 = sshll.u32 [#allocation5], 4
      %s30 = int_to_ptr.vmem [resolvable:$true] %s29
      %35 = dma.hbm_to_vmem [thread:$0]  %s1, 204800, %s30, [#allocation6], 640, 640, 40
    $region9: #{ecg_classifier_forward.1} parent=1 // pred_fallthru
      _
    // Predicated region
    $region10: #{ecg_classifier_forward.1} parent=1 // pred_check
      _
    $region11: #{ecg_classifier_forward.1} parent=1 // pred_check_branch
      %37 = sbr.rel (0) target = $region13
    $region12: #{ecg_classifier_forward.1} parent=1 // pred_region
      %s39 = ssub.s32 160, 160
      %40 = vsyncadd [#allocation6], %s39
      %s42 = sshll.u32 [#allocation7], 4
      %s43 = int_to_ptr.vmem [resolvable:$true] %s42
      %45 = dma.hbm_to_vmem [thread:$0]  %s2, 160, %s43, [#allocation6]
    $region13: #{ecg_classifier_forward.1} parent=1 // pred_fallthru
      _
    // Predicated region
    $region14: #{ecg_classifier_forward.1} parent=1 // pred_check
      _
    $region15: #{ecg_classifier_forward.1} parent=1 // pred_check_branch
      %47 = sbr.rel (0) target = $region17
    $region16: #{ecg_classifier_forward.1} parent=1 // pred_region
      %s49 = ssub.s32 10240, 10240
      %50 = vsyncadd [#allocation9], %s49
      %s51 = sshll.u32 [#allocation8], 4
      %s52 = int_to_ptr.vmem [resolvable:$true] %s51
      %57 = dma.hbm_to_vmem [thread:$0]  %s3, 10240, %s52, [#allocation9], 64, 64, 4
    $region17: #{ecg_classifier_forward.1} parent=1 // pred_fallthru
      _
    // Predicated region
    $region18: #{ecg_classifier_forward.1} parent=1 // pred_check
      _
    $region19: #{ecg_classifier_forward.1} parent=1 // pred_check_branch
      %59 = sbr.rel (0) target = $region21
    $region20: #{ecg_classifier_forward.1} parent=1 // pred_region
      %s61 = ssub.s32 16, 16
      %62 = vsyncadd [#allocation9], %s61
      %s64 = sshll.u32 [#allocation10], 4
      %s65 = int_to_ptr.vmem [resolvable:$true] %s64
      %67 = dma.hbm_to_vmem [thread:$0]  %s4, 16, %s65, [#allocation9]
    $region21: #{ecg_classifier_forward.1} parent=1 // pred_fallthru
      _
    // Predicated region
    $region22: #{ecg_classifier_forward.1} parent=1 // pred_check
      _
    $region23: #{ecg_classifier_forward.1} parent=1 // pred_check_branch
      %69 = sbr.rel (0) target = $region25
    $region24: #{ecg_classifier_forward.1} parent=1 // pred_region
      %70 = dma.done [#allocation3], 640
    $region25: #{ecg_classifier_forward.1} parent=1 // pred_fallthru
      _
    // Predicated region
    $region26: #{ecg_classifier_forward.1} parent=1 // pred_check
      _
    $region27: #{ecg_classifier_forward.1} parent=1 // pred_check_branch
      %72 = sbr.rel (0) target = $region29
    $region28: #{ecg_classifier_forward.1} parent=1 // pred_region
      %73 = dma.done [#allocation6], 204800
    $region29: #{ecg_classifier_forward.1} parent=1 // pred_fallthru
      _
    // Predicated region
    $region30: #{ecg_classifier_forward.1} parent=1 // pred_check
      _
    $region31: #{ecg_classifier_forward.1} parent=1 // pred_check_branch
      %75 = sbr.rel (0) target = $region33
    $region32: #{ecg_classifier_forward.1} parent=1 // pred_region
      %76 = dma.done [#allocation6], 160
    $region33: #{ecg_classifier_forward.1} parent=1 // pred_fallthru
      _
    // Predicated region
    $region34: #{ecg_classifier_forward.1} parent=1 // pred_check
      _
    $region35: #{ecg_classifier_forward.1} parent=1 // pred_check_branch
      %78 = sbr.rel (0) target = $region37
    $region36: #{ecg_classifier_forward.1} parent=1 // pred_region
      %79 = dma.done [#allocation9], 10240
    $region37: #{ecg_classifier_forward.1} parent=1 // pred_fallthru
      _
    // Predicated region
    $region38: #{ecg_classifier_forward.1} parent=1 // pred_check
      _
    $region39: #{ecg_classifier_forward.1} parent=1 // pred_check_branch
      %81 = sbr.rel (0) target = $region41
    $region40: #{ecg_classifier_forward.1} parent=1 // pred_region
      %82 = dma.done [#allocation9], 16
    $region41: #{ecg_classifier_forward.1} parent=1 // pred_fallthru
      _
    %v84 = vld [vmem:[#allocation2] sm:$0xff]
    %v85 = vld [vmem:[#allocation2 + $0x8] sm:$0xff]
    %v86 = vld [vmem:[#allocation2 + $0x10] sm:$0xff]
    %v87 = vld [vmem:[#allocation2 + $0x18] sm:$0xff]
    %v88 = vld [vmem:[#allocation2 + $0x20] sm:$0xff]
    %v94 = vcombine.high %v84, %v84
    %v96 = vunpack.c.l.s4 1983009808
    %v97 = vunpack.c.0.s8 %v96
    %v98 = vlaneseq
    %v99 = vshrl.u32 %v98, 7
    %v100 = vsub.s32 %v97, %v99
    %v101 = vrot.slane %v84, %v100
    %v103 = vunpack.c.l.s4 1983009808
    %v104 = vunpack.c.0.s8 %v103
    %v105 = vlaneseq
    %v106 = vshrl.u32 %v105, 7
    %v107 = vsub.s32 %v104, %v106
    %v108 = vrot.slane %v94, %v107
    %v109 = vcombine.high %v101, %v101
    %v110 = vcombine.high %v108, %v108
    %v111 = vcombine.high %v85, %v85
    %v113 = vunpack.c.l.s4 1983009808
    %v114 = vunpack.c.0.s8 %v113
    %v115 = vlaneseq
    %v116 = vshrl.u32 %v115, 7
    %v117 = vsub.s32 %v114, %v116
    %v118 = vrot.slane %v85, %v117
    %v120 = vunpack.c.l.s4 1983009808
    %v121 = vunpack.c.0.s8 %v120
    %v122 = vlaneseq
    %v123 = vshrl.u32 %v122, 7
    %v124 = vsub.s32 %v121, %v123
    %v125 = vrot.slane %v111, %v124
    %v126 = vcombine.high %v118, %v118
    %v127 = vcombine.high %v125, %v125
    %v128 = vcombine.high %v86, %v86
    %v130 = vunpack.c.l.s4 1983009808
    %v131 = vunpack.c.0.s8 %v130
    %v132 = vlaneseq
    %v133 = vshrl.u32 %v132, 7
    %v134 = vsub.s32 %v131, %v133
    %v135 = vrot.slane %v86, %v134
    %v137 = vunpack.c.l.s4 1983009808
    %v138 = vunpack.c.0.s8 %v137
    %v139 = vlaneseq
    %v140 = vshrl.u32 %v139, 7
    %v141 = vsub.s32 %v138, %v140
    %v142 = vrot.slane %v128, %v141
    %v143 = vcombine.high %v135, %v135
    %v144 = vcombine.high %v142, %v142
    %v145 = vcombine.high %v87, %v87
    %v147 = vunpack.c.l.s4 1983009808
    %v148 = vunpack.c.0.s8 %v147
    %v149 = vlaneseq
    %v150 = vshrl.u32 %v149, 7
    %v151 = vsub.s32 %v148, %v150
    %v152 = vrot.slane %v87, %v151
    %v154 = vunpack.c.l.s4 1983009808
    %v155 = vunpack.c.0.s8 %v154
    %v156 = vlaneseq
    %v157 = vshrl.u32 %v156, 7
    %v158 = vsub.s32 %v155, %v157
    %v159 = vrot.slane %v145, %v158
    %v160 = vcombine.high %v152, %v152
    %v161 = vcombine.high %v159, %v159
    %v162 = vcombine.high %v88, %v88
    %v164 = vunpack.c.l.s4 1983009808
    %v165 = vunpack.c.0.s8 %v164
    %v166 = vlaneseq
    %v167 = vshrl.u32 %v166, 7
    %v168 = vsub.s32 %v165, %v167
    %v169 = vrot.slane %v88, %v168
    %v171 = vunpack.c.l.s4 1983009808
    %v172 = vunpack.c.0.s8 %v171
    %v173 = vlaneseq
    %v174 = vshrl.u32 %v173, 7
    %v175 = vsub.s32 %v172, %v174
    %v176 = vrot.slane %v162, %v175
    %v177 = vcombine.high %v169, %v169
    %v178 = vcombine.high %v176, %v176
    %v199 = vpack.c.bf16 %v101, %v101
    %v200 = vpack.c.bf16 %v109, %v109
    %v201 = vpack.c.bf16 %v108, %v108
    %v202 = vpack.c.bf16 %v110, %v110
    %v203 = vpack.c.bf16 %v118, %v118
    %v204 = vpack.c.bf16 %v126, %v126
    %v205 = vpack.c.bf16 %v125, %v125
    %v206 = vpack.c.bf16 %v127, %v127
    %v207 = vpack.c.bf16 %v135, %v135
    %v208 = vpack.c.bf16 %v143, %v143
    %v209 = vpack.c.bf16 %v142, %v142
    %v210 = vpack.c.bf16 %v144, %v144
    %v211 = vpack.c.bf16 %v152, %v152
    %v212 = vpack.c.bf16 %v160, %v160
    %v213 = vpack.c.bf16 %v159, %v159
    %v214 = vpack.c.bf16 %v161, %v161
    %v215 = vpack.c.bf16 %v169, %v169
    %v216 = vpack.c.bf16 %v177, %v177
    %v217 = vpack.c.bf16 %v176, %v176
    %v218 = vpack.c.bf16 %v178, %v178
    %v219 = vld [vmem:[#allocation5] sm:$0xff]
    %v220 = vld [vmem:[#allocation5 + $0x8] sm:$0xff]
    %v221 = vld [vmem:[#allocation5 + $0x10] sm:$0xff]
    %v222 = vld [vmem:[#allocation5 + $0x18] sm:$0xff]
    %v223 = vld [vmem:[#allocation5 + $0x20] sm:$0xff]
    %v224 = vld [vmem:[#allocation5 + $0x28] sm:$0xff]
    %v225 = vld [vmem:[#allocation5 + $0x30] sm:$0xff]
    %v226 = vld [vmem:[#allocation5 + $0x38] sm:$0xff]
    %v227 = vld [vmem:[#allocation5 + $0x40] sm:$0xff]
    %v228 = vld [vmem:[#allocation5 + $0x48] sm:$0xff]
    %v229 = vld [vmem:[#allocation5 + $0x50] sm:$0xff]
    %v230 = vld [vmem:[#allocation5 + $0x58] sm:$0xff]
    %v231 = vld [vmem:[#allocation5 + $0x60] sm:$0xff]
    %v232 = vld [vmem:[#allocation5 + $0x68] sm:$0xff]
    %v233 = vld [vmem:[#allocation5 + $0x70] sm:$0xff]
    %v234 = vld [vmem:[#allocation5 + $0x78] sm:$0xff]
    %v235 = vld [vmem:[#allocation5 + $0x80] sm:$0xff]
    %v236 = vld [vmem:[#allocation5 + $0x88] sm:$0xff]
    %v237 = vld [vmem:[#allocation5 + $0x90] sm:$0xff]
    %v238 = vld [vmem:[#allocation5 + $0x98] sm:$0xff]
    %v239 = vld [vmem:[#allocation5 + $0xa0] sm:$0xff]
    %v240 = vld [vmem:[#allocation5 + $0xa8] sm:$0xff]
    %v241 = vld [vmem:[#allocation5 + $0xb0] sm:$0xff]
    %v242 = vld [vmem:[#allocation5 + $0xb8] sm:$0xff]
    %v243 = vld [vmem:[#allocation5 + $0xc0] sm:$0xff]
    %v244 = vld [vmem:[#allocation5 + $0xc8] sm:$0xff]
    %v245 = vld [vmem:[#allocation5 + $0xd0] sm:$0xff]
    %v246 = vld [vmem:[#allocation5 + $0xd8] sm:$0xff]
    %v247 = vld [vmem:[#allocation5 + $0xe0] sm:$0xff]
    %v248 = vld [vmem:[#allocation5 + $0xe8] sm:$0xff]
    %v249 = vld [vmem:[#allocation5 + $0xf0] sm:$0xff]
    %v250 = vld [vmem:[#allocation5 + $0xf8] sm:$0xff]
    %v251 = vld [vmem:[#allocation5 + $0x100] sm:$0xff]
    %v252 = vld [vmem:[#allocation5 + $0x108] sm:$0xff]
    %v253 = vld [vmem:[#allocation5 + $0x110] sm:$0xff]
    %v254 = vld [vmem:[#allocation5 + $0x118] sm:$0xff]
    %v255 = vld [vmem:[#allocation5 + $0x120] sm:$0xff]
    %v256 = vld [vmem:[#allocation5 + $0x128] sm:$0xff]
    %v257 = vld [vmem:[#allocation5 + $0x130] sm:$0xff]
    %v258 = vld [vmem:[#allocation5 + $0x138] sm:$0xff]
    %v259 = vld [vmem:[#allocation5 + $0x140] sm:$0xff]
    %v260 = vld [vmem:[#allocation5 + $0x148] sm:$0xff]
    %v261 = vld [vmem:[#allocation5 + $0x150] sm:$0xff]
    %v262 = vld [vmem:[#allocation5 + $0x158] sm:$0xff]
    %v263 = vld [vmem:[#allocation5 + $0x160] sm:$0xff]
    %v264 = vld [vmem:[#allocation5 + $0x168] sm:$0xff]
    %v265 = vld [vmem:[#allocation5 + $0x170] sm:$0xff]
    %v266 = vld [vmem:[#allocation5 + $0x178] sm:$0xff]
    %v267 = vld [vmem:[#allocation5 + $0x180] sm:$0xff]
    %v268 = vld [vmem:[#allocation5 + $0x188] sm:$0xff]
    %v269 = vld [vmem:[#allocation5 + $0x190] sm:$0xff]
    %v270 = vld [vmem:[#allocation5 + $0x198] sm:$0xff]
    %v271 = vld [vmem:[#allocation5 + $0x1a0] sm:$0xff]
    %v272 = vld [vmem:[#allocation5 + $0x1a8] sm:$0xff]
    %v273 = vld [vmem:[#allocation5 + $0x1b0] sm:$0xff]
    %v274 = vld [vmem:[#allocation5 + $0x1b8] sm:$0xff]
    %v275 = vld [vmem:[#allocation5 + $0x1c0] sm:$0xff]
    %v276 = vld [vmem:[#allocation5 + $0x1c8] sm:$0xff]
    %v277 = vld [vmem:[#allocation5 + $0x1d0] sm:$0xff]
    %v278 = vld [vmem:[#allocation5 + $0x1d8] sm:$0xff]
    %v279 = vld [vmem:[#allocation5 + $0x1e0] sm:$0xff]
    %v280 = vld [vmem:[#allocation5 + $0x1e8] sm:$0xff]
    %v281 = vld [vmem:[#allocation5 + $0x1f0] sm:$0xff]
    %v282 = vld [vmem:[#allocation5 + $0x1f8] sm:$0xff]
    %v283 = vld [vmem:[#allocation5 + $0x200] sm:$0xff]
    %v284 = vld [vmem:[#allocation5 + $0x208] sm:$0xff]
    %v285 = vld [vmem:[#allocation5 + $0x210] sm:$0xff]
    %v286 = vld [vmem:[#allocation5 + $0x218] sm:$0xff]
    %v287 = vld [vmem:[#allocation5 + $0x220] sm:$0xff]
    %v288 = vld [vmem:[#allocation5 + $0x228] sm:$0xff]
    %v289 = vld [vmem:[#allocation5 + $0x230] sm:$0xff]
    %v290 = vld [vmem:[#allocation5 + $0x238] sm:$0xff]
    %v291 = vld [vmem:[#allocation5 + $0x240] sm:$0xff]
    %v292 = vld [vmem:[#allocation5 + $0x248] sm:$0xff]
    %v293 = vld [vmem:[#allocation5 + $0x250] sm:$0xff]
    %v294 = vld [vmem:[#allocation5 + $0x258] sm:$0xff]
    %v295 = vld [vmem:[#allocation5 + $0x260] sm:$0xff]
    %v296 = vld [vmem:[#allocation5 + $0x268] sm:$0xff]
    %v297 = vld [vmem:[#allocation5 + $0x270] sm:$0xff]
    %v298 = vld [vmem:[#allocation5 + $0x278] sm:$0xff]
    %v299 = vld [vmem:[#allocation5 + $0x280] sm:$0xff]
    %v300 = vld [vmem:[#allocation5 + $0x288] sm:$0xff]
    %v301 = vld [vmem:[#allocation5 + $0x290] sm:$0xff]
    %v302 = vld [vmem:[#allocation5 + $0x298] sm:$0xff]
    %v303 = vld [vmem:[#allocation5 + $0x2a0] sm:$0xff]
    %v304 = vld [vmem:[#allocation5 + $0x2a8] sm:$0xff]
    %v305 = vld [vmem:[#allocation5 + $0x2b0] sm:$0xff]
    %v306 = vld [vmem:[#allocation5 + $0x2b8] sm:$0xff]
    %v307 = vld [vmem:[#allocation5 + $0x2c0] sm:$0xff]
    %v308 = vld [vmem:[#allocation5 + $0x2c8] sm:$0xff]
    %v309 = vld [vmem:[#allocation5 + $0x2d0] sm:$0xff]
    %v310 = vld [vmem:[#allocation5 + $0x2d8] sm:$0xff]
    %v311 = vld [vmem:[#allocation5 + $0x2e0] sm:$0xff]
    %v312 = vld [vmem:[#allocation5 + $0x2e8] sm:$0xff]
    %v313 = vld [vmem:[#allocation5 + $0x2f0] sm:$0xff]
    %v314 = vld [vmem:[#allocation5 + $0x2f8] sm:$0xff]
    %v315 = vld [vmem:[#allocation5 + $0x300] sm:$0xff]
    %v316 = vld [vmem:[#allocation5 + $0x308] sm:$0xff]
    %v317 = vld [vmem:[#allocation5 + $0x310] sm:$0xff]
    %v318 = vld [vmem:[#allocation5 + $0x318] sm:$0xff]
    %v319 = vld [vmem:[#allocation5 + $0x320] sm:$0xff]
    %v320 = vld [vmem:[#allocation5 + $0x328] sm:$0xff]
    %v321 = vld [vmem:[#allocation5 + $0x330] sm:$0xff]
    %v322 = vld [vmem:[#allocation5 + $0x338] sm:$0xff]
    %v323 = vld [vmem:[#allocation5 + $0x340] sm:$0xff]
    %v324 = vld [vmem:[#allocation5 + $0x348] sm:$0xff]
    %v325 = vld [vmem:[#allocation5 + $0x350] sm:$0xff]
    %v326 = vld [vmem:[#allocation5 + $0x358] sm:$0xff]
    %v327 = vld [vmem:[#allocation5 + $0x360] sm:$0xff]
    %v328 = vld [vmem:[#allocation5 + $0x368] sm:$0xff]
    %v329 = vld [vmem:[#allocation5 + $0x370] sm:$0xff]
    %v330 = vld [vmem:[#allocation5 + $0x378] sm:$0xff]
    %v331 = vld [vmem:[#allocation5 + $0x380] sm:$0xff]
    %v332 = vld [vmem:[#allocation5 + $0x388] sm:$0xff]
    %v333 = vld [vmem:[#allocation5 + $0x390] sm:$0xff]
    %v334 = vld [vmem:[#allocation5 + $0x398] sm:$0xff]
    %v335 = vld [vmem:[#allocation5 + $0x3a0] sm:$0xff]
    %v336 = vld [vmem:[#allocation5 + $0x3a8] sm:$0xff]
    %v337 = vld [vmem:[#allocation5 + $0x3b0] sm:$0xff]
    %v338 = vld [vmem:[#allocation5 + $0x3b8] sm:$0xff]
    %v339 = vld [vmem:[#allocation5 + $0x3c0] sm:$0xff]
    %v340 = vld [vmem:[#allocation5 + $0x3c8] sm:$0xff]
    %v341 = vld [vmem:[#allocation5 + $0x3d0] sm:$0xff]
    %v342 = vld [vmem:[#allocation5 + $0x3d8] sm:$0xff]
    %v343 = vld [vmem:[#allocation5 + $0x3e0] sm:$0xff]
    %v344 = vld [vmem:[#allocation5 + $0x3e8] sm:$0xff]
    %v345 = vld [vmem:[#allocation5 + $0x3f0] sm:$0xff]
    %v346 = vld [vmem:[#allocation5 + $0x3f8] sm:$0xff]
    %v347 = vld [vmem:[#allocation5 + $0x400] sm:$0xff]
    %v348 = vld [vmem:[#allocation5 + $0x408] sm:$0xff]
    %v349 = vld [vmem:[#allocation5 + $0x410] sm:$0xff]
    %v350 = vld [vmem:[#allocation5 + $0x418] sm:$0xff]
    %v351 = vld [vmem:[#allocation5 + $0x420] sm:$0xff]
    %v352 = vld [vmem:[#allocation5 + $0x428] sm:$0xff]
    %v353 = vld [vmem:[#allocation5 + $0x430] sm:$0xff]
    %v354 = vld [vmem:[#allocation5 + $0x438] sm:$0xff]
    %v355 = vld [vmem:[#allocation5 + $0x440] sm:$0xff]
    %v356 = vld [vmem:[#allocation5 + $0x448] sm:$0xff]
    %v357 = vld [vmem:[#allocation5 + $0x450] sm:$0xff]
    %v358 = vld [vmem:[#allocation5 + $0x458] sm:$0xff]
    %v359 = vld [vmem:[#allocation5 + $0x460] sm:$0xff]
    %v360 = vld [vmem:[#allocation5 + $0x468] sm:$0xff]
    %v361 = vld [vmem:[#allocation5 + $0x470] sm:$0xff]
    %v362 = vld [vmem:[#allocation5 + $0x478] sm:$0xff]
    %v363 = vld [vmem:[#allocation5 + $0x480] sm:$0xff]
    %v364 = vld [vmem:[#allocation5 + $0x488] sm:$0xff]
    %v365 = vld [vmem:[#allocation5 + $0x490] sm:$0xff]
    %v366 = vld [vmem:[#allocation5 + $0x498] sm:$0xff]
    %v367 = vld [vmem:[#allocation5 + $0x4a0] sm:$0xff]
    %v368 = vld [vmem:[#allocation5 + $0x4a8] sm:$0xff]
    %v369 = vld [vmem:[#allocation5 + $0x4b0] sm:$0xff]
    %v370 = vld [vmem:[#allocation5 + $0x4b8] sm:$0xff]
    %v371 = vld [vmem:[#allocation5 + $0x4c0] sm:$0xff]
    %v372 = vld [vmem:[#allocation5 + $0x4c8] sm:$0xff]
    %v373 = vld [vmem:[#allocation5 + $0x4d0] sm:$0xff]
    %v374 = vld [vmem:[#allocation5 + $0x4d8] sm:$0xff]
    %v375 = vld [vmem:[#allocation5 + $0x4e0] sm:$0xff]
    %v376 = vld [vmem:[#allocation5 + $0x4e8] sm:$0xff]
    %v377 = vld [vmem:[#allocation5 + $0x4f0] sm:$0xff]
    %v378 = vld [vmem:[#allocation5 + $0x4f8] sm:$0xff]
    %v379 = vld [vmem:[#allocation5 + $0x500] sm:$0xff]
    %v380 = vld [vmem:[#allocation5 + $0x508] sm:$0xff]
    %v381 = vld [vmem:[#allocation5 + $0x510] sm:$0xff]
    %v382 = vld [vmem:[#allocation5 + $0x518] sm:$0xff]
    %v383 = vld [vmem:[#allocation5 + $0x520] sm:$0xff]
    %v384 = vld [vmem:[#allocation5 + $0x528] sm:$0xff]
    %v385 = vld [vmem:[#allocation5 + $0x530] sm:$0xff]
    %v386 = vld [vmem:[#allocation5 + $0x538] sm:$0xff]
    %v387 = vld [vmem:[#allocation5 + $0x540] sm:$0xff]
    %v388 = vld [vmem:[#allocation5 + $0x548] sm:$0xff]
    %v389 = vld [vmem:[#allocation5 + $0x550] sm:$0xff]
    %v390 = vld [vmem:[#allocation5 + $0x558] sm:$0xff]
    %v391 = vld [vmem:[#allocation5 + $0x560] sm:$0xff]
    %v392 = vld [vmem:[#allocation5 + $0x568] sm:$0xff]
    %v393 = vld [vmem:[#allocation5 + $0x570] sm:$0xff]
    %v394 = vld [vmem:[#allocation5 + $0x578] sm:$0xff]
    %v395 = vld [vmem:[#allocation5 + $0x580] sm:$0xff]
    %v396 = vld [vmem:[#allocation5 + $0x588] sm:$0xff]
    %v397 = vld [vmem:[#allocation5 + $0x590] sm:$0xff]
    %v398 = vld [vmem:[#allocation5 + $0x598] sm:$0xff]
    %v399 = vld [vmem:[#allocation5 + $0x5a0] sm:$0xff]
    %v400 = vld [vmem:[#allocation5 + $0x5a8] sm:$0xff]
    %v401 = vld [vmem:[#allocation5 + $0x5b0] sm:$0xff]
    %v402 = vld [vmem:[#allocation5 + $0x5b8] sm:$0xff]
    %v403 = vld [vmem:[#allocation5 + $0x5c0] sm:$0xff]
    %v404 = vld [vmem:[#allocation5 + $0x5c8] sm:$0xff]
    %v405 = vld [vmem:[#allocation5 + $0x5d0] sm:$0xff]
    %v406 = vld [vmem:[#allocation5 + $0x5d8] sm:$0xff]
    %v407 = vld [vmem:[#allocation5 + $0x5e0] sm:$0xff]
    %v408 = vld [vmem:[#allocation5 + $0x5e8] sm:$0xff]
    %v409 = vld [vmem:[#allocation5 + $0x5f0] sm:$0xff]
    %v410 = vld [vmem:[#allocation5 + $0x5f8] sm:$0xff]
    %v411 = vld [vmem:[#allocation5 + $0x600] sm:$0xff]
    %v412 = vld [vmem:[#allocation5 + $0x608] sm:$0xff]
    %v413 = vld [vmem:[#allocation5 + $0x610] sm:$0xff]
    %v414 = vld [vmem:[#allocation5 + $0x618] sm:$0xff]
    %v415 = vld [vmem:[#allocation5 + $0x620] sm:$0xff]
    %v416 = vld [vmem:[#allocation5 + $0x628] sm:$0xff]
    %v417 = vld [vmem:[#allocation5 + $0x630] sm:$0xff]
    %v418 = vld [vmem:[#allocation5 + $0x638] sm:$0xff]
    %v419 = vld [vmem:[#allocation5 + $0x640] sm:$0xff]
    %v420 = vld [vmem:[#allocation5 + $0x648] sm:$0xff]
    %v421 = vld [vmem:[#allocation5 + $0x650] sm:$0xff]
    %v422 = vld [vmem:[#allocation5 + $0x658] sm:$0xff]
    %v423 = vld [vmem:[#allocation5 + $0x660] sm:$0xff]
    %v424 = vld [vmem:[#allocation5 + $0x668] sm:$0xff]
    %v425 = vld [vmem:[#allocation5 + $0x670] sm:$0xff]
    %v426 = vld [vmem:[#allocation5 + $0x678] sm:$0xff]
    %v427 = vld [vmem:[#allocation5 + $0x680] sm:$0xff]
    %v428 = vld [vmem:[#allocation5 + $0x688] sm:$0xff]
    %v429 = vld [vmem:[#allocation5 + $0x690] sm:$0xff]
    %v430 = vld [vmem:[#allocation5 + $0x698] sm:$0xff]
    %v431 = vld [vmem:[#allocation5 + $0x6a0] sm:$0xff]
    %v432 = vld [vmem:[#allocation5 + $0x6a8] sm:$0xff]
    %v433 = vld [vmem:[#allocation5 + $0x6b0] sm:$0xff]
    %v434 = vld [vmem:[#allocation5 + $0x6b8] sm:$0xff]
    %v435 = vld [vmem:[#allocation5 + $0x6c0] sm:$0xff]
    %v436 = vld [vmem:[#allocation5 + $0x6c8] sm:$0xff]
    %v437 = vld [vmem:[#allocation5 + $0x6d0] sm:$0xff]
    %v438 = vld [vmem:[#allocation5 + $0x6d8] sm:$0xff]
    %v439 = vld [vmem:[#allocation5 + $0x6e0] sm:$0xff]
    %v440 = vld [vmem:[#allocation5 + $0x6e8] sm:$0xff]
    %v441 = vld [vmem:[#allocation5 + $0x6f0] sm:$0xff]
    %v442 = vld [vmem:[#allocation5 + $0x6f8] sm:$0xff]
    %v443 = vld [vmem:[#allocation5 + $0x700] sm:$0xff]
    %v444 = vld [vmem:[#allocation5 + $0x708] sm:$0xff]
    %v445 = vld [vmem:[#allocation5 + $0x710] sm:$0xff]
    %v446 = vld [vmem:[#allocation5 + $0x718] sm:$0xff]
    %v447 = vld [vmem:[#allocation5 + $0x720] sm:$0xff]
    %v448 = vld [vmem:[#allocation5 + $0x728] sm:$0xff]
    %v449 = vld [vmem:[#allocation5 + $0x730] sm:$0xff]
    %v450 = vld [vmem:[#allocation5 + $0x738] sm:$0xff]
    %v451 = vld [vmem:[#allocation5 + $0x740] sm:$0xff]
    %v452 = vld [vmem:[#allocation5 + $0x748] sm:$0xff]
    %v453 = vld [vmem:[#allocation5 + $0x750] sm:$0xff]
    %v454 = vld [vmem:[#allocation5 + $0x758] sm:$0xff]
    %v455 = vld [vmem:[#allocation5 + $0x760] sm:$0xff]
    %v456 = vld [vmem:[#allocation5 + $0x768] sm:$0xff]
    %v457 = vld [vmem:[#allocation5 + $0x770] sm:$0xff]
    %v458 = vld [vmem:[#allocation5 + $0x778] sm:$0xff]
    %v459 = vld [vmem:[#allocation5 + $0x780] sm:$0xff]
    %v460 = vld [vmem:[#allocation5 + $0x788] sm:$0xff]
    %v461 = vld [vmem:[#allocation5 + $0x790] sm:$0xff]
    %v462 = vld [vmem:[#allocation5 + $0x798] sm:$0xff]
    %v463 = vld [vmem:[#allocation5 + $0x7a0] sm:$0xff]
    %v464 = vld [vmem:[#allocation5 + $0x7a8] sm:$0xff]
    %v465 = vld [vmem:[#allocation5 + $0x7b0] sm:$0xff]
    %v466 = vld [vmem:[#allocation5 + $0x7b8] sm:$0xff]
    %v467 = vld [vmem:[#allocation5 + $0x7c0] sm:$0xff]
    %v468 = vld [vmem:[#allocation5 + $0x7c8] sm:$0xff]
    %v469 = vld [vmem:[#allocation5 + $0x7d0] sm:$0xff]
    %v470 = vld [vmem:[#allocation5 + $0x7d8] sm:$0xff]
    %v471 = vld [vmem:[#allocation5 + $0x7e0] sm:$0xff]
    %v472 = vld [vmem:[#allocation5 + $0x7e8] sm:$0xff]
    %v473 = vld [vmem:[#allocation5 + $0x7f0] sm:$0xff]
    %v474 = vld [vmem:[#allocation5 + $0x7f8] sm:$0xff]
    %v475 = vld [vmem:[#allocation5 + $0x800] sm:$0xff]
    %v476 = vld [vmem:[#allocation5 + $0x808] sm:$0xff]
    %v477 = vld [vmem:[#allocation5 + $0x810] sm:$0xff]
    %v478 = vld [vmem:[#allocation5 + $0x818] sm:$0xff]
    %v479 = vld [vmem:[#allocation5 + $0x820] sm:$0xff]
    %v480 = vld [vmem:[#allocation5 + $0x828] sm:$0xff]
    %v481 = vld [vmem:[#allocation5 + $0x830] sm:$0xff]
    %v482 = vld [vmem:[#allocation5 + $0x838] sm:$0xff]
    %v483 = vld [vmem:[#allocation5 + $0x840] sm:$0xff]
    %v484 = vld [vmem:[#allocation5 + $0x848] sm:$0xff]
    %v485 = vld [vmem:[#allocation5 + $0x850] sm:$0xff]
    %v486 = vld [vmem:[#allocation5 + $0x858] sm:$0xff]
    %v487 = vld [vmem:[#allocation5 + $0x860] sm:$0xff]
    %v488 = vld [vmem:[#allocation5 + $0x868] sm:$0xff]
    %v489 = vld [vmem:[#allocation5 + $0x870] sm:$0xff]
    %v490 = vld [vmem:[#allocation5 + $0x878] sm:$0xff]
    %v491 = vld [vmem:[#allocation5 + $0x880] sm:$0xff]
    %v492 = vld [vmem:[#allocation5 + $0x888] sm:$0xff]
    %v493 = vld [vmem:[#allocation5 + $0x890] sm:$0xff]
    %v494 = vld [vmem:[#allocation5 + $0x898] sm:$0xff]
    %v495 = vld [vmem:[#allocation5 + $0x8a0] sm:$0xff]
    %v496 = vld [vmem:[#allocation5 + $0x8a8] sm:$0xff]
    %v497 = vld [vmem:[#allocation5 + $0x8b0] sm:$0xff]
    %v498 = vld [vmem:[#allocation5 + $0x8b8] sm:$0xff]
    %v499 = vld [vmem:[#allocation5 + $0x8c0] sm:$0xff]
    %v500 = vld [vmem:[#allocation5 + $0x8c8] sm:$0xff]
    %v501 = vld [vmem:[#allocation5 + $0x8d0] sm:$0xff]
    %v502 = vld [vmem:[#allocation5 + $0x8d8] sm:$0xff]
    %v503 = vld [vmem:[#allocation5 + $0x8e0] sm:$0xff]
    %v504 = vld [vmem:[#allocation5 + $0x8e8] sm:$0xff]
    %v505 = vld [vmem:[#allocation5 + $0x8f0] sm:$0xff]
    %v506 = vld [vmem:[#allocation5 + $0x8f8] sm:$0xff]
    %v507 = vld [vmem:[#allocation5 + $0x900] sm:$0xff]
    %v508 = vld [vmem:[#allocation5 + $0x908] sm:$0xff]
    %v509 = vld [vmem:[#allocation5 + $0x910] sm:$0xff]
    %v510 = vld [vmem:[#allocation5 + $0x918] sm:$0xff]
    %v511 = vld [vmem:[#allocation5 + $0x920] sm:$0xff]
    %v512 = vld [vmem:[#allocation5 + $0x928] sm:$0xff]
    %v513 = vld [vmem:[#allocation5 + $0x930] sm:$0xff]
    %v514 = vld [vmem:[#allocation5 + $0x938] sm:$0xff]
    %v515 = vld [vmem:[#allocation5 + $0x940] sm:$0xff]
    %v516 = vld [vmem:[#allocation5 + $0x948] sm:$0xff]
    %v517 = vld [vmem:[#allocation5 + $0x950] sm:$0xff]
    %v518 = vld [vmem:[#allocation5 + $0x958] sm:$0xff]
    %v519 = vld [vmem:[#allocation5 + $0x960] sm:$0xff]
    %v520 = vld [vmem:[#allocation5 + $0x968] sm:$0xff]
    %v521 = vld [vmem:[#allocation5 + $0x970] sm:$0xff]
    %v522 = vld [vmem:[#allocation5 + $0x978] sm:$0xff]
    %v523 = vld [vmem:[#allocation5 + $0x980] sm:$0xff]
    %v524 = vld [vmem:[#allocation5 + $0x988] sm:$0xff]
    %v525 = vld [vmem:[#allocation5 + $0x990] sm:$0xff]
    %v526 = vld [vmem:[#allocation5 + $0x998] sm:$0xff]
    %v527 = vld [vmem:[#allocation5 + $0x9a0] sm:$0xff]
    %v528 = vld [vmem:[#allocation5 + $0x9a8] sm:$0xff]
    %v529 = vld [vmem:[#allocation5 + $0x9b0] sm:$0xff]
    %v530 = vld [vmem:[#allocation5 + $0x9b8] sm:$0xff]
    %v531 = vld [vmem:[#allocation5 + $0x9c0] sm:$0xff]
    %v532 = vld [vmem:[#allocation5 + $0x9c8] sm:$0xff]
    %v533 = vld [vmem:[#allocation5 + $0x9d0] sm:$0xff]
    %v534 = vld [vmem:[#allocation5 + $0x9d8] sm:$0xff]
    %v535 = vld [vmem:[#allocation5 + $0x9e0] sm:$0xff]
    %v536 = vld [vmem:[#allocation5 + $0x9e8] sm:$0xff]
    %v537 = vld [vmem:[#allocation5 + $0x9f0] sm:$0xff]
    %v538 = vld [vmem:[#allocation5 + $0x9f8] sm:$0xff]
    %v539 = vld [vmem:[#allocation5 + $0xa00] sm:$0xff]
    %v540 = vld [vmem:[#allocation5 + $0xa08] sm:$0xff]
    %v541 = vld [vmem:[#allocation5 + $0xa10] sm:$0xff]
    %v542 = vld [vmem:[#allocation5 + $0xa18] sm:$0xff]
    %v543 = vld [vmem:[#allocation5 + $0xa20] sm:$0xff]
    %v544 = vld [vmem:[#allocation5 + $0xa28] sm:$0xff]
    %v545 = vld [vmem:[#allocation5 + $0xa30] sm:$0xff]
    %v546 = vld [vmem:[#allocation5 + $0xa38] sm:$0xff]
    %v547 = vld [vmem:[#allocation5 + $0xa40] sm:$0xff]
    %v548 = vld [vmem:[#allocation5 + $0xa48] sm:$0xff]
    %v549 = vld [vmem:[#allocation5 + $0xa50] sm:$0xff]
    %v550 = vld [vmem:[#allocation5 + $0xa58] sm:$0xff]
    %v551 = vld [vmem:[#allocation5 + $0xa60] sm:$0xff]
    %v552 = vld [vmem:[#allocation5 + $0xa68] sm:$0xff]
    %v553 = vld [vmem:[#allocation5 + $0xa70] sm:$0xff]
    %v554 = vld [vmem:[#allocation5 + $0xa78] sm:$0xff]
    %v555 = vld [vmem:[#allocation5 + $0xa80] sm:$0xff]
    %v556 = vld [vmem:[#allocation5 + $0xa88] sm:$0xff]
    %v557 = vld [vmem:[#allocation5 + $0xa90] sm:$0xff]
    %v558 = vld [vmem:[#allocation5 + $0xa98] sm:$0xff]
    %v559 = vld [vmem:[#allocation5 + $0xaa0] sm:$0xff]
    %v560 = vld [vmem:[#allocation5 + $0xaa8] sm:$0xff]
    %v561 = vld [vmem:[#allocation5 + $0xab0] sm:$0xff]
    %v562 = vld [vmem:[#allocation5 + $0xab8] sm:$0xff]
    %v563 = vld [vmem:[#allocation5 + $0xac0] sm:$0xff]
    %v564 = vld [vmem:[#allocation5 + $0xac8] sm:$0xff]
    %v565 = vld [vmem:[#allocation5 + $0xad0] sm:$0xff]
    %v566 = vld [vmem:[#allocation5 + $0xad8] sm:$0xff]
    %v567 = vld [vmem:[#allocation5 + $0xae0] sm:$0xff]
    %v568 = vld [vmem:[#allocation5 + $0xae8] sm:$0xff]
    %v569 = vld [vmem:[#allocation5 + $0xaf0] sm:$0xff]
    %v570 = vld [vmem:[#allocation5 + $0xaf8] sm:$0xff]
    %v571 = vld [vmem:[#allocation5 + $0xb00] sm:$0xff]
    %v572 = vld [vmem:[#allocation5 + $0xb08] sm:$0xff]
    %v573 = vld [vmem:[#allocation5 + $0xb10] sm:$0xff]
    %v574 = vld [vmem:[#allocation5 + $0xb18] sm:$0xff]
    %v575 = vld [vmem:[#allocation5 + $0xb20] sm:$0xff]
    %v576 = vld [vmem:[#allocation5 + $0xb28] sm:$0xff]
    %v577 = vld [vmem:[#allocation5 + $0xb30] sm:$0xff]
    %v578 = vld [vmem:[#allocation5 + $0xb38] sm:$0xff]
    %v579 = vld [vmem:[#allocation5 + $0xb40] sm:$0xff]
    %v580 = vld [vmem:[#allocation5 + $0xb48] sm:$0xff]
    %v581 = vld [vmem:[#allocation5 + $0xb50] sm:$0xff]
    %v582 = vld [vmem:[#allocation5 + $0xb58] sm:$0xff]
    %v583 = vld [vmem:[#allocation5 + $0xb60] sm:$0xff]
    %v584 = vld [vmem:[#allocation5 + $0xb68] sm:$0xff]
    %v585 = vld [vmem:[#allocation5 + $0xb70] sm:$0xff]
    %v586 = vld [vmem:[#allocation5 + $0xb78] sm:$0xff]
    %v587 = vld [vmem:[#allocation5 + $0xb80] sm:$0xff]
    %v588 = vld [vmem:[#allocation5 + $0xb88] sm:$0xff]
    %v589 = vld [vmem:[#allocation5 + $0xb90] sm:$0xff]
    %v590 = vld [vmem:[#allocation5 + $0xb98] sm:$0xff]
    %v591 = vld [vmem:[#allocation5 + $0xba0] sm:$0xff]
    %v592 = vld [vmem:[#allocation5 + $0xba8] sm:$0xff]
    %v593 = vld [vmem:[#allocation5 + $0xbb0] sm:$0xff]
    %v594 = vld [vmem:[#allocation5 + $0xbb8] sm:$0xff]
    %v595 = vld [vmem:[#allocation5 + $0xbc0] sm:$0xff]
    %v596 = vld [vmem:[#allocation5 + $0xbc8] sm:$0xff]
    %v597 = vld [vmem:[#allocation5 + $0xbd0] sm:$0xff]
    %v598 = vld [vmem:[#allocation5 + $0xbd8] sm:$0xff]
    %v599 = vld [vmem:[#allocation5 + $0xbe0] sm:$0xff]
    %v600 = vld [vmem:[#allocation5 + $0xbe8] sm:$0xff]
    %v601 = vld [vmem:[#allocation5 + $0xbf0] sm:$0xff]
    %v602 = vld [vmem:[#allocation5 + $0xbf8] sm:$0xff]
    %v603 = vld [vmem:[#allocation5 + $0xc00] sm:$0xff]
    %v604 = vld [vmem:[#allocation5 + $0xc08] sm:$0xff]
    %v605 = vld [vmem:[#allocation5 + $0xc10] sm:$0xff]
    %v606 = vld [vmem:[#allocation5 + $0xc18] sm:$0xff]
    %v607 = vld [vmem:[#allocation5 + $0xc20] sm:$0xff]
    %v608 = vld [vmem:[#allocation5 + $0xc28] sm:$0xff]
    %v609 = vld [vmem:[#allocation5 + $0xc30] sm:$0xff]
    %v610 = vld [vmem:[#allocation5 + $0xc38] sm:$0xff]
    %v611 = vld [vmem:[#allocation5 + $0xc40] sm:$0xff]
    %v612 = vld [vmem:[#allocation5 + $0xc48] sm:$0xff]
    %v613 = vld [vmem:[#allocation5 + $0xc50] sm:$0xff]
    %v614 = vld [vmem:[#allocation5 + $0xc58] sm:$0xff]
    %v615 = vld [vmem:[#allocation5 + $0xc60] sm:$0xff]
    %v616 = vld [vmem:[#allocation5 + $0xc68] sm:$0xff]
    %v617 = vld [vmem:[#allocation5 + $0xc70] sm:$0xff]
    %v618 = vld [vmem:[#allocation5 + $0xc78] sm:$0xff]
    %v619 = vld [vmem:[#allocation5 + $0xc80] sm:$0xff]
    %v620 = vld [vmem:[#allocation5 + $0xc88] sm:$0xff]
    %v621 = vld [vmem:[#allocation5 + $0xc90] sm:$0xff]
    %v622 = vld [vmem:[#allocation5 + $0xc98] sm:$0xff]
    %v623 = vld [vmem:[#allocation5 + $0xca0] sm:$0xff]
    %v624 = vld [vmem:[#allocation5 + $0xca8] sm:$0xff]
    %v625 = vld [vmem:[#allocation5 + $0xcb0] sm:$0xff]
    %v626 = vld [vmem:[#allocation5 + $0xcb8] sm:$0xff]
    %v627 = vld [vmem:[#allocation5 + $0xcc0] sm:$0xff]
    %v628 = vld [vmem:[#allocation5 + $0xcc8] sm:$0xff]
    %v629 = vld [vmem:[#allocation5 + $0xcd0] sm:$0xff]
    %v630 = vld [vmem:[#allocation5 + $0xcd8] sm:$0xff]
    %v631 = vld [vmem:[#allocation5 + $0xce0] sm:$0xff]
    %v632 = vld [vmem:[#allocation5 + $0xce8] sm:$0xff]
    %v633 = vld [vmem:[#allocation5 + $0xcf0] sm:$0xff]
    %v634 = vld [vmem:[#allocation5 + $0xcf8] sm:$0xff]
    %v635 = vld [vmem:[#allocation5 + $0xd00] sm:$0xff]
    %v636 = vld [vmem:[#allocation5 + $0xd08] sm:$0xff]
    %v637 = vld [vmem:[#allocation5 + $0xd10] sm:$0xff]
    %v638 = vld [vmem:[#allocation5 + $0xd18] sm:$0xff]
    %v639 = vld [vmem:[#allocation5 + $0xd20] sm:$0xff]
    %v640 = vld [vmem:[#allocation5 + $0xd28] sm:$0xff]
    %v641 = vld [vmem:[#allocation5 + $0xd30] sm:$0xff]
    %v642 = vld [vmem:[#allocation5 + $0xd38] sm:$0xff]
    %v643 = vld [vmem:[#allocation5 + $0xd40] sm:$0xff]
    %v644 = vld [vmem:[#allocation5 + $0xd48] sm:$0xff]
    %v645 = vld [vmem:[#allocation5 + $0xd50] sm:$0xff]
    %v646 = vld [vmem:[#allocation5 + $0xd58] sm:$0xff]
    %v647 = vld [vmem:[#allocation5 + $0xd60] sm:$0xff]
    %v648 = vld [vmem:[#allocation5 + $0xd68] sm:$0xff]
    %v649 = vld [vmem:[#allocation5 + $0xd70] sm:$0xff]
    %v650 = vld [vmem:[#allocation5 + $0xd78] sm:$0xff]
    %v651 = vld [vmem:[#allocation5 + $0xd80] sm:$0xff]
    %v652 = vld [vmem:[#allocation5 + $0xd88] sm:$0xff]
    %v653 = vld [vmem:[#allocation5 + $0xd90] sm:$0xff]
    %v654 = vld [vmem:[#allocation5 + $0xd98] sm:$0xff]
    %v655 = vld [vmem:[#allocation5 + $0xda0] sm:$0xff]
    %v656 = vld [vmem:[#allocation5 + $0xda8] sm:$0xff]
    %v657 = vld [vmem:[#allocation5 + $0xdb0] sm:$0xff]
    %v658 = vld [vmem:[#allocation5 + $0xdb8] sm:$0xff]
    %v659 = vld [vmem:[#allocation5 + $0xdc0] sm:$0xff]
    %v660 = vld [vmem:[#allocation5 + $0xdc8] sm:$0xff]
    %v661 = vld [vmem:[#allocation5 + $0xdd0] sm:$0xff]
    %v662 = vld [vmem:[#allocation5 + $0xdd8] sm:$0xff]
    %v663 = vld [vmem:[#allocation5 + $0xde0] sm:$0xff]
    %v664 = vld [vmem:[#allocation5 + $0xde8] sm:$0xff]
    %v665 = vld [vmem:[#allocation5 + $0xdf0] sm:$0xff]
    %v666 = vld [vmem:[#allocation5 + $0xdf8] sm:$0xff]
    %v667 = vld [vmem:[#allocation5 + $0xe00] sm:$0xff]
    %v668 = vld [vmem:[#allocation5 + $0xe08] sm:$0xff]
    %v669 = vld [vmem:[#allocation5 + $0xe10] sm:$0xff]
    %v670 = vld [vmem:[#allocation5 + $0xe18] sm:$0xff]
    %v671 = vld [vmem:[#allocation5 + $0xe20] sm:$0xff]
    %v672 = vld [vmem:[#allocation5 + $0xe28] sm:$0xff]
    %v673 = vld [vmem:[#allocation5 + $0xe30] sm:$0xff]
    %v674 = vld [vmem:[#allocation5 + $0xe38] sm:$0xff]
    %v675 = vld [vmem:[#allocation5 + $0xe40] sm:$0xff]
    %v676 = vld [vmem:[#allocation5 + $0xe48] sm:$0xff]
    %v677 = vld [vmem:[#allocation5 + $0xe50] sm:$0xff]
    %v678 = vld [vmem:[#allocation5 + $0xe58] sm:$0xff]
    %v679 = vld [vmem:[#allocation5 + $0xe60] sm:$0xff]
    %v680 = vld [vmem:[#allocation5 + $0xe68] sm:$0xff]
    %v681 = vld [vmem:[#allocation5 + $0xe70] sm:$0xff]
    %v682 = vld [vmem:[#allocation5 + $0xe78] sm:$0xff]
    %v683 = vld [vmem:[#allocation5 + $0xe80] sm:$0xff]
    %v684 = vld [vmem:[#allocation5 + $0xe88] sm:$0xff]
    %v685 = vld [vmem:[#allocation5 + $0xe90] sm:$0xff]
    %v686 = vld [vmem:[#allocation5 + $0xe98] sm:$0xff]
    %v687 = vld [vmem:[#allocation5 + $0xea0] sm:$0xff]
    %v688 = vld [vmem:[#allocation5 + $0xea8] sm:$0xff]
    %v689 = vld [vmem:[#allocation5 + $0xeb0] sm:$0xff]
    %v690 = vld [vmem:[#allocation5 + $0xeb8] sm:$0xff]
    %v691 = vld [vmem:[#allocation5 + $0xec0] sm:$0xff]
    %v692 = vld [vmem:[#allocation5 + $0xec8] sm:$0xff]
    %v693 = vld [vmem:[#allocation5 + $0xed0] sm:$0xff]
    %v694 = vld [vmem:[#allocation5 + $0xed8] sm:$0xff]
    %v695 = vld [vmem:[#allocation5 + $0xee0] sm:$0xff]
    %v696 = vld [vmem:[#allocation5 + $0xee8] sm:$0xff]
    %v697 = vld [vmem:[#allocation5 + $0xef0] sm:$0xff]
    %v698 = vld [vmem:[#allocation5 + $0xef8] sm:$0xff]
    %v699 = vld [vmem:[#allocation5 + $0xf00] sm:$0xff]
    %v700 = vld [vmem:[#allocation5 + $0xf08] sm:$0xff]
    %v701 = vld [vmem:[#allocation5 + $0xf10] sm:$0xff]
    %v702 = vld [vmem:[#allocation5 + $0xf18] sm:$0xff]
    %v703 = vld [vmem:[#allocation5 + $0xf20] sm:$0xff]
    %v704 = vld [vmem:[#allocation5 + $0xf28] sm:$0xff]
    %v705 = vld [vmem:[#allocation5 + $0xf30] sm:$0xff]
    %v706 = vld [vmem:[#allocation5 + $0xf38] sm:$0xff]
    %v707 = vld [vmem:[#allocation5 + $0xf40] sm:$0xff]
    %v708 = vld [vmem:[#allocation5 + $0xf48] sm:$0xff]
    %v709 = vld [vmem:[#allocation5 + $0xf50] sm:$0xff]
    %v710 = vld [vmem:[#allocation5 + $0xf58] sm:$0xff]
    %v711 = vld [vmem:[#allocation5 + $0xf60] sm:$0xff]
    %v712 = vld [vmem:[#allocation5 + $0xf68] sm:$0xff]
    %v713 = vld [vmem:[#allocation5 + $0xf70] sm:$0xff]
    %v714 = vld [vmem:[#allocation5 + $0xf78] sm:$0xff]
    %v715 = vld [vmem:[#allocation5 + $0xf80] sm:$0xff]
    %v716 = vld [vmem:[#allocation5 + $0xf88] sm:$0xff]
    %v717 = vld [vmem:[#allocation5 + $0xf90] sm:$0xff]
    %v718 = vld [vmem:[#allocation5 + $0xf98] sm:$0xff]
    %v719 = vld [vmem:[#allocation5 + $0xfa0] sm:$0xff]
    %v720 = vld [vmem:[#allocation5 + $0xfa8] sm:$0xff]
    %v721 = vld [vmem:[#allocation5 + $0xfb0] sm:$0xff]
    %v722 = vld [vmem:[#allocation5 + $0xfb8] sm:$0xff]
    %v723 = vld [vmem:[#allocation5 + $0xfc0] sm:$0xff]
    %v724 = vld [vmem:[#allocation5 + $0xfc8] sm:$0xff]
    %v725 = vld [vmem:[#allocation5 + $0xfd0] sm:$0xff]
    %v726 = vld [vmem:[#allocation5 + $0xfd8] sm:$0xff]
    %v727 = vld [vmem:[#allocation5 + $0xfe0] sm:$0xff]
    %v728 = vld [vmem:[#allocation5 + $0xfe8] sm:$0xff]
    %v729 = vld [vmem:[#allocation5 + $0xff0] sm:$0xff]
    %v730 = vld [vmem:[#allocation5 + $0xff8] sm:$0xff]
    %v731 = vld [vmem:[#allocation5 + $0x1000] sm:$0xff]
    %v732 = vld [vmem:[#allocation5 + $0x1008] sm:$0xff]
    %v733 = vld [vmem:[#allocation5 + $0x1010] sm:$0xff]
    %v734 = vld [vmem:[#allocation5 + $0x1018] sm:$0xff]
    %v735 = vld [vmem:[#allocation5 + $0x1020] sm:$0xff]
    %v736 = vld [vmem:[#allocation5 + $0x1028] sm:$0xff]
    %v737 = vld [vmem:[#allocation5 + $0x1030] sm:$0xff]
    %v738 = vld [vmem:[#allocation5 + $0x1038] sm:$0xff]
    %v739 = vld [vmem:[#allocation5 + $0x1040] sm:$0xff]
    %v740 = vld [vmem:[#allocation5 + $0x1048] sm:$0xff]
    %v741 = vld [vmem:[#allocation5 + $0x1050] sm:$0xff]
    %v742 = vld [vmem:[#allocation5 + $0x1058] sm:$0xff]
    %v743 = vld [vmem:[#allocation5 + $0x1060] sm:$0xff]
    %v744 = vld [vmem:[#allocation5 + $0x1068] sm:$0xff]
    %v745 = vld [vmem:[#allocation5 + $0x1070] sm:$0xff]
    %v746 = vld [vmem:[#allocation5 + $0x1078] sm:$0xff]
    %v747 = vld [vmem:[#allocation5 + $0x1080] sm:$0xff]
    %v748 = vld [vmem:[#allocation5 + $0x1088] sm:$0xff]
    %v749 = vld [vmem:[#allocation5 + $0x1090] sm:$0xff]
    %v750 = vld [vmem:[#allocation5 + $0x1098] sm:$0xff]
    %v751 = vld [vmem:[#allocation5 + $0x10a0] sm:$0xff]
    %v752 = vld [vmem:[#allocation5 + $0x10a8] sm:$0xff]
    %v753 = vld [vmem:[#allocation5 + $0x10b0] sm:$0xff]
    %v754 = vld [vmem:[#allocation5 + $0x10b8] sm:$0xff]
    %v755 = vld [vmem:[#allocation5 + $0x10c0] sm:$0xff]
    %v756 = vld [vmem:[#allocation5 + $0x10c8] sm:$0xff]
    %v757 = vld [vmem:[#allocation5 + $0x10d0] sm:$0xff]
    %v758 = vld [vmem:[#allocation5 + $0x10d8] sm:$0xff]
    %v759 = vld [vmem:[#allocation5 + $0x10e0] sm:$0xff]
    %v760 = vld [vmem:[#allocation5 + $0x10e8] sm:$0xff]
    %v761 = vld [vmem:[#allocation5 + $0x10f0] sm:$0xff]
    %v762 = vld [vmem:[#allocation5 + $0x10f8] sm:$0xff]
    %v763 = vld [vmem:[#allocation5 + $0x1100] sm:$0xff]
    %v764 = vld [vmem:[#allocation5 + $0x1108] sm:$0xff]
    %v765 = vld [vmem:[#allocation5 + $0x1110] sm:$0xff]
    %v766 = vld [vmem:[#allocation5 + $0x1118] sm:$0xff]
    %v767 = vld [vmem:[#allocation5 + $0x1120] sm:$0xff]
    %v768 = vld [vmem:[#allocation5 + $0x1128] sm:$0xff]
    %v769 = vld [vmem:[#allocation5 + $0x1130] sm:$0xff]
    %v770 = vld [vmem:[#allocation5 + $0x1138] sm:$0xff]
    %v771 = vld [vmem:[#allocation5 + $0x1140] sm:$0xff]
    %v772 = vld [vmem:[#allocation5 + $0x1148] sm:$0xff]
    %v773 = vld [vmem:[#allocation5 + $0x1150] sm:$0xff]
    %v774 = vld [vmem:[#allocation5 + $0x1158] sm:$0xff]
    %v775 = vld [vmem:[#allocation5 + $0x1160] sm:$0xff]
    %v776 = vld [vmem:[#allocation5 + $0x1168] sm:$0xff]
    %v777 = vld [vmem:[#allocation5 + $0x1170] sm:$0xff]
    %v778 = vld [vmem:[#allocation5 + $0x1178] sm:$0xff]
    %v779 = vld [vmem:[#allocation5 + $0x1180] sm:$0xff]
    %v780 = vld [vmem:[#allocation5 + $0x1188] sm:$0xff]
    %v781 = vld [vmem:[#allocation5 + $0x1190] sm:$0xff]
    %v782 = vld [vmem:[#allocation5 + $0x1198] sm:$0xff]
    %v783 = vld [vmem:[#allocation5 + $0x11a0] sm:$0xff]
    %v784 = vld [vmem:[#allocation5 + $0x11a8] sm:$0xff]
    %v785 = vld [vmem:[#allocation5 + $0x11b0] sm:$0xff]
    %v786 = vld [vmem:[#allocation5 + $0x11b8] sm:$0xff]
    %v787 = vld [vmem:[#allocation5 + $0x11c0] sm:$0xff]
    %v788 = vld [vmem:[#allocation5 + $0x11c8] sm:$0xff]
    %v789 = vld [vmem:[#allocation5 + $0x11d0] sm:$0xff]
    %v790 = vld [vmem:[#allocation5 + $0x11d8] sm:$0xff]
    %v791 = vld [vmem:[#allocation5 + $0x11e0] sm:$0xff]
    %v792 = vld [vmem:[#allocation5 + $0x11e8] sm:$0xff]
    %v793 = vld [vmem:[#allocation5 + $0x11f0] sm:$0xff]
    %v794 = vld [vmem:[#allocation5 + $0x11f8] sm:$0xff]
    %v795 = vld [vmem:[#allocation5 + $0x1200] sm:$0xff]
    %v796 = vld [vmem:[#allocation5 + $0x1208] sm:$0xff]
    %v797 = vld [vmem:[#allocation5 + $0x1210] sm:$0xff]
    %v798 = vld [vmem:[#allocation5 + $0x1218] sm:$0xff]
    %v799 = vld [vmem:[#allocation5 + $0x1220] sm:$0xff]
    %v800 = vld [vmem:[#allocation5 + $0x1228] sm:$0xff]
    %v801 = vld [vmem:[#allocation5 + $0x1230] sm:$0xff]
    %v802 = vld [vmem:[#allocation5 + $0x1238] sm:$0xff]
    %v803 = vld [vmem:[#allocation5 + $0x1240] sm:$0xff]
    %v804 = vld [vmem:[#allocation5 + $0x1248] sm:$0xff]
    %v805 = vld [vmem:[#allocation5 + $0x1250] sm:$0xff]
    %v806 = vld [vmem:[#allocation5 + $0x1258] sm:$0xff]
    %v807 = vld [vmem:[#allocation5 + $0x1260] sm:$0xff]
    %v808 = vld [vmem:[#allocation5 + $0x1268] sm:$0xff]
    %v809 = vld [vmem:[#allocation5 + $0x1270] sm:$0xff]
    %v810 = vld [vmem:[#allocation5 + $0x1278] sm:$0xff]
    %v811 = vld [vmem:[#allocation5 + $0x1280] sm:$0xff]
    %v812 = vld [vmem:[#allocation5 + $0x1288] sm:$0xff]
    %v813 = vld [vmem:[#allocation5 + $0x1290] sm:$0xff]
    %v814 = vld [vmem:[#allocation5 + $0x1298] sm:$0xff]
    %v815 = vld [vmem:[#allocation5 + $0x12a0] sm:$0xff]
    %v816 = vld [vmem:[#allocation5 + $0x12a8] sm:$0xff]
    %v817 = vld [vmem:[#allocation5 + $0x12b0] sm:$0xff]
    %v818 = vld [vmem:[#allocation5 + $0x12b8] sm:$0xff]
    %v819 = vld [vmem:[#allocation5 + $0x12c0] sm:$0xff]
    %v820 = vld [vmem:[#allocation5 + $0x12c8] sm:$0xff]
    %v821 = vld [vmem:[#allocation5 + $0x12d0] sm:$0xff]
    %v822 = vld [vmem:[#allocation5 + $0x12d8] sm:$0xff]
    %v823 = vld [vmem:[#allocation5 + $0x12e0] sm:$0xff]
    %v824 = vld [vmem:[#allocation5 + $0x12e8] sm:$0xff]
    %v825 = vld [vmem:[#allocation5 + $0x12f0] sm:$0xff]
    %v826 = vld [vmem:[#allocation5 + $0x12f8] sm:$0xff]
    %v827 = vld [vmem:[#allocation5 + $0x1300] sm:$0xff]
    %v828 = vld [vmem:[#allocation5 + $0x1308] sm:$0xff]
    %v829 = vld [vmem:[#allocation5 + $0x1310] sm:$0xff]
    %v830 = vld [vmem:[#allocation5 + $0x1318] sm:$0xff]
    %v831 = vld [vmem:[#allocation5 + $0x1320] sm:$0xff]
    %v832 = vld [vmem:[#allocation5 + $0x1328] sm:$0xff]
    %v833 = vld [vmem:[#allocation5 + $0x1330] sm:$0xff]
    %v834 = vld [vmem:[#allocation5 + $0x1338] sm:$0xff]
    %v835 = vld [vmem:[#allocation5 + $0x1340] sm:$0xff]
    %v836 = vld [vmem:[#allocation5 + $0x1348] sm:$0xff]
    %v837 = vld [vmem:[#allocation5 + $0x1350] sm:$0xff]
    %v838 = vld [vmem:[#allocation5 + $0x1358] sm:$0xff]
    %v839 = vld [vmem:[#allocation5 + $0x1360] sm:$0xff]
    %v840 = vld [vmem:[#allocation5 + $0x1368] sm:$0xff]
    %v841 = vld [vmem:[#allocation5 + $0x1370] sm:$0xff]
    %v842 = vld [vmem:[#allocation5 + $0x1378] sm:$0xff]
    %v843 = vld [vmem:[#allocation5 + $0x1380] sm:$0xff]
    %v844 = vld [vmem:[#allocation5 + $0x1388] sm:$0xff]
    %v845 = vld [vmem:[#allocation5 + $0x1390] sm:$0xff]
    %v846 = vld [vmem:[#allocation5 + $0x1398] sm:$0xff]
    %v847 = vld [vmem:[#allocation5 + $0x13a0] sm:$0xff]
    %v848 = vld [vmem:[#allocation5 + $0x13a8] sm:$0xff]
    %v849 = vld [vmem:[#allocation5 + $0x13b0] sm:$0xff]
    %v850 = vld [vmem:[#allocation5 + $0x13b8] sm:$0xff]
    %v851 = vld [vmem:[#allocation5 + $0x13c0] sm:$0xff]
    %v852 = vld [vmem:[#allocation5 + $0x13c8] sm:$0xff]
    %v853 = vld [vmem:[#allocation5 + $0x13d0] sm:$0xff]
    %v854 = vld [vmem:[#allocation5 + $0x13d8] sm:$0xff]
    %v855 = vld [vmem:[#allocation5 + $0x13e0] sm:$0xff]
    %v856 = vld [vmem:[#allocation5 + $0x13e8] sm:$0xff]
    %v857 = vld [vmem:[#allocation5 + $0x13f0] sm:$0xff]
    %v858 = vld [vmem:[#allocation5 + $0x13f8] sm:$0xff]
    %v859 = vld [vmem:[#allocation5 + $0x1400] sm:$0xff]
    %v860 = vld [vmem:[#allocation5 + $0x1408] sm:$0xff]
    %v861 = vld [vmem:[#allocation5 + $0x1410] sm:$0xff]
    %v862 = vld [vmem:[#allocation5 + $0x1418] sm:$0xff]
    %v863 = vld [vmem:[#allocation5 + $0x1420] sm:$0xff]
    %v864 = vld [vmem:[#allocation5 + $0x1428] sm:$0xff]
    %v865 = vld [vmem:[#allocation5 + $0x1430] sm:$0xff]
    %v866 = vld [vmem:[#allocation5 + $0x1438] sm:$0xff]
    %v867 = vld [vmem:[#allocation5 + $0x1440] sm:$0xff]
    %v868 = vld [vmem:[#allocation5 + $0x1448] sm:$0xff]
    %v869 = vld [vmem:[#allocation5 + $0x1450] sm:$0xff]
    %v870 = vld [vmem:[#allocation5 + $0x1458] sm:$0xff]
    %v871 = vld [vmem:[#allocation5 + $0x1460] sm:$0xff]
    %v872 = vld [vmem:[#allocation5 + $0x1468] sm:$0xff]
    %v873 = vld [vmem:[#allocation5 + $0x1470] sm:$0xff]
    %v874 = vld [vmem:[#allocation5 + $0x1478] sm:$0xff]
    %v875 = vld [vmem:[#allocation5 + $0x1480] sm:$0xff]
    %v876 = vld [vmem:[#allocation5 + $0x1488] sm:$0xff]
    %v877 = vld [vmem:[#allocation5 + $0x1490] sm:$0xff]
    %v878 = vld [vmem:[#allocation5 + $0x1498] sm:$0xff]
    %v879 = vld [vmem:[#allocation5 + $0x14a0] sm:$0xff]
    %v880 = vld [vmem:[#allocation5 + $0x14a8] sm:$0xff]
    %v881 = vld [vmem:[#allocation5 + $0x14b0] sm:$0xff]
    %v882 = vld [vmem:[#allocation5 + $0x14b8] sm:$0xff]
    %v883 = vld [vmem:[#allocation5 + $0x14c0] sm:$0xff]
    %v884 = vld [vmem:[#allocation5 + $0x14c8] sm:$0xff]
    %v885 = vld [vmem:[#allocation5 + $0x14d0] sm:$0xff]
    %v886 = vld [vmem:[#allocation5 + $0x14d8] sm:$0xff]
    %v887 = vld [vmem:[#allocation5 + $0x14e0] sm:$0xff]
    %v888 = vld [vmem:[#allocation5 + $0x14e8] sm:$0xff]
    %v889 = vld [vmem:[#allocation5 + $0x14f0] sm:$0xff]
    %v890 = vld [vmem:[#allocation5 + $0x14f8] sm:$0xff]
    %v891 = vld [vmem:[#allocation5 + $0x1500] sm:$0xff]
    %v892 = vld [vmem:[#allocation5 + $0x1508] sm:$0xff]
    %v893 = vld [vmem:[#allocation5 + $0x1510] sm:$0xff]
    %v894 = vld [vmem:[#allocation5 + $0x1518] sm:$0xff]
    %v895 = vld [vmem:[#allocation5 + $0x1520] sm:$0xff]
    %v896 = vld [vmem:[#allocation5 + $0x1528] sm:$0xff]
    %v897 = vld [vmem:[#allocation5 + $0x1530] sm:$0xff]
    %v898 = vld [vmem:[#allocation5 + $0x1538] sm:$0xff]
    %v899 = vld [vmem:[#allocation5 + $0x1540] sm:$0xff]
    %v900 = vld [vmem:[#allocation5 + $0x1548] sm:$0xff]
    %v901 = vld [vmem:[#allocation5 + $0x1550] sm:$0xff]
    %v902 = vld [vmem:[#allocation5 + $0x1558] sm:$0xff]
    %v903 = vld [vmem:[#allocation5 + $0x1560] sm:$0xff]
    %v904 = vld [vmem:[#allocation5 + $0x1568] sm:$0xff]
    %v905 = vld [vmem:[#allocation5 + $0x1570] sm:$0xff]
    %v906 = vld [vmem:[#allocation5 + $0x1578] sm:$0xff]
    %v907 = vld [vmem:[#allocation5 + $0x1580] sm:$0xff]
    %v908 = vld [vmem:[#allocation5 + $0x1588] sm:$0xff]
    %v909 = vld [vmem:[#allocation5 + $0x1590] sm:$0xff]
    %v910 = vld [vmem:[#allocation5 + $0x1598] sm:$0xff]
    %v911 = vld [vmem:[#allocation5 + $0x15a0] sm:$0xff]
    %v912 = vld [vmem:[#allocation5 + $0x15a8] sm:$0xff]
    %v913 = vld [vmem:[#allocation5 + $0x15b0] sm:$0xff]
    %v914 = vld [vmem:[#allocation5 + $0x15b8] sm:$0xff]
    %v915 = vld [vmem:[#allocation5 + $0x15c0] sm:$0xff]
    %v916 = vld [vmem:[#allocation5 + $0x15c8] sm:$0xff]
    %v917 = vld [vmem:[#allocation5 + $0x15d0] sm:$0xff]
    %v918 = vld [vmem:[#allocation5 + $0x15d8] sm:$0xff]
    %v919 = vld [vmem:[#allocation5 + $0x15e0] sm:$0xff]
    %v920 = vld [vmem:[#allocation5 + $0x15e8] sm:$0xff]
    %v921 = vld [vmem:[#allocation5 + $0x15f0] sm:$0xff]
    %v922 = vld [vmem:[#allocation5 + $0x15f8] sm:$0xff]
    %v923 = vld [vmem:[#allocation5 + $0x1600] sm:$0xff]
    %v924 = vld [vmem:[#allocation5 + $0x1608] sm:$0xff]
    %v925 = vld [vmem:[#allocation5 + $0x1610] sm:$0xff]
    %v926 = vld [vmem:[#allocation5 + $0x1618] sm:$0xff]
    %v927 = vld [vmem:[#allocation5 + $0x1620] sm:$0xff]
    %v928 = vld [vmem:[#allocation5 + $0x1628] sm:$0xff]
    %v929 = vld [vmem:[#allocation5 + $0x1630] sm:$0xff]
    %v930 = vld [vmem:[#allocation5 + $0x1638] sm:$0xff]
    %v931 = vld [vmem:[#allocation5 + $0x1640] sm:$0xff]
    %v932 = vld [vmem:[#allocation5 + $0x1648] sm:$0xff]
    %v933 = vld [vmem:[#allocation5 + $0x1650] sm:$0xff]
    %v934 = vld [vmem:[#allocation5 + $0x1658] sm:$0xff]
    %v935 = vld [vmem:[#allocation5 + $0x1660] sm:$0xff]
    %v936 = vld [vmem:[#allocation5 + $0x1668] sm:$0xff]
    %v937 = vld [vmem:[#allocation5 + $0x1670] sm:$0xff]
    %v938 = vld [vmem:[#allocation5 + $0x1678] sm:$0xff]
    %v939 = vld [vmem:[#allocation5 + $0x1680] sm:$0xff]
    %v940 = vld [vmem:[#allocation5 + $0x1688] sm:$0xff]
    %v941 = vld [vmem:[#allocation5 + $0x1690] sm:$0xff]
    %v942 = vld [vmem:[#allocation5 + $0x1698] sm:$0xff]
    %v943 = vld [vmem:[#allocation5 + $0x16a0] sm:$0xff]
    %v944 = vld [vmem:[#allocation5 + $0x16a8] sm:$0xff]
    %v945 = vld [vmem:[#allocation5 + $0x16b0] sm:$0xff]
    %v946 = vld [vmem:[#allocation5 + $0x16b8] sm:$0xff]
    %v947 = vld [vmem:[#allocation5 + $0x16c0] sm:$0xff]
    %v948 = vld [vmem:[#allocation5 + $0x16c8] sm:$0xff]
    %v949 = vld [vmem:[#allocation5 + $0x16d0] sm:$0xff]
    %v950 = vld [vmem:[#allocation5 + $0x16d8] sm:$0xff]
    %v951 = vld [vmem:[#allocation5 + $0x16e0] sm:$0xff]
    %v952 = vld [vmem:[#allocation5 + $0x16e8] sm:$0xff]
    %v953 = vld [vmem:[#allocation5 + $0x16f0] sm:$0xff]
    %v954 = vld [vmem:[#allocation5 + $0x16f8] sm:$0xff]
    %v955 = vld [vmem:[#allocation5 + $0x1700] sm:$0xff]
    %v956 = vld [vmem:[#allocation5 + $0x1708] sm:$0xff]
    %v957 = vld [vmem:[#allocation5 + $0x1710] sm:$0xff]
    %v958 = vld [vmem:[#allocation5 + $0x1718] sm:$0xff]
    %v959 = vld [vmem:[#allocation5 + $0x1720] sm:$0xff]
    %v960 = vld [vmem:[#allocation5 + $0x1728] sm:$0xff]
    %v961 = vld [vmem:[#allocation5 + $0x1730] sm:$0xff]
    %v962 = vld [vmem:[#allocation5 + $0x1738] sm:$0xff]
    %v963 = vld [vmem:[#allocation5 + $0x1740] sm:$0xff]
    %v964 = vld [vmem:[#allocation5 + $0x1748] sm:$0xff]
    %v965 = vld [vmem:[#allocation5 + $0x1750] sm:$0xff]
    %v966 = vld [vmem:[#allocation5 + $0x1758] sm:$0xff]
    %v967 = vld [vmem:[#allocation5 + $0x1760] sm:$0xff]
    %v968 = vld [vmem:[#allocation5 + $0x1768] sm:$0xff]
    %v969 = vld [vmem:[#allocation5 + $0x1770] sm:$0xff]
    %v970 = vld [vmem:[#allocation5 + $0x1778] sm:$0xff]
    %v971 = vld [vmem:[#allocation5 + $0x1780] sm:$0xff]
    %v972 = vld [vmem:[#allocation5 + $0x1788] sm:$0xff]
    %v973 = vld [vmem:[#allocation5 + $0x1790] sm:$0xff]
    %v974 = vld [vmem:[#allocation5 + $0x1798] sm:$0xff]
    %v975 = vld [vmem:[#allocation5 + $0x17a0] sm:$0xff]
    %v976 = vld [vmem:[#allocation5 + $0x17a8] sm:$0xff]
    %v977 = vld [vmem:[#allocation5 + $0x17b0] sm:$0xff]
    %v978 = vld [vmem:[#allocation5 + $0x17b8] sm:$0xff]
    %v979 = vld [vmem:[#allocation5 + $0x17c0] sm:$0xff]
    %v980 = vld [vmem:[#allocation5 + $0x17c8] sm:$0xff]
    %v981 = vld [vmem:[#allocation5 + $0x17d0] sm:$0xff]
    %v982 = vld [vmem:[#allocation5 + $0x17d8] sm:$0xff]
    %v983 = vld [vmem:[#allocation5 + $0x17e0] sm:$0xff]
    %v984 = vld [vmem:[#allocation5 + $0x17e8] sm:$0xff]
    %v985 = vld [vmem:[#allocation5 + $0x17f0] sm:$0xff]
    %v986 = vld [vmem:[#allocation5 + $0x17f8] sm:$0xff]
    %v987 = vld [vmem:[#allocation5 + $0x1800] sm:$0xff]
    %v988 = vld [vmem:[#allocation5 + $0x1808] sm:$0xff]
    %v989 = vld [vmem:[#allocation5 + $0x1810] sm:$0xff]
    %v990 = vld [vmem:[#allocation5 + $0x1818] sm:$0xff]
    %v991 = vld [vmem:[#allocation5 + $0x1820] sm:$0xff]
    %v992 = vld [vmem:[#allocation5 + $0x1828] sm:$0xff]
    %v993 = vld [vmem:[#allocation5 + $0x1830] sm:$0xff]
    %v994 = vld [vmem:[#allocation5 + $0x1838] sm:$0xff]
    %v995 = vld [vmem:[#allocation5 + $0x1840] sm:$0xff]
    %v996 = vld [vmem:[#allocation5 + $0x1848] sm:$0xff]
    %v997 = vld [vmem:[#allocation5 + $0x1850] sm:$0xff]
    %v998 = vld [vmem:[#allocation5 + $0x1858] sm:$0xff]
    %v999 = vld [vmem:[#allocation5 + $0x1860] sm:$0xff]
    %v1000 = vld [vmem:[#allocation5 + $0x1868] sm:$0xff]
    %v1001 = vld [vmem:[#allocation5 + $0x1870] sm:$0xff]
    %v1002 = vld [vmem:[#allocation5 + $0x1878] sm:$0xff]
    %v1003 = vld [vmem:[#allocation5 + $0x1880] sm:$0xff]
    %v1004 = vld [vmem:[#allocation5 + $0x1888] sm:$0xff]
    %v1005 = vld [vmem:[#allocation5 + $0x1890] sm:$0xff]
    %v1006 = vld [vmem:[#allocation5 + $0x1898] sm:$0xff]
    %v1007 = vld [vmem:[#allocation5 + $0x18a0] sm:$0xff]
    %v1008 = vld [vmem:[#allocation5 + $0x18a8] sm:$0xff]
    %v1009 = vld [vmem:[#allocation5 + $0x18b0] sm:$0xff]
    %v1010 = vld [vmem:[#allocation5 + $0x18b8] sm:$0xff]
    %v1011 = vld [vmem:[#allocation5 + $0x18c0] sm:$0xff]
    %v1012 = vld [vmem:[#allocation5 + $0x18c8] sm:$0xff]
    %v1013 = vld [vmem:[#allocation5 + $0x18d0] sm:$0xff]
    %v1014 = vld [vmem:[#allocation5 + $0x18d8] sm:$0xff]
    %v1015 = vld [vmem:[#allocation5 + $0x18e0] sm:$0xff]
    %v1016 = vld [vmem:[#allocation5 + $0x18e8] sm:$0xff]
    %v1017 = vld [vmem:[#allocation5 + $0x18f0] sm:$0xff]
    %v1018 = vld [vmem:[#allocation5 + $0x18f8] sm:$0xff]
    %v1019 = vld [vmem:[#allocation5 + $0x1900] sm:$0xff]
    %v1020 = vld [vmem:[#allocation5 + $0x1908] sm:$0xff]
    %v1021 = vld [vmem:[#allocation5 + $0x1910] sm:$0xff]
    %v1022 = vld [vmem:[#allocation5 + $0x1918] sm:$0xff]
    %v1023 = vld [vmem:[#allocation5 + $0x1920] sm:$0xff]
    %v1024 = vld [vmem:[#allocation5 + $0x1928] sm:$0xff]
    %v1025 = vld [vmem:[#allocation5 + $0x1930] sm:$0xff]
    %v1026 = vld [vmem:[#allocation5 + $0x1938] sm:$0xff]
    %v1027 = vld [vmem:[#allocation5 + $0x1940] sm:$0xff]
    %v1028 = vld [vmem:[#allocation5 + $0x1948] sm:$0xff]
    %v1029 = vld [vmem:[#allocation5 + $0x1950] sm:$0xff]
    %v1030 = vld [vmem:[#allocation5 + $0x1958] sm:$0xff]
    %v1031 = vld [vmem:[#allocation5 + $0x1960] sm:$0xff]
    %v1032 = vld [vmem:[#allocation5 + $0x1968] sm:$0xff]
    %v1033 = vld [vmem:[#allocation5 + $0x1970] sm:$0xff]
    %v1034 = vld [vmem:[#allocation5 + $0x1978] sm:$0xff]
    %v1035 = vld [vmem:[#allocation5 + $0x1980] sm:$0xff]
    %v1036 = vld [vmem:[#allocation5 + $0x1988] sm:$0xff]
    %v1037 = vld [vmem:[#allocation5 + $0x1990] sm:$0xff]
    %v1038 = vld [vmem:[#allocation5 + $0x1998] sm:$0xff]
    %v1039 = vld [vmem:[#allocation5 + $0x19a0] sm:$0xff]
    %v1040 = vld [vmem:[#allocation5 + $0x19a8] sm:$0xff]
    %v1041 = vld [vmem:[#allocation5 + $0x19b0] sm:$0xff]
    %v1042 = vld [vmem:[#allocation5 + $0x19b8] sm:$0xff]
    %v1043 = vld [vmem:[#allocation5 + $0x19c0] sm:$0xff]
    %v1044 = vld [vmem:[#allocation5 + $0x19c8] sm:$0xff]
    %v1045 = vld [vmem:[#allocation5 + $0x19d0] sm:$0xff]
    %v1046 = vld [vmem:[#allocation5 + $0x19d8] sm:$0xff]
    %v1047 = vld [vmem:[#allocation5 + $0x19e0] sm:$0xff]
    %v1048 = vld [vmem:[#allocation5 + $0x19e8] sm:$0xff]
    %v1049 = vld [vmem:[#allocation5 + $0x19f0] sm:$0xff]
    %v1050 = vld [vmem:[#allocation5 + $0x19f8] sm:$0xff]
    %v1051 = vld [vmem:[#allocation5 + $0x1a00] sm:$0xff]
    %v1052 = vld [vmem:[#allocation5 + $0x1a08] sm:$0xff]
    %v1053 = vld [vmem:[#allocation5 + $0x1a10] sm:$0xff]
    %v1054 = vld [vmem:[#allocation5 + $0x1a18] sm:$0xff]
    %v1055 = vld [vmem:[#allocation5 + $0x1a20] sm:$0xff]
    %v1056 = vld [vmem:[#allocation5 + $0x1a28] sm:$0xff]
    %v1057 = vld [vmem:[#allocation5 + $0x1a30] sm:$0xff]
    %v1058 = vld [vmem:[#allocation5 + $0x1a38] sm:$0xff]
    %v1059 = vld [vmem:[#allocation5 + $0x1a40] sm:$0xff]
    %v1060 = vld [vmem:[#allocation5 + $0x1a48] sm:$0xff]
    %v1061 = vld [vmem:[#allocation5 + $0x1a50] sm:$0xff]
    %v1062 = vld [vmem:[#allocation5 + $0x1a58] sm:$0xff]
    %v1063 = vld [vmem:[#allocation5 + $0x1a60] sm:$0xff]
    %v1064 = vld [vmem:[#allocation5 + $0x1a68] sm:$0xff]
    %v1065 = vld [vmem:[#allocation5 + $0x1a70] sm:$0xff]
    %v1066 = vld [vmem:[#allocation5 + $0x1a78] sm:$0xff]
    %v1067 = vld [vmem:[#allocation5 + $0x1a80] sm:$0xff]
    %v1068 = vld [vmem:[#allocation5 + $0x1a88] sm:$0xff]
    %v1069 = vld [vmem:[#allocation5 + $0x1a90] sm:$0xff]
    %v1070 = vld [vmem:[#allocation5 + $0x1a98] sm:$0xff]
    %v1071 = vld [vmem:[#allocation5 + $0x1aa0] sm:$0xff]
    %v1072 = vld [vmem:[#allocation5 + $0x1aa8] sm:$0xff]
    %v1073 = vld [vmem:[#allocation5 + $0x1ab0] sm:$0xff]
    %v1074 = vld [vmem:[#allocation5 + $0x1ab8] sm:$0xff]
    %v1075 = vld [vmem:[#allocation5 + $0x1ac0] sm:$0xff]
    %v1076 = vld [vmem:[#allocation5 + $0x1ac8] sm:$0xff]
    %v1077 = vld [vmem:[#allocation5 + $0x1ad0] sm:$0xff]
    %v1078 = vld [vmem:[#allocation5 + $0x1ad8] sm:$0xff]
    %v1079 = vld [vmem:[#allocation5 + $0x1ae0] sm:$0xff]
    %v1080 = vld [vmem:[#allocation5 + $0x1ae8] sm:$0xff]
    %v1081 = vld [vmem:[#allocation5 + $0x1af0] sm:$0xff]
    %v1082 = vld [vmem:[#allocation5 + $0x1af8] sm:$0xff]
    %v1083 = vld [vmem:[#allocation5 + $0x1b00] sm:$0xff]
    %v1084 = vld [vmem:[#allocation5 + $0x1b08] sm:$0xff]
    %v1085 = vld [vmem:[#allocation5 + $0x1b10] sm:$0xff]
    %v1086 = vld [vmem:[#allocation5 + $0x1b18] sm:$0xff]
    %v1087 = vld [vmem:[#allocation5 + $0x1b20] sm:$0xff]
    %v1088 = vld [vmem:[#allocation5 + $0x1b28] sm:$0xff]
    %v1089 = vld [vmem:[#allocation5 + $0x1b30] sm:$0xff]
    %v1090 = vld [vmem:[#allocation5 + $0x1b38] sm:$0xff]
    %v1091 = vld [vmem:[#allocation5 + $0x1b40] sm:$0xff]
    %v1092 = vld [vmem:[#allocation5 + $0x1b48] sm:$0xff]
    %v1093 = vld [vmem:[#allocation5 + $0x1b50] sm:$0xff]
    %v1094 = vld [vmem:[#allocation5 + $0x1b58] sm:$0xff]
    %v1095 = vld [vmem:[#allocation5 + $0x1b60] sm:$0xff]
    %v1096 = vld [vmem:[#allocation5 + $0x1b68] sm:$0xff]
    %v1097 = vld [vmem:[#allocation5 + $0x1b70] sm:$0xff]
    %v1098 = vld [vmem:[#allocation5 + $0x1b78] sm:$0xff]
    %v1099 = vld [vmem:[#allocation5 + $0x1b80] sm:$0xff]
    %v1100 = vld [vmem:[#allocation5 + $0x1b88] sm:$0xff]
    %v1101 = vld [vmem:[#allocation5 + $0x1b90] sm:$0xff]
    %v1102 = vld [vmem:[#allocation5 + $0x1b98] sm:$0xff]
    %v1103 = vld [vmem:[#allocation5 + $0x1ba0] sm:$0xff]
    %v1104 = vld [vmem:[#allocation5 + $0x1ba8] sm:$0xff]
    %v1105 = vld [vmem:[#allocation5 + $0x1bb0] sm:$0xff]
    %v1106 = vld [vmem:[#allocation5 + $0x1bb8] sm:$0xff]
    %v1107 = vld [vmem:[#allocation5 + $0x1bc0] sm:$0xff]
    %v1108 = vld [vmem:[#allocation5 + $0x1bc8] sm:$0xff]
    %v1109 = vld [vmem:[#allocation5 + $0x1bd0] sm:$0xff]
    %v1110 = vld [vmem:[#allocation5 + $0x1bd8] sm:$0xff]
    %v1111 = vld [vmem:[#allocation5 + $0x1be0] sm:$0xff]
    %v1112 = vld [vmem:[#allocation5 + $0x1be8] sm:$0xff]
    %v1113 = vld [vmem:[#allocation5 + $0x1bf0] sm:$0xff]
    %v1114 = vld [vmem:[#allocation5 + $0x1bf8] sm:$0xff]
    %v1115 = vld [vmem:[#allocation5 + $0x1c00] sm:$0xff]
    %v1116 = vld [vmem:[#allocation5 + $0x1c08] sm:$0xff]
    %v1117 = vld [vmem:[#allocation5 + $0x1c10] sm:$0xff]
    %v1118 = vld [vmem:[#allocation5 + $0x1c18] sm:$0xff]
    %v1119 = vld [vmem:[#allocation5 + $0x1c20] sm:$0xff]
    %v1120 = vld [vmem:[#allocation5 + $0x1c28] sm:$0xff]
    %v1121 = vld [vmem:[#allocation5 + $0x1c30] sm:$0xff]
    %v1122 = vld [vmem:[#allocation5 + $0x1c38] sm:$0xff]
    %v1123 = vld [vmem:[#allocation5 + $0x1c40] sm:$0xff]
    %v1124 = vld [vmem:[#allocation5 + $0x1c48] sm:$0xff]
    %v1125 = vld [vmem:[#allocation5 + $0x1c50] sm:$0xff]
    %v1126 = vld [vmem:[#allocation5 + $0x1c58] sm:$0xff]
    %v1127 = vld [vmem:[#allocation5 + $0x1c60] sm:$0xff]
    %v1128 = vld [vmem:[#allocation5 + $0x1c68] sm:$0xff]
    %v1129 = vld [vmem:[#allocation5 + $0x1c70] sm:$0xff]
    %v1130 = vld [vmem:[#allocation5 + $0x1c78] sm:$0xff]
    %v1131 = vld [vmem:[#allocation5 + $0x1c80] sm:$0xff]
    %v1132 = vld [vmem:[#allocation5 + $0x1c88] sm:$0xff]
    %v1133 = vld [vmem:[#allocation5 + $0x1c90] sm:$0xff]
    %v1134 = vld [vmem:[#allocation5 + $0x1c98] sm:$0xff]
    %v1135 = vld [vmem:[#allocation5 + $0x1ca0] sm:$0xff]
    %v1136 = vld [vmem:[#allocation5 + $0x1ca8] sm:$0xff]
    %v1137 = vld [vmem:[#allocation5 + $0x1cb0] sm:$0xff]
    %v1138 = vld [vmem:[#allocation5 + $0x1cb8] sm:$0xff]
    %v1139 = vld [vmem:[#allocation5 + $0x1cc0] sm:$0xff]
    %v1140 = vld [vmem:[#allocation5 + $0x1cc8] sm:$0xff]
    %v1141 = vld [vmem:[#allocation5 + $0x1cd0] sm:$0xff]
    %v1142 = vld [vmem:[#allocation5 + $0x1cd8] sm:$0xff]
    %v1143 = vld [vmem:[#allocation5 + $0x1ce0] sm:$0xff]
    %v1144 = vld [vmem:[#allocation5 + $0x1ce8] sm:$0xff]
    %v1145 = vld [vmem:[#allocation5 + $0x1cf0] sm:$0xff]
    %v1146 = vld [vmem:[#allocation5 + $0x1cf8] sm:$0xff]
    %v1147 = vld [vmem:[#allocation5 + $0x1d00] sm:$0xff]
    %v1148 = vld [vmem:[#allocation5 + $0x1d08] sm:$0xff]
    %v1149 = vld [vmem:[#allocation5 + $0x1d10] sm:$0xff]
    %v1150 = vld [vmem:[#allocation5 + $0x1d18] sm:$0xff]
    %v1151 = vld [vmem:[#allocation5 + $0x1d20] sm:$0xff]
    %v1152 = vld [vmem:[#allocation5 + $0x1d28] sm:$0xff]
    %v1153 = vld [vmem:[#allocation5 + $0x1d30] sm:$0xff]
    %v1154 = vld [vmem:[#allocation5 + $0x1d38] sm:$0xff]
    %v1155 = vld [vmem:[#allocation5 + $0x1d40] sm:$0xff]
    %v1156 = vld [vmem:[#allocation5 + $0x1d48] sm:$0xff]
    %v1157 = vld [vmem:[#allocation5 + $0x1d50] sm:$0xff]
    %v1158 = vld [vmem:[#allocation5 + $0x1d58] sm:$0xff]
    %v1159 = vld [vmem:[#allocation5 + $0x1d60] sm:$0xff]
    %v1160 = vld [vmem:[#allocation5 + $0x1d68] sm:$0xff]
    %v1161 = vld [vmem:[#allocation5 + $0x1d70] sm:$0xff]
    %v1162 = vld [vmem:[#allocation5 + $0x1d78] sm:$0xff]
    %v1163 = vld [vmem:[#allocation5 + $0x1d80] sm:$0xff]
    %v1164 = vld [vmem:[#allocation5 + $0x1d88] sm:$0xff]
    %v1165 = vld [vmem:[#allocation5 + $0x1d90] sm:$0xff]
    %v1166 = vld [vmem:[#allocation5 + $0x1d98] sm:$0xff]
    %v1167 = vld [vmem:[#allocation5 + $0x1da0] sm:$0xff]
    %v1168 = vld [vmem:[#allocation5 + $0x1da8] sm:$0xff]
    %v1169 = vld [vmem:[#allocation5 + $0x1db0] sm:$0xff]
    %v1170 = vld [vmem:[#allocation5 + $0x1db8] sm:$0xff]
    %v1171 = vld [vmem:[#allocation5 + $0x1dc0] sm:$0xff]
    %v1172 = vld [vmem:[#allocation5 + $0x1dc8] sm:$0xff]
    %v1173 = vld [vmem:[#allocation5 + $0x1dd0] sm:$0xff]
    %v1174 = vld [vmem:[#allocation5 + $0x1dd8] sm:$0xff]
    %v1175 = vld [vmem:[#allocation5 + $0x1de0] sm:$0xff]
    %v1176 = vld [vmem:[#allocation5 + $0x1de8] sm:$0xff]
    %v1177 = vld [vmem:[#allocation5 + $0x1df0] sm:$0xff]
    %v1178 = vld [vmem:[#allocation5 + $0x1df8] sm:$0xff]
    %v1179 = vld [vmem:[#allocation5 + $0x1e00] sm:$0xff]
    %v1180 = vld [vmem:[#allocation5 + $0x1e08] sm:$0xff]
    %v1181 = vld [vmem:[#allocation5 + $0x1e10] sm:$0xff]
    %v1182 = vld [vmem:[#allocation5 + $0x1e18] sm:$0xff]
    %v1183 = vld [vmem:[#allocation5 + $0x1e20] sm:$0xff]
    %v1184 = vld [vmem:[#allocation5 + $0x1e28] sm:$0xff]
    %v1185 = vld [vmem:[#allocation5 + $0x1e30] sm:$0xff]
    %v1186 = vld [vmem:[#allocation5 + $0x1e38] sm:$0xff]
    %v1187 = vld [vmem:[#allocation5 + $0x1e40] sm:$0xff]
    %v1188 = vld [vmem:[#allocation5 + $0x1e48] sm:$0xff]
    %v1189 = vld [vmem:[#allocation5 + $0x1e50] sm:$0xff]
    %v1190 = vld [vmem:[#allocation5 + $0x1e58] sm:$0xff]
    %v1191 = vld [vmem:[#allocation5 + $0x1e60] sm:$0xff]
    %v1192 = vld [vmem:[#allocation5 + $0x1e68] sm:$0xff]
    %v1193 = vld [vmem:[#allocation5 + $0x1e70] sm:$0xff]
    %v1194 = vld [vmem:[#allocation5 + $0x1e78] sm:$0xff]
    %v1195 = vld [vmem:[#allocation5 + $0x1e80] sm:$0xff]
    %v1196 = vld [vmem:[#allocation5 + $0x1e88] sm:$0xff]
    %v1197 = vld [vmem:[#allocation5 + $0x1e90] sm:$0xff]
    %v1198 = vld [vmem:[#allocation5 + $0x1e98] sm:$0xff]
    %v1199 = vld [vmem:[#allocation5 + $0x1ea0] sm:$0xff]
    %v1200 = vld [vmem:[#allocation5 + $0x1ea8] sm:$0xff]
    %v1201 = vld [vmem:[#allocation5 + $0x1eb0] sm:$0xff]
    %v1202 = vld [vmem:[#allocation5 + $0x1eb8] sm:$0xff]
    %v1203 = vld [vmem:[#allocation5 + $0x1ec0] sm:$0xff]
    %v1204 = vld [vmem:[#allocation5 + $0x1ec8] sm:$0xff]
    %v1205 = vld [vmem:[#allocation5 + $0x1ed0] sm:$0xff]
    %v1206 = vld [vmem:[#allocation5 + $0x1ed8] sm:$0xff]
    %v1207 = vld [vmem:[#allocation5 + $0x1ee0] sm:$0xff]
    %v1208 = vld [vmem:[#allocation5 + $0x1ee8] sm:$0xff]
    %v1209 = vld [vmem:[#allocation5 + $0x1ef0] sm:$0xff]
    %v1210 = vld [vmem:[#allocation5 + $0x1ef8] sm:$0xff]
    %v1211 = vld [vmem:[#allocation5 + $0x1f00] sm:$0xff]
    %v1212 = vld [vmem:[#allocation5 + $0x1f08] sm:$0xff]
    %v1213 = vld [vmem:[#allocation5 + $0x1f10] sm:$0xff]
    %v1214 = vld [vmem:[#allocation5 + $0x1f18] sm:$0xff]
    %v1215 = vld [vmem:[#allocation5 + $0x1f20] sm:$0xff]
    %v1216 = vld [vmem:[#allocation5 + $0x1f28] sm:$0xff]
    %v1217 = vld [vmem:[#allocation5 + $0x1f30] sm:$0xff]
    %v1218 = vld [vmem:[#allocation5 + $0x1f38] sm:$0xff]
    %v1219 = vld [vmem:[#allocation5 + $0x1f40] sm:$0xff]
    %v1220 = vld [vmem:[#allocation5 + $0x1f48] sm:$0xff]
    %v1221 = vld [vmem:[#allocation5 + $0x1f50] sm:$0xff]
    %v1222 = vld [vmem:[#allocation5 + $0x1f58] sm:$0xff]
    %v1223 = vld [vmem:[#allocation5 + $0x1f60] sm:$0xff]
    %v1224 = vld [vmem:[#allocation5 + $0x1f68] sm:$0xff]
    %v1225 = vld [vmem:[#allocation5 + $0x1f70] sm:$0xff]
    %v1226 = vld [vmem:[#allocation5 + $0x1f78] sm:$0xff]
    %v1227 = vld [vmem:[#allocation5 + $0x1f80] sm:$0xff]
    %v1228 = vld [vmem:[#allocation5 + $0x1f88] sm:$0xff]
    %v1229 = vld [vmem:[#allocation5 + $0x1f90] sm:$0xff]
    %v1230 = vld [vmem:[#allocation5 + $0x1f98] sm:$0xff]
    %v1231 = vld [vmem:[#allocation5 + $0x1fa0] sm:$0xff]
    %v1232 = vld [vmem:[#allocation5 + $0x1fa8] sm:$0xff]
    %v1233 = vld [vmem:[#allocation5 + $0x1fb0] sm:$0xff]
    %v1234 = vld [vmem:[#allocation5 + $0x1fb8] sm:$0xff]
    %v1235 = vld [vmem:[#allocation5 + $0x1fc0] sm:$0xff]
    %v1236 = vld [vmem:[#allocation5 + $0x1fc8] sm:$0xff]
    %v1237 = vld [vmem:[#allocation5 + $0x1fd0] sm:$0xff]
    %v1238 = vld [vmem:[#allocation5 + $0x1fd8] sm:$0xff]
    %v1239 = vld [vmem:[#allocation5 + $0x1fe0] sm:$0xff]
    %v1240 = vld [vmem:[#allocation5 + $0x1fe8] sm:$0xff]
    %v1241 = vld [vmem:[#allocation5 + $0x1ff0] sm:$0xff]
    %v1242 = vld [vmem:[#allocation5 + $0x1ff8] sm:$0xff]
    %v1243 = vld [vmem:[#allocation5 + $0x2000] sm:$0xff]
    %v1244 = vld [vmem:[#allocation5 + $0x2008] sm:$0xff]
    %v1245 = vld [vmem:[#allocation5 + $0x2010] sm:$0xff]
    %v1246 = vld [vmem:[#allocation5 + $0x2018] sm:$0xff]
    %v1247 = vld [vmem:[#allocation5 + $0x2020] sm:$0xff]
    %v1248 = vld [vmem:[#allocation5 + $0x2028] sm:$0xff]
    %v1249 = vld [vmem:[#allocation5 + $0x2030] sm:$0xff]
    %v1250 = vld [vmem:[#allocation5 + $0x2038] sm:$0xff]
    %v1251 = vld [vmem:[#allocation5 + $0x2040] sm:$0xff]
    %v1252 = vld [vmem:[#allocation5 + $0x2048] sm:$0xff]
    %v1253 = vld [vmem:[#allocation5 + $0x2050] sm:$0xff]
    %v1254 = vld [vmem:[#allocation5 + $0x2058] sm:$0xff]
    %v1255 = vld [vmem:[#allocation5 + $0x2060] sm:$0xff]
    %v1256 = vld [vmem:[#allocation5 + $0x2068] sm:$0xff]
    %v1257 = vld [vmem:[#allocation5 + $0x2070] sm:$0xff]
    %v1258 = vld [vmem:[#allocation5 + $0x2078] sm:$0xff]
    %v1259 = vld [vmem:[#allocation5 + $0x2080] sm:$0xff]
    %v1260 = vld [vmem:[#allocation5 + $0x2088] sm:$0xff]
    %v1261 = vld [vmem:[#allocation5 + $0x2090] sm:$0xff]
    %v1262 = vld [vmem:[#allocation5 + $0x2098] sm:$0xff]
    %v1263 = vld [vmem:[#allocation5 + $0x20a0] sm:$0xff]
    %v1264 = vld [vmem:[#allocation5 + $0x20a8] sm:$0xff]
    %v1265 = vld [vmem:[#allocation5 + $0x20b0] sm:$0xff]
    %v1266 = vld [vmem:[#allocation5 + $0x20b8] sm:$0xff]
    %v1267 = vld [vmem:[#allocation5 + $0x20c0] sm:$0xff]
    %v1268 = vld [vmem:[#allocation5 + $0x20c8] sm:$0xff]
    %v1269 = vld [vmem:[#allocation5 + $0x20d0] sm:$0xff]
    %v1270 = vld [vmem:[#allocation5 + $0x20d8] sm:$0xff]
    %v1271 = vld [vmem:[#allocation5 + $0x20e0] sm:$0xff]
    %v1272 = vld [vmem:[#allocation5 + $0x20e8] sm:$0xff]
    %v1273 = vld [vmem:[#allocation5 + $0x20f0] sm:$0xff]
    %v1274 = vld [vmem:[#allocation5 + $0x20f8] sm:$0xff]
    %v1275 = vld [vmem:[#allocation5 + $0x2100] sm:$0xff]
    %v1276 = vld [vmem:[#allocation5 + $0x2108] sm:$0xff]
    %v1277 = vld [vmem:[#allocation5 + $0x2110] sm:$0xff]
    %v1278 = vld [vmem:[#allocation5 + $0x2118] sm:$0xff]
    %v1279 = vld [vmem:[#allocation5 + $0x2120] sm:$0xff]
    %v1280 = vld [vmem:[#allocation5 + $0x2128] sm:$0xff]
    %v1281 = vld [vmem:[#allocation5 + $0x2130] sm:$0xff]
    %v1282 = vld [vmem:[#allocation5 + $0x2138] sm:$0xff]
    %v1283 = vld [vmem:[#allocation5 + $0x2140] sm:$0xff]
    %v1284 = vld [vmem:[#allocation5 + $0x2148] sm:$0xff]
    %v1285 = vld [vmem:[#allocation5 + $0x2150] sm:$0xff]
    %v1286 = vld [vmem:[#allocation5 + $0x2158] sm:$0xff]
    %v1287 = vld [vmem:[#allocation5 + $0x2160] sm:$0xff]
    %v1288 = vld [vmem:[#allocation5 + $0x2168] sm:$0xff]
    %v1289 = vld [vmem:[#allocation5 + $0x2170] sm:$0xff]
    %v1290 = vld [vmem:[#allocation5 + $0x2178] sm:$0xff]
    %v1291 = vld [vmem:[#allocation5 + $0x2180] sm:$0xff]
    %v1292 = vld [vmem:[#allocation5 + $0x2188] sm:$0xff]
    %v1293 = vld [vmem:[#allocation5 + $0x2190] sm:$0xff]
    %v1294 = vld [vmem:[#allocation5 + $0x2198] sm:$0xff]
    %v1295 = vld [vmem:[#allocation5 + $0x21a0] sm:$0xff]
    %v1296 = vld [vmem:[#allocation5 + $0x21a8] sm:$0xff]
    %v1297 = vld [vmem:[#allocation5 + $0x21b0] sm:$0xff]
    %v1298 = vld [vmem:[#allocation5 + $0x21b8] sm:$0xff]
    %v1299 = vld [vmem:[#allocation5 + $0x21c0] sm:$0xff]
    %v1300 = vld [vmem:[#allocation5 + $0x21c8] sm:$0xff]
    %v1301 = vld [vmem:[#allocation5 + $0x21d0] sm:$0xff]
    %v1302 = vld [vmem:[#allocation5 + $0x21d8] sm:$0xff]
    %v1303 = vld [vmem:[#allocation5 + $0x21e0] sm:$0xff]
    %v1304 = vld [vmem:[#allocation5 + $0x21e8] sm:$0xff]
    %v1305 = vld [vmem:[#allocation5 + $0x21f0] sm:$0xff]
    %v1306 = vld [vmem:[#allocation5 + $0x21f8] sm:$0xff]
    %v1307 = vld [vmem:[#allocation5 + $0x2200] sm:$0xff]
    %v1308 = vld [vmem:[#allocation5 + $0x2208] sm:$0xff]
    %v1309 = vld [vmem:[#allocation5 + $0x2210] sm:$0xff]
    %v1310 = vld [vmem:[#allocation5 + $0x2218] sm:$0xff]
    %v1311 = vld [vmem:[#allocation5 + $0x2220] sm:$0xff]
    %v1312 = vld [vmem:[#allocation5 + $0x2228] sm:$0xff]
    %v1313 = vld [vmem:[#allocation5 + $0x2230] sm:$0xff]
    %v1314 = vld [vmem:[#allocation5 + $0x2238] sm:$0xff]
    %v1315 = vld [vmem:[#allocation5 + $0x2240] sm:$0xff]
    %v1316 = vld [vmem:[#allocation5 + $0x2248] sm:$0xff]
    %v1317 = vld [vmem:[#allocation5 + $0x2250] sm:$0xff]
    %v1318 = vld [vmem:[#allocation5 + $0x2258] sm:$0xff]
    %v1319 = vld [vmem:[#allocation5 + $0x2260] sm:$0xff]
    %v1320 = vld [vmem:[#allocation5 + $0x2268] sm:$0xff]
    %v1321 = vld [vmem:[#allocation5 + $0x2270] sm:$0xff]
    %v1322 = vld [vmem:[#allocation5 + $0x2278] sm:$0xff]
    %v1323 = vld [vmem:[#allocation5 + $0x2280] sm:$0xff]
    %v1324 = vld [vmem:[#allocation5 + $0x2288] sm:$0xff]
    %v1325 = vld [vmem:[#allocation5 + $0x2290] sm:$0xff]
    %v1326 = vld [vmem:[#allocation5 + $0x2298] sm:$0xff]
    %v1327 = vld [vmem:[#allocation5 + $0x22a0] sm:$0xff]
    %v1328 = vld [vmem:[#allocation5 + $0x22a8] sm:$0xff]
    %v1329 = vld [vmem:[#allocation5 + $0x22b0] sm:$0xff]
    %v1330 = vld [vmem:[#allocation5 + $0x22b8] sm:$0xff]
    %v1331 = vld [vmem:[#allocation5 + $0x22c0] sm:$0xff]
    %v1332 = vld [vmem:[#allocation5 + $0x22c8] sm:$0xff]
    %v1333 = vld [vmem:[#allocation5 + $0x22d0] sm:$0xff]
    %v1334 = vld [vmem:[#allocation5 + $0x22d8] sm:$0xff]
    %v1335 = vld [vmem:[#allocation5 + $0x22e0] sm:$0xff]
    %v1336 = vld [vmem:[#allocation5 + $0x22e8] sm:$0xff]
    %v1337 = vld [vmem:[#allocation5 + $0x22f0] sm:$0xff]
    %v1338 = vld [vmem:[#allocation5 + $0x22f8] sm:$0xff]
    %v1339 = vld [vmem:[#allocation5 + $0x2300] sm:$0xff]
    %v1340 = vld [vmem:[#allocation5 + $0x2308] sm:$0xff]
    %v1341 = vld [vmem:[#allocation5 + $0x2310] sm:$0xff]
    %v1342 = vld [vmem:[#allocation5 + $0x2318] sm:$0xff]
    %v1343 = vld [vmem:[#allocation5 + $0x2320] sm:$0xff]
    %v1344 = vld [vmem:[#allocation5 + $0x2328] sm:$0xff]
    %v1345 = vld [vmem:[#allocation5 + $0x2330] sm:$0xff]
    %v1346 = vld [vmem:[#allocation5 + $0x2338] sm:$0xff]
    %v1347 = vld [vmem:[#allocation5 + $0x2340] sm:$0xff]
    %v1348 = vld [vmem:[#allocation5 + $0x2348] sm:$0xff]
    %v1349 = vld [vmem:[#allocation5 + $0x2350] sm:$0xff]
    %v1350 = vld [vmem:[#allocation5 + $0x2358] sm:$0xff]
    %v1351 = vld [vmem:[#allocation5 + $0x2360] sm:$0xff]
    %v1352 = vld [vmem:[#allocation5 + $0x2368] sm:$0xff]
    %v1353 = vld [vmem:[#allocation5 + $0x2370] sm:$0xff]
    %v1354 = vld [vmem:[#allocation5 + $0x2378] sm:$0xff]
    %v1355 = vld [vmem:[#allocation5 + $0x2380] sm:$0xff]
    %v1356 = vld [vmem:[#allocation5 + $0x2388] sm:$0xff]
    %v1357 = vld [vmem:[#allocation5 + $0x2390] sm:$0xff]
    %v1358 = vld [vmem:[#allocation5 + $0x2398] sm:$0xff]
    %v1359 = vld [vmem:[#allocation5 + $0x23a0] sm:$0xff]
    %v1360 = vld [vmem:[#allocation5 + $0x23a8] sm:$0xff]
    %v1361 = vld [vmem:[#allocation5 + $0x23b0] sm:$0xff]
    %v1362 = vld [vmem:[#allocation5 + $0x23b8] sm:$0xff]
    %v1363 = vld [vmem:[#allocation5 + $0x23c0] sm:$0xff]
    %v1364 = vld [vmem:[#allocation5 + $0x23c8] sm:$0xff]
    %v1365 = vld [vmem:[#allocation5 + $0x23d0] sm:$0xff]
    %v1366 = vld [vmem:[#allocation5 + $0x23d8] sm:$0xff]
    %v1367 = vld [vmem:[#allocation5 + $0x23e0] sm:$0xff]
    %v1368 = vld [vmem:[#allocation5 + $0x23e8] sm:$0xff]
    %v1369 = vld [vmem:[#allocation5 + $0x23f0] sm:$0xff]
    %v1370 = vld [vmem:[#allocation5 + $0x23f8] sm:$0xff]
    %v1371 = vld [vmem:[#allocation5 + $0x2400] sm:$0xff]
    %v1372 = vld [vmem:[#allocation5 + $0x2408] sm:$0xff]
    %v1373 = vld [vmem:[#allocation5 + $0x2410] sm:$0xff]
    %v1374 = vld [vmem:[#allocation5 + $0x2418] sm:$0xff]
    %v1375 = vld [vmem:[#allocation5 + $0x2420] sm:$0xff]
    %v1376 = vld [vmem:[#allocation5 + $0x2428] sm:$0xff]
    %v1377 = vld [vmem:[#allocation5 + $0x2430] sm:$0xff]
    %v1378 = vld [vmem:[#allocation5 + $0x2438] sm:$0xff]
    %v1379 = vld [vmem:[#allocation5 + $0x2440] sm:$0xff]
    %v1380 = vld [vmem:[#allocation5 + $0x2448] sm:$0xff]
    %v1381 = vld [vmem:[#allocation5 + $0x2450] sm:$0xff]
    %v1382 = vld [vmem:[#allocation5 + $0x2458] sm:$0xff]
    %v1383 = vld [vmem:[#allocation5 + $0x2460] sm:$0xff]
    %v1384 = vld [vmem:[#allocation5 + $0x2468] sm:$0xff]
    %v1385 = vld [vmem:[#allocation5 + $0x2470] sm:$0xff]
    %v1386 = vld [vmem:[#allocation5 + $0x2478] sm:$0xff]
    %v1387 = vld [vmem:[#allocation5 + $0x2480] sm:$0xff]
    %v1388 = vld [vmem:[#allocation5 + $0x2488] sm:$0xff]
    %v1389 = vld [vmem:[#allocation5 + $0x2490] sm:$0xff]
    %v1390 = vld [vmem:[#allocation5 + $0x2498] sm:$0xff]
    %v1391 = vld [vmem:[#allocation5 + $0x24a0] sm:$0xff]
    %v1392 = vld [vmem:[#allocation5 + $0x24a8] sm:$0xff]
    %v1393 = vld [vmem:[#allocation5 + $0x24b0] sm:$0xff]
    %v1394 = vld [vmem:[#allocation5 + $0x24b8] sm:$0xff]
    %v1395 = vld [vmem:[#allocation5 + $0x24c0] sm:$0xff]
    %v1396 = vld [vmem:[#allocation5 + $0x24c8] sm:$0xff]
    %v1397 = vld [vmem:[#allocation5 + $0x24d0] sm:$0xff]
    %v1398 = vld [vmem:[#allocation5 + $0x24d8] sm:$0xff]
    %v1399 = vld [vmem:[#allocation5 + $0x24e0] sm:$0xff]
    %v1400 = vld [vmem:[#allocation5 + $0x24e8] sm:$0xff]
    %v1401 = vld [vmem:[#allocation5 + $0x24f0] sm:$0xff]
    %v1402 = vld [vmem:[#allocation5 + $0x24f8] sm:$0xff]
    %v1403 = vld [vmem:[#allocation5 + $0x2500] sm:$0xff]
    %v1404 = vld [vmem:[#allocation5 + $0x2508] sm:$0xff]
    %v1405 = vld [vmem:[#allocation5 + $0x2510] sm:$0xff]
    %v1406 = vld [vmem:[#allocation5 + $0x2518] sm:$0xff]
    %v1407 = vld [vmem:[#allocation5 + $0x2520] sm:$0xff]
    %v1408 = vld [vmem:[#allocation5 + $0x2528] sm:$0xff]
    %v1409 = vld [vmem:[#allocation5 + $0x2530] sm:$0xff]
    %v1410 = vld [vmem:[#allocation5 + $0x2538] sm:$0xff]
    %v1411 = vld [vmem:[#allocation5 + $0x2540] sm:$0xff]
    %v1412 = vld [vmem:[#allocation5 + $0x2548] sm:$0xff]
    %v1413 = vld [vmem:[#allocation5 + $0x2550] sm:$0xff]
    %v1414 = vld [vmem:[#allocation5 + $0x2558] sm:$0xff]
    %v1415 = vld [vmem:[#allocation5 + $0x2560] sm:$0xff]
    %v1416 = vld [vmem:[#allocation5 + $0x2568] sm:$0xff]
    %v1417 = vld [vmem:[#allocation5 + $0x2570] sm:$0xff]
    %v1418 = vld [vmem:[#allocation5 + $0x2578] sm:$0xff]
    %v1419 = vld [vmem:[#allocation5 + $0x2580] sm:$0xff]
    %v1420 = vld [vmem:[#allocation5 + $0x2588] sm:$0xff]
    %v1421 = vld [vmem:[#allocation5 + $0x2590] sm:$0xff]
    %v1422 = vld [vmem:[#allocation5 + $0x2598] sm:$0xff]
    %v1423 = vld [vmem:[#allocation5 + $0x25a0] sm:$0xff]
    %v1424 = vld [vmem:[#allocation5 + $0x25a8] sm:$0xff]
    %v1425 = vld [vmem:[#allocation5 + $0x25b0] sm:$0xff]
    %v1426 = vld [vmem:[#allocation5 + $0x25b8] sm:$0xff]
    %v1427 = vld [vmem:[#allocation5 + $0x25c0] sm:$0xff]
    %v1428 = vld [vmem:[#allocation5 + $0x25c8] sm:$0xff]
    %v1429 = vld [vmem:[#allocation5 + $0x25d0] sm:$0xff]
    %v1430 = vld [vmem:[#allocation5 + $0x25d8] sm:$0xff]
    %v1431 = vld [vmem:[#allocation5 + $0x25e0] sm:$0xff]
    %v1432 = vld [vmem:[#allocation5 + $0x25e8] sm:$0xff]
    %v1433 = vld [vmem:[#allocation5 + $0x25f0] sm:$0xff]
    %v1434 = vld [vmem:[#allocation5 + $0x25f8] sm:$0xff]
    %v1435 = vld [vmem:[#allocation5 + $0x2600] sm:$0xff]
    %v1436 = vld [vmem:[#allocation5 + $0x2608] sm:$0xff]
    %v1437 = vld [vmem:[#allocation5 + $0x2610] sm:$0xff]
    %v1438 = vld [vmem:[#allocation5 + $0x2618] sm:$0xff]
    %v1439 = vld [vmem:[#allocation5 + $0x2620] sm:$0xff]
    %v1440 = vld [vmem:[#allocation5 + $0x2628] sm:$0xff]
    %v1441 = vld [vmem:[#allocation5 + $0x2630] sm:$0xff]
    %v1442 = vld [vmem:[#allocation5 + $0x2638] sm:$0xff]
    %v1443 = vld [vmem:[#allocation5 + $0x2640] sm:$0xff]
    %v1444 = vld [vmem:[#allocation5 + $0x2648] sm:$0xff]
    %v1445 = vld [vmem:[#allocation5 + $0x2650] sm:$0xff]
    %v1446 = vld [vmem:[#allocation5 + $0x2658] sm:$0xff]
    %v1447 = vld [vmem:[#allocation5 + $0x2660] sm:$0xff]
    %v1448 = vld [vmem:[#allocation5 + $0x2668] sm:$0xff]
    %v1449 = vld [vmem:[#allocation5 + $0x2670] sm:$0xff]
    %v1450 = vld [vmem:[#allocation5 + $0x2678] sm:$0xff]
    %v1451 = vld [vmem:[#allocation5 + $0x2680] sm:$0xff]
    %v1452 = vld [vmem:[#allocation5 + $0x2688] sm:$0xff]
    %v1453 = vld [vmem:[#allocation5 + $0x2690] sm:$0xff]
    %v1454 = vld [vmem:[#allocation5 + $0x2698] sm:$0xff]
    %v1455 = vld [vmem:[#allocation5 + $0x26a0] sm:$0xff]
    %v1456 = vld [vmem:[#allocation5 + $0x26a8] sm:$0xff]
    %v1457 = vld [vmem:[#allocation5 + $0x26b0] sm:$0xff]
    %v1458 = vld [vmem:[#allocation5 + $0x26b8] sm:$0xff]
    %v1459 = vld [vmem:[#allocation5 + $0x26c0] sm:$0xff]
    %v1460 = vld [vmem:[#allocation5 + $0x26c8] sm:$0xff]
    %v1461 = vld [vmem:[#allocation5 + $0x26d0] sm:$0xff]
    %v1462 = vld [vmem:[#allocation5 + $0x26d8] sm:$0xff]
    %v1463 = vld [vmem:[#allocation5 + $0x26e0] sm:$0xff]
    %v1464 = vld [vmem:[#allocation5 + $0x26e8] sm:$0xff]
    %v1465 = vld [vmem:[#allocation5 + $0x26f0] sm:$0xff]
    %v1466 = vld [vmem:[#allocation5 + $0x26f8] sm:$0xff]
    %v1467 = vld [vmem:[#allocation5 + $0x2700] sm:$0xff]
    %v1468 = vld [vmem:[#allocation5 + $0x2708] sm:$0xff]
    %v1469 = vld [vmem:[#allocation5 + $0x2710] sm:$0xff]
    %v1470 = vld [vmem:[#allocation5 + $0x2718] sm:$0xff]
    %v1471 = vld [vmem:[#allocation5 + $0x2720] sm:$0xff]
    %v1472 = vld [vmem:[#allocation5 + $0x2728] sm:$0xff]
    %v1473 = vld [vmem:[#allocation5 + $0x2730] sm:$0xff]
    %v1474 = vld [vmem:[#allocation5 + $0x2738] sm:$0xff]
    %v1475 = vld [vmem:[#allocation5 + $0x2740] sm:$0xff]
    %v1476 = vld [vmem:[#allocation5 + $0x2748] sm:$0xff]
    %v1477 = vld [vmem:[#allocation5 + $0x2750] sm:$0xff]
    %v1478 = vld [vmem:[#allocation5 + $0x2758] sm:$0xff]
    %v1479 = vld [vmem:[#allocation5 + $0x2760] sm:$0xff]
    %v1480 = vld [vmem:[#allocation5 + $0x2768] sm:$0xff]
    %v1481 = vld [vmem:[#allocation5 + $0x2770] sm:$0xff]
    %v1482 = vld [vmem:[#allocation5 + $0x2778] sm:$0xff]
    %v1483 = vld [vmem:[#allocation5 + $0x2780] sm:$0xff]
    %v1484 = vld [vmem:[#allocation5 + $0x2788] sm:$0xff]
    %v1485 = vld [vmem:[#allocation5 + $0x2790] sm:$0xff]
    %v1486 = vld [vmem:[#allocation5 + $0x2798] sm:$0xff]
    %v1487 = vld [vmem:[#allocation5 + $0x27a0] sm:$0xff]
    %v1488 = vld [vmem:[#allocation5 + $0x27a8] sm:$0xff]
    %v1489 = vld [vmem:[#allocation5 + $0x27b0] sm:$0xff]
    %v1490 = vld [vmem:[#allocation5 + $0x27b8] sm:$0xff]
    %v1491 = vld [vmem:[#allocation5 + $0x27c0] sm:$0xff]
    %v1492 = vld [vmem:[#allocation5 + $0x27c8] sm:$0xff]
    %v1493 = vld [vmem:[#allocation5 + $0x27d0] sm:$0xff]
    %v1494 = vld [vmem:[#allocation5 + $0x27d8] sm:$0xff]
    %v1495 = vld [vmem:[#allocation5 + $0x27e0] sm:$0xff]
    %v1496 = vld [vmem:[#allocation5 + $0x27e8] sm:$0xff]
    %v1497 = vld [vmem:[#allocation5 + $0x27f0] sm:$0xff]
    %v1498 = vld [vmem:[#allocation5 + $0x27f8] sm:$0xff]
    %v1499 = vld [vmem:[#allocation5 + $0x2800] sm:$0xff]
    %v1500 = vld [vmem:[#allocation5 + $0x2808] sm:$0xff]
    %v1501 = vld [vmem:[#allocation5 + $0x2810] sm:$0xff]
    %v1502 = vld [vmem:[#allocation5 + $0x2818] sm:$0xff]
    %v1503 = vld [vmem:[#allocation5 + $0x2820] sm:$0xff]
    %v1504 = vld [vmem:[#allocation5 + $0x2828] sm:$0xff]
    %v1505 = vld [vmem:[#allocation5 + $0x2830] sm:$0xff]
    %v1506 = vld [vmem:[#allocation5 + $0x2838] sm:$0xff]
    %v1507 = vld [vmem:[#allocation5 + $0x2840] sm:$0xff]
    %v1508 = vld [vmem:[#allocation5 + $0x2848] sm:$0xff]
    %v1509 = vld [vmem:[#allocation5 + $0x2850] sm:$0xff]
    %v1510 = vld [vmem:[#allocation5 + $0x2858] sm:$0xff]
    %v1511 = vld [vmem:[#allocation5 + $0x2860] sm:$0xff]
    %v1512 = vld [vmem:[#allocation5 + $0x2868] sm:$0xff]
    %v1513 = vld [vmem:[#allocation5 + $0x2870] sm:$0xff]
    %v1514 = vld [vmem:[#allocation5 + $0x2878] sm:$0xff]
    %v1515 = vld [vmem:[#allocation5 + $0x2880] sm:$0xff]
    %v1516 = vld [vmem:[#allocation5 + $0x2888] sm:$0xff]
    %v1517 = vld [vmem:[#allocation5 + $0x2890] sm:$0xff]
    %v1518 = vld [vmem:[#allocation5 + $0x2898] sm:$0xff]
    %v1519 = vld [vmem:[#allocation5 + $0x28a0] sm:$0xff]
    %v1520 = vld [vmem:[#allocation5 + $0x28a8] sm:$0xff]
    %v1521 = vld [vmem:[#allocation5 + $0x28b0] sm:$0xff]
    %v1522 = vld [vmem:[#allocation5 + $0x28b8] sm:$0xff]
    %v1523 = vld [vmem:[#allocation5 + $0x28c0] sm:$0xff]
    %v1524 = vld [vmem:[#allocation5 + $0x28c8] sm:$0xff]
    %v1525 = vld [vmem:[#allocation5 + $0x28d0] sm:$0xff]
    %v1526 = vld [vmem:[#allocation5 + $0x28d8] sm:$0xff]
    %v1527 = vld [vmem:[#allocation5 + $0x28e0] sm:$0xff]
    %v1528 = vld [vmem:[#allocation5 + $0x28e8] sm:$0xff]
    %v1529 = vld [vmem:[#allocation5 + $0x28f0] sm:$0xff]
    %v1530 = vld [vmem:[#allocation5 + $0x28f8] sm:$0xff]
    %v1531 = vld [vmem:[#allocation5 + $0x2900] sm:$0xff]
    %v1532 = vld [vmem:[#allocation5 + $0x2908] sm:$0xff]
    %v1533 = vld [vmem:[#allocation5 + $0x2910] sm:$0xff]
    %v1534 = vld [vmem:[#allocation5 + $0x2918] sm:$0xff]
    %v1535 = vld [vmem:[#allocation5 + $0x2920] sm:$0xff]
    %v1536 = vld [vmem:[#allocation5 + $0x2928] sm:$0xff]
    %v1537 = vld [vmem:[#allocation5 + $0x2930] sm:$0xff]
    %v1538 = vld [vmem:[#allocation5 + $0x2938] sm:$0xff]
    %v1539 = vld [vmem:[#allocation5 + $0x2940] sm:$0xff]
    %v1540 = vld [vmem:[#allocation5 + $0x2948] sm:$0xff]
    %v1541 = vld [vmem:[#allocation5 + $0x2950] sm:$0xff]
    %v1542 = vld [vmem:[#allocation5 + $0x2958] sm:$0xff]
    %v1543 = vld [vmem:[#allocation5 + $0x2960] sm:$0xff]
    %v1544 = vld [vmem:[#allocation5 + $0x2968] sm:$0xff]
    %v1545 = vld [vmem:[#allocation5 + $0x2970] sm:$0xff]
    %v1546 = vld [vmem:[#allocation5 + $0x2978] sm:$0xff]
    %v1547 = vld [vmem:[#allocation5 + $0x2980] sm:$0xff]
    %v1548 = vld [vmem:[#allocation5 + $0x2988] sm:$0xff]
    %v1549 = vld [vmem:[#allocation5 + $0x2990] sm:$0xff]
    %v1550 = vld [vmem:[#allocation5 + $0x2998] sm:$0xff]
    %v1551 = vld [vmem:[#allocation5 + $0x29a0] sm:$0xff]
    %v1552 = vld [vmem:[#allocation5 + $0x29a8] sm:$0xff]
    %v1553 = vld [vmem:[#allocation5 + $0x29b0] sm:$0xff]
    %v1554 = vld [vmem:[#allocation5 + $0x29b8] sm:$0xff]
    %v1555 = vld [vmem:[#allocation5 + $0x29c0] sm:$0xff]
    %v1556 = vld [vmem:[#allocation5 + $0x29c8] sm:$0xff]
    %v1557 = vld [vmem:[#allocation5 + $0x29d0] sm:$0xff]
    %v1558 = vld [vmem:[#allocation5 + $0x29d8] sm:$0xff]
    %v1559 = vld [vmem:[#allocation5 + $0x29e0] sm:$0xff]
    %v1560 = vld [vmem:[#allocation5 + $0x29e8] sm:$0xff]
    %v1561 = vld [vmem:[#allocation5 + $0x29f0] sm:$0xff]
    %v1562 = vld [vmem:[#allocation5 + $0x29f8] sm:$0xff]
    %v1563 = vld [vmem:[#allocation5 + $0x2a00] sm:$0xff]
    %v1564 = vld [vmem:[#allocation5 + $0x2a08] sm:$0xff]
    %v1565 = vld [vmem:[#allocation5 + $0x2a10] sm:$0xff]
    %v1566 = vld [vmem:[#allocation5 + $0x2a18] sm:$0xff]
    %v1567 = vld [vmem:[#allocation5 + $0x2a20] sm:$0xff]
    %v1568 = vld [vmem:[#allocation5 + $0x2a28] sm:$0xff]
    %v1569 = vld [vmem:[#allocation5 + $0x2a30] sm:$0xff]
    %v1570 = vld [vmem:[#allocation5 + $0x2a38] sm:$0xff]
    %v1571 = vld [vmem:[#allocation5 + $0x2a40] sm:$0xff]
    %v1572 = vld [vmem:[#allocation5 + $0x2a48] sm:$0xff]
    %v1573 = vld [vmem:[#allocation5 + $0x2a50] sm:$0xff]
    %v1574 = vld [vmem:[#allocation5 + $0x2a58] sm:$0xff]
    %v1575 = vld [vmem:[#allocation5 + $0x2a60] sm:$0xff]
    %v1576 = vld [vmem:[#allocation5 + $0x2a68] sm:$0xff]
    %v1577 = vld [vmem:[#allocation5 + $0x2a70] sm:$0xff]
    %v1578 = vld [vmem:[#allocation5 + $0x2a78] sm:$0xff]
    %v1579 = vld [vmem:[#allocation5 + $0x2a80] sm:$0xff]
    %v1580 = vld [vmem:[#allocation5 + $0x2a88] sm:$0xff]
    %v1581 = vld [vmem:[#allocation5 + $0x2a90] sm:$0xff]
    %v1582 = vld [vmem:[#allocation5 + $0x2a98] sm:$0xff]
    %v1583 = vld [vmem:[#allocation5 + $0x2aa0] sm:$0xff]
    %v1584 = vld [vmem:[#allocation5 + $0x2aa8] sm:$0xff]
    %v1585 = vld [vmem:[#allocation5 + $0x2ab0] sm:$0xff]
    %v1586 = vld [vmem:[#allocation5 + $0x2ab8] sm:$0xff]
    %v1587 = vld [vmem:[#allocation5 + $0x2ac0] sm:$0xff]
    %v1588 = vld [vmem:[#allocation5 + $0x2ac8] sm:$0xff]
    %v1589 = vld [vmem:[#allocation5 + $0x2ad0] sm:$0xff]
    %v1590 = vld [vmem:[#allocation5 + $0x2ad8] sm:$0xff]
    %v1591 = vld [vmem:[#allocation5 + $0x2ae0] sm:$0xff]
    %v1592 = vld [vmem:[#allocation5 + $0x2ae8] sm:$0xff]
    %v1593 = vld [vmem:[#allocation5 + $0x2af0] sm:$0xff]
    %v1594 = vld [vmem:[#allocation5 + $0x2af8] sm:$0xff]
    %v1595 = vld [vmem:[#allocation5 + $0x2b00] sm:$0xff]
    %v1596 = vld [vmem:[#allocation5 + $0x2b08] sm:$0xff]
    %v1597 = vld [vmem:[#allocation5 + $0x2b10] sm:$0xff]
    %v1598 = vld [vmem:[#allocation5 + $0x2b18] sm:$0xff]
    %v1599 = vld [vmem:[#allocation5 + $0x2b20] sm:$0xff]
    %v1600 = vld [vmem:[#allocation5 + $0x2b28] sm:$0xff]
    %v1601 = vld [vmem:[#allocation5 + $0x2b30] sm:$0xff]
    %v1602 = vld [vmem:[#allocation5 + $0x2b38] sm:$0xff]
    %v1603 = vld [vmem:[#allocation5 + $0x2b40] sm:$0xff]
    %v1604 = vld [vmem:[#allocation5 + $0x2b48] sm:$0xff]
    %v1605 = vld [vmem:[#allocation5 + $0x2b50] sm:$0xff]
    %v1606 = vld [vmem:[#allocation5 + $0x2b58] sm:$0xff]
    %v1607 = vld [vmem:[#allocation5 + $0x2b60] sm:$0xff]
    %v1608 = vld [vmem:[#allocation5 + $0x2b68] sm:$0xff]
    %v1609 = vld [vmem:[#allocation5 + $0x2b70] sm:$0xff]
    %v1610 = vld [vmem:[#allocation5 + $0x2b78] sm:$0xff]
    %v1611 = vld [vmem:[#allocation5 + $0x2b80] sm:$0xff]
    %v1612 = vld [vmem:[#allocation5 + $0x2b88] sm:$0xff]
    %v1613 = vld [vmem:[#allocation5 + $0x2b90] sm:$0xff]
    %v1614 = vld [vmem:[#allocation5 + $0x2b98] sm:$0xff]
    %v1615 = vld [vmem:[#allocation5 + $0x2ba0] sm:$0xff]
    %v1616 = vld [vmem:[#allocation5 + $0x2ba8] sm:$0xff]
    %v1617 = vld [vmem:[#allocation5 + $0x2bb0] sm:$0xff]
    %v1618 = vld [vmem:[#allocation5 + $0x2bb8] sm:$0xff]
    %v1619 = vld [vmem:[#allocation5 + $0x2bc0] sm:$0xff]
    %v1620 = vld [vmem:[#allocation5 + $0x2bc8] sm:$0xff]
    %v1621 = vld [vmem:[#allocation5 + $0x2bd0] sm:$0xff]
    %v1622 = vld [vmem:[#allocation5 + $0x2bd8] sm:$0xff]
    %v1623 = vld [vmem:[#allocation5 + $0x2be0] sm:$0xff]
    %v1624 = vld [vmem:[#allocation5 + $0x2be8] sm:$0xff]
    %v1625 = vld [vmem:[#allocation5 + $0x2bf0] sm:$0xff]
    %v1626 = vld [vmem:[#allocation5 + $0x2bf8] sm:$0xff]
    %v1627 = vld [vmem:[#allocation5 + $0x2c00] sm:$0xff]
    %v1628 = vld [vmem:[#allocation5 + $0x2c08] sm:$0xff]
    %v1629 = vld [vmem:[#allocation5 + $0x2c10] sm:$0xff]
    %v1630 = vld [vmem:[#allocation5 + $0x2c18] sm:$0xff]
    %v1631 = vld [vmem:[#allocation5 + $0x2c20] sm:$0xff]
    %v1632 = vld [vmem:[#allocation5 + $0x2c28] sm:$0xff]
    %v1633 = vld [vmem:[#allocation5 + $0x2c30] sm:$0xff]
    %v1634 = vld [vmem:[#allocation5 + $0x2c38] sm:$0xff]
    %v1635 = vld [vmem:[#allocation5 + $0x2c40] sm:$0xff]
    %v1636 = vld [vmem:[#allocation5 + $0x2c48] sm:$0xff]
    %v1637 = vld [vmem:[#allocation5 + $0x2c50] sm:$0xff]
    %v1638 = vld [vmem:[#allocation5 + $0x2c58] sm:$0xff]
    %v1639 = vld [vmem:[#allocation5 + $0x2c60] sm:$0xff]
    %v1640 = vld [vmem:[#allocation5 + $0x2c68] sm:$0xff]
    %v1641 = vld [vmem:[#allocation5 + $0x2c70] sm:$0xff]
    %v1642 = vld [vmem:[#allocation5 + $0x2c78] sm:$0xff]
    %v1643 = vld [vmem:[#allocation5 + $0x2c80] sm:$0xff]
    %v1644 = vld [vmem:[#allocation5 + $0x2c88] sm:$0xff]
    %v1645 = vld [vmem:[#allocation5 + $0x2c90] sm:$0xff]
    %v1646 = vld [vmem:[#allocation5 + $0x2c98] sm:$0xff]
    %v1647 = vld [vmem:[#allocation5 + $0x2ca0] sm:$0xff]
    %v1648 = vld [vmem:[#allocation5 + $0x2ca8] sm:$0xff]
    %v1649 = vld [vmem:[#allocation5 + $0x2cb0] sm:$0xff]
    %v1650 = vld [vmem:[#allocation5 + $0x2cb8] sm:$0xff]
    %v1651 = vld [vmem:[#allocation5 + $0x2cc0] sm:$0xff]
    %v1652 = vld [vmem:[#allocation5 + $0x2cc8] sm:$0xff]
    %v1653 = vld [vmem:[#allocation5 + $0x2cd0] sm:$0xff]
    %v1654 = vld [vmem:[#allocation5 + $0x2cd8] sm:$0xff]
    %v1655 = vld [vmem:[#allocation5 + $0x2ce0] sm:$0xff]
    %v1656 = vld [vmem:[#allocation5 + $0x2ce8] sm:$0xff]
    %v1657 = vld [vmem:[#allocation5 + $0x2cf0] sm:$0xff]
    %v1658 = vld [vmem:[#allocation5 + $0x2cf8] sm:$0xff]
    %v1659 = vld [vmem:[#allocation5 + $0x2d00] sm:$0xff]
    %v1660 = vld [vmem:[#allocation5 + $0x2d08] sm:$0xff]
    %v1661 = vld [vmem:[#allocation5 + $0x2d10] sm:$0xff]
    %v1662 = vld [vmem:[#allocation5 + $0x2d18] sm:$0xff]
    %v1663 = vld [vmem:[#allocation5 + $0x2d20] sm:$0xff]
    %v1664 = vld [vmem:[#allocation5 + $0x2d28] sm:$0xff]
    %v1665 = vld [vmem:[#allocation5 + $0x2d30] sm:$0xff]
    %v1666 = vld [vmem:[#allocation5 + $0x2d38] sm:$0xff]
    %v1667 = vld [vmem:[#allocation5 + $0x2d40] sm:$0xff]
    %v1668 = vld [vmem:[#allocation5 + $0x2d48] sm:$0xff]
    %v1669 = vld [vmem:[#allocation5 + $0x2d50] sm:$0xff]
    %v1670 = vld [vmem:[#allocation5 + $0x2d58] sm:$0xff]
    %v1671 = vld [vmem:[#allocation5 + $0x2d60] sm:$0xff]
    %v1672 = vld [vmem:[#allocation5 + $0x2d68] sm:$0xff]
    %v1673 = vld [vmem:[#allocation5 + $0x2d70] sm:$0xff]
    %v1674 = vld [vmem:[#allocation5 + $0x2d78] sm:$0xff]
    %v1675 = vld [vmem:[#allocation5 + $0x2d80] sm:$0xff]
    %v1676 = vld [vmem:[#allocation5 + $0x2d88] sm:$0xff]
    %v1677 = vld [vmem:[#allocation5 + $0x2d90] sm:$0xff]
    %v1678 = vld [vmem:[#allocation5 + $0x2d98] sm:$0xff]
    %v1679 = vld [vmem:[#allocation5 + $0x2da0] sm:$0xff]
    %v1680 = vld [vmem:[#allocation5 + $0x2da8] sm:$0xff]
    %v1681 = vld [vmem:[#allocation5 + $0x2db0] sm:$0xff]
    %v1682 = vld [vmem:[#allocation5 + $0x2db8] sm:$0xff]
    %v1683 = vld [vmem:[#allocation5 + $0x2dc0] sm:$0xff]
    %v1684 = vld [vmem:[#allocation5 + $0x2dc8] sm:$0xff]
    %v1685 = vld [vmem:[#allocation5 + $0x2dd0] sm:$0xff]
    %v1686 = vld [vmem:[#allocation5 + $0x2dd8] sm:$0xff]
    %v1687 = vld [vmem:[#allocation5 + $0x2de0] sm:$0xff]
    %v1688 = vld [vmem:[#allocation5 + $0x2de8] sm:$0xff]
    %v1689 = vld [vmem:[#allocation5 + $0x2df0] sm:$0xff]
    %v1690 = vld [vmem:[#allocation5 + $0x2df8] sm:$0xff]
    %v1691 = vld [vmem:[#allocation5 + $0x2e00] sm:$0xff]
    %v1692 = vld [vmem:[#allocation5 + $0x2e08] sm:$0xff]
    %v1693 = vld [vmem:[#allocation5 + $0x2e10] sm:$0xff]
    %v1694 = vld [vmem:[#allocation5 + $0x2e18] sm:$0xff]
    %v1695 = vld [vmem:[#allocation5 + $0x2e20] sm:$0xff]
    %v1696 = vld [vmem:[#allocation5 + $0x2e28] sm:$0xff]
    %v1697 = vld [vmem:[#allocation5 + $0x2e30] sm:$0xff]
    %v1698 = vld [vmem:[#allocation5 + $0x2e38] sm:$0xff]
    %v1699 = vld [vmem:[#allocation5 + $0x2e40] sm:$0xff]
    %v1700 = vld [vmem:[#allocation5 + $0x2e48] sm:$0xff]
    %v1701 = vld [vmem:[#allocation5 + $0x2e50] sm:$0xff]
    %v1702 = vld [vmem:[#allocation5 + $0x2e58] sm:$0xff]
    %v1703 = vld [vmem:[#allocation5 + $0x2e60] sm:$0xff]
    %v1704 = vld [vmem:[#allocation5 + $0x2e68] sm:$0xff]
    %v1705 = vld [vmem:[#allocation5 + $0x2e70] sm:$0xff]
    %v1706 = vld [vmem:[#allocation5 + $0x2e78] sm:$0xff]
    %v1707 = vld [vmem:[#allocation5 + $0x2e80] sm:$0xff]
    %v1708 = vld [vmem:[#allocation5 + $0x2e88] sm:$0xff]
    %v1709 = vld [vmem:[#allocation5 + $0x2e90] sm:$0xff]
    %v1710 = vld [vmem:[#allocation5 + $0x2e98] sm:$0xff]
    %v1711 = vld [vmem:[#allocation5 + $0x2ea0] sm:$0xff]
    %v1712 = vld [vmem:[#allocation5 + $0x2ea8] sm:$0xff]
    %v1713 = vld [vmem:[#allocation5 + $0x2eb0] sm:$0xff]
    %v1714 = vld [vmem:[#allocation5 + $0x2eb8] sm:$0xff]
    %v1715 = vld [vmem:[#allocation5 + $0x2ec0] sm:$0xff]
    %v1716 = vld [vmem:[#allocation5 + $0x2ec8] sm:$0xff]
    %v1717 = vld [vmem:[#allocation5 + $0x2ed0] sm:$0xff]
    %v1718 = vld [vmem:[#allocation5 + $0x2ed8] sm:$0xff]
    %v1719 = vld [vmem:[#allocation5 + $0x2ee0] sm:$0xff]
    %v1720 = vld [vmem:[#allocation5 + $0x2ee8] sm:$0xff]
    %v1721 = vld [vmem:[#allocation5 + $0x2ef0] sm:$0xff]
    %v1722 = vld [vmem:[#allocation5 + $0x2ef8] sm:$0xff]
    %v1723 = vld [vmem:[#allocation5 + $0x2f00] sm:$0xff]
    %v1724 = vld [vmem:[#allocation5 + $0x2f08] sm:$0xff]
    %v1725 = vld [vmem:[#allocation5 + $0x2f10] sm:$0xff]
    %v1726 = vld [vmem:[#allocation5 + $0x2f18] sm:$0xff]
    %v1727 = vld [vmem:[#allocation5 + $0x2f20] sm:$0xff]
    %v1728 = vld [vmem:[#allocation5 + $0x2f28] sm:$0xff]
    %v1729 = vld [vmem:[#allocation5 + $0x2f30] sm:$0xff]
    %v1730 = vld [vmem:[#allocation5 + $0x2f38] sm:$0xff]
    %v1731 = vld [vmem:[#allocation5 + $0x2f40] sm:$0xff]
    %v1732 = vld [vmem:[#allocation5 + $0x2f48] sm:$0xff]
    %v1733 = vld [vmem:[#allocation5 + $0x2f50] sm:$0xff]
    %v1734 = vld [vmem:[#allocation5 + $0x2f58] sm:$0xff]
    %v1735 = vld [vmem:[#allocation5 + $0x2f60] sm:$0xff]
    %v1736 = vld [vmem:[#allocation5 + $0x2f68] sm:$0xff]
    %v1737 = vld [vmem:[#allocation5 + $0x2f70] sm:$0xff]
    %v1738 = vld [vmem:[#allocation5 + $0x2f78] sm:$0xff]
    %v1739 = vld [vmem:[#allocation5 + $0x2f80] sm:$0xff]
    %v1740 = vld [vmem:[#allocation5 + $0x2f88] sm:$0xff]
    %v1741 = vld [vmem:[#allocation5 + $0x2f90] sm:$0xff]
    %v1742 = vld [vmem:[#allocation5 + $0x2f98] sm:$0xff]
    %v1743 = vld [vmem:[#allocation5 + $0x2fa0] sm:$0xff]
    %v1744 = vld [vmem:[#allocation5 + $0x2fa8] sm:$0xff]
    %v1745 = vld [vmem:[#allocation5 + $0x2fb0] sm:$0xff]
    %v1746 = vld [vmem:[#allocation5 + $0x2fb8] sm:$0xff]
    %v1747 = vld [vmem:[#allocation5 + $0x2fc0] sm:$0xff]
    %v1748 = vld [vmem:[#allocation5 + $0x2fc8] sm:$0xff]
    %v1749 = vld [vmem:[#allocation5 + $0x2fd0] sm:$0xff]
    %v1750 = vld [vmem:[#allocation5 + $0x2fd8] sm:$0xff]
    %v1751 = vld [vmem:[#allocation5 + $0x2fe0] sm:$0xff]
    %v1752 = vld [vmem:[#allocation5 + $0x2fe8] sm:$0xff]
    %v1753 = vld [vmem:[#allocation5 + $0x2ff0] sm:$0xff]
    %v1754 = vld [vmem:[#allocation5 + $0x2ff8] sm:$0xff]
    %v1755 = vld [vmem:[#allocation5 + $0x3000] sm:$0xff]
    %v1756 = vld [vmem:[#allocation5 + $0x3008] sm:$0xff]
    %v1757 = vld [vmem:[#allocation5 + $0x3010] sm:$0xff]
    %v1758 = vld [vmem:[#allocation5 + $0x3018] sm:$0xff]
    %v1759 = vld [vmem:[#allocation5 + $0x3020] sm:$0xff]
    %v1760 = vld [vmem:[#allocation5 + $0x3028] sm:$0xff]
    %v1761 = vld [vmem:[#allocation5 + $0x3030] sm:$0xff]
    %v1762 = vld [vmem:[#allocation5 + $0x3038] sm:$0xff]
    %v1763 = vld [vmem:[#allocation5 + $0x3040] sm:$0xff]
    %v1764 = vld [vmem:[#allocation5 + $0x3048] sm:$0xff]
    %v1765 = vld [vmem:[#allocation5 + $0x3050] sm:$0xff]
    %v1766 = vld [vmem:[#allocation5 + $0x3058] sm:$0xff]
    %v1767 = vld [vmem:[#allocation5 + $0x3060] sm:$0xff]
    %v1768 = vld [vmem:[#allocation5 + $0x3068] sm:$0xff]
    %v1769 = vld [vmem:[#allocation5 + $0x3070] sm:$0xff]
    %v1770 = vld [vmem:[#allocation5 + $0x3078] sm:$0xff]
    %v1771 = vld [vmem:[#allocation5 + $0x3080] sm:$0xff]
    %v1772 = vld [vmem:[#allocation5 + $0x3088] sm:$0xff]
    %v1773 = vld [vmem:[#allocation5 + $0x3090] sm:$0xff]
    %v1774 = vld [vmem:[#allocation5 + $0x3098] sm:$0xff]
    %v1775 = vld [vmem:[#allocation5 + $0x30a0] sm:$0xff]
    %v1776 = vld [vmem:[#allocation5 + $0x30a8] sm:$0xff]
    %v1777 = vld [vmem:[#allocation5 + $0x30b0] sm:$0xff]
    %v1778 = vld [vmem:[#allocation5 + $0x30b8] sm:$0xff]
    %v1779 = vld [vmem:[#allocation5 + $0x30c0] sm:$0xff]
    %v1780 = vld [vmem:[#allocation5 + $0x30c8] sm:$0xff]
    %v1781 = vld [vmem:[#allocation5 + $0x30d0] sm:$0xff]
    %v1782 = vld [vmem:[#allocation5 + $0x30d8] sm:$0xff]
    %v1783 = vld [vmem:[#allocation5 + $0x30e0] sm:$0xff]
    %v1784 = vld [vmem:[#allocation5 + $0x30e8] sm:$0xff]
    %v1785 = vld [vmem:[#allocation5 + $0x30f0] sm:$0xff]
    %v1786 = vld [vmem:[#allocation5 + $0x30f8] sm:$0xff]
    %v1787 = vld [vmem:[#allocation5 + $0x3100] sm:$0xff]
    %v1788 = vld [vmem:[#allocation5 + $0x3108] sm:$0xff]
    %v1789 = vld [vmem:[#allocation5 + $0x3110] sm:$0xff]
    %v1790 = vld [vmem:[#allocation5 + $0x3118] sm:$0xff]
    %v1791 = vld [vmem:[#allocation5 + $0x3120] sm:$0xff]
    %v1792 = vld [vmem:[#allocation5 + $0x3128] sm:$0xff]
    %v1793 = vld [vmem:[#allocation5 + $0x3130] sm:$0xff]
    %v1794 = vld [vmem:[#allocation5 + $0x3138] sm:$0xff]
    %v1795 = vld [vmem:[#allocation5 + $0x3140] sm:$0xff]
    %v1796 = vld [vmem:[#allocation5 + $0x3148] sm:$0xff]
    %v1797 = vld [vmem:[#allocation5 + $0x3150] sm:$0xff]
    %v1798 = vld [vmem:[#allocation5 + $0x3158] sm:$0xff]
    %v1799 = vld [vmem:[#allocation5 + $0x3160] sm:$0xff]
    %v1800 = vld [vmem:[#allocation5 + $0x3168] sm:$0xff]
    %v1801 = vld [vmem:[#allocation5 + $0x3170] sm:$0xff]
    %v1802 = vld [vmem:[#allocation5 + $0x3178] sm:$0xff]
    %v1803 = vld [vmem:[#allocation5 + $0x3180] sm:$0xff]
    %v1804 = vld [vmem:[#allocation5 + $0x3188] sm:$0xff]
    %v1805 = vld [vmem:[#allocation5 + $0x3190] sm:$0xff]
    %v1806 = vld [vmem:[#allocation5 + $0x3198] sm:$0xff]
    %v1807 = vld [vmem:[#allocation5 + $0x31a0] sm:$0xff]
    %v1808 = vld [vmem:[#allocation5 + $0x31a8] sm:$0xff]
    %v1809 = vld [vmem:[#allocation5 + $0x31b0] sm:$0xff]
    %v1810 = vld [vmem:[#allocation5 + $0x31b8] sm:$0xff]
    %v1811 = vld [vmem:[#allocation5 + $0x31c0] sm:$0xff]
    %v1812 = vld [vmem:[#allocation5 + $0x31c8] sm:$0xff]
    %v1813 = vld [vmem:[#allocation5 + $0x31d0] sm:$0xff]
    %v1814 = vld [vmem:[#allocation5 + $0x31d8] sm:$0xff]
    %v1815 = vld [vmem:[#allocation5 + $0x31e0] sm:$0xff]
    %v1816 = vld [vmem:[#allocation5 + $0x31e8] sm:$0xff]
    %v1817 = vld [vmem:[#allocation5 + $0x31f0] sm:$0xff]
    %v1818 = vld [vmem:[#allocation5 + $0x31f8] sm:$0xff]
    %v1819 = vld [vmem:[#allocation7] sm:$0xff]
    %v1820 = vld [vmem:[#allocation7 + $0x8] sm:$0x3]
    %v1823 = vlaneseq
    %v1824 = vshrl.u32 %v1823, 7
    %v1825 = vsub.s32 0, %v1824
    %v1826 = vrot.slane %v1819, %v1825
    %v1827 = vlaneseq
    %v1828 = vshrl.u32 %v1827, 7
    %v1829 = vsub.s32 1, %v1828
    %v1830 = vrot.slane %v1819, %v1829
    %v1831 = vlaneseq
    %v1832 = vshrl.u32 %v1831, 7
    %v1833 = vsub.s32 2, %v1832
    %v1834 = vrot.slane %v1819, %v1833
    %v1835 = vlaneseq
    %v1836 = vshrl.u32 %v1835, 7
    %v1837 = vsub.s32 3, %v1836
    %v1838 = vrot.slane %v1819, %v1837
    %v1839 = vlaneseq
    %v1840 = vshrl.u32 %v1839, 7
    %v1841 = vsub.s32 4, %v1840
    %v1842 = vrot.slane %v1819, %v1841
    %v1843 = vlaneseq
    %v1844 = vshrl.u32 %v1843, 7
    %v1845 = vsub.s32 5, %v1844
    %v1846 = vrot.slane %v1819, %v1845
    %v1847 = vlaneseq
    %v1848 = vshrl.u32 %v1847, 7
    %v1849 = vsub.s32 6, %v1848
    %v1850 = vrot.slane %v1819, %v1849
    %v1851 = vlaneseq
    %v1852 = vshrl.u32 %v1851, 7
    %v1853 = vsub.s32 7, %v1852
    %v1854 = vrot.slane %v1819, %v1853
    %v1855 = vlaneseq
    %v1856 = vshrl.u32 %v1855, 7
    %v1857 = vsub.s32 0, %v1856
    %v1858 = vrot.slane %v1820, %v1857
    %v1859 = vlaneseq
    %v1860 = vshrl.u32 %v1859, 7
    %v1861 = vsub.s32 1, %v1860
    %v1862 = vrot.slane %v1820, %v1861
    %v3473 = vunpack.c.l.b16 %v219
    %v3474 = vunpack.c.h.b16 %v219
    %v3475 = vunpack.c.l.b16 %v220
    %v3476 = vunpack.c.h.b16 %v220
    %v3477 = vunpack.c.l.b16 %v221
    %v3478 = vunpack.c.h.b16 %v221
    %v3479 = vunpack.c.l.b16 %v222
    %v3480 = vunpack.c.h.b16 %v222
    %v3481 = vunpack.c.l.b16 %v223
    %v3482 = vunpack.c.h.b16 %v223
    %v3483 = vunpack.c.l.b16 %v224
    %v3484 = vunpack.c.h.b16 %v224
    %v3485 = vunpack.c.l.b16 %v225
    %v3486 = vunpack.c.h.b16 %v225
    %v3487 = vunpack.c.l.b16 %v226
    %v3488 = vunpack.c.h.b16 %v226
    %v3489 = vunpack.c.l.b16 %v227
    %v3490 = vunpack.c.h.b16 %v227
    %v3491 = vunpack.c.l.b16 %v228
    %v3492 = vunpack.c.h.b16 %v228
    %v3493 = vunpack.c.l.b16 %v229
    %v3494 = vunpack.c.h.b16 %v229
    %v3495 = vunpack.c.l.b16 %v230
    %v3496 = vunpack.c.h.b16 %v230
    %v3497 = vunpack.c.l.b16 %v231
    %v3498 = vunpack.c.h.b16 %v231
    %v3499 = vunpack.c.l.b16 %v232
    %v3500 = vunpack.c.h.b16 %v232
    %v3501 = vunpack.c.l.b16 %v233
    %v3502 = vunpack.c.h.b16 %v233
    %v3503 = vunpack.c.l.b16 %v234
    %v3504 = vunpack.c.h.b16 %v234
    %v3505 = vunpack.c.l.b16 %v235
    %v3506 = vunpack.c.h.b16 %v235
    %v3507 = vunpack.c.l.b16 %v236
    %v3508 = vunpack.c.h.b16 %v236
    %v3509 = vunpack.c.l.b16 %v237
    %v3510 = vunpack.c.h.b16 %v237
    %v3511 = vunpack.c.l.b16 %v238
    %v3512 = vunpack.c.h.b16 %v238
    %v3513 = vunpack.c.l.b16 %v239
    %v3514 = vunpack.c.h.b16 %v239
    %v3515 = vunpack.c.l.b16 %v240
    %v3516 = vunpack.c.h.b16 %v240
    %v3517 = vunpack.c.l.b16 %v241
    %v3518 = vunpack.c.h.b16 %v241
    %v3519 = vunpack.c.l.b16 %v242
    %v3520 = vunpack.c.h.b16 %v242
    %v3521 = vunpack.c.l.b16 %v243
    %v3522 = vunpack.c.h.b16 %v243
    %v3523 = vunpack.c.l.b16 %v244
    %v3524 = vunpack.c.h.b16 %v244
    %v3525 = vunpack.c.l.b16 %v245
    %v3526 = vunpack.c.h.b16 %v245
    %v3527 = vunpack.c.l.b16 %v246
    %v3528 = vunpack.c.h.b16 %v246
    %v3529 = vunpack.c.l.b16 %v247
    %v3530 = vunpack.c.h.b16 %v247
    %v3531 = vunpack.c.l.b16 %v248
    %v3532 = vunpack.c.h.b16 %v248
    %v3533 = vunpack.c.l.b16 %v249
    %v3534 = vunpack.c.h.b16 %v249
    %v3535 = vunpack.c.l.b16 %v250
    %v3536 = vunpack.c.h.b16 %v250
    %v3537 = vunpack.c.l.b16 %v251
    %v3538 = vunpack.c.h.b16 %v251
    %v3539 = vunpack.c.l.b16 %v252
    %v3540 = vunpack.c.h.b16 %v252
    %v3541 = vunpack.c.l.b16 %v253
    %v3542 = vunpack.c.h.b16 %v253
    %v3543 = vunpack.c.l.b16 %v254
    %v3544 = vunpack.c.h.b16 %v254
    %v3545 = vunpack.c.l.b16 %v255
    %v3546 = vunpack.c.h.b16 %v255
    %v3547 = vunpack.c.l.b16 %v256
    %v3548 = vunpack.c.h.b16 %v256
    %v3549 = vunpack.c.l.b16 %v257
    %v3550 = vunpack.c.h.b16 %v257
    %v3551 = vunpack.c.l.b16 %v258
    %v3552 = vunpack.c.h.b16 %v258
    %v3553 = vunpack.c.l.b16 %v259
    %v3554 = vunpack.c.h.b16 %v259
    %v3555 = vunpack.c.l.b16 %v260
    %v3556 = vunpack.c.h.b16 %v260
    %v3557 = vunpack.c.l.b16 %v261
    %v3558 = vunpack.c.h.b16 %v261
    %v3559 = vunpack.c.l.b16 %v262
    %v3560 = vunpack.c.h.b16 %v262
    %v3561 = vunpack.c.l.b16 %v263
    %v3562 = vunpack.c.h.b16 %v263
    %v3563 = vunpack.c.l.b16 %v264
    %v3564 = vunpack.c.h.b16 %v264
    %v3565 = vunpack.c.l.b16 %v265
    %v3566 = vunpack.c.h.b16 %v265
    %v3567 = vunpack.c.l.b16 %v266
    %v3568 = vunpack.c.h.b16 %v266
    %v3569 = vunpack.c.l.b16 %v267
    %v3570 = vunpack.c.h.b16 %v267
    %v3571 = vunpack.c.l.b16 %v268
    %v3572 = vunpack.c.h.b16 %v268
    %v3573 = vunpack.c.l.b16 %v269
    %v3574 = vunpack.c.h.b16 %v269
    %v3575 = vunpack.c.l.b16 %v270
    %v3576 = vunpack.c.h.b16 %v270
    %v3577 = vunpack.c.l.b16 %v271
    %v3578 = vunpack.c.h.b16 %v271
    %v3579 = vunpack.c.l.b16 %v272
    %v3580 = vunpack.c.h.b16 %v272
    %v3581 = vunpack.c.l.b16 %v273
    %v3582 = vunpack.c.h.b16 %v273
    %v3583 = vunpack.c.l.b16 %v274
    %v3584 = vunpack.c.h.b16 %v274
    %v3585 = vunpack.c.l.b16 %v275
    %v3586 = vunpack.c.h.b16 %v275
    %v3587 = vunpack.c.l.b16 %v276
    %v3588 = vunpack.c.h.b16 %v276
    %v3589 = vunpack.c.l.b16 %v277
    %v3590 = vunpack.c.h.b16 %v277
    %v3591 = vunpack.c.l.b16 %v278
    %v3592 = vunpack.c.h.b16 %v278
    %v3593 = vunpack.c.l.b16 %v279
    %v3594 = vunpack.c.h.b16 %v279
    %v3595 = vunpack.c.l.b16 %v280
    %v3596 = vunpack.c.h.b16 %v280
    %v3597 = vunpack.c.l.b16 %v281
    %v3598 = vunpack.c.h.b16 %v281
    %v3599 = vunpack.c.l.b16 %v282
    %v3600 = vunpack.c.h.b16 %v282
    %v3601 = vunpack.c.l.b16 %v283
    %v3602 = vunpack.c.h.b16 %v283
    %v3603 = vunpack.c.l.b16 %v284
    %v3604 = vunpack.c.h.b16 %v284
    %v3605 = vunpack.c.l.b16 %v285
    %v3606 = vunpack.c.h.b16 %v285
    %v3607 = vunpack.c.l.b16 %v286
    %v3608 = vunpack.c.h.b16 %v286
    %v3609 = vunpack.c.l.b16 %v287
    %v3610 = vunpack.c.h.b16 %v287
    %v3611 = vunpack.c.l.b16 %v288
    %v3612 = vunpack.c.h.b16 %v288
    %v3613 = vunpack.c.l.b16 %v289
    %v3614 = vunpack.c.h.b16 %v289
    %v3615 = vunpack.c.l.b16 %v290
    %v3616 = vunpack.c.h.b16 %v290
    %v3617 = vunpack.c.l.b16 %v291
    %v3618 = vunpack.c.h.b16 %v291
    %v3619 = vunpack.c.l.b16 %v292
    %v3620 = vunpack.c.h.b16 %v292
    %v3621 = vunpack.c.l.b16 %v293
    %v3622 = vunpack.c.h.b16 %v293
    %v3623 = vunpack.c.l.b16 %v294
    %v3624 = vunpack.c.h.b16 %v294
    %v3625 = vunpack.c.l.b16 %v295
    %v3626 = vunpack.c.h.b16 %v295
    %v3627 = vunpack.c.l.b16 %v296
    %v3628 = vunpack.c.h.b16 %v296
    %v3629 = vunpack.c.l.b16 %v297
    %v3630 = vunpack.c.h.b16 %v297
    %v3631 = vunpack.c.l.b16 %v298
    %v3632 = vunpack.c.h.b16 %v298
    %v3633 = vunpack.c.l.b16 %v299
    %v3634 = vunpack.c.h.b16 %v299
    %v3635 = vunpack.c.l.b16 %v300
    %v3636 = vunpack.c.h.b16 %v300
    %v3637 = vunpack.c.l.b16 %v301
    %v3638 = vunpack.c.h.b16 %v301
    %v3639 = vunpack.c.l.b16 %v302
    %v3640 = vunpack.c.h.b16 %v302
    %v3641 = vunpack.c.l.b16 %v303
    %v3642 = vunpack.c.h.b16 %v303
    %v3643 = vunpack.c.l.b16 %v304
    %v3644 = vunpack.c.h.b16 %v304
    %v3645 = vunpack.c.l.b16 %v305
    %v3646 = vunpack.c.h.b16 %v305
    %v3647 = vunpack.c.l.b16 %v306
    %v3648 = vunpack.c.h.b16 %v306
    %v3649 = vunpack.c.l.b16 %v307
    %v3650 = vunpack.c.h.b16 %v307
    %v3651 = vunpack.c.l.b16 %v308
    %v3652 = vunpack.c.h.b16 %v308
    %v3653 = vunpack.c.l.b16 %v309
    %v3654 = vunpack.c.h.b16 %v309
    %v3655 = vunpack.c.l.b16 %v310
    %v3656 = vunpack.c.h.b16 %v310
    %v3657 = vunpack.c.l.b16 %v311
    %v3658 = vunpack.c.h.b16 %v311
    %v3659 = vunpack.c.l.b16 %v312
    %v3660 = vunpack.c.h.b16 %v312
    %v3661 = vunpack.c.l.b16 %v313
    %v3662 = vunpack.c.h.b16 %v313
    %v3663 = vunpack.c.l.b16 %v314
    %v3664 = vunpack.c.h.b16 %v314
    %v3665 = vunpack.c.l.b16 %v315
    %v3666 = vunpack.c.h.b16 %v315
    %v3667 = vunpack.c.l.b16 %v316
    %v3668 = vunpack.c.h.b16 %v316
    %v3669 = vunpack.c.l.b16 %v317
    %v3670 = vunpack.c.h.b16 %v317
    %v3671 = vunpack.c.l.b16 %v318
    %v3672 = vunpack.c.h.b16 %v318
    %v3673 = vunpack.c.l.b16 %v319
    %v3674 = vunpack.c.h.b16 %v319
    %v3675 = vunpack.c.l.b16 %v320
    %v3676 = vunpack.c.h.b16 %v320
    %v3677 = vunpack.c.l.b16 %v321
    %v3678 = vunpack.c.h.b16 %v321
    %v3679 = vunpack.c.l.b16 %v322
    %v3680 = vunpack.c.h.b16 %v322
    %v3681 = vunpack.c.l.b16 %v323
    %v3682 = vunpack.c.h.b16 %v323
    %v3683 = vunpack.c.l.b16 %v324
    %v3684 = vunpack.c.h.b16 %v324
    %v3685 = vunpack.c.l.b16 %v325
    %v3686 = vunpack.c.h.b16 %v325
    %v3687 = vunpack.c.l.b16 %v326
    %v3688 = vunpack.c.h.b16 %v326
    %v3689 = vunpack.c.l.b16 %v327
    %v3690 = vunpack.c.h.b16 %v327
    %v3691 = vunpack.c.l.b16 %v328
    %v3692 = vunpack.c.h.b16 %v328
    %v3693 = vunpack.c.l.b16 %v329
    %v3694 = vunpack.c.h.b16 %v329
    %v3695 = vunpack.c.l.b16 %v330
    %v3696 = vunpack.c.h.b16 %v330
    %v3697 = vunpack.c.l.b16 %v331
    %v3698 = vunpack.c.h.b16 %v331
    %v3699 = vunpack.c.l.b16 %v332
    %v3700 = vunpack.c.h.b16 %v332
    %v3701 = vunpack.c.l.b16 %v333
    %v3702 = vunpack.c.h.b16 %v333
    %v3703 = vunpack.c.l.b16 %v334
    %v3704 = vunpack.c.h.b16 %v334
    %v3705 = vunpack.c.l.b16 %v335
    %v3706 = vunpack.c.h.b16 %v335
    %v3707 = vunpack.c.l.b16 %v336
    %v3708 = vunpack.c.h.b16 %v336
    %v3709 = vunpack.c.l.b16 %v337
    %v3710 = vunpack.c.h.b16 %v337
    %v3711 = vunpack.c.l.b16 %v338
    %v3712 = vunpack.c.h.b16 %v338
    %v3713 = vunpack.c.l.b16 %v339
    %v3714 = vunpack.c.h.b16 %v339
    %v3715 = vunpack.c.l.b16 %v340
    %v3716 = vunpack.c.h.b16 %v340
    %v3717 = vunpack.c.l.b16 %v341
    %v3718 = vunpack.c.h.b16 %v341
    %v3719 = vunpack.c.l.b16 %v342
    %v3720 = vunpack.c.h.b16 %v342
    %v3721 = vunpack.c.l.b16 %v343
    %v3722 = vunpack.c.h.b16 %v343
    %v3723 = vunpack.c.l.b16 %v344
    %v3724 = vunpack.c.h.b16 %v344
    %v3725 = vunpack.c.l.b16 %v345
    %v3726 = vunpack.c.h.b16 %v345
    %v3727 = vunpack.c.l.b16 %v346
    %v3728 = vunpack.c.h.b16 %v346
    %v3729 = vunpack.c.l.b16 %v347
    %v3730 = vunpack.c.h.b16 %v347
    %v3731 = vunpack.c.l.b16 %v348
    %v3732 = vunpack.c.h.b16 %v348
    %v3733 = vunpack.c.l.b16 %v349
    %v3734 = vunpack.c.h.b16 %v349
    %v3735 = vunpack.c.l.b16 %v350
    %v3736 = vunpack.c.h.b16 %v350
    %v3737 = vunpack.c.l.b16 %v351
    %v3738 = vunpack.c.h.b16 %v351
    %v3739 = vunpack.c.l.b16 %v352
    %v3740 = vunpack.c.h.b16 %v352
    %v3741 = vunpack.c.l.b16 %v353
    %v3742 = vunpack.c.h.b16 %v353
    %v3743 = vunpack.c.l.b16 %v354
    %v3744 = vunpack.c.h.b16 %v354
    %v3745 = vunpack.c.l.b16 %v355
    %v3746 = vunpack.c.h.b16 %v355
    %v3747 = vunpack.c.l.b16 %v356
    %v3748 = vunpack.c.h.b16 %v356
    %v3749 = vunpack.c.l.b16 %v357
    %v3750 = vunpack.c.h.b16 %v357
    %v3751 = vunpack.c.l.b16 %v358
    %v3752 = vunpack.c.h.b16 %v358
    %v3753 = vunpack.c.l.b16 %v359
    %v3754 = vunpack.c.h.b16 %v359
    %v3755 = vunpack.c.l.b16 %v360
    %v3756 = vunpack.c.h.b16 %v360
    %v3757 = vunpack.c.l.b16 %v361
    %v3758 = vunpack.c.h.b16 %v361
    %v3759 = vunpack.c.l.b16 %v362
    %v3760 = vunpack.c.h.b16 %v362
    %v3761 = vunpack.c.l.b16 %v363
    %v3762 = vunpack.c.h.b16 %v363
    %v3763 = vunpack.c.l.b16 %v364
    %v3764 = vunpack.c.h.b16 %v364
    %v3765 = vunpack.c.l.b16 %v365
    %v3766 = vunpack.c.h.b16 %v365
    %v3767 = vunpack.c.l.b16 %v366
    %v3768 = vunpack.c.h.b16 %v366
    %v3769 = vunpack.c.l.b16 %v367
    %v3770 = vunpack.c.h.b16 %v367
    %v3771 = vunpack.c.l.b16 %v368
    %v3772 = vunpack.c.h.b16 %v368
    %v3773 = vunpack.c.l.b16 %v369
    %v3774 = vunpack.c.h.b16 %v369
    %v3775 = vunpack.c.l.b16 %v370
    %v3776 = vunpack.c.h.b16 %v370
    %v3777 = vunpack.c.l.b16 %v371
    %v3778 = vunpack.c.h.b16 %v371
    %v3779 = vunpack.c.l.b16 %v372
    %v3780 = vunpack.c.h.b16 %v372
    %v3781 = vunpack.c.l.b16 %v373
    %v3782 = vunpack.c.h.b16 %v373
    %v3783 = vunpack.c.l.b16 %v374
    %v3784 = vunpack.c.h.b16 %v374
    %v3785 = vunpack.c.l.b16 %v375
    %v3786 = vunpack.c.h.b16 %v375
    %v3787 = vunpack.c.l.b16 %v376
    %v3788 = vunpack.c.h.b16 %v376
    %v3789 = vunpack.c.l.b16 %v377
    %v3790 = vunpack.c.h.b16 %v377
    %v3791 = vunpack.c.l.b16 %v378
    %v3792 = vunpack.c.h.b16 %v378
    %v3793 = vunpack.c.l.b16 %v379
    %v3794 = vunpack.c.h.b16 %v379
    %v3795 = vunpack.c.l.b16 %v380
    %v3796 = vunpack.c.h.b16 %v380
    %v3797 = vunpack.c.l.b16 %v381
    %v3798 = vunpack.c.h.b16 %v381
    %v3799 = vunpack.c.l.b16 %v382
    %v3800 = vunpack.c.h.b16 %v382
    %v3801 = vunpack.c.l.b16 %v383
    %v3802 = vunpack.c.h.b16 %v383
    %v3803 = vunpack.c.l.b16 %v384
    %v3804 = vunpack.c.h.b16 %v384
    %v3805 = vunpack.c.l.b16 %v385
    %v3806 = vunpack.c.h.b16 %v385
    %v3807 = vunpack.c.l.b16 %v386
    %v3808 = vunpack.c.h.b16 %v386
    %v3809 = vunpack.c.l.b16 %v387
    %v3810 = vunpack.c.h.b16 %v387
    %v3811 = vunpack.c.l.b16 %v388
    %v3812 = vunpack.c.h.b16 %v388
    %v3813 = vunpack.c.l.b16 %v389
    %v3814 = vunpack.c.h.b16 %v389
    %v3815 = vunpack.c.l.b16 %v390
    %v3816 = vunpack.c.h.b16 %v390
    %v3817 = vunpack.c.l.b16 %v391
    %v3818 = vunpack.c.h.b16 %v391
    %v3819 = vunpack.c.l.b16 %v392
    %v3820 = vunpack.c.h.b16 %v392
    %v3821 = vunpack.c.l.b16 %v393
    %v3822 = vunpack.c.h.b16 %v393
    %v3823 = vunpack.c.l.b16 %v394
    %v3824 = vunpack.c.h.b16 %v394
    %v3825 = vunpack.c.l.b16 %v395
    %v3826 = vunpack.c.h.b16 %v395
    %v3827 = vunpack.c.l.b16 %v396
    %v3828 = vunpack.c.h.b16 %v396
    %v3829 = vunpack.c.l.b16 %v397
    %v3830 = vunpack.c.h.b16 %v397
    %v3831 = vunpack.c.l.b16 %v398
    %v3832 = vunpack.c.h.b16 %v398
    %v3833 = vunpack.c.l.b16 %v399
    %v3834 = vunpack.c.h.b16 %v399
    %v3835 = vunpack.c.l.b16 %v400
    %v3836 = vunpack.c.h.b16 %v400
    %v3837 = vunpack.c.l.b16 %v401
    %v3838 = vunpack.c.h.b16 %v401
    %v3839 = vunpack.c.l.b16 %v402
    %v3840 = vunpack.c.h.b16 %v402
    %v3841 = vunpack.c.l.b16 %v403
    %v3842 = vunpack.c.h.b16 %v403
    %v3843 = vunpack.c.l.b16 %v404
    %v3844 = vunpack.c.h.b16 %v404
    %v3845 = vunpack.c.l.b16 %v405
    %v3846 = vunpack.c.h.b16 %v405
    %v3847 = vunpack.c.l.b16 %v406
    %v3848 = vunpack.c.h.b16 %v406
    %v3849 = vunpack.c.l.b16 %v407
    %v3850 = vunpack.c.h.b16 %v407
    %v3851 = vunpack.c.l.b16 %v408
    %v3852 = vunpack.c.h.b16 %v408
    %v3853 = vunpack.c.l.b16 %v409
    %v3854 = vunpack.c.h.b16 %v409
    %v3855 = vunpack.c.l.b16 %v410
    %v3856 = vunpack.c.h.b16 %v410
    %v3857 = vunpack.c.l.b16 %v411
    %v3858 = vunpack.c.h.b16 %v411
    %v3859 = vunpack.c.l.b16 %v412
    %v3860 = vunpack.c.h.b16 %v412
    %v3861 = vunpack.c.l.b16 %v413
    %v3862 = vunpack.c.h.b16 %v413
    %v3863 = vunpack.c.l.b16 %v414
    %v3864 = vunpack.c.h.b16 %v414
    %v3865 = vunpack.c.l.b16 %v415
    %v3866 = vunpack.c.h.b16 %v415
    %v3867 = vunpack.c.l.b16 %v416
    %v3868 = vunpack.c.h.b16 %v416
    %v3869 = vunpack.c.l.b16 %v417
    %v3870 = vunpack.c.h.b16 %v417
    %v3871 = vunpack.c.l.b16 %v418
    %v3872 = vunpack.c.h.b16 %v418
    %v3873 = vunpack.c.l.b16 %v419
    %v3874 = vunpack.c.h.b16 %v419
    %v3875 = vunpack.c.l.b16 %v420
    %v3876 = vunpack.c.h.b16 %v420
    %v3877 = vunpack.c.l.b16 %v421
    %v3878 = vunpack.c.h.b16 %v421
    %v3879 = vunpack.c.l.b16 %v422
    %v3880 = vunpack.c.h.b16 %v422
    %v3881 = vunpack.c.l.b16 %v423
    %v3882 = vunpack.c.h.b16 %v423
    %v3883 = vunpack.c.l.b16 %v424
    %v3884 = vunpack.c.h.b16 %v424
    %v3885 = vunpack.c.l.b16 %v425
    %v3886 = vunpack.c.h.b16 %v425
    %v3887 = vunpack.c.l.b16 %v426
    %v3888 = vunpack.c.h.b16 %v426
    %v3889 = vunpack.c.l.b16 %v427
    %v3890 = vunpack.c.h.b16 %v427
    %v3891 = vunpack.c.l.b16 %v428
    %v3892 = vunpack.c.h.b16 %v428
    %v3893 = vunpack.c.l.b16 %v429
    %v3894 = vunpack.c.h.b16 %v429
    %v3895 = vunpack.c.l.b16 %v430
    %v3896 = vunpack.c.h.b16 %v430
    %v3897 = vunpack.c.l.b16 %v431
    %v3898 = vunpack.c.h.b16 %v431
    %v3899 = vunpack.c.l.b16 %v432
    %v3900 = vunpack.c.h.b16 %v432
    %v3901 = vunpack.c.l.b16 %v433
    %v3902 = vunpack.c.h.b16 %v433
    %v3903 = vunpack.c.l.b16 %v434
    %v3904 = vunpack.c.h.b16 %v434
    %v3905 = vunpack.c.l.b16 %v435
    %v3906 = vunpack.c.h.b16 %v435
    %v3907 = vunpack.c.l.b16 %v436
    %v3908 = vunpack.c.h.b16 %v436
    %v3909 = vunpack.c.l.b16 %v437
    %v3910 = vunpack.c.h.b16 %v437
    %v3911 = vunpack.c.l.b16 %v438
    %v3912 = vunpack.c.h.b16 %v438
    %v3913 = vunpack.c.l.b16 %v439
    %v3914 = vunpack.c.h.b16 %v439
    %v3915 = vunpack.c.l.b16 %v440
    %v3916 = vunpack.c.h.b16 %v440
    %v3917 = vunpack.c.l.b16 %v441
    %v3918 = vunpack.c.h.b16 %v441
    %v3919 = vunpack.c.l.b16 %v442
    %v3920 = vunpack.c.h.b16 %v442
    %v3921 = vunpack.c.l.b16 %v443
    %v3922 = vunpack.c.h.b16 %v443
    %v3923 = vunpack.c.l.b16 %v444
    %v3924 = vunpack.c.h.b16 %v444
    %v3925 = vunpack.c.l.b16 %v445
    %v3926 = vunpack.c.h.b16 %v445
    %v3927 = vunpack.c.l.b16 %v446
    %v3928 = vunpack.c.h.b16 %v446
    %v3929 = vunpack.c.l.b16 %v447
    %v3930 = vunpack.c.h.b16 %v447
    %v3931 = vunpack.c.l.b16 %v448
    %v3932 = vunpack.c.h.b16 %v448
    %v3933 = vunpack.c.l.b16 %v449
    %v3934 = vunpack.c.h.b16 %v449
    %v3935 = vunpack.c.l.b16 %v450
    %v3936 = vunpack.c.h.b16 %v450
    %v3937 = vunpack.c.l.b16 %v451
    %v3938 = vunpack.c.h.b16 %v451
    %v3939 = vunpack.c.l.b16 %v452
    %v3940 = vunpack.c.h.b16 %v452
    %v3941 = vunpack.c.l.b16 %v453
    %v3942 = vunpack.c.h.b16 %v453
    %v3943 = vunpack.c.l.b16 %v454
    %v3944 = vunpack.c.h.b16 %v454
    %v3945 = vunpack.c.l.b16 %v455
    %v3946 = vunpack.c.h.b16 %v455
    %v3947 = vunpack.c.l.b16 %v456
    %v3948 = vunpack.c.h.b16 %v456
    %v3949 = vunpack.c.l.b16 %v457
    %v3950 = vunpack.c.h.b16 %v457
    %v3951 = vunpack.c.l.b16 %v458
    %v3952 = vunpack.c.h.b16 %v458
    %v3953 = vunpack.c.l.b16 %v459
    %v3954 = vunpack.c.h.b16 %v459
    %v3955 = vunpack.c.l.b16 %v460
    %v3956 = vunpack.c.h.b16 %v460
    %v3957 = vunpack.c.l.b16 %v461
    %v3958 = vunpack.c.h.b16 %v461
    %v3959 = vunpack.c.l.b16 %v462
    %v3960 = vunpack.c.h.b16 %v462
    %v3961 = vunpack.c.l.b16 %v463
    %v3962 = vunpack.c.h.b16 %v463
    %v3963 = vunpack.c.l.b16 %v464
    %v3964 = vunpack.c.h.b16 %v464
    %v3965 = vunpack.c.l.b16 %v465
    %v3966 = vunpack.c.h.b16 %v465
    %v3967 = vunpack.c.l.b16 %v466
    %v3968 = vunpack.c.h.b16 %v466
    %v3969 = vunpack.c.l.b16 %v467
    %v3970 = vunpack.c.h.b16 %v467
    %v3971 = vunpack.c.l.b16 %v468
    %v3972 = vunpack.c.h.b16 %v468
    %v3973 = vunpack.c.l.b16 %v469
    %v3974 = vunpack.c.h.b16 %v469
    %v3975 = vunpack.c.l.b16 %v470
    %v3976 = vunpack.c.h.b16 %v470
    %v3977 = vunpack.c.l.b16 %v471
    %v3978 = vunpack.c.h.b16 %v471
    %v3979 = vunpack.c.l.b16 %v472
    %v3980 = vunpack.c.h.b16 %v472
    %v3981 = vunpack.c.l.b16 %v473
    %v3982 = vunpack.c.h.b16 %v473
    %v3983 = vunpack.c.l.b16 %v474
    %v3984 = vunpack.c.h.b16 %v474
    %v3985 = vunpack.c.l.b16 %v475
    %v3986 = vunpack.c.h.b16 %v475
    %v3987 = vunpack.c.l.b16 %v476
    %v3988 = vunpack.c.h.b16 %v476
    %v3989 = vunpack.c.l.b16 %v477
    %v3990 = vunpack.c.h.b16 %v477
    %v3991 = vunpack.c.l.b16 %v478
    %v3992 = vunpack.c.h.b16 %v478
    %v3993 = vunpack.c.l.b16 %v479
    %v3994 = vunpack.c.h.b16 %v479
    %v3995 = vunpack.c.l.b16 %v480
    %v3996 = vunpack.c.h.b16 %v480
    %v3997 = vunpack.c.l.b16 %v481
    %v3998 = vunpack.c.h.b16 %v481
    %v3999 = vunpack.c.l.b16 %v482
    %v4000 = vunpack.c.h.b16 %v482
    %v4001 = vunpack.c.l.b16 %v483
    %v4002 = vunpack.c.h.b16 %v483
    %v4003 = vunpack.c.l.b16 %v484
    %v4004 = vunpack.c.h.b16 %v484
    %v4005 = vunpack.c.l.b16 %v485
    %v4006 = vunpack.c.h.b16 %v485
    %v4007 = vunpack.c.l.b16 %v486
    %v4008 = vunpack.c.h.b16 %v486
    %v4009 = vunpack.c.l.b16 %v487
    %v4010 = vunpack.c.h.b16 %v487
    %v4011 = vunpack.c.l.b16 %v488
    %v4012 = vunpack.c.h.b16 %v488
    %v4013 = vunpack.c.l.b16 %v489
    %v4014 = vunpack.c.h.b16 %v489
    %v4015 = vunpack.c.l.b16 %v490
    %v4016 = vunpack.c.h.b16 %v490
    %v4017 = vunpack.c.l.b16 %v491
    %v4018 = vunpack.c.h.b16 %v491
    %v4019 = vunpack.c.l.b16 %v492
    %v4020 = vunpack.c.h.b16 %v492
    %v4021 = vunpack.c.l.b16 %v493
    %v4022 = vunpack.c.h.b16 %v493
    %v4023 = vunpack.c.l.b16 %v494
    %v4024 = vunpack.c.h.b16 %v494
    %v4025 = vunpack.c.l.b16 %v495
    %v4026 = vunpack.c.h.b16 %v495
    %v4027 = vunpack.c.l.b16 %v496
    %v4028 = vunpack.c.h.b16 %v496
    %v4029 = vunpack.c.l.b16 %v497
    %v4030 = vunpack.c.h.b16 %v497
    %v4031 = vunpack.c.l.b16 %v498
    %v4032 = vunpack.c.h.b16 %v498
    %v4033 = vunpack.c.l.b16 %v499
    %v4034 = vunpack.c.h.b16 %v499
    %v4035 = vunpack.c.l.b16 %v500
    %v4036 = vunpack.c.h.b16 %v500
    %v4037 = vunpack.c.l.b16 %v501
    %v4038 = vunpack.c.h.b16 %v501
    %v4039 = vunpack.c.l.b16 %v502
    %v4040 = vunpack.c.h.b16 %v502
    %v4041 = vunpack.c.l.b16 %v503
    %v4042 = vunpack.c.h.b16 %v503
    %v4043 = vunpack.c.l.b16 %v504
    %v4044 = vunpack.c.h.b16 %v504
    %v4045 = vunpack.c.l.b16 %v505
    %v4046 = vunpack.c.h.b16 %v505
    %v4047 = vunpack.c.l.b16 %v506
    %v4048 = vunpack.c.h.b16 %v506
    %v4049 = vunpack.c.l.b16 %v507
    %v4050 = vunpack.c.h.b16 %v507
    %v4051 = vunpack.c.l.b16 %v508
    %v4052 = vunpack.c.h.b16 %v508
    %v4053 = vunpack.c.l.b16 %v509
    %v4054 = vunpack.c.h.b16 %v509
    %v4055 = vunpack.c.l.b16 %v510
    %v4056 = vunpack.c.h.b16 %v510
    %v4057 = vunpack.c.l.b16 %v511
    %v4058 = vunpack.c.h.b16 %v511
    %v4059 = vunpack.c.l.b16 %v512
    %v4060 = vunpack.c.h.b16 %v512
    %v4061 = vunpack.c.l.b16 %v513
    %v4062 = vunpack.c.h.b16 %v513
    %v4063 = vunpack.c.l.b16 %v514
    %v4064 = vunpack.c.h.b16 %v514
    %v4065 = vunpack.c.l.b16 %v515
    %v4066 = vunpack.c.h.b16 %v515
    %v4067 = vunpack.c.l.b16 %v516
    %v4068 = vunpack.c.h.b16 %v516
    %v4069 = vunpack.c.l.b16 %v517
    %v4070 = vunpack.c.h.b16 %v517
    %v4071 = vunpack.c.l.b16 %v518
    %v4072 = vunpack.c.h.b16 %v518
    %v4073 = vunpack.c.l.b16 %v519
    %v4074 = vunpack.c.h.b16 %v519
    %v4075 = vunpack.c.l.b16 %v520
    %v4076 = vunpack.c.h.b16 %v520
    %v4077 = vunpack.c.l.b16 %v521
    %v4078 = vunpack.c.h.b16 %v521
    %v4079 = vunpack.c.l.b16 %v522
    %v4080 = vunpack.c.h.b16 %v522
    %v4081 = vunpack.c.l.b16 %v523
    %v4082 = vunpack.c.h.b16 %v523
    %v4083 = vunpack.c.l.b16 %v524
    %v4084 = vunpack.c.h.b16 %v524
    %v4085 = vunpack.c.l.b16 %v525
    %v4086 = vunpack.c.h.b16 %v525
    %v4087 = vunpack.c.l.b16 %v526
    %v4088 = vunpack.c.h.b16 %v526
    %v4089 = vunpack.c.l.b16 %v527
    %v4090 = vunpack.c.h.b16 %v527
    %v4091 = vunpack.c.l.b16 %v528
    %v4092 = vunpack.c.h.b16 %v528
    %v4093 = vunpack.c.l.b16 %v529
    %v4094 = vunpack.c.h.b16 %v529
    %v4095 = vunpack.c.l.b16 %v530
    %v4096 = vunpack.c.h.b16 %v530
    %v4097 = vunpack.c.l.b16 %v531
    %v4098 = vunpack.c.h.b16 %v531
    %v4099 = vunpack.c.l.b16 %v532
    %v4100 = vunpack.c.h.b16 %v532
    %v4101 = vunpack.c.l.b16 %v533
    %v4102 = vunpack.c.h.b16 %v533
    %v4103 = vunpack.c.l.b16 %v534
    %v4104 = vunpack.c.h.b16 %v534
    %v4105 = vunpack.c.l.b16 %v535
    %v4106 = vunpack.c.h.b16 %v535
    %v4107 = vunpack.c.l.b16 %v536
    %v4108 = vunpack.c.h.b16 %v536
    %v4109 = vunpack.c.l.b16 %v537
    %v4110 = vunpack.c.h.b16 %v537
    %v4111 = vunpack.c.l.b16 %v538
    %v4112 = vunpack.c.h.b16 %v538
    %v4113 = vunpack.c.l.b16 %v539
    %v4114 = vunpack.c.h.b16 %v539
    %v4115 = vunpack.c.l.b16 %v540
    %v4116 = vunpack.c.h.b16 %v540
    %v4117 = vunpack.c.l.b16 %v541
    %v4118 = vunpack.c.h.b16 %v541
    %v4119 = vunpack.c.l.b16 %v542
    %v4120 = vunpack.c.h.b16 %v542
    %v4121 = vunpack.c.l.b16 %v543
    %v4122 = vunpack.c.h.b16 %v543
    %v4123 = vunpack.c.l.b16 %v544
    %v4124 = vunpack.c.h.b16 %v544
    %v4125 = vunpack.c.l.b16 %v545
    %v4126 = vunpack.c.h.b16 %v545
    %v4127 = vunpack.c.l.b16 %v546
    %v4128 = vunpack.c.h.b16 %v546
    %v4129 = vunpack.c.l.b16 %v547
    %v4130 = vunpack.c.h.b16 %v547
    %v4131 = vunpack.c.l.b16 %v548
    %v4132 = vunpack.c.h.b16 %v548
    %v4133 = vunpack.c.l.b16 %v549
    %v4134 = vunpack.c.h.b16 %v549
    %v4135 = vunpack.c.l.b16 %v550
    %v4136 = vunpack.c.h.b16 %v550
    %v4137 = vunpack.c.l.b16 %v551
    %v4138 = vunpack.c.h.b16 %v551
    %v4139 = vunpack.c.l.b16 %v552
    %v4140 = vunpack.c.h.b16 %v552
    %v4141 = vunpack.c.l.b16 %v553
    %v4142 = vunpack.c.h.b16 %v553
    %v4143 = vunpack.c.l.b16 %v554
    %v4144 = vunpack.c.h.b16 %v554
    %v4145 = vunpack.c.l.b16 %v555
    %v4146 = vunpack.c.h.b16 %v555
    %v4147 = vunpack.c.l.b16 %v556
    %v4148 = vunpack.c.h.b16 %v556
    %v4149 = vunpack.c.l.b16 %v557
    %v4150 = vunpack.c.h.b16 %v557
    %v4151 = vunpack.c.l.b16 %v558
    %v4152 = vunpack.c.h.b16 %v558
    %v4153 = vunpack.c.l.b16 %v559
    %v4154 = vunpack.c.h.b16 %v559
    %v4155 = vunpack.c.l.b16 %v560
    %v4156 = vunpack.c.h.b16 %v560
    %v4157 = vunpack.c.l.b16 %v561
    %v4158 = vunpack.c.h.b16 %v561
    %v4159 = vunpack.c.l.b16 %v562
    %v4160 = vunpack.c.h.b16 %v562
    %v4161 = vunpack.c.l.b16 %v563
    %v4162 = vunpack.c.h.b16 %v563
    %v4163 = vunpack.c.l.b16 %v564
    %v4164 = vunpack.c.h.b16 %v564
    %v4165 = vunpack.c.l.b16 %v565
    %v4166 = vunpack.c.h.b16 %v565
    %v4167 = vunpack.c.l.b16 %v566
    %v4168 = vunpack.c.h.b16 %v566
    %v4169 = vunpack.c.l.b16 %v567
    %v4170 = vunpack.c.h.b16 %v567
    %v4171 = vunpack.c.l.b16 %v568
    %v4172 = vunpack.c.h.b16 %v568
    %v4173 = vunpack.c.l.b16 %v569
    %v4174 = vunpack.c.h.b16 %v569
    %v4175 = vunpack.c.l.b16 %v570
    %v4176 = vunpack.c.h.b16 %v570
    %v4177 = vunpack.c.l.b16 %v571
    %v4178 = vunpack.c.h.b16 %v571
    %v4179 = vunpack.c.l.b16 %v572
    %v4180 = vunpack.c.h.b16 %v572
    %v4181 = vunpack.c.l.b16 %v573
    %v4182 = vunpack.c.h.b16 %v573
    %v4183 = vunpack.c.l.b16 %v574
    %v4184 = vunpack.c.h.b16 %v574
    %v4185 = vunpack.c.l.b16 %v575
    %v4186 = vunpack.c.h.b16 %v575
    %v4187 = vunpack.c.l.b16 %v576
    %v4188 = vunpack.c.h.b16 %v576
    %v4189 = vunpack.c.l.b16 %v577
    %v4190 = vunpack.c.h.b16 %v577
    %v4191 = vunpack.c.l.b16 %v578
    %v4192 = vunpack.c.h.b16 %v578
    %v4193 = vunpack.c.l.b16 %v579
    %v4194 = vunpack.c.h.b16 %v579
    %v4195 = vunpack.c.l.b16 %v580
    %v4196 = vunpack.c.h.b16 %v580
    %v4197 = vunpack.c.l.b16 %v581
    %v4198 = vunpack.c.h.b16 %v581
    %v4199 = vunpack.c.l.b16 %v582
    %v4200 = vunpack.c.h.b16 %v582
    %v4201 = vunpack.c.l.b16 %v583
    %v4202 = vunpack.c.h.b16 %v583
    %v4203 = vunpack.c.l.b16 %v584
    %v4204 = vunpack.c.h.b16 %v584
    %v4205 = vunpack.c.l.b16 %v585
    %v4206 = vunpack.c.h.b16 %v585
    %v4207 = vunpack.c.l.b16 %v586
    %v4208 = vunpack.c.h.b16 %v586
    %v4209 = vunpack.c.l.b16 %v587
    %v4210 = vunpack.c.h.b16 %v587
    %v4211 = vunpack.c.l.b16 %v588
    %v4212 = vunpack.c.h.b16 %v588
    %v4213 = vunpack.c.l.b16 %v589
    %v4214 = vunpack.c.h.b16 %v589
    %v4215 = vunpack.c.l.b16 %v590
    %v4216 = vunpack.c.h.b16 %v590
    %v4217 = vunpack.c.l.b16 %v591
    %v4218 = vunpack.c.h.b16 %v591
    %v4219 = vunpack.c.l.b16 %v592
    %v4220 = vunpack.c.h.b16 %v592
    %v4221 = vunpack.c.l.b16 %v593
    %v4222 = vunpack.c.h.b16 %v593
    %v4223 = vunpack.c.l.b16 %v594
    %v4224 = vunpack.c.h.b16 %v594
    %v4225 = vunpack.c.l.b16 %v595
    %v4226 = vunpack.c.h.b16 %v595
    %v4227 = vunpack.c.l.b16 %v596
    %v4228 = vunpack.c.h.b16 %v596
    %v4229 = vunpack.c.l.b16 %v597
    %v4230 = vunpack.c.h.b16 %v597
    %v4231 = vunpack.c.l.b16 %v598
    %v4232 = vunpack.c.h.b16 %v598
    %v4233 = vunpack.c.l.b16 %v599
    %v4234 = vunpack.c.h.b16 %v599
    %v4235 = vunpack.c.l.b16 %v600
    %v4236 = vunpack.c.h.b16 %v600
    %v4237 = vunpack.c.l.b16 %v601
    %v4238 = vunpack.c.h.b16 %v601
    %v4239 = vunpack.c.l.b16 %v602
    %v4240 = vunpack.c.h.b16 %v602
    %v4241 = vunpack.c.l.b16 %v603
    %v4242 = vunpack.c.h.b16 %v603
    %v4243 = vunpack.c.l.b16 %v604
    %v4244 = vunpack.c.h.b16 %v604
    %v4245 = vunpack.c.l.b16 %v605
    %v4246 = vunpack.c.h.b16 %v605
    %v4247 = vunpack.c.l.b16 %v606
    %v4248 = vunpack.c.h.b16 %v606
    %v4249 = vunpack.c.l.b16 %v607
    %v4250 = vunpack.c.h.b16 %v607
    %v4251 = vunpack.c.l.b16 %v608
    %v4252 = vunpack.c.h.b16 %v608
    %v4253 = vunpack.c.l.b16 %v609
    %v4254 = vunpack.c.h.b16 %v609
    %v4255 = vunpack.c.l.b16 %v610
    %v4256 = vunpack.c.h.b16 %v610
    %v4257 = vunpack.c.l.b16 %v611
    %v4258 = vunpack.c.h.b16 %v611
    %v4259 = vunpack.c.l.b16 %v612
    %v4260 = vunpack.c.h.b16 %v612
    %v4261 = vunpack.c.l.b16 %v613
    %v4262 = vunpack.c.h.b16 %v613
    %v4263 = vunpack.c.l.b16 %v614
    %v4264 = vunpack.c.h.b16 %v614
    %v4265 = vunpack.c.l.b16 %v615
    %v4266 = vunpack.c.h.b16 %v615
    %v4267 = vunpack.c.l.b16 %v616
    %v4268 = vunpack.c.h.b16 %v616
    %v4269 = vunpack.c.l.b16 %v617
    %v4270 = vunpack.c.h.b16 %v617
    %v4271 = vunpack.c.l.b16 %v618
    %v4272 = vunpack.c.h.b16 %v618
    %v4273 = vunpack.c.l.b16 %v619
    %v4274 = vunpack.c.h.b16 %v619
    %v4275 = vunpack.c.l.b16 %v620
    %v4276 = vunpack.c.h.b16 %v620
    %v4277 = vunpack.c.l.b16 %v621
    %v4278 = vunpack.c.h.b16 %v621
    %v4279 = vunpack.c.l.b16 %v622
    %v4280 = vunpack.c.h.b16 %v622
    %v4281 = vunpack.c.l.b16 %v623
    %v4282 = vunpack.c.h.b16 %v623
    %v4283 = vunpack.c.l.b16 %v624
    %v4284 = vunpack.c.h.b16 %v624
    %v4285 = vunpack.c.l.b16 %v625
    %v4286 = vunpack.c.h.b16 %v625
    %v4287 = vunpack.c.l.b16 %v626
    %v4288 = vunpack.c.h.b16 %v626
    %v4289 = vunpack.c.l.b16 %v627
    %v4290 = vunpack.c.h.b16 %v627
    %v4291 = vunpack.c.l.b16 %v628
    %v4292 = vunpack.c.h.b16 %v628
    %v4293 = vunpack.c.l.b16 %v629
    %v4294 = vunpack.c.h.b16 %v629
    %v4295 = vunpack.c.l.b16 %v630
    %v4296 = vunpack.c.h.b16 %v630
    %v4297 = vunpack.c.l.b16 %v631
    %v4298 = vunpack.c.h.b16 %v631
    %v4299 = vunpack.c.l.b16 %v632
    %v4300 = vunpack.c.h.b16 %v632
    %v4301 = vunpack.c.l.b16 %v633
    %v4302 = vunpack.c.h.b16 %v633
    %v4303 = vunpack.c.l.b16 %v634
    %v4304 = vunpack.c.h.b16 %v634
    %v4305 = vunpack.c.l.b16 %v635
    %v4306 = vunpack.c.h.b16 %v635
    %v4307 = vunpack.c.l.b16 %v636
    %v4308 = vunpack.c.h.b16 %v636
    %v4309 = vunpack.c.l.b16 %v637
    %v4310 = vunpack.c.h.b16 %v637
    %v4311 = vunpack.c.l.b16 %v638
    %v4312 = vunpack.c.h.b16 %v638
    %v4313 = vunpack.c.l.b16 %v639
    %v4314 = vunpack.c.h.b16 %v639
    %v4315 = vunpack.c.l.b16 %v640
    %v4316 = vunpack.c.h.b16 %v640
    %v4317 = vunpack.c.l.b16 %v641
    %v4318 = vunpack.c.h.b16 %v641
    %v4319 = vunpack.c.l.b16 %v642
    %v4320 = vunpack.c.h.b16 %v642
    %v4321 = vunpack.c.l.b16 %v643
    %v4322 = vunpack.c.h.b16 %v643
    %v4323 = vunpack.c.l.b16 %v644
    %v4324 = vunpack.c.h.b16 %v644
    %v4325 = vunpack.c.l.b16 %v645
    %v4326 = vunpack.c.h.b16 %v645
    %v4327 = vunpack.c.l.b16 %v646
    %v4328 = vunpack.c.h.b16 %v646
    %v4329 = vunpack.c.l.b16 %v647
    %v4330 = vunpack.c.h.b16 %v647
    %v4331 = vunpack.c.l.b16 %v648
    %v4332 = vunpack.c.h.b16 %v648
    %v4333 = vunpack.c.l.b16 %v649
    %v4334 = vunpack.c.h.b16 %v649
    %v4335 = vunpack.c.l.b16 %v650
    %v4336 = vunpack.c.h.b16 %v650
    %v4337 = vunpack.c.l.b16 %v651
    %v4338 = vunpack.c.h.b16 %v651
    %v4339 = vunpack.c.l.b16 %v652
    %v4340 = vunpack.c.h.b16 %v652
    %v4341 = vunpack.c.l.b16 %v653
    %v4342 = vunpack.c.h.b16 %v653
    %v4343 = vunpack.c.l.b16 %v654
    %v4344 = vunpack.c.h.b16 %v654
    %v4345 = vunpack.c.l.b16 %v655
    %v4346 = vunpack.c.h.b16 %v655
    %v4347 = vunpack.c.l.b16 %v656
    %v4348 = vunpack.c.h.b16 %v656
    %v4349 = vunpack.c.l.b16 %v657
    %v4350 = vunpack.c.h.b16 %v657
    %v4351 = vunpack.c.l.b16 %v658
    %v4352 = vunpack.c.h.b16 %v658
    %v4353 = vunpack.c.l.b16 %v659
    %v4354 = vunpack.c.h.b16 %v659
    %v4355 = vunpack.c.l.b16 %v660
    %v4356 = vunpack.c.h.b16 %v660
    %v4357 = vunpack.c.l.b16 %v661
    %v4358 = vunpack.c.h.b16 %v661
    %v4359 = vunpack.c.l.b16 %v662
    %v4360 = vunpack.c.h.b16 %v662
    %v4361 = vunpack.c.l.b16 %v663
    %v4362 = vunpack.c.h.b16 %v663
    %v4363 = vunpack.c.l.b16 %v664
    %v4364 = vunpack.c.h.b16 %v664
    %v4365 = vunpack.c.l.b16 %v665
    %v4366 = vunpack.c.h.b16 %v665
    %v4367 = vunpack.c.l.b16 %v666
    %v4368 = vunpack.c.h.b16 %v666
    %v4369 = vunpack.c.l.b16 %v667
    %v4370 = vunpack.c.h.b16 %v667
    %v4371 = vunpack.c.l.b16 %v668
    %v4372 = vunpack.c.h.b16 %v668
    %v4373 = vunpack.c.l.b16 %v669
    %v4374 = vunpack.c.h.b16 %v669
    %v4375 = vunpack.c.l.b16 %v670
    %v4376 = vunpack.c.h.b16 %v670
    %v4377 = vunpack.c.l.b16 %v671
    %v4378 = vunpack.c.h.b16 %v671
    %v4379 = vunpack.c.l.b16 %v672
    %v4380 = vunpack.c.h.b16 %v672
    %v4381 = vunpack.c.l.b16 %v673
    %v4382 = vunpack.c.h.b16 %v673
    %v4383 = vunpack.c.l.b16 %v674
    %v4384 = vunpack.c.h.b16 %v674
    %v4385 = vunpack.c.l.b16 %v675
    %v4386 = vunpack.c.h.b16 %v675
    %v4387 = vunpack.c.l.b16 %v676
    %v4388 = vunpack.c.h.b16 %v676
    %v4389 = vunpack.c.l.b16 %v677
    %v4390 = vunpack.c.h.b16 %v677
    %v4391 = vunpack.c.l.b16 %v678
    %v4392 = vunpack.c.h.b16 %v678
    %v4393 = vunpack.c.l.b16 %v679
    %v4394 = vunpack.c.h.b16 %v679
    %v4395 = vunpack.c.l.b16 %v680
    %v4396 = vunpack.c.h.b16 %v680
    %v4397 = vunpack.c.l.b16 %v681
    %v4398 = vunpack.c.h.b16 %v681
    %v4399 = vunpack.c.l.b16 %v682
    %v4400 = vunpack.c.h.b16 %v682
    %v4401 = vunpack.c.l.b16 %v683
    %v4402 = vunpack.c.h.b16 %v683
    %v4403 = vunpack.c.l.b16 %v684
    %v4404 = vunpack.c.h.b16 %v684
    %v4405 = vunpack.c.l.b16 %v685
    %v4406 = vunpack.c.h.b16 %v685
    %v4407 = vunpack.c.l.b16 %v686
    %v4408 = vunpack.c.h.b16 %v686
    %v4409 = vunpack.c.l.b16 %v687
    %v4410 = vunpack.c.h.b16 %v687
    %v4411 = vunpack.c.l.b16 %v688
    %v4412 = vunpack.c.h.b16 %v688
    %v4413 = vunpack.c.l.b16 %v689
    %v4414 = vunpack.c.h.b16 %v689
    %v4415 = vunpack.c.l.b16 %v690
    %v4416 = vunpack.c.h.b16 %v690
    %v4417 = vunpack.c.l.b16 %v691
    %v4418 = vunpack.c.h.b16 %v691
    %v4419 = vunpack.c.l.b16 %v692
    %v4420 = vunpack.c.h.b16 %v692
    %v4421 = vunpack.c.l.b16 %v693
    %v4422 = vunpack.c.h.b16 %v693
    %v4423 = vunpack.c.l.b16 %v694
    %v4424 = vunpack.c.h.b16 %v694
    %v4425 = vunpack.c.l.b16 %v695
    %v4426 = vunpack.c.h.b16 %v695
    %v4427 = vunpack.c.l.b16 %v696
    %v4428 = vunpack.c.h.b16 %v696
    %v4429 = vunpack.c.l.b16 %v697
    %v4430 = vunpack.c.h.b16 %v697
    %v4431 = vunpack.c.l.b16 %v698
    %v4432 = vunpack.c.h.b16 %v698
    %v4433 = vunpack.c.l.b16 %v699
    %v4434 = vunpack.c.h.b16 %v699
    %v4435 = vunpack.c.l.b16 %v700
    %v4436 = vunpack.c.h.b16 %v700
    %v4437 = vunpack.c.l.b16 %v701
    %v4438 = vunpack.c.h.b16 %v701
    %v4439 = vunpack.c.l.b16 %v702
    %v4440 = vunpack.c.h.b16 %v702
    %v4441 = vunpack.c.l.b16 %v703
    %v4442 = vunpack.c.h.b16 %v703
    %v4443 = vunpack.c.l.b16 %v704
    %v4444 = vunpack.c.h.b16 %v704
    %v4445 = vunpack.c.l.b16 %v705
    %v4446 = vunpack.c.h.b16 %v705
    %v4447 = vunpack.c.l.b16 %v706
    %v4448 = vunpack.c.h.b16 %v706
    %v4449 = vunpack.c.l.b16 %v707
    %v4450 = vunpack.c.h.b16 %v707
    %v4451 = vunpack.c.l.b16 %v708
    %v4452 = vunpack.c.h.b16 %v708
    %v4453 = vunpack.c.l.b16 %v709
    %v4454 = vunpack.c.h.b16 %v709
    %v4455 = vunpack.c.l.b16 %v710
    %v4456 = vunpack.c.h.b16 %v710
    %v4457 = vunpack.c.l.b16 %v711
    %v4458 = vunpack.c.h.b16 %v711
    %v4459 = vunpack.c.l.b16 %v712
    %v4460 = vunpack.c.h.b16 %v712
    %v4461 = vunpack.c.l.b16 %v713
    %v4462 = vunpack.c.h.b16 %v713
    %v4463 = vunpack.c.l.b16 %v714
    %v4464 = vunpack.c.h.b16 %v714
    %v4465 = vunpack.c.l.b16 %v715
    %v4466 = vunpack.c.h.b16 %v715
    %v4467 = vunpack.c.l.b16 %v716
    %v4468 = vunpack.c.h.b16 %v716
    %v4469 = vunpack.c.l.b16 %v717
    %v4470 = vunpack.c.h.b16 %v717
    %v4471 = vunpack.c.l.b16 %v718
    %v4472 = vunpack.c.h.b16 %v718
    %v4473 = vunpack.c.l.b16 %v719
    %v4474 = vunpack.c.h.b16 %v719
    %v4475 = vunpack.c.l.b16 %v720
    %v4476 = vunpack.c.h.b16 %v720
    %v4477 = vunpack.c.l.b16 %v721
    %v4478 = vunpack.c.h.b16 %v721
    %v4479 = vunpack.c.l.b16 %v722
    %v4480 = vunpack.c.h.b16 %v722
    %v4481 = vunpack.c.l.b16 %v723
    %v4482 = vunpack.c.h.b16 %v723
    %v4483 = vunpack.c.l.b16 %v724
    %v4484 = vunpack.c.h.b16 %v724
    %v4485 = vunpack.c.l.b16 %v725
    %v4486 = vunpack.c.h.b16 %v725
    %v4487 = vunpack.c.l.b16 %v726
    %v4488 = vunpack.c.h.b16 %v726
    %v4489 = vunpack.c.l.b16 %v727
    %v4490 = vunpack.c.h.b16 %v727
    %v4491 = vunpack.c.l.b16 %v728
    %v4492 = vunpack.c.h.b16 %v728
    %v4493 = vunpack.c.l.b16 %v729
    %v4494 = vunpack.c.h.b16 %v729
    %v4495 = vunpack.c.l.b16 %v730
    %v4496 = vunpack.c.h.b16 %v730
    %v4497 = vunpack.c.l.b16 %v731
    %v4498 = vunpack.c.h.b16 %v731
    %v4499 = vunpack.c.l.b16 %v732
    %v4500 = vunpack.c.h.b16 %v732
    %v4501 = vunpack.c.l.b16 %v733
    %v4502 = vunpack.c.h.b16 %v733
    %v4503 = vunpack.c.l.b16 %v734
    %v4504 = vunpack.c.h.b16 %v734
    %v4505 = vunpack.c.l.b16 %v735
    %v4506 = vunpack.c.h.b16 %v735
    %v4507 = vunpack.c.l.b16 %v736
    %v4508 = vunpack.c.h.b16 %v736
    %v4509 = vunpack.c.l.b16 %v737
    %v4510 = vunpack.c.h.b16 %v737
    %v4511 = vunpack.c.l.b16 %v738
    %v4512 = vunpack.c.h.b16 %v738
    %v4513 = vunpack.c.l.b16 %v739
    %v4514 = vunpack.c.h.b16 %v739
    %v4515 = vunpack.c.l.b16 %v740
    %v4516 = vunpack.c.h.b16 %v740
    %v4517 = vunpack.c.l.b16 %v741
    %v4518 = vunpack.c.h.b16 %v741
    %v4519 = vunpack.c.l.b16 %v742
    %v4520 = vunpack.c.h.b16 %v742
    %v4521 = vunpack.c.l.b16 %v743
    %v4522 = vunpack.c.h.b16 %v743
    %v4523 = vunpack.c.l.b16 %v744
    %v4524 = vunpack.c.h.b16 %v744
    %v4525 = vunpack.c.l.b16 %v745
    %v4526 = vunpack.c.h.b16 %v745
    %v4527 = vunpack.c.l.b16 %v746
    %v4528 = vunpack.c.h.b16 %v746
    %v4529 = vunpack.c.l.b16 %v747
    %v4530 = vunpack.c.h.b16 %v747
    %v4531 = vunpack.c.l.b16 %v748
    %v4532 = vunpack.c.h.b16 %v748
    %v4533 = vunpack.c.l.b16 %v749
    %v4534 = vunpack.c.h.b16 %v749
    %v4535 = vunpack.c.l.b16 %v750
    %v4536 = vunpack.c.h.b16 %v750
    %v4537 = vunpack.c.l.b16 %v751
    %v4538 = vunpack.c.h.b16 %v751
    %v4539 = vunpack.c.l.b16 %v752
    %v4540 = vunpack.c.h.b16 %v752
    %v4541 = vunpack.c.l.b16 %v753
    %v4542 = vunpack.c.h.b16 %v753
    %v4543 = vunpack.c.l.b16 %v754
    %v4544 = vunpack.c.h.b16 %v754
    %v4545 = vunpack.c.l.b16 %v755
    %v4546 = vunpack.c.h.b16 %v755
    %v4547 = vunpack.c.l.b16 %v756
    %v4548 = vunpack.c.h.b16 %v756
    %v4549 = vunpack.c.l.b16 %v757
    %v4550 = vunpack.c.h.b16 %v757
    %v4551 = vunpack.c.l.b16 %v758
    %v4552 = vunpack.c.h.b16 %v758
    %v4553 = vunpack.c.l.b16 %v759
    %v4554 = vunpack.c.h.b16 %v759
    %v4555 = vunpack.c.l.b16 %v760
    %v4556 = vunpack.c.h.b16 %v760
    %v4557 = vunpack.c.l.b16 %v761
    %v4558 = vunpack.c.h.b16 %v761
    %v4559 = vunpack.c.l.b16 %v762
    %v4560 = vunpack.c.h.b16 %v762
    %v4561 = vunpack.c.l.b16 %v763
    %v4562 = vunpack.c.h.b16 %v763
    %v4563 = vunpack.c.l.b16 %v764
    %v4564 = vunpack.c.h.b16 %v764
    %v4565 = vunpack.c.l.b16 %v765
    %v4566 = vunpack.c.h.b16 %v765
    %v4567 = vunpack.c.l.b16 %v766
    %v4568 = vunpack.c.h.b16 %v766
    %v4569 = vunpack.c.l.b16 %v767
    %v4570 = vunpack.c.h.b16 %v767
    %v4571 = vunpack.c.l.b16 %v768
    %v4572 = vunpack.c.h.b16 %v768
    %v4573 = vunpack.c.l.b16 %v769
    %v4574 = vunpack.c.h.b16 %v769
    %v4575 = vunpack.c.l.b16 %v770
    %v4576 = vunpack.c.h.b16 %v770
    %v4577 = vunpack.c.l.b16 %v771
    %v4578 = vunpack.c.h.b16 %v771
    %v4579 = vunpack.c.l.b16 %v772
    %v4580 = vunpack.c.h.b16 %v772
    %v4581 = vunpack.c.l.b16 %v773
    %v4582 = vunpack.c.h.b16 %v773
    %v4583 = vunpack.c.l.b16 %v774
    %v4584 = vunpack.c.h.b16 %v774
    %v4585 = vunpack.c.l.b16 %v775
    %v4586 = vunpack.c.h.b16 %v775
    %v4587 = vunpack.c.l.b16 %v776
    %v4588 = vunpack.c.h.b16 %v776
    %v4589 = vunpack.c.l.b16 %v777
    %v4590 = vunpack.c.h.b16 %v777
    %v4591 = vunpack.c.l.b16 %v778
    %v4592 = vunpack.c.h.b16 %v778
    %v4593 = vunpack.c.l.b16 %v779
    %v4594 = vunpack.c.h.b16 %v779
    %v4595 = vunpack.c.l.b16 %v780
    %v4596 = vunpack.c.h.b16 %v780
    %v4597 = vunpack.c.l.b16 %v781
    %v4598 = vunpack.c.h.b16 %v781
    %v4599 = vunpack.c.l.b16 %v782
    %v4600 = vunpack.c.h.b16 %v782
    %v4601 = vunpack.c.l.b16 %v783
    %v4602 = vunpack.c.h.b16 %v783
    %v4603 = vunpack.c.l.b16 %v784
    %v4604 = vunpack.c.h.b16 %v784
    %v4605 = vunpack.c.l.b16 %v785
    %v4606 = vunpack.c.h.b16 %v785
    %v4607 = vunpack.c.l.b16 %v786
    %v4608 = vunpack.c.h.b16 %v786
    %v4609 = vunpack.c.l.b16 %v787
    %v4610 = vunpack.c.h.b16 %v787
    %v4611 = vunpack.c.l.b16 %v788
    %v4612 = vunpack.c.h.b16 %v788
    %v4613 = vunpack.c.l.b16 %v789
    %v4614 = vunpack.c.h.b16 %v789
    %v4615 = vunpack.c.l.b16 %v790
    %v4616 = vunpack.c.h.b16 %v790
    %v4617 = vunpack.c.l.b16 %v791
    %v4618 = vunpack.c.h.b16 %v791
    %v4619 = vunpack.c.l.b16 %v792
    %v4620 = vunpack.c.h.b16 %v792
    %v4621 = vunpack.c.l.b16 %v793
    %v4622 = vunpack.c.h.b16 %v793
    %v4623 = vunpack.c.l.b16 %v794
    %v4624 = vunpack.c.h.b16 %v794
    %v4625 = vunpack.c.l.b16 %v795
    %v4626 = vunpack.c.h.b16 %v795
    %v4627 = vunpack.c.l.b16 %v796
    %v4628 = vunpack.c.h.b16 %v796
    %v4629 = vunpack.c.l.b16 %v797
    %v4630 = vunpack.c.h.b16 %v797
    %v4631 = vunpack.c.l.b16 %v798
    %v4632 = vunpack.c.h.b16 %v798
    %v4633 = vunpack.c.l.b16 %v799
    %v4634 = vunpack.c.h.b16 %v799
    %v4635 = vunpack.c.l.b16 %v800
    %v4636 = vunpack.c.h.b16 %v800
    %v4637 = vunpack.c.l.b16 %v801
    %v4638 = vunpack.c.h.b16 %v801
    %v4639 = vunpack.c.l.b16 %v802
    %v4640 = vunpack.c.h.b16 %v802
    %v4641 = vunpack.c.l.b16 %v803
    %v4642 = vunpack.c.h.b16 %v803
    %v4643 = vunpack.c.l.b16 %v804
    %v4644 = vunpack.c.h.b16 %v804
    %v4645 = vunpack.c.l.b16 %v805
    %v4646 = vunpack.c.h.b16 %v805
    %v4647 = vunpack.c.l.b16 %v806
    %v4648 = vunpack.c.h.b16 %v806
    %v4649 = vunpack.c.l.b16 %v807
    %v4650 = vunpack.c.h.b16 %v807
    %v4651 = vunpack.c.l.b16 %v808
    %v4652 = vunpack.c.h.b16 %v808
    %v4653 = vunpack.c.l.b16 %v809
    %v4654 = vunpack.c.h.b16 %v809
    %v4655 = vunpack.c.l.b16 %v810
    %v4656 = vunpack.c.h.b16 %v810
    %v4657 = vunpack.c.l.b16 %v811
    %v4658 = vunpack.c.h.b16 %v811
    %v4659 = vunpack.c.l.b16 %v812
    %v4660 = vunpack.c.h.b16 %v812
    %v4661 = vunpack.c.l.b16 %v813
    %v4662 = vunpack.c.h.b16 %v813
    %v4663 = vunpack.c.l.b16 %v814
    %v4664 = vunpack.c.h.b16 %v814
    %v4665 = vunpack.c.l.b16 %v815
    %v4666 = vunpack.c.h.b16 %v815
    %v4667 = vunpack.c.l.b16 %v816
    %v4668 = vunpack.c.h.b16 %v816
    %v4669 = vunpack.c.l.b16 %v817
    %v4670 = vunpack.c.h.b16 %v817
    %v4671 = vunpack.c.l.b16 %v818
    %v4672 = vunpack.c.h.b16 %v818
    %v4673 = vunpack.c.l.b16 %v819
    %v4674 = vunpack.c.h.b16 %v819
    %v4675 = vunpack.c.l.b16 %v820
    %v4676 = vunpack.c.h.b16 %v820
    %v4677 = vunpack.c.l.b16 %v821
    %v4678 = vunpack.c.h.b16 %v821
    %v4679 = vunpack.c.l.b16 %v822
    %v4680 = vunpack.c.h.b16 %v822
    %v4681 = vunpack.c.l.b16 %v823
    %v4682 = vunpack.c.h.b16 %v823
    %v4683 = vunpack.c.l.b16 %v824
    %v4684 = vunpack.c.h.b16 %v824
    %v4685 = vunpack.c.l.b16 %v825
    %v4686 = vunpack.c.h.b16 %v825
    %v4687 = vunpack.c.l.b16 %v826
    %v4688 = vunpack.c.h.b16 %v826
    %v4689 = vunpack.c.l.b16 %v827
    %v4690 = vunpack.c.h.b16 %v827
    %v4691 = vunpack.c.l.b16 %v828
    %v4692 = vunpack.c.h.b16 %v828
    %v4693 = vunpack.c.l.b16 %v829
    %v4694 = vunpack.c.h.b16 %v829
    %v4695 = vunpack.c.l.b16 %v830
    %v4696 = vunpack.c.h.b16 %v830
    %v4697 = vunpack.c.l.b16 %v831
    %v4698 = vunpack.c.h.b16 %v831
    %v4699 = vunpack.c.l.b16 %v832
    %v4700 = vunpack.c.h.b16 %v832
    %v4701 = vunpack.c.l.b16 %v833
    %v4702 = vunpack.c.h.b16 %v833
    %v4703 = vunpack.c.l.b16 %v834
    %v4704 = vunpack.c.h.b16 %v834
    %v4705 = vunpack.c.l.b16 %v835
    %v4706 = vunpack.c.h.b16 %v835
    %v4707 = vunpack.c.l.b16 %v836
    %v4708 = vunpack.c.h.b16 %v836
    %v4709 = vunpack.c.l.b16 %v837
    %v4710 = vunpack.c.h.b16 %v837
    %v4711 = vunpack.c.l.b16 %v838
    %v4712 = vunpack.c.h.b16 %v838
    %v4713 = vunpack.c.l.b16 %v839
    %v4714 = vunpack.c.h.b16 %v839
    %v4715 = vunpack.c.l.b16 %v840
    %v4716 = vunpack.c.h.b16 %v840
    %v4717 = vunpack.c.l.b16 %v841
    %v4718 = vunpack.c.h.b16 %v841
    %v4719 = vunpack.c.l.b16 %v842
    %v4720 = vunpack.c.h.b16 %v842
    %v4721 = vunpack.c.l.b16 %v843
    %v4722 = vunpack.c.h.b16 %v843
    %v4723 = vunpack.c.l.b16 %v844
    %v4724 = vunpack.c.h.b16 %v844
    %v4725 = vunpack.c.l.b16 %v845
    %v4726 = vunpack.c.h.b16 %v845
    %v4727 = vunpack.c.l.b16 %v846
    %v4728 = vunpack.c.h.b16 %v846
    %v4729 = vunpack.c.l.b16 %v847
    %v4730 = vunpack.c.h.b16 %v847
    %v4731 = vunpack.c.l.b16 %v848
    %v4732 = vunpack.c.h.b16 %v848
    %v4733 = vunpack.c.l.b16 %v849
    %v4734 = vunpack.c.h.b16 %v849
    %v4735 = vunpack.c.l.b16 %v850
    %v4736 = vunpack.c.h.b16 %v850
    %v4737 = vunpack.c.l.b16 %v851
    %v4738 = vunpack.c.h.b16 %v851
    %v4739 = vunpack.c.l.b16 %v852
    %v4740 = vunpack.c.h.b16 %v852
    %v4741 = vunpack.c.l.b16 %v853
    %v4742 = vunpack.c.h.b16 %v853
    %v4743 = vunpack.c.l.b16 %v854
    %v4744 = vunpack.c.h.b16 %v854
    %v4745 = vunpack.c.l.b16 %v855
    %v4746 = vunpack.c.h.b16 %v855
    %v4747 = vunpack.c.l.b16 %v856
    %v4748 = vunpack.c.h.b16 %v856
    %v4749 = vunpack.c.l.b16 %v857
    %v4750 = vunpack.c.h.b16 %v857
    %v4751 = vunpack.c.l.b16 %v858
    %v4752 = vunpack.c.h.b16 %v858
    %v4753 = vunpack.c.l.b16 %v859
    %v4754 = vunpack.c.h.b16 %v859
    %v4755 = vunpack.c.l.b16 %v860
    %v4756 = vunpack.c.h.b16 %v860
    %v4757 = vunpack.c.l.b16 %v861
    %v4758 = vunpack.c.h.b16 %v861
    %v4759 = vunpack.c.l.b16 %v862
    %v4760 = vunpack.c.h.b16 %v862
    %v4761 = vunpack.c.l.b16 %v863
    %v4762 = vunpack.c.h.b16 %v863
    %v4763 = vunpack.c.l.b16 %v864
    %v4764 = vunpack.c.h.b16 %v864
    %v4765 = vunpack.c.l.b16 %v865
    %v4766 = vunpack.c.h.b16 %v865
    %v4767 = vunpack.c.l.b16 %v866
    %v4768 = vunpack.c.h.b16 %v866
    %v4769 = vunpack.c.l.b16 %v867
    %v4770 = vunpack.c.h.b16 %v867
    %v4771 = vunpack.c.l.b16 %v868
    %v4772 = vunpack.c.h.b16 %v868
    %v4773 = vunpack.c.l.b16 %v869
    %v4774 = vunpack.c.h.b16 %v869
    %v4775 = vunpack.c.l.b16 %v870
    %v4776 = vunpack.c.h.b16 %v870
    %v4777 = vunpack.c.l.b16 %v871
    %v4778 = vunpack.c.h.b16 %v871
    %v4779 = vunpack.c.l.b16 %v872
    %v4780 = vunpack.c.h.b16 %v872
    %v4781 = vunpack.c.l.b16 %v873
    %v4782 = vunpack.c.h.b16 %v873
    %v4783 = vunpack.c.l.b16 %v874
    %v4784 = vunpack.c.h.b16 %v874
    %v4785 = vunpack.c.l.b16 %v875
    %v4786 = vunpack.c.h.b16 %v875
    %v4787 = vunpack.c.l.b16 %v876
    %v4788 = vunpack.c.h.b16 %v876
    %v4789 = vunpack.c.l.b16 %v877
    %v4790 = vunpack.c.h.b16 %v877
    %v4791 = vunpack.c.l.b16 %v878
    %v4792 = vunpack.c.h.b16 %v878
    %v4793 = vunpack.c.l.b16 %v879
    %v4794 = vunpack.c.h.b16 %v879
    %v4795 = vunpack.c.l.b16 %v880
    %v4796 = vunpack.c.h.b16 %v880
    %v4797 = vunpack.c.l.b16 %v881
    %v4798 = vunpack.c.h.b16 %v881
    %v4799 = vunpack.c.l.b16 %v882
    %v4800 = vunpack.c.h.b16 %v882
    %v4801 = vunpack.c.l.b16 %v883
    %v4802 = vunpack.c.h.b16 %v883
    %v4803 = vunpack.c.l.b16 %v884
    %v4804 = vunpack.c.h.b16 %v884
    %v4805 = vunpack.c.l.b16 %v885
    %v4806 = vunpack.c.h.b16 %v885
    %v4807 = vunpack.c.l.b16 %v886
    %v4808 = vunpack.c.h.b16 %v886
    %v4809 = vunpack.c.l.b16 %v887
    %v4810 = vunpack.c.h.b16 %v887
    %v4811 = vunpack.c.l.b16 %v888
    %v4812 = vunpack.c.h.b16 %v888
    %v4813 = vunpack.c.l.b16 %v889
    %v4814 = vunpack.c.h.b16 %v889
    %v4815 = vunpack.c.l.b16 %v890
    %v4816 = vunpack.c.h.b16 %v890
    %v4817 = vunpack.c.l.b16 %v891
    %v4818 = vunpack.c.h.b16 %v891
    %v4819 = vunpack.c.l.b16 %v892
    %v4820 = vunpack.c.h.b16 %v892
    %v4821 = vunpack.c.l.b16 %v893
    %v4822 = vunpack.c.h.b16 %v893
    %v4823 = vunpack.c.l.b16 %v894
    %v4824 = vunpack.c.h.b16 %v894
    %v4825 = vunpack.c.l.b16 %v895
    %v4826 = vunpack.c.h.b16 %v895
    %v4827 = vunpack.c.l.b16 %v896
    %v4828 = vunpack.c.h.b16 %v896
    %v4829 = vunpack.c.l.b16 %v897
    %v4830 = vunpack.c.h.b16 %v897
    %v4831 = vunpack.c.l.b16 %v898
    %v4832 = vunpack.c.h.b16 %v898
    %v4833 = vunpack.c.l.b16 %v899
    %v4834 = vunpack.c.h.b16 %v899
    %v4835 = vunpack.c.l.b16 %v900
    %v4836 = vunpack.c.h.b16 %v900
    %v4837 = vunpack.c.l.b16 %v901
    %v4838 = vunpack.c.h.b16 %v901
    %v4839 = vunpack.c.l.b16 %v902
    %v4840 = vunpack.c.h.b16 %v902
    %v4841 = vunpack.c.l.b16 %v903
    %v4842 = vunpack.c.h.b16 %v903
    %v4843 = vunpack.c.l.b16 %v904
    %v4844 = vunpack.c.h.b16 %v904
    %v4845 = vunpack.c.l.b16 %v905
    %v4846 = vunpack.c.h.b16 %v905
    %v4847 = vunpack.c.l.b16 %v906
    %v4848 = vunpack.c.h.b16 %v906
    %v4849 = vunpack.c.l.b16 %v907
    %v4850 = vunpack.c.h.b16 %v907
    %v4851 = vunpack.c.l.b16 %v908
    %v4852 = vunpack.c.h.b16 %v908
    %v4853 = vunpack.c.l.b16 %v909
    %v4854 = vunpack.c.h.b16 %v909
    %v4855 = vunpack.c.l.b16 %v910
    %v4856 = vunpack.c.h.b16 %v910
    %v4857 = vunpack.c.l.b16 %v911
    %v4858 = vunpack.c.h.b16 %v911
    %v4859 = vunpack.c.l.b16 %v912
    %v4860 = vunpack.c.h.b16 %v912
    %v4861 = vunpack.c.l.b16 %v913
    %v4862 = vunpack.c.h.b16 %v913
    %v4863 = vunpack.c.l.b16 %v914
    %v4864 = vunpack.c.h.b16 %v914
    %v4865 = vunpack.c.l.b16 %v915
    %v4866 = vunpack.c.h.b16 %v915
    %v4867 = vunpack.c.l.b16 %v916
    %v4868 = vunpack.c.h.b16 %v916
    %v4869 = vunpack.c.l.b16 %v917
    %v4870 = vunpack.c.h.b16 %v917
    %v4871 = vunpack.c.l.b16 %v918
    %v4872 = vunpack.c.h.b16 %v918
    %v4873 = vunpack.c.l.b16 %v919
    %v4874 = vunpack.c.h.b16 %v919
    %v4875 = vunpack.c.l.b16 %v920
    %v4876 = vunpack.c.h.b16 %v920
    %v4877 = vunpack.c.l.b16 %v921
    %v4878 = vunpack.c.h.b16 %v921
    %v4879 = vunpack.c.l.b16 %v922
    %v4880 = vunpack.c.h.b16 %v922
    %v4881 = vunpack.c.l.b16 %v923
    %v4882 = vunpack.c.h.b16 %v923
    %v4883 = vunpack.c.l.b16 %v924
    %v4884 = vunpack.c.h.b16 %v924
    %v4885 = vunpack.c.l.b16 %v925
    %v4886 = vunpack.c.h.b16 %v925
    %v4887 = vunpack.c.l.b16 %v926
    %v4888 = vunpack.c.h.b16 %v926
    %v4889 = vunpack.c.l.b16 %v927
    %v4890 = vunpack.c.h.b16 %v927
    %v4891 = vunpack.c.l.b16 %v928
    %v4892 = vunpack.c.h.b16 %v928
    %v4893 = vunpack.c.l.b16 %v929
    %v4894 = vunpack.c.h.b16 %v929
    %v4895 = vunpack.c.l.b16 %v930
    %v4896 = vunpack.c.h.b16 %v930
    %v4897 = vunpack.c.l.b16 %v931
    %v4898 = vunpack.c.h.b16 %v931
    %v4899 = vunpack.c.l.b16 %v932
    %v4900 = vunpack.c.h.b16 %v932
    %v4901 = vunpack.c.l.b16 %v933
    %v4902 = vunpack.c.h.b16 %v933
    %v4903 = vunpack.c.l.b16 %v934
    %v4904 = vunpack.c.h.b16 %v934
    %v4905 = vunpack.c.l.b16 %v935
    %v4906 = vunpack.c.h.b16 %v935
    %v4907 = vunpack.c.l.b16 %v936
    %v4908 = vunpack.c.h.b16 %v936
    %v4909 = vunpack.c.l.b16 %v937
    %v4910 = vunpack.c.h.b16 %v937
    %v4911 = vunpack.c.l.b16 %v938
    %v4912 = vunpack.c.h.b16 %v938
    %v4913 = vunpack.c.l.b16 %v939
    %v4914 = vunpack.c.h.b16 %v939
    %v4915 = vunpack.c.l.b16 %v940
    %v4916 = vunpack.c.h.b16 %v940
    %v4917 = vunpack.c.l.b16 %v941
    %v4918 = vunpack.c.h.b16 %v941
    %v4919 = vunpack.c.l.b16 %v942
    %v4920 = vunpack.c.h.b16 %v942
    %v4921 = vunpack.c.l.b16 %v943
    %v4922 = vunpack.c.h.b16 %v943
    %v4923 = vunpack.c.l.b16 %v944
    %v4924 = vunpack.c.h.b16 %v944
    %v4925 = vunpack.c.l.b16 %v945
    %v4926 = vunpack.c.h.b16 %v945
    %v4927 = vunpack.c.l.b16 %v946
    %v4928 = vunpack.c.h.b16 %v946
    %v4929 = vunpack.c.l.b16 %v947
    %v4930 = vunpack.c.h.b16 %v947
    %v4931 = vunpack.c.l.b16 %v948
    %v4932 = vunpack.c.h.b16 %v948
    %v4933 = vunpack.c.l.b16 %v949
    %v4934 = vunpack.c.h.b16 %v949
    %v4935 = vunpack.c.l.b16 %v950
    %v4936 = vunpack.c.h.b16 %v950
    %v4937 = vunpack.c.l.b16 %v951
    %v4938 = vunpack.c.h.b16 %v951
    %v4939 = vunpack.c.l.b16 %v952
    %v4940 = vunpack.c.h.b16 %v952
    %v4941 = vunpack.c.l.b16 %v953
    %v4942 = vunpack.c.h.b16 %v953
    %v4943 = vunpack.c.l.b16 %v954
    %v4944 = vunpack.c.h.b16 %v954
    %v4945 = vunpack.c.l.b16 %v955
    %v4946 = vunpack.c.h.b16 %v955
    %v4947 = vunpack.c.l.b16 %v956
    %v4948 = vunpack.c.h.b16 %v956
    %v4949 = vunpack.c.l.b16 %v957
    %v4950 = vunpack.c.h.b16 %v957
    %v4951 = vunpack.c.l.b16 %v958
    %v4952 = vunpack.c.h.b16 %v958
    %v4953 = vunpack.c.l.b16 %v959
    %v4954 = vunpack.c.h.b16 %v959
    %v4955 = vunpack.c.l.b16 %v960
    %v4956 = vunpack.c.h.b16 %v960
    %v4957 = vunpack.c.l.b16 %v961
    %v4958 = vunpack.c.h.b16 %v961
    %v4959 = vunpack.c.l.b16 %v962
    %v4960 = vunpack.c.h.b16 %v962
    %v4961 = vunpack.c.l.b16 %v963
    %v4962 = vunpack.c.h.b16 %v963
    %v4963 = vunpack.c.l.b16 %v964
    %v4964 = vunpack.c.h.b16 %v964
    %v4965 = vunpack.c.l.b16 %v965
    %v4966 = vunpack.c.h.b16 %v965
    %v4967 = vunpack.c.l.b16 %v966
    %v4968 = vunpack.c.h.b16 %v966
    %v4969 = vunpack.c.l.b16 %v967
    %v4970 = vunpack.c.h.b16 %v967
    %v4971 = vunpack.c.l.b16 %v968
    %v4972 = vunpack.c.h.b16 %v968
    %v4973 = vunpack.c.l.b16 %v969
    %v4974 = vunpack.c.h.b16 %v969
    %v4975 = vunpack.c.l.b16 %v970
    %v4976 = vunpack.c.h.b16 %v970
    %v4977 = vunpack.c.l.b16 %v971
    %v4978 = vunpack.c.h.b16 %v971
    %v4979 = vunpack.c.l.b16 %v972
    %v4980 = vunpack.c.h.b16 %v972
    %v4981 = vunpack.c.l.b16 %v973
    %v4982 = vunpack.c.h.b16 %v973
    %v4983 = vunpack.c.l.b16 %v974
    %v4984 = vunpack.c.h.b16 %v974
    %v4985 = vunpack.c.l.b16 %v975
    %v4986 = vunpack.c.h.b16 %v975
    %v4987 = vunpack.c.l.b16 %v976
    %v4988 = vunpack.c.h.b16 %v976
    %v4989 = vunpack.c.l.b16 %v977
    %v4990 = vunpack.c.h.b16 %v977
    %v4991 = vunpack.c.l.b16 %v978
    %v4992 = vunpack.c.h.b16 %v978
    %v4993 = vunpack.c.l.b16 %v979
    %v4994 = vunpack.c.h.b16 %v979
    %v4995 = vunpack.c.l.b16 %v980
    %v4996 = vunpack.c.h.b16 %v980
    %v4997 = vunpack.c.l.b16 %v981
    %v4998 = vunpack.c.h.b16 %v981
    %v4999 = vunpack.c.l.b16 %v982
    %v5000 = vunpack.c.h.b16 %v982
    %v5001 = vunpack.c.l.b16 %v983
    %v5002 = vunpack.c.h.b16 %v983
    %v5003 = vunpack.c.l.b16 %v984
    %v5004 = vunpack.c.h.b16 %v984
    %v5005 = vunpack.c.l.b16 %v985
    %v5006 = vunpack.c.h.b16 %v985
    %v5007 = vunpack.c.l.b16 %v986
    %v5008 = vunpack.c.h.b16 %v986
    %v5009 = vunpack.c.l.b16 %v987
    %v5010 = vunpack.c.h.b16 %v987
    %v5011 = vunpack.c.l.b16 %v988
    %v5012 = vunpack.c.h.b16 %v988
    %v5013 = vunpack.c.l.b16 %v989
    %v5014 = vunpack.c.h.b16 %v989
    %v5015 = vunpack.c.l.b16 %v990
    %v5016 = vunpack.c.h.b16 %v990
    %v5017 = vunpack.c.l.b16 %v991
    %v5018 = vunpack.c.h.b16 %v991
    %v5019 = vunpack.c.l.b16 %v992
    %v5020 = vunpack.c.h.b16 %v992
    %v5021 = vunpack.c.l.b16 %v993
    %v5022 = vunpack.c.h.b16 %v993
    %v5023 = vunpack.c.l.b16 %v994
    %v5024 = vunpack.c.h.b16 %v994
    %v5025 = vunpack.c.l.b16 %v995
    %v5026 = vunpack.c.h.b16 %v995
    %v5027 = vunpack.c.l.b16 %v996
    %v5028 = vunpack.c.h.b16 %v996
    %v5029 = vunpack.c.l.b16 %v997
    %v5030 = vunpack.c.h.b16 %v997
    %v5031 = vunpack.c.l.b16 %v998
    %v5032 = vunpack.c.h.b16 %v998
    %v5033 = vunpack.c.l.b16 %v999
    %v5034 = vunpack.c.h.b16 %v999
    %v5035 = vunpack.c.l.b16 %v1000
    %v5036 = vunpack.c.h.b16 %v1000
    %v5037 = vunpack.c.l.b16 %v1001
    %v5038 = vunpack.c.h.b16 %v1001
    %v5039 = vunpack.c.l.b16 %v1002
    %v5040 = vunpack.c.h.b16 %v1002
    %v5041 = vunpack.c.l.b16 %v1003
    %v5042 = vunpack.c.h.b16 %v1003
    %v5043 = vunpack.c.l.b16 %v1004
    %v5044 = vunpack.c.h.b16 %v1004
    %v5045 = vunpack.c.l.b16 %v1005
    %v5046 = vunpack.c.h.b16 %v1005
    %v5047 = vunpack.c.l.b16 %v1006
    %v5048 = vunpack.c.h.b16 %v1006
    %v5049 = vunpack.c.l.b16 %v1007
    %v5050 = vunpack.c.h.b16 %v1007
    %v5051 = vunpack.c.l.b16 %v1008
    %v5052 = vunpack.c.h.b16 %v1008
    %v5053 = vunpack.c.l.b16 %v1009
    %v5054 = vunpack.c.h.b16 %v1009
    %v5055 = vunpack.c.l.b16 %v1010
    %v5056 = vunpack.c.h.b16 %v1010
    %v5057 = vunpack.c.l.b16 %v1011
    %v5058 = vunpack.c.h.b16 %v1011
    %v5059 = vunpack.c.l.b16 %v1012
    %v5060 = vunpack.c.h.b16 %v1012
    %v5061 = vunpack.c.l.b16 %v1013
    %v5062 = vunpack.c.h.b16 %v1013
    %v5063 = vunpack.c.l.b16 %v1014
    %v5064 = vunpack.c.h.b16 %v1014
    %v5065 = vunpack.c.l.b16 %v1015
    %v5066 = vunpack.c.h.b16 %v1015
    %v5067 = vunpack.c.l.b16 %v1016
    %v5068 = vunpack.c.h.b16 %v1016
    %v5069 = vunpack.c.l.b16 %v1017
    %v5070 = vunpack.c.h.b16 %v1017
    %v5071 = vunpack.c.l.b16 %v1018
    %v5072 = vunpack.c.h.b16 %v1018
    %v5073 = vunpack.c.l.b16 %v1019
    %v5074 = vunpack.c.h.b16 %v1019
    %v5075 = vunpack.c.l.b16 %v1020
    %v5076 = vunpack.c.h.b16 %v1020
    %v5077 = vunpack.c.l.b16 %v1021
    %v5078 = vunpack.c.h.b16 %v1021
    %v5079 = vunpack.c.l.b16 %v1022
    %v5080 = vunpack.c.h.b16 %v1022
    %v5081 = vunpack.c.l.b16 %v1023
    %v5082 = vunpack.c.h.b16 %v1023
    %v5083 = vunpack.c.l.b16 %v1024
    %v5084 = vunpack.c.h.b16 %v1024
    %v5085 = vunpack.c.l.b16 %v1025
    %v5086 = vunpack.c.h.b16 %v1025
    %v5087 = vunpack.c.l.b16 %v1026
    %v5088 = vunpack.c.h.b16 %v1026
    %v5089 = vunpack.c.l.b16 %v1027
    %v5090 = vunpack.c.h.b16 %v1027
    %v5091 = vunpack.c.l.b16 %v1028
    %v5092 = vunpack.c.h.b16 %v1028
    %v5093 = vunpack.c.l.b16 %v1029
    %v5094 = vunpack.c.h.b16 %v1029
    %v5095 = vunpack.c.l.b16 %v1030
    %v5096 = vunpack.c.h.b16 %v1030
    %v5097 = vunpack.c.l.b16 %v1031
    %v5098 = vunpack.c.h.b16 %v1031
    %v5099 = vunpack.c.l.b16 %v1032
    %v5100 = vunpack.c.h.b16 %v1032
    %v5101 = vunpack.c.l.b16 %v1033
    %v5102 = vunpack.c.h.b16 %v1033
    %v5103 = vunpack.c.l.b16 %v1034
    %v5104 = vunpack.c.h.b16 %v1034
    %v5105 = vunpack.c.l.b16 %v1035
    %v5106 = vunpack.c.h.b16 %v1035
    %v5107 = vunpack.c.l.b16 %v1036
    %v5108 = vunpack.c.h.b16 %v1036
    %v5109 = vunpack.c.l.b16 %v1037
    %v5110 = vunpack.c.h.b16 %v1037
    %v5111 = vunpack.c.l.b16 %v1038
    %v5112 = vunpack.c.h.b16 %v1038
    %v5113 = vunpack.c.l.b16 %v1039
    %v5114 = vunpack.c.h.b16 %v1039
    %v5115 = vunpack.c.l.b16 %v1040
    %v5116 = vunpack.c.h.b16 %v1040
    %v5117 = vunpack.c.l.b16 %v1041
    %v5118 = vunpack.c.h.b16 %v1041
    %v5119 = vunpack.c.l.b16 %v1042
    %v5120 = vunpack.c.h.b16 %v1042
    %v5121 = vunpack.c.l.b16 %v1043
    %v5122 = vunpack.c.h.b16 %v1043
    %v5123 = vunpack.c.l.b16 %v1044
    %v5124 = vunpack.c.h.b16 %v1044
    %v5125 = vunpack.c.l.b16 %v1045
    %v5126 = vunpack.c.h.b16 %v1045
    %v5127 = vunpack.c.l.b16 %v1046
    %v5128 = vunpack.c.h.b16 %v1046
    %v5129 = vunpack.c.l.b16 %v1047
    %v5130 = vunpack.c.h.b16 %v1047
    %v5131 = vunpack.c.l.b16 %v1048
    %v5132 = vunpack.c.h.b16 %v1048
    %v5133 = vunpack.c.l.b16 %v1049
    %v5134 = vunpack.c.h.b16 %v1049
    %v5135 = vunpack.c.l.b16 %v1050
    %v5136 = vunpack.c.h.b16 %v1050
    %v5137 = vunpack.c.l.b16 %v1051
    %v5138 = vunpack.c.h.b16 %v1051
    %v5139 = vunpack.c.l.b16 %v1052
    %v5140 = vunpack.c.h.b16 %v1052
    %v5141 = vunpack.c.l.b16 %v1053
    %v5142 = vunpack.c.h.b16 %v1053
    %v5143 = vunpack.c.l.b16 %v1054
    %v5144 = vunpack.c.h.b16 %v1054
    %v5145 = vunpack.c.l.b16 %v1055
    %v5146 = vunpack.c.h.b16 %v1055
    %v5147 = vunpack.c.l.b16 %v1056
    %v5148 = vunpack.c.h.b16 %v1056
    %v5149 = vunpack.c.l.b16 %v1057
    %v5150 = vunpack.c.h.b16 %v1057
    %v5151 = vunpack.c.l.b16 %v1058
    %v5152 = vunpack.c.h.b16 %v1058
    %v5153 = vunpack.c.l.b16 %v1059
    %v5154 = vunpack.c.h.b16 %v1059
    %v5155 = vunpack.c.l.b16 %v1060
    %v5156 = vunpack.c.h.b16 %v1060
    %v5157 = vunpack.c.l.b16 %v1061
    %v5158 = vunpack.c.h.b16 %v1061
    %v5159 = vunpack.c.l.b16 %v1062
    %v5160 = vunpack.c.h.b16 %v1062
    %v5161 = vunpack.c.l.b16 %v1063
    %v5162 = vunpack.c.h.b16 %v1063
    %v5163 = vunpack.c.l.b16 %v1064
    %v5164 = vunpack.c.h.b16 %v1064
    %v5165 = vunpack.c.l.b16 %v1065
    %v5166 = vunpack.c.h.b16 %v1065
    %v5167 = vunpack.c.l.b16 %v1066
    %v5168 = vunpack.c.h.b16 %v1066
    %v5169 = vunpack.c.l.b16 %v1067
    %v5170 = vunpack.c.h.b16 %v1067
    %v5171 = vunpack.c.l.b16 %v1068
    %v5172 = vunpack.c.h.b16 %v1068
    %v5173 = vunpack.c.l.b16 %v1069
    %v5174 = vunpack.c.h.b16 %v1069
    %v5175 = vunpack.c.l.b16 %v1070
    %v5176 = vunpack.c.h.b16 %v1070
    %v5177 = vunpack.c.l.b16 %v1071
    %v5178 = vunpack.c.h.b16 %v1071
    %v5179 = vunpack.c.l.b16 %v1072
    %v5180 = vunpack.c.h.b16 %v1072
    %v5181 = vunpack.c.l.b16 %v1073
    %v5182 = vunpack.c.h.b16 %v1073
    %v5183 = vunpack.c.l.b16 %v1074
    %v5184 = vunpack.c.h.b16 %v1074
    %v5185 = vunpack.c.l.b16 %v1075
    %v5186 = vunpack.c.h.b16 %v1075
    %v5187 = vunpack.c.l.b16 %v1076
    %v5188 = vunpack.c.h.b16 %v1076
    %v5189 = vunpack.c.l.b16 %v1077
    %v5190 = vunpack.c.h.b16 %v1077
    %v5191 = vunpack.c.l.b16 %v1078
    %v5192 = vunpack.c.h.b16 %v1078
    %v5193 = vunpack.c.l.b16 %v1079
    %v5194 = vunpack.c.h.b16 %v1079
    %v5195 = vunpack.c.l.b16 %v1080
    %v5196 = vunpack.c.h.b16 %v1080
    %v5197 = vunpack.c.l.b16 %v1081
    %v5198 = vunpack.c.h.b16 %v1081
    %v5199 = vunpack.c.l.b16 %v1082
    %v5200 = vunpack.c.h.b16 %v1082
    %v5201 = vunpack.c.l.b16 %v1083
    %v5202 = vunpack.c.h.b16 %v1083
    %v5203 = vunpack.c.l.b16 %v1084
    %v5204 = vunpack.c.h.b16 %v1084
    %v5205 = vunpack.c.l.b16 %v1085
    %v5206 = vunpack.c.h.b16 %v1085
    %v5207 = vunpack.c.l.b16 %v1086
    %v5208 = vunpack.c.h.b16 %v1086
    %v5209 = vunpack.c.l.b16 %v1087
    %v5210 = vunpack.c.h.b16 %v1087
    %v5211 = vunpack.c.l.b16 %v1088
    %v5212 = vunpack.c.h.b16 %v1088
    %v5213 = vunpack.c.l.b16 %v1089
    %v5214 = vunpack.c.h.b16 %v1089
    %v5215 = vunpack.c.l.b16 %v1090
    %v5216 = vunpack.c.h.b16 %v1090
    %v5217 = vunpack.c.l.b16 %v1091
    %v5218 = vunpack.c.h.b16 %v1091
    %v5219 = vunpack.c.l.b16 %v1092
    %v5220 = vunpack.c.h.b16 %v1092
    %v5221 = vunpack.c.l.b16 %v1093
    %v5222 = vunpack.c.h.b16 %v1093
    %v5223 = vunpack.c.l.b16 %v1094
    %v5224 = vunpack.c.h.b16 %v1094
    %v5225 = vunpack.c.l.b16 %v1095
    %v5226 = vunpack.c.h.b16 %v1095
    %v5227 = vunpack.c.l.b16 %v1096
    %v5228 = vunpack.c.h.b16 %v1096
    %v5229 = vunpack.c.l.b16 %v1097
    %v5230 = vunpack.c.h.b16 %v1097
    %v5231 = vunpack.c.l.b16 %v1098
    %v5232 = vunpack.c.h.b16 %v1098
    %v5233 = vunpack.c.l.b16 %v1099
    %v5234 = vunpack.c.h.b16 %v1099
    %v5235 = vunpack.c.l.b16 %v1100
    %v5236 = vunpack.c.h.b16 %v1100
    %v5237 = vunpack.c.l.b16 %v1101
    %v5238 = vunpack.c.h.b16 %v1101
    %v5239 = vunpack.c.l.b16 %v1102
    %v5240 = vunpack.c.h.b16 %v1102
    %v5241 = vunpack.c.l.b16 %v1103
    %v5242 = vunpack.c.h.b16 %v1103
    %v5243 = vunpack.c.l.b16 %v1104
    %v5244 = vunpack.c.h.b16 %v1104
    %v5245 = vunpack.c.l.b16 %v1105
    %v5246 = vunpack.c.h.b16 %v1105
    %v5247 = vunpack.c.l.b16 %v1106
    %v5248 = vunpack.c.h.b16 %v1106
    %v5249 = vunpack.c.l.b16 %v1107
    %v5250 = vunpack.c.h.b16 %v1107
    %v5251 = vunpack.c.l.b16 %v1108
    %v5252 = vunpack.c.h.b16 %v1108
    %v5253 = vunpack.c.l.b16 %v1109
    %v5254 = vunpack.c.h.b16 %v1109
    %v5255 = vunpack.c.l.b16 %v1110
    %v5256 = vunpack.c.h.b16 %v1110
    %v5257 = vunpack.c.l.b16 %v1111
    %v5258 = vunpack.c.h.b16 %v1111
    %v5259 = vunpack.c.l.b16 %v1112
    %v5260 = vunpack.c.h.b16 %v1112
    %v5261 = vunpack.c.l.b16 %v1113
    %v5262 = vunpack.c.h.b16 %v1113
    %v5263 = vunpack.c.l.b16 %v1114
    %v5264 = vunpack.c.h.b16 %v1114
    %v5265 = vunpack.c.l.b16 %v1115
    %v5266 = vunpack.c.h.b16 %v1115
    %v5267 = vunpack.c.l.b16 %v1116
    %v5268 = vunpack.c.h.b16 %v1116
    %v5269 = vunpack.c.l.b16 %v1117
    %v5270 = vunpack.c.h.b16 %v1117
    %v5271 = vunpack.c.l.b16 %v1118
    %v5272 = vunpack.c.h.b16 %v1118
    %v5273 = vunpack.c.l.b16 %v1119
    %v5274 = vunpack.c.h.b16 %v1119
    %v5275 = vunpack.c.l.b16 %v1120
    %v5276 = vunpack.c.h.b16 %v1120
    %v5277 = vunpack.c.l.b16 %v1121
    %v5278 = vunpack.c.h.b16 %v1121
    %v5279 = vunpack.c.l.b16 %v1122
    %v5280 = vunpack.c.h.b16 %v1122
    %v5281 = vunpack.c.l.b16 %v1123
    %v5282 = vunpack.c.h.b16 %v1123
    %v5283 = vunpack.c.l.b16 %v1124
    %v5284 = vunpack.c.h.b16 %v1124
    %v5285 = vunpack.c.l.b16 %v1125
    %v5286 = vunpack.c.h.b16 %v1125
    %v5287 = vunpack.c.l.b16 %v1126
    %v5288 = vunpack.c.h.b16 %v1126
    %v5289 = vunpack.c.l.b16 %v1127
    %v5290 = vunpack.c.h.b16 %v1127
    %v5291 = vunpack.c.l.b16 %v1128
    %v5292 = vunpack.c.h.b16 %v1128
    %v5293 = vunpack.c.l.b16 %v1129
    %v5294 = vunpack.c.h.b16 %v1129
    %v5295 = vunpack.c.l.b16 %v1130
    %v5296 = vunpack.c.h.b16 %v1130
    %v5297 = vunpack.c.l.b16 %v1131
    %v5298 = vunpack.c.h.b16 %v1131
    %v5299 = vunpack.c.l.b16 %v1132
    %v5300 = vunpack.c.h.b16 %v1132
    %v5301 = vunpack.c.l.b16 %v1133
    %v5302 = vunpack.c.h.b16 %v1133
    %v5303 = vunpack.c.l.b16 %v1134
    %v5304 = vunpack.c.h.b16 %v1134
    %v5305 = vunpack.c.l.b16 %v1135
    %v5306 = vunpack.c.h.b16 %v1135
    %v5307 = vunpack.c.l.b16 %v1136
    %v5308 = vunpack.c.h.b16 %v1136
    %v5309 = vunpack.c.l.b16 %v1137
    %v5310 = vunpack.c.h.b16 %v1137
    %v5311 = vunpack.c.l.b16 %v1138
    %v5312 = vunpack.c.h.b16 %v1138
    %v5313 = vunpack.c.l.b16 %v1139
    %v5314 = vunpack.c.h.b16 %v1139
    %v5315 = vunpack.c.l.b16 %v1140
    %v5316 = vunpack.c.h.b16 %v1140
    %v5317 = vunpack.c.l.b16 %v1141
    %v5318 = vunpack.c.h.b16 %v1141
    %v5319 = vunpack.c.l.b16 %v1142
    %v5320 = vunpack.c.h.b16 %v1142
    %v5321 = vunpack.c.l.b16 %v1143
    %v5322 = vunpack.c.h.b16 %v1143
    %v5323 = vunpack.c.l.b16 %v1144
    %v5324 = vunpack.c.h.b16 %v1144
    %v5325 = vunpack.c.l.b16 %v1145
    %v5326 = vunpack.c.h.b16 %v1145
    %v5327 = vunpack.c.l.b16 %v1146
    %v5328 = vunpack.c.h.b16 %v1146
    %v5329 = vunpack.c.l.b16 %v1147
    %v5330 = vunpack.c.h.b16 %v1147
    %v5331 = vunpack.c.l.b16 %v1148
    %v5332 = vunpack.c.h.b16 %v1148
    %v5333 = vunpack.c.l.b16 %v1149
    %v5334 = vunpack.c.h.b16 %v1149
    %v5335 = vunpack.c.l.b16 %v1150
    %v5336 = vunpack.c.h.b16 %v1150
    %v5337 = vunpack.c.l.b16 %v1151
    %v5338 = vunpack.c.h.b16 %v1151
    %v5339 = vunpack.c.l.b16 %v1152
    %v5340 = vunpack.c.h.b16 %v1152
    %v5341 = vunpack.c.l.b16 %v1153
    %v5342 = vunpack.c.h.b16 %v1153
    %v5343 = vunpack.c.l.b16 %v1154
    %v5344 = vunpack.c.h.b16 %v1154
    %v5345 = vunpack.c.l.b16 %v1155
    %v5346 = vunpack.c.h.b16 %v1155
    %v5347 = vunpack.c.l.b16 %v1156
    %v5348 = vunpack.c.h.b16 %v1156
    %v5349 = vunpack.c.l.b16 %v1157
    %v5350 = vunpack.c.h.b16 %v1157
    %v5351 = vunpack.c.l.b16 %v1158
    %v5352 = vunpack.c.h.b16 %v1158
    %v5353 = vunpack.c.l.b16 %v1159
    %v5354 = vunpack.c.h.b16 %v1159
    %v5355 = vunpack.c.l.b16 %v1160
    %v5356 = vunpack.c.h.b16 %v1160
    %v5357 = vunpack.c.l.b16 %v1161
    %v5358 = vunpack.c.h.b16 %v1161
    %v5359 = vunpack.c.l.b16 %v1162
    %v5360 = vunpack.c.h.b16 %v1162
    %v5361 = vunpack.c.l.b16 %v1163
    %v5362 = vunpack.c.h.b16 %v1163
    %v5363 = vunpack.c.l.b16 %v1164
    %v5364 = vunpack.c.h.b16 %v1164
    %v5365 = vunpack.c.l.b16 %v1165
    %v5366 = vunpack.c.h.b16 %v1165
    %v5367 = vunpack.c.l.b16 %v1166
    %v5368 = vunpack.c.h.b16 %v1166
    %v5369 = vunpack.c.l.b16 %v1167
    %v5370 = vunpack.c.h.b16 %v1167
    %v5371 = vunpack.c.l.b16 %v1168
    %v5372 = vunpack.c.h.b16 %v1168
    %v5373 = vunpack.c.l.b16 %v1169
    %v5374 = vunpack.c.h.b16 %v1169
    %v5375 = vunpack.c.l.b16 %v1170
    %v5376 = vunpack.c.h.b16 %v1170
    %v5377 = vunpack.c.l.b16 %v1171
    %v5378 = vunpack.c.h.b16 %v1171
    %v5379 = vunpack.c.l.b16 %v1172
    %v5380 = vunpack.c.h.b16 %v1172
    %v5381 = vunpack.c.l.b16 %v1173
    %v5382 = vunpack.c.h.b16 %v1173
    %v5383 = vunpack.c.l.b16 %v1174
    %v5384 = vunpack.c.h.b16 %v1174
    %v5385 = vunpack.c.l.b16 %v1175
    %v5386 = vunpack.c.h.b16 %v1175
    %v5387 = vunpack.c.l.b16 %v1176
    %v5388 = vunpack.c.h.b16 %v1176
    %v5389 = vunpack.c.l.b16 %v1177
    %v5390 = vunpack.c.h.b16 %v1177
    %v5391 = vunpack.c.l.b16 %v1178
    %v5392 = vunpack.c.h.b16 %v1178
    %v5393 = vunpack.c.l.b16 %v1179
    %v5394 = vunpack.c.h.b16 %v1179
    %v5395 = vunpack.c.l.b16 %v1180
    %v5396 = vunpack.c.h.b16 %v1180
    %v5397 = vunpack.c.l.b16 %v1181
    %v5398 = vunpack.c.h.b16 %v1181
    %v5399 = vunpack.c.l.b16 %v1182
    %v5400 = vunpack.c.h.b16 %v1182
    %v5401 = vunpack.c.l.b16 %v1183
    %v5402 = vunpack.c.h.b16 %v1183
    %v5403 = vunpack.c.l.b16 %v1184
    %v5404 = vunpack.c.h.b16 %v1184
    %v5405 = vunpack.c.l.b16 %v1185
    %v5406 = vunpack.c.h.b16 %v1185
    %v5407 = vunpack.c.l.b16 %v1186
    %v5408 = vunpack.c.h.b16 %v1186
    %v5409 = vunpack.c.l.b16 %v1187
    %v5410 = vunpack.c.h.b16 %v1187
    %v5411 = vunpack.c.l.b16 %v1188
    %v5412 = vunpack.c.h.b16 %v1188
    %v5413 = vunpack.c.l.b16 %v1189
    %v5414 = vunpack.c.h.b16 %v1189
    %v5415 = vunpack.c.l.b16 %v1190
    %v5416 = vunpack.c.h.b16 %v1190
    %v5417 = vunpack.c.l.b16 %v1191
    %v5418 = vunpack.c.h.b16 %v1191
    %v5419 = vunpack.c.l.b16 %v1192
    %v5420 = vunpack.c.h.b16 %v1192
    %v5421 = vunpack.c.l.b16 %v1193
    %v5422 = vunpack.c.h.b16 %v1193
    %v5423 = vunpack.c.l.b16 %v1194
    %v5424 = vunpack.c.h.b16 %v1194
    %v5425 = vunpack.c.l.b16 %v1195
    %v5426 = vunpack.c.h.b16 %v1195
    %v5427 = vunpack.c.l.b16 %v1196
    %v5428 = vunpack.c.h.b16 %v1196
    %v5429 = vunpack.c.l.b16 %v1197
    %v5430 = vunpack.c.h.b16 %v1197
    %v5431 = vunpack.c.l.b16 %v1198
    %v5432 = vunpack.c.h.b16 %v1198
    %v5433 = vunpack.c.l.b16 %v1199
    %v5434 = vunpack.c.h.b16 %v1199
    %v5435 = vunpack.c.l.b16 %v1200
    %v5436 = vunpack.c.h.b16 %v1200
    %v5437 = vunpack.c.l.b16 %v1201
    %v5438 = vunpack.c.h.b16 %v1201
    %v5439 = vunpack.c.l.b16 %v1202
    %v5440 = vunpack.c.h.b16 %v1202
    %v5441 = vunpack.c.l.b16 %v1203
    %v5442 = vunpack.c.h.b16 %v1203
    %v5443 = vunpack.c.l.b16 %v1204
    %v5444 = vunpack.c.h.b16 %v1204
    %v5445 = vunpack.c.l.b16 %v1205
    %v5446 = vunpack.c.h.b16 %v1205
    %v5447 = vunpack.c.l.b16 %v1206
    %v5448 = vunpack.c.h.b16 %v1206
    %v5449 = vunpack.c.l.b16 %v1207
    %v5450 = vunpack.c.h.b16 %v1207
    %v5451 = vunpack.c.l.b16 %v1208
    %v5452 = vunpack.c.h.b16 %v1208
    %v5453 = vunpack.c.l.b16 %v1209
    %v5454 = vunpack.c.h.b16 %v1209
    %v5455 = vunpack.c.l.b16 %v1210
    %v5456 = vunpack.c.h.b16 %v1210
    %v5457 = vunpack.c.l.b16 %v1211
    %v5458 = vunpack.c.h.b16 %v1211
    %v5459 = vunpack.c.l.b16 %v1212
    %v5460 = vunpack.c.h.b16 %v1212
    %v5461 = vunpack.c.l.b16 %v1213
    %v5462 = vunpack.c.h.b16 %v1213
    %v5463 = vunpack.c.l.b16 %v1214
    %v5464 = vunpack.c.h.b16 %v1214
    %v5465 = vunpack.c.l.b16 %v1215
    %v5466 = vunpack.c.h.b16 %v1215
    %v5467 = vunpack.c.l.b16 %v1216
    %v5468 = vunpack.c.h.b16 %v1216
    %v5469 = vunpack.c.l.b16 %v1217
    %v5470 = vunpack.c.h.b16 %v1217
    %v5471 = vunpack.c.l.b16 %v1218
    %v5472 = vunpack.c.h.b16 %v1218
    %v5473 = vunpack.c.l.b16 %v1219
    %v5474 = vunpack.c.h.b16 %v1219
    %v5475 = vunpack.c.l.b16 %v1220
    %v5476 = vunpack.c.h.b16 %v1220
    %v5477 = vunpack.c.l.b16 %v1221
    %v5478 = vunpack.c.h.b16 %v1221
    %v5479 = vunpack.c.l.b16 %v1222
    %v5480 = vunpack.c.h.b16 %v1222
    %v5481 = vunpack.c.l.b16 %v1223
    %v5482 = vunpack.c.h.b16 %v1223
    %v5483 = vunpack.c.l.b16 %v1224
    %v5484 = vunpack.c.h.b16 %v1224
    %v5485 = vunpack.c.l.b16 %v1225
    %v5486 = vunpack.c.h.b16 %v1225
    %v5487 = vunpack.c.l.b16 %v1226
    %v5488 = vunpack.c.h.b16 %v1226
    %v5489 = vunpack.c.l.b16 %v1227
    %v5490 = vunpack.c.h.b16 %v1227
    %v5491 = vunpack.c.l.b16 %v1228
    %v5492 = vunpack.c.h.b16 %v1228
    %v5493 = vunpack.c.l.b16 %v1229
    %v5494 = vunpack.c.h.b16 %v1229
    %v5495 = vunpack.c.l.b16 %v1230
    %v5496 = vunpack.c.h.b16 %v1230
    %v5497 = vunpack.c.l.b16 %v1231
    %v5498 = vunpack.c.h.b16 %v1231
    %v5499 = vunpack.c.l.b16 %v1232
    %v5500 = vunpack.c.h.b16 %v1232
    %v5501 = vunpack.c.l.b16 %v1233
    %v5502 = vunpack.c.h.b16 %v1233
    %v5503 = vunpack.c.l.b16 %v1234
    %v5504 = vunpack.c.h.b16 %v1234
    %v5505 = vunpack.c.l.b16 %v1235
    %v5506 = vunpack.c.h.b16 %v1235
    %v5507 = vunpack.c.l.b16 %v1236
    %v5508 = vunpack.c.h.b16 %v1236
    %v5509 = vunpack.c.l.b16 %v1237
    %v5510 = vunpack.c.h.b16 %v1237
    %v5511 = vunpack.c.l.b16 %v1238
    %v5512 = vunpack.c.h.b16 %v1238
    %v5513 = vunpack.c.l.b16 %v1239
    %v5514 = vunpack.c.h.b16 %v1239
    %v5515 = vunpack.c.l.b16 %v1240
    %v5516 = vunpack.c.h.b16 %v1240
    %v5517 = vunpack.c.l.b16 %v1241
    %v5518 = vunpack.c.h.b16 %v1241
    %v5519 = vunpack.c.l.b16 %v1242
    %v5520 = vunpack.c.h.b16 %v1242
    %v5521 = vunpack.c.l.b16 %v1243
    %v5522 = vunpack.c.h.b16 %v1243
    %v5523 = vunpack.c.l.b16 %v1244
    %v5524 = vunpack.c.h.b16 %v1244
    %v5525 = vunpack.c.l.b16 %v1245
    %v5526 = vunpack.c.h.b16 %v1245
    %v5527 = vunpack.c.l.b16 %v1246
    %v5528 = vunpack.c.h.b16 %v1246
    %v5529 = vunpack.c.l.b16 %v1247
    %v5530 = vunpack.c.h.b16 %v1247
    %v5531 = vunpack.c.l.b16 %v1248
    %v5532 = vunpack.c.h.b16 %v1248
    %v5533 = vunpack.c.l.b16 %v1249
    %v5534 = vunpack.c.h.b16 %v1249
    %v5535 = vunpack.c.l.b16 %v1250
    %v5536 = vunpack.c.h.b16 %v1250
    %v5537 = vunpack.c.l.b16 %v1251
    %v5538 = vunpack.c.h.b16 %v1251
    %v5539 = vunpack.c.l.b16 %v1252
    %v5540 = vunpack.c.h.b16 %v1252
    %v5541 = vunpack.c.l.b16 %v1253
    %v5542 = vunpack.c.h.b16 %v1253
    %v5543 = vunpack.c.l.b16 %v1254
    %v5544 = vunpack.c.h.b16 %v1254
    %v5545 = vunpack.c.l.b16 %v1255
    %v5546 = vunpack.c.h.b16 %v1255
    %v5547 = vunpack.c.l.b16 %v1256
    %v5548 = vunpack.c.h.b16 %v1256
    %v5549 = vunpack.c.l.b16 %v1257
    %v5550 = vunpack.c.h.b16 %v1257
    %v5551 = vunpack.c.l.b16 %v1258
    %v5552 = vunpack.c.h.b16 %v1258
    %v5553 = vunpack.c.l.b16 %v1259
    %v5554 = vunpack.c.h.b16 %v1259
    %v5555 = vunpack.c.l.b16 %v1260
    %v5556 = vunpack.c.h.b16 %v1260
    %v5557 = vunpack.c.l.b16 %v1261
    %v5558 = vunpack.c.h.b16 %v1261
    %v5559 = vunpack.c.l.b16 %v1262
    %v5560 = vunpack.c.h.b16 %v1262
    %v5561 = vunpack.c.l.b16 %v1263
    %v5562 = vunpack.c.h.b16 %v1263
    %v5563 = vunpack.c.l.b16 %v1264
    %v5564 = vunpack.c.h.b16 %v1264
    %v5565 = vunpack.c.l.b16 %v1265
    %v5566 = vunpack.c.h.b16 %v1265
    %v5567 = vunpack.c.l.b16 %v1266
    %v5568 = vunpack.c.h.b16 %v1266
    %v5569 = vunpack.c.l.b16 %v1267
    %v5570 = vunpack.c.h.b16 %v1267
    %v5571 = vunpack.c.l.b16 %v1268
    %v5572 = vunpack.c.h.b16 %v1268
    %v5573 = vunpack.c.l.b16 %v1269
    %v5574 = vunpack.c.h.b16 %v1269
    %v5575 = vunpack.c.l.b16 %v1270
    %v5576 = vunpack.c.h.b16 %v1270
    %v5577 = vunpack.c.l.b16 %v1271
    %v5578 = vunpack.c.h.b16 %v1271
    %v5579 = vunpack.c.l.b16 %v1272
    %v5580 = vunpack.c.h.b16 %v1272
    %v5581 = vunpack.c.l.b16 %v1273
    %v5582 = vunpack.c.h.b16 %v1273
    %v5583 = vunpack.c.l.b16 %v1274
    %v5584 = vunpack.c.h.b16 %v1274
    %v5585 = vunpack.c.l.b16 %v1275
    %v5586 = vunpack.c.h.b16 %v1275
    %v5587 = vunpack.c.l.b16 %v1276
    %v5588 = vunpack.c.h.b16 %v1276
    %v5589 = vunpack.c.l.b16 %v1277
    %v5590 = vunpack.c.h.b16 %v1277
    %v5591 = vunpack.c.l.b16 %v1278
    %v5592 = vunpack.c.h.b16 %v1278
    %v5593 = vunpack.c.l.b16 %v1279
    %v5594 = vunpack.c.h.b16 %v1279
    %v5595 = vunpack.c.l.b16 %v1280
    %v5596 = vunpack.c.h.b16 %v1280
    %v5597 = vunpack.c.l.b16 %v1281
    %v5598 = vunpack.c.h.b16 %v1281
    %v5599 = vunpack.c.l.b16 %v1282
    %v5600 = vunpack.c.h.b16 %v1282
    %v5601 = vunpack.c.l.b16 %v1283
    %v5602 = vunpack.c.h.b16 %v1283
    %v5603 = vunpack.c.l.b16 %v1284
    %v5604 = vunpack.c.h.b16 %v1284
    %v5605 = vunpack.c.l.b16 %v1285
    %v5606 = vunpack.c.h.b16 %v1285
    %v5607 = vunpack.c.l.b16 %v1286
    %v5608 = vunpack.c.h.b16 %v1286
    %v5609 = vunpack.c.l.b16 %v1287
    %v5610 = vunpack.c.h.b16 %v1287
    %v5611 = vunpack.c.l.b16 %v1288
    %v5612 = vunpack.c.h.b16 %v1288
    %v5613 = vunpack.c.l.b16 %v1289
    %v5614 = vunpack.c.h.b16 %v1289
    %v5615 = vunpack.c.l.b16 %v1290
    %v5616 = vunpack.c.h.b16 %v1290
    %v5617 = vunpack.c.l.b16 %v1291
    %v5618 = vunpack.c.h.b16 %v1291
    %v5619 = vunpack.c.l.b16 %v1292
    %v5620 = vunpack.c.h.b16 %v1292
    %v5621 = vunpack.c.l.b16 %v1293
    %v5622 = vunpack.c.h.b16 %v1293
    %v5623 = vunpack.c.l.b16 %v1294
    %v5624 = vunpack.c.h.b16 %v1294
    %v5625 = vunpack.c.l.b16 %v1295
    %v5626 = vunpack.c.h.b16 %v1295
    %v5627 = vunpack.c.l.b16 %v1296
    %v5628 = vunpack.c.h.b16 %v1296
    %v5629 = vunpack.c.l.b16 %v1297
    %v5630 = vunpack.c.h.b16 %v1297
    %v5631 = vunpack.c.l.b16 %v1298
    %v5632 = vunpack.c.h.b16 %v1298
    %v5633 = vunpack.c.l.b16 %v1299
    %v5634 = vunpack.c.h.b16 %v1299
    %v5635 = vunpack.c.l.b16 %v1300
    %v5636 = vunpack.c.h.b16 %v1300
    %v5637 = vunpack.c.l.b16 %v1301
    %v5638 = vunpack.c.h.b16 %v1301
    %v5639 = vunpack.c.l.b16 %v1302
    %v5640 = vunpack.c.h.b16 %v1302
    %v5641 = vunpack.c.l.b16 %v1303
    %v5642 = vunpack.c.h.b16 %v1303
    %v5643 = vunpack.c.l.b16 %v1304
    %v5644 = vunpack.c.h.b16 %v1304
    %v5645 = vunpack.c.l.b16 %v1305
    %v5646 = vunpack.c.h.b16 %v1305
    %v5647 = vunpack.c.l.b16 %v1306
    %v5648 = vunpack.c.h.b16 %v1306
    %v5649 = vunpack.c.l.b16 %v1307
    %v5650 = vunpack.c.h.b16 %v1307
    %v5651 = vunpack.c.l.b16 %v1308
    %v5652 = vunpack.c.h.b16 %v1308
    %v5653 = vunpack.c.l.b16 %v1309
    %v5654 = vunpack.c.h.b16 %v1309
    %v5655 = vunpack.c.l.b16 %v1310
    %v5656 = vunpack.c.h.b16 %v1310
    %v5657 = vunpack.c.l.b16 %v1311
    %v5658 = vunpack.c.h.b16 %v1311
    %v5659 = vunpack.c.l.b16 %v1312
    %v5660 = vunpack.c.h.b16 %v1312
    %v5661 = vunpack.c.l.b16 %v1313
    %v5662 = vunpack.c.h.b16 %v1313
    %v5663 = vunpack.c.l.b16 %v1314
    %v5664 = vunpack.c.h.b16 %v1314
    %v5665 = vunpack.c.l.b16 %v1315
    %v5666 = vunpack.c.h.b16 %v1315
    %v5667 = vunpack.c.l.b16 %v1316
    %v5668 = vunpack.c.h.b16 %v1316
    %v5669 = vunpack.c.l.b16 %v1317
    %v5670 = vunpack.c.h.b16 %v1317
    %v5671 = vunpack.c.l.b16 %v1318
    %v5672 = vunpack.c.h.b16 %v1318
    %v5673 = vunpack.c.l.b16 %v1319
    %v5674 = vunpack.c.h.b16 %v1319
    %v5675 = vunpack.c.l.b16 %v1320
    %v5676 = vunpack.c.h.b16 %v1320
    %v5677 = vunpack.c.l.b16 %v1321
    %v5678 = vunpack.c.h.b16 %v1321
    %v5679 = vunpack.c.l.b16 %v1322
    %v5680 = vunpack.c.h.b16 %v1322
    %v5681 = vunpack.c.l.b16 %v1323
    %v5682 = vunpack.c.h.b16 %v1323
    %v5683 = vunpack.c.l.b16 %v1324
    %v5684 = vunpack.c.h.b16 %v1324
    %v5685 = vunpack.c.l.b16 %v1325
    %v5686 = vunpack.c.h.b16 %v1325
    %v5687 = vunpack.c.l.b16 %v1326
    %v5688 = vunpack.c.h.b16 %v1326
    %v5689 = vunpack.c.l.b16 %v1327
    %v5690 = vunpack.c.h.b16 %v1327
    %v5691 = vunpack.c.l.b16 %v1328
    %v5692 = vunpack.c.h.b16 %v1328
    %v5693 = vunpack.c.l.b16 %v1329
    %v5694 = vunpack.c.h.b16 %v1329
    %v5695 = vunpack.c.l.b16 %v1330
    %v5696 = vunpack.c.h.b16 %v1330
    %v5697 = vunpack.c.l.b16 %v1331
    %v5698 = vunpack.c.h.b16 %v1331
    %v5699 = vunpack.c.l.b16 %v1332
    %v5700 = vunpack.c.h.b16 %v1332
    %v5701 = vunpack.c.l.b16 %v1333
    %v5702 = vunpack.c.h.b16 %v1333
    %v5703 = vunpack.c.l.b16 %v1334
    %v5704 = vunpack.c.h.b16 %v1334
    %v5705 = vunpack.c.l.b16 %v1335
    %v5706 = vunpack.c.h.b16 %v1335
    %v5707 = vunpack.c.l.b16 %v1336
    %v5708 = vunpack.c.h.b16 %v1336
    %v5709 = vunpack.c.l.b16 %v1337
    %v5710 = vunpack.c.h.b16 %v1337
    %v5711 = vunpack.c.l.b16 %v1338
    %v5712 = vunpack.c.h.b16 %v1338
    %v5713 = vunpack.c.l.b16 %v1339
    %v5714 = vunpack.c.h.b16 %v1339
    %v5715 = vunpack.c.l.b16 %v1340
    %v5716 = vunpack.c.h.b16 %v1340
    %v5717 = vunpack.c.l.b16 %v1341
    %v5718 = vunpack.c.h.b16 %v1341
    %v5719 = vunpack.c.l.b16 %v1342
    %v5720 = vunpack.c.h.b16 %v1342
    %v5721 = vunpack.c.l.b16 %v1343
    %v5722 = vunpack.c.h.b16 %v1343
    %v5723 = vunpack.c.l.b16 %v1344
    %v5724 = vunpack.c.h.b16 %v1344
    %v5725 = vunpack.c.l.b16 %v1345
    %v5726 = vunpack.c.h.b16 %v1345
    %v5727 = vunpack.c.l.b16 %v1346
    %v5728 = vunpack.c.h.b16 %v1346
    %v5729 = vunpack.c.l.b16 %v1347
    %v5730 = vunpack.c.h.b16 %v1347
    %v5731 = vunpack.c.l.b16 %v1348
    %v5732 = vunpack.c.h.b16 %v1348
    %v5733 = vunpack.c.l.b16 %v1349
    %v5734 = vunpack.c.h.b16 %v1349
    %v5735 = vunpack.c.l.b16 %v1350
    %v5736 = vunpack.c.h.b16 %v1350
    %v5737 = vunpack.c.l.b16 %v1351
    %v5738 = vunpack.c.h.b16 %v1351
    %v5739 = vunpack.c.l.b16 %v1352
    %v5740 = vunpack.c.h.b16 %v1352
    %v5741 = vunpack.c.l.b16 %v1353
    %v5742 = vunpack.c.h.b16 %v1353
    %v5743 = vunpack.c.l.b16 %v1354
    %v5744 = vunpack.c.h.b16 %v1354
    %v5745 = vunpack.c.l.b16 %v1355
    %v5746 = vunpack.c.h.b16 %v1355
    %v5747 = vunpack.c.l.b16 %v1356
    %v5748 = vunpack.c.h.b16 %v1356
    %v5749 = vunpack.c.l.b16 %v1357
    %v5750 = vunpack.c.h.b16 %v1357
    %v5751 = vunpack.c.l.b16 %v1358
    %v5752 = vunpack.c.h.b16 %v1358
    %v5753 = vunpack.c.l.b16 %v1359
    %v5754 = vunpack.c.h.b16 %v1359
    %v5755 = vunpack.c.l.b16 %v1360
    %v5756 = vunpack.c.h.b16 %v1360
    %v5757 = vunpack.c.l.b16 %v1361
    %v5758 = vunpack.c.h.b16 %v1361
    %v5759 = vunpack.c.l.b16 %v1362
    %v5760 = vunpack.c.h.b16 %v1362
    %v5761 = vunpack.c.l.b16 %v1363
    %v5762 = vunpack.c.h.b16 %v1363
    %v5763 = vunpack.c.l.b16 %v1364
    %v5764 = vunpack.c.h.b16 %v1364
    %v5765 = vunpack.c.l.b16 %v1365
    %v5766 = vunpack.c.h.b16 %v1365
    %v5767 = vunpack.c.l.b16 %v1366
    %v5768 = vunpack.c.h.b16 %v1366
    %v5769 = vunpack.c.l.b16 %v1367
    %v5770 = vunpack.c.h.b16 %v1367
    %v5771 = vunpack.c.l.b16 %v1368
    %v5772 = vunpack.c.h.b16 %v1368
    %v5773 = vunpack.c.l.b16 %v1369
    %v5774 = vunpack.c.h.b16 %v1369
    %v5775 = vunpack.c.l.b16 %v1370
    %v5776 = vunpack.c.h.b16 %v1370
    %v5777 = vunpack.c.l.b16 %v1371
    %v5778 = vunpack.c.h.b16 %v1371
    %v5779 = vunpack.c.l.b16 %v1372
    %v5780 = vunpack.c.h.b16 %v1372
    %v5781 = vunpack.c.l.b16 %v1373
    %v5782 = vunpack.c.h.b16 %v1373
    %v5783 = vunpack.c.l.b16 %v1374
    %v5784 = vunpack.c.h.b16 %v1374
    %v5785 = vunpack.c.l.b16 %v1375
    %v5786 = vunpack.c.h.b16 %v1375
    %v5787 = vunpack.c.l.b16 %v1376
    %v5788 = vunpack.c.h.b16 %v1376
    %v5789 = vunpack.c.l.b16 %v1377
    %v5790 = vunpack.c.h.b16 %v1377
    %v5791 = vunpack.c.l.b16 %v1378
    %v5792 = vunpack.c.h.b16 %v1378
    %v5793 = vunpack.c.l.b16 %v1379
    %v5794 = vunpack.c.h.b16 %v1379
    %v5795 = vunpack.c.l.b16 %v1380
    %v5796 = vunpack.c.h.b16 %v1380
    %v5797 = vunpack.c.l.b16 %v1381
    %v5798 = vunpack.c.h.b16 %v1381
    %v5799 = vunpack.c.l.b16 %v1382
    %v5800 = vunpack.c.h.b16 %v1382
    %v5801 = vunpack.c.l.b16 %v1383
    %v5802 = vunpack.c.h.b16 %v1383
    %v5803 = vunpack.c.l.b16 %v1384
    %v5804 = vunpack.c.h.b16 %v1384
    %v5805 = vunpack.c.l.b16 %v1385
    %v5806 = vunpack.c.h.b16 %v1385
    %v5807 = vunpack.c.l.b16 %v1386
    %v5808 = vunpack.c.h.b16 %v1386
    %v5809 = vunpack.c.l.b16 %v1387
    %v5810 = vunpack.c.h.b16 %v1387
    %v5811 = vunpack.c.l.b16 %v1388
    %v5812 = vunpack.c.h.b16 %v1388
    %v5813 = vunpack.c.l.b16 %v1389
    %v5814 = vunpack.c.h.b16 %v1389
    %v5815 = vunpack.c.l.b16 %v1390
    %v5816 = vunpack.c.h.b16 %v1390
    %v5817 = vunpack.c.l.b16 %v1391
    %v5818 = vunpack.c.h.b16 %v1391
    %v5819 = vunpack.c.l.b16 %v1392
    %v5820 = vunpack.c.h.b16 %v1392
    %v5821 = vunpack.c.l.b16 %v1393
    %v5822 = vunpack.c.h.b16 %v1393
    %v5823 = vunpack.c.l.b16 %v1394
    %v5824 = vunpack.c.h.b16 %v1394
    %v5825 = vunpack.c.l.b16 %v1395
    %v5826 = vunpack.c.h.b16 %v1395
    %v5827 = vunpack.c.l.b16 %v1396
    %v5828 = vunpack.c.h.b16 %v1396
    %v5829 = vunpack.c.l.b16 %v1397
    %v5830 = vunpack.c.h.b16 %v1397
    %v5831 = vunpack.c.l.b16 %v1398
    %v5832 = vunpack.c.h.b16 %v1398
    %v5833 = vunpack.c.l.b16 %v1399
    %v5834 = vunpack.c.h.b16 %v1399
    %v5835 = vunpack.c.l.b16 %v1400
    %v5836 = vunpack.c.h.b16 %v1400
    %v5837 = vunpack.c.l.b16 %v1401
    %v5838 = vunpack.c.h.b16 %v1401
    %v5839 = vunpack.c.l.b16 %v1402
    %v5840 = vunpack.c.h.b16 %v1402
    %v5841 = vunpack.c.l.b16 %v1403
    %v5842 = vunpack.c.h.b16 %v1403
    %v5843 = vunpack.c.l.b16 %v1404
    %v5844 = vunpack.c.h.b16 %v1404
    %v5845 = vunpack.c.l.b16 %v1405
    %v5846 = vunpack.c.h.b16 %v1405
    %v5847 = vunpack.c.l.b16 %v1406
    %v5848 = vunpack.c.h.b16 %v1406
    %v5849 = vunpack.c.l.b16 %v1407
    %v5850 = vunpack.c.h.b16 %v1407
    %v5851 = vunpack.c.l.b16 %v1408
    %v5852 = vunpack.c.h.b16 %v1408
    %v5853 = vunpack.c.l.b16 %v1409
    %v5854 = vunpack.c.h.b16 %v1409
    %v5855 = vunpack.c.l.b16 %v1410
    %v5856 = vunpack.c.h.b16 %v1410
    %v5857 = vunpack.c.l.b16 %v1411
    %v5858 = vunpack.c.h.b16 %v1411
    %v5859 = vunpack.c.l.b16 %v1412
    %v5860 = vunpack.c.h.b16 %v1412
    %v5861 = vunpack.c.l.b16 %v1413
    %v5862 = vunpack.c.h.b16 %v1413
    %v5863 = vunpack.c.l.b16 %v1414
    %v5864 = vunpack.c.h.b16 %v1414
    %v5865 = vunpack.c.l.b16 %v1415
    %v5866 = vunpack.c.h.b16 %v1415
    %v5867 = vunpack.c.l.b16 %v1416
    %v5868 = vunpack.c.h.b16 %v1416
    %v5869 = vunpack.c.l.b16 %v1417
    %v5870 = vunpack.c.h.b16 %v1417
    %v5871 = vunpack.c.l.b16 %v1418
    %v5872 = vunpack.c.h.b16 %v1418
    %v5873 = vunpack.c.l.b16 %v1419
    %v5874 = vunpack.c.h.b16 %v1419
    %v5875 = vunpack.c.l.b16 %v1420
    %v5876 = vunpack.c.h.b16 %v1420
    %v5877 = vunpack.c.l.b16 %v1421
    %v5878 = vunpack.c.h.b16 %v1421
    %v5879 = vunpack.c.l.b16 %v1422
    %v5880 = vunpack.c.h.b16 %v1422
    %v5881 = vunpack.c.l.b16 %v1423
    %v5882 = vunpack.c.h.b16 %v1423
    %v5883 = vunpack.c.l.b16 %v1424
    %v5884 = vunpack.c.h.b16 %v1424
    %v5885 = vunpack.c.l.b16 %v1425
    %v5886 = vunpack.c.h.b16 %v1425
    %v5887 = vunpack.c.l.b16 %v1426
    %v5888 = vunpack.c.h.b16 %v1426
    %v5889 = vunpack.c.l.b16 %v1427
    %v5890 = vunpack.c.h.b16 %v1427
    %v5891 = vunpack.c.l.b16 %v1428
    %v5892 = vunpack.c.h.b16 %v1428
    %v5893 = vunpack.c.l.b16 %v1429
    %v5894 = vunpack.c.h.b16 %v1429
    %v5895 = vunpack.c.l.b16 %v1430
    %v5896 = vunpack.c.h.b16 %v1430
    %v5897 = vunpack.c.l.b16 %v1431
    %v5898 = vunpack.c.h.b16 %v1431
    %v5899 = vunpack.c.l.b16 %v1432
    %v5900 = vunpack.c.h.b16 %v1432
    %v5901 = vunpack.c.l.b16 %v1433
    %v5902 = vunpack.c.h.b16 %v1433
    %v5903 = vunpack.c.l.b16 %v1434
    %v5904 = vunpack.c.h.b16 %v1434
    %v5905 = vunpack.c.l.b16 %v1435
    %v5906 = vunpack.c.h.b16 %v1435
    %v5907 = vunpack.c.l.b16 %v1436
    %v5908 = vunpack.c.h.b16 %v1436
    %v5909 = vunpack.c.l.b16 %v1437
    %v5910 = vunpack.c.h.b16 %v1437
    %v5911 = vunpack.c.l.b16 %v1438
    %v5912 = vunpack.c.h.b16 %v1438
    %v5913 = vunpack.c.l.b16 %v1439
    %v5914 = vunpack.c.h.b16 %v1439
    %v5915 = vunpack.c.l.b16 %v1440
    %v5916 = vunpack.c.h.b16 %v1440
    %v5917 = vunpack.c.l.b16 %v1441
    %v5918 = vunpack.c.h.b16 %v1441
    %v5919 = vunpack.c.l.b16 %v1442
    %v5920 = vunpack.c.h.b16 %v1442
    %v5921 = vunpack.c.l.b16 %v1443
    %v5922 = vunpack.c.h.b16 %v1443
    %v5923 = vunpack.c.l.b16 %v1444
    %v5924 = vunpack.c.h.b16 %v1444
    %v5925 = vunpack.c.l.b16 %v1445
    %v5926 = vunpack.c.h.b16 %v1445
    %v5927 = vunpack.c.l.b16 %v1446
    %v5928 = vunpack.c.h.b16 %v1446
    %v5929 = vunpack.c.l.b16 %v1447
    %v5930 = vunpack.c.h.b16 %v1447
    %v5931 = vunpack.c.l.b16 %v1448
    %v5932 = vunpack.c.h.b16 %v1448
    %v5933 = vunpack.c.l.b16 %v1449
    %v5934 = vunpack.c.h.b16 %v1449
    %v5935 = vunpack.c.l.b16 %v1450
    %v5936 = vunpack.c.h.b16 %v1450
    %v5937 = vunpack.c.l.b16 %v1451
    %v5938 = vunpack.c.h.b16 %v1451
    %v5939 = vunpack.c.l.b16 %v1452
    %v5940 = vunpack.c.h.b16 %v1452
    %v5941 = vunpack.c.l.b16 %v1453
    %v5942 = vunpack.c.h.b16 %v1453
    %v5943 = vunpack.c.l.b16 %v1454
    %v5944 = vunpack.c.h.b16 %v1454
    %v5945 = vunpack.c.l.b16 %v1455
    %v5946 = vunpack.c.h.b16 %v1455
    %v5947 = vunpack.c.l.b16 %v1456
    %v5948 = vunpack.c.h.b16 %v1456
    %v5949 = vunpack.c.l.b16 %v1457
    %v5950 = vunpack.c.h.b16 %v1457
    %v5951 = vunpack.c.l.b16 %v1458
    %v5952 = vunpack.c.h.b16 %v1458
    %v5953 = vunpack.c.l.b16 %v1459
    %v5954 = vunpack.c.h.b16 %v1459
    %v5955 = vunpack.c.l.b16 %v1460
    %v5956 = vunpack.c.h.b16 %v1460
    %v5957 = vunpack.c.l.b16 %v1461
    %v5958 = vunpack.c.h.b16 %v1461
    %v5959 = vunpack.c.l.b16 %v1462
    %v5960 = vunpack.c.h.b16 %v1462
    %v5961 = vunpack.c.l.b16 %v1463
    %v5962 = vunpack.c.h.b16 %v1463
    %v5963 = vunpack.c.l.b16 %v1464
    %v5964 = vunpack.c.h.b16 %v1464
    %v5965 = vunpack.c.l.b16 %v1465
    %v5966 = vunpack.c.h.b16 %v1465
    %v5967 = vunpack.c.l.b16 %v1466
    %v5968 = vunpack.c.h.b16 %v1466
    %v5969 = vunpack.c.l.b16 %v1467
    %v5970 = vunpack.c.h.b16 %v1467
    %v5971 = vunpack.c.l.b16 %v1468
    %v5972 = vunpack.c.h.b16 %v1468
    %v5973 = vunpack.c.l.b16 %v1469
    %v5974 = vunpack.c.h.b16 %v1469
    %v5975 = vunpack.c.l.b16 %v1470
    %v5976 = vunpack.c.h.b16 %v1470
    %v5977 = vunpack.c.l.b16 %v1471
    %v5978 = vunpack.c.h.b16 %v1471
    %v5979 = vunpack.c.l.b16 %v1472
    %v5980 = vunpack.c.h.b16 %v1472
    %v5981 = vunpack.c.l.b16 %v1473
    %v5982 = vunpack.c.h.b16 %v1473
    %v5983 = vunpack.c.l.b16 %v1474
    %v5984 = vunpack.c.h.b16 %v1474
    %v5985 = vunpack.c.l.b16 %v1475
    %v5986 = vunpack.c.h.b16 %v1475
    %v5987 = vunpack.c.l.b16 %v1476
    %v5988 = vunpack.c.h.b16 %v1476
    %v5989 = vunpack.c.l.b16 %v1477
    %v5990 = vunpack.c.h.b16 %v1477
    %v5991 = vunpack.c.l.b16 %v1478
    %v5992 = vunpack.c.h.b16 %v1478
    %v5993 = vunpack.c.l.b16 %v1479
    %v5994 = vunpack.c.h.b16 %v1479
    %v5995 = vunpack.c.l.b16 %v1480
    %v5996 = vunpack.c.h.b16 %v1480
    %v5997 = vunpack.c.l.b16 %v1481
    %v5998 = vunpack.c.h.b16 %v1481
    %v5999 = vunpack.c.l.b16 %v1482
    %v6000 = vunpack.c.h.b16 %v1482
    %v6001 = vunpack.c.l.b16 %v1483
    %v6002 = vunpack.c.h.b16 %v1483
    %v6003 = vunpack.c.l.b16 %v1484
    %v6004 = vunpack.c.h.b16 %v1484
    %v6005 = vunpack.c.l.b16 %v1485
    %v6006 = vunpack.c.h.b16 %v1485
    %v6007 = vunpack.c.l.b16 %v1486
    %v6008 = vunpack.c.h.b16 %v1486
    %v6009 = vunpack.c.l.b16 %v1487
    %v6010 = vunpack.c.h.b16 %v1487
    %v6011 = vunpack.c.l.b16 %v1488
    %v6012 = vunpack.c.h.b16 %v1488
    %v6013 = vunpack.c.l.b16 %v1489
    %v6014 = vunpack.c.h.b16 %v1489
    %v6015 = vunpack.c.l.b16 %v1490
    %v6016 = vunpack.c.h.b16 %v1490
    %v6017 = vunpack.c.l.b16 %v1491
    %v6018 = vunpack.c.h.b16 %v1491
    %v6019 = vunpack.c.l.b16 %v1492
    %v6020 = vunpack.c.h.b16 %v1492
    %v6021 = vunpack.c.l.b16 %v1493
    %v6022 = vunpack.c.h.b16 %v1493
    %v6023 = vunpack.c.l.b16 %v1494
    %v6024 = vunpack.c.h.b16 %v1494
    %v6025 = vunpack.c.l.b16 %v1495
    %v6026 = vunpack.c.h.b16 %v1495
    %v6027 = vunpack.c.l.b16 %v1496
    %v6028 = vunpack.c.h.b16 %v1496
    %v6029 = vunpack.c.l.b16 %v1497
    %v6030 = vunpack.c.h.b16 %v1497
    %v6031 = vunpack.c.l.b16 %v1498
    %v6032 = vunpack.c.h.b16 %v1498
    %v6033 = vunpack.c.l.b16 %v1499
    %v6034 = vunpack.c.h.b16 %v1499
    %v6035 = vunpack.c.l.b16 %v1500
    %v6036 = vunpack.c.h.b16 %v1500
    %v6037 = vunpack.c.l.b16 %v1501
    %v6038 = vunpack.c.h.b16 %v1501
    %v6039 = vunpack.c.l.b16 %v1502
    %v6040 = vunpack.c.h.b16 %v1502
    %v6041 = vunpack.c.l.b16 %v1503
    %v6042 = vunpack.c.h.b16 %v1503
    %v6043 = vunpack.c.l.b16 %v1504
    %v6044 = vunpack.c.h.b16 %v1504
    %v6045 = vunpack.c.l.b16 %v1505
    %v6046 = vunpack.c.h.b16 %v1505
    %v6047 = vunpack.c.l.b16 %v1506
    %v6048 = vunpack.c.h.b16 %v1506
    %v6049 = vunpack.c.l.b16 %v1507
    %v6050 = vunpack.c.h.b16 %v1507
    %v6051 = vunpack.c.l.b16 %v1508
    %v6052 = vunpack.c.h.b16 %v1508
    %v6053 = vunpack.c.l.b16 %v1509
    %v6054 = vunpack.c.h.b16 %v1509
    %v6055 = vunpack.c.l.b16 %v1510
    %v6056 = vunpack.c.h.b16 %v1510
    %v6057 = vunpack.c.l.b16 %v1511
    %v6058 = vunpack.c.h.b16 %v1511
    %v6059 = vunpack.c.l.b16 %v1512
    %v6060 = vunpack.c.h.b16 %v1512
    %v6061 = vunpack.c.l.b16 %v1513
    %v6062 = vunpack.c.h.b16 %v1513
    %v6063 = vunpack.c.l.b16 %v1514
    %v6064 = vunpack.c.h.b16 %v1514
    %v6065 = vunpack.c.l.b16 %v1515
    %v6066 = vunpack.c.h.b16 %v1515
    %v6067 = vunpack.c.l.b16 %v1516
    %v6068 = vunpack.c.h.b16 %v1516
    %v6069 = vunpack.c.l.b16 %v1517
    %v6070 = vunpack.c.h.b16 %v1517
    %v6071 = vunpack.c.l.b16 %v1518
    %v6072 = vunpack.c.h.b16 %v1518
    %v6073 = vunpack.c.l.b16 %v1519
    %v6074 = vunpack.c.h.b16 %v1519
    %v6075 = vunpack.c.l.b16 %v1520
    %v6076 = vunpack.c.h.b16 %v1520
    %v6077 = vunpack.c.l.b16 %v1521
    %v6078 = vunpack.c.h.b16 %v1521
    %v6079 = vunpack.c.l.b16 %v1522
    %v6080 = vunpack.c.h.b16 %v1522
    %v6081 = vunpack.c.l.b16 %v1523
    %v6082 = vunpack.c.h.b16 %v1523
    %v6083 = vunpack.c.l.b16 %v1524
    %v6084 = vunpack.c.h.b16 %v1524
    %v6085 = vunpack.c.l.b16 %v1525
    %v6086 = vunpack.c.h.b16 %v1525
    %v6087 = vunpack.c.l.b16 %v1526
    %v6088 = vunpack.c.h.b16 %v1526
    %v6089 = vunpack.c.l.b16 %v1527
    %v6090 = vunpack.c.h.b16 %v1527
    %v6091 = vunpack.c.l.b16 %v1528
    %v6092 = vunpack.c.h.b16 %v1528
    %v6093 = vunpack.c.l.b16 %v1529
    %v6094 = vunpack.c.h.b16 %v1529
    %v6095 = vunpack.c.l.b16 %v1530
    %v6096 = vunpack.c.h.b16 %v1530
    %v6097 = vunpack.c.l.b16 %v1531
    %v6098 = vunpack.c.h.b16 %v1531
    %v6099 = vunpack.c.l.b16 %v1532
    %v6100 = vunpack.c.h.b16 %v1532
    %v6101 = vunpack.c.l.b16 %v1533
    %v6102 = vunpack.c.h.b16 %v1533
    %v6103 = vunpack.c.l.b16 %v1534
    %v6104 = vunpack.c.h.b16 %v1534
    %v6105 = vunpack.c.l.b16 %v1535
    %v6106 = vunpack.c.h.b16 %v1535
    %v6107 = vunpack.c.l.b16 %v1536
    %v6108 = vunpack.c.h.b16 %v1536
    %v6109 = vunpack.c.l.b16 %v1537
    %v6110 = vunpack.c.h.b16 %v1537
    %v6111 = vunpack.c.l.b16 %v1538
    %v6112 = vunpack.c.h.b16 %v1538
    %v6113 = vunpack.c.l.b16 %v1539
    %v6114 = vunpack.c.h.b16 %v1539
    %v6115 = vunpack.c.l.b16 %v1540
    %v6116 = vunpack.c.h.b16 %v1540
    %v6117 = vunpack.c.l.b16 %v1541
    %v6118 = vunpack.c.h.b16 %v1541
    %v6119 = vunpack.c.l.b16 %v1542
    %v6120 = vunpack.c.h.b16 %v1542
    %v6121 = vunpack.c.l.b16 %v1543
    %v6122 = vunpack.c.h.b16 %v1543
    %v6123 = vunpack.c.l.b16 %v1544
    %v6124 = vunpack.c.h.b16 %v1544
    %v6125 = vunpack.c.l.b16 %v1545
    %v6126 = vunpack.c.h.b16 %v1545
    %v6127 = vunpack.c.l.b16 %v1546
    %v6128 = vunpack.c.h.b16 %v1546
    %v6129 = vunpack.c.l.b16 %v1547
    %v6130 = vunpack.c.h.b16 %v1547
    %v6131 = vunpack.c.l.b16 %v1548
    %v6132 = vunpack.c.h.b16 %v1548
    %v6133 = vunpack.c.l.b16 %v1549
    %v6134 = vunpack.c.h.b16 %v1549
    %v6135 = vunpack.c.l.b16 %v1550
    %v6136 = vunpack.c.h.b16 %v1550
    %v6137 = vunpack.c.l.b16 %v1551
    %v6138 = vunpack.c.h.b16 %v1551
    %v6139 = vunpack.c.l.b16 %v1552
    %v6140 = vunpack.c.h.b16 %v1552
    %v6141 = vunpack.c.l.b16 %v1553
    %v6142 = vunpack.c.h.b16 %v1553
    %v6143 = vunpack.c.l.b16 %v1554
    %v6144 = vunpack.c.h.b16 %v1554
    %v6145 = vunpack.c.l.b16 %v1555
    %v6146 = vunpack.c.h.b16 %v1555
    %v6147 = vunpack.c.l.b16 %v1556
    %v6148 = vunpack.c.h.b16 %v1556
    %v6149 = vunpack.c.l.b16 %v1557
    %v6150 = vunpack.c.h.b16 %v1557
    %v6151 = vunpack.c.l.b16 %v1558
    %v6152 = vunpack.c.h.b16 %v1558
    %v6153 = vunpack.c.l.b16 %v1559
    %v6154 = vunpack.c.h.b16 %v1559
    %v6155 = vunpack.c.l.b16 %v1560
    %v6156 = vunpack.c.h.b16 %v1560
    %v6157 = vunpack.c.l.b16 %v1561
    %v6158 = vunpack.c.h.b16 %v1561
    %v6159 = vunpack.c.l.b16 %v1562
    %v6160 = vunpack.c.h.b16 %v1562
    %v6161 = vunpack.c.l.b16 %v1563
    %v6162 = vunpack.c.h.b16 %v1563
    %v6163 = vunpack.c.l.b16 %v1564
    %v6164 = vunpack.c.h.b16 %v1564
    %v6165 = vunpack.c.l.b16 %v1565
    %v6166 = vunpack.c.h.b16 %v1565
    %v6167 = vunpack.c.l.b16 %v1566
    %v6168 = vunpack.c.h.b16 %v1566
    %v6169 = vunpack.c.l.b16 %v1567
    %v6170 = vunpack.c.h.b16 %v1567
    %v6171 = vunpack.c.l.b16 %v1568
    %v6172 = vunpack.c.h.b16 %v1568
    %v6173 = vunpack.c.l.b16 %v1569
    %v6174 = vunpack.c.h.b16 %v1569
    %v6175 = vunpack.c.l.b16 %v1570
    %v6176 = vunpack.c.h.b16 %v1570
    %v6177 = vunpack.c.l.b16 %v1571
    %v6178 = vunpack.c.h.b16 %v1571
    %v6179 = vunpack.c.l.b16 %v1572
    %v6180 = vunpack.c.h.b16 %v1572
    %v6181 = vunpack.c.l.b16 %v1573
    %v6182 = vunpack.c.h.b16 %v1573
    %v6183 = vunpack.c.l.b16 %v1574
    %v6184 = vunpack.c.h.b16 %v1574
    %v6185 = vunpack.c.l.b16 %v1575
    %v6186 = vunpack.c.h.b16 %v1575
    %v6187 = vunpack.c.l.b16 %v1576
    %v6188 = vunpack.c.h.b16 %v1576
    %v6189 = vunpack.c.l.b16 %v1577
    %v6190 = vunpack.c.h.b16 %v1577
    %v6191 = vunpack.c.l.b16 %v1578
    %v6192 = vunpack.c.h.b16 %v1578
    %v6193 = vunpack.c.l.b16 %v1579
    %v6194 = vunpack.c.h.b16 %v1579
    %v6195 = vunpack.c.l.b16 %v1580
    %v6196 = vunpack.c.h.b16 %v1580
    %v6197 = vunpack.c.l.b16 %v1581
    %v6198 = vunpack.c.h.b16 %v1581
    %v6199 = vunpack.c.l.b16 %v1582
    %v6200 = vunpack.c.h.b16 %v1582
    %v6201 = vunpack.c.l.b16 %v1583
    %v6202 = vunpack.c.h.b16 %v1583
    %v6203 = vunpack.c.l.b16 %v1584
    %v6204 = vunpack.c.h.b16 %v1584
    %v6205 = vunpack.c.l.b16 %v1585
    %v6206 = vunpack.c.h.b16 %v1585
    %v6207 = vunpack.c.l.b16 %v1586
    %v6208 = vunpack.c.h.b16 %v1586
    %v6209 = vunpack.c.l.b16 %v1587
    %v6210 = vunpack.c.h.b16 %v1587
    %v6211 = vunpack.c.l.b16 %v1588
    %v6212 = vunpack.c.h.b16 %v1588
    %v6213 = vunpack.c.l.b16 %v1589
    %v6214 = vunpack.c.h.b16 %v1589
    %v6215 = vunpack.c.l.b16 %v1590
    %v6216 = vunpack.c.h.b16 %v1590
    %v6217 = vunpack.c.l.b16 %v1591
    %v6218 = vunpack.c.h.b16 %v1591
    %v6219 = vunpack.c.l.b16 %v1592
    %v6220 = vunpack.c.h.b16 %v1592
    %v6221 = vunpack.c.l.b16 %v1593
    %v6222 = vunpack.c.h.b16 %v1593
    %v6223 = vunpack.c.l.b16 %v1594
    %v6224 = vunpack.c.h.b16 %v1594
    %v6225 = vunpack.c.l.b16 %v1595
    %v6226 = vunpack.c.h.b16 %v1595
    %v6227 = vunpack.c.l.b16 %v1596
    %v6228 = vunpack.c.h.b16 %v1596
    %v6229 = vunpack.c.l.b16 %v1597
    %v6230 = vunpack.c.h.b16 %v1597
    %v6231 = vunpack.c.l.b16 %v1598
    %v6232 = vunpack.c.h.b16 %v1598
    %v6233 = vunpack.c.l.b16 %v1599
    %v6234 = vunpack.c.h.b16 %v1599
    %v6235 = vunpack.c.l.b16 %v1600
    %v6236 = vunpack.c.h.b16 %v1600
    %v6237 = vunpack.c.l.b16 %v1601
    %v6238 = vunpack.c.h.b16 %v1601
    %v6239 = vunpack.c.l.b16 %v1602
    %v6240 = vunpack.c.h.b16 %v1602
    %v6241 = vunpack.c.l.b16 %v1603
    %v6242 = vunpack.c.h.b16 %v1603
    %v6243 = vunpack.c.l.b16 %v1604
    %v6244 = vunpack.c.h.b16 %v1604
    %v6245 = vunpack.c.l.b16 %v1605
    %v6246 = vunpack.c.h.b16 %v1605
    %v6247 = vunpack.c.l.b16 %v1606
    %v6248 = vunpack.c.h.b16 %v1606
    %v6249 = vunpack.c.l.b16 %v1607
    %v6250 = vunpack.c.h.b16 %v1607
    %v6251 = vunpack.c.l.b16 %v1608
    %v6252 = vunpack.c.h.b16 %v1608
    %v6253 = vunpack.c.l.b16 %v1609
    %v6254 = vunpack.c.h.b16 %v1609
    %v6255 = vunpack.c.l.b16 %v1610
    %v6256 = vunpack.c.h.b16 %v1610
    %v6257 = vunpack.c.l.b16 %v1611
    %v6258 = vunpack.c.h.b16 %v1611
    %v6259 = vunpack.c.l.b16 %v1612
    %v6260 = vunpack.c.h.b16 %v1612
    %v6261 = vunpack.c.l.b16 %v1613
    %v6262 = vunpack.c.h.b16 %v1613
    %v6263 = vunpack.c.l.b16 %v1614
    %v6264 = vunpack.c.h.b16 %v1614
    %v6265 = vunpack.c.l.b16 %v1615
    %v6266 = vunpack.c.h.b16 %v1615
    %v6267 = vunpack.c.l.b16 %v1616
    %v6268 = vunpack.c.h.b16 %v1616
    %v6269 = vunpack.c.l.b16 %v1617
    %v6270 = vunpack.c.h.b16 %v1617
    %v6271 = vunpack.c.l.b16 %v1618
    %v6272 = vunpack.c.h.b16 %v1618
    %v6273 = vunpack.c.l.b16 %v1619
    %v6274 = vunpack.c.h.b16 %v1619
    %v6275 = vunpack.c.l.b16 %v1620
    %v6276 = vunpack.c.h.b16 %v1620
    %v6277 = vunpack.c.l.b16 %v1621
    %v6278 = vunpack.c.h.b16 %v1621
    %v6279 = vunpack.c.l.b16 %v1622
    %v6280 = vunpack.c.h.b16 %v1622
    %v6281 = vunpack.c.l.b16 %v1623
    %v6282 = vunpack.c.h.b16 %v1623
    %v6283 = vunpack.c.l.b16 %v1624
    %v6284 = vunpack.c.h.b16 %v1624
    %v6285 = vunpack.c.l.b16 %v1625
    %v6286 = vunpack.c.h.b16 %v1625
    %v6287 = vunpack.c.l.b16 %v1626
    %v6288 = vunpack.c.h.b16 %v1626
    %v6289 = vunpack.c.l.b16 %v1627
    %v6290 = vunpack.c.h.b16 %v1627
    %v6291 = vunpack.c.l.b16 %v1628
    %v6292 = vunpack.c.h.b16 %v1628
    %v6293 = vunpack.c.l.b16 %v1629
    %v6294 = vunpack.c.h.b16 %v1629
    %v6295 = vunpack.c.l.b16 %v1630
    %v6296 = vunpack.c.h.b16 %v1630
    %v6297 = vunpack.c.l.b16 %v1631
    %v6298 = vunpack.c.h.b16 %v1631
    %v6299 = vunpack.c.l.b16 %v1632
    %v6300 = vunpack.c.h.b16 %v1632
    %v6301 = vunpack.c.l.b16 %v1633
    %v6302 = vunpack.c.h.b16 %v1633
    %v6303 = vunpack.c.l.b16 %v1634
    %v6304 = vunpack.c.h.b16 %v1634
    %v6305 = vunpack.c.l.b16 %v1635
    %v6306 = vunpack.c.h.b16 %v1635
    %v6307 = vunpack.c.l.b16 %v1636
    %v6308 = vunpack.c.h.b16 %v1636
    %v6309 = vunpack.c.l.b16 %v1637
    %v6310 = vunpack.c.h.b16 %v1637
    %v6311 = vunpack.c.l.b16 %v1638
    %v6312 = vunpack.c.h.b16 %v1638
    %v6313 = vunpack.c.l.b16 %v1639
    %v6314 = vunpack.c.h.b16 %v1639
    %v6315 = vunpack.c.l.b16 %v1640
    %v6316 = vunpack.c.h.b16 %v1640
    %v6317 = vunpack.c.l.b16 %v1641
    %v6318 = vunpack.c.h.b16 %v1641
    %v6319 = vunpack.c.l.b16 %v1642
    %v6320 = vunpack.c.h.b16 %v1642
    %v6321 = vunpack.c.l.b16 %v1643
    %v6322 = vunpack.c.h.b16 %v1643
    %v6323 = vunpack.c.l.b16 %v1644
    %v6324 = vunpack.c.h.b16 %v1644
    %v6325 = vunpack.c.l.b16 %v1645
    %v6326 = vunpack.c.h.b16 %v1645
    %v6327 = vunpack.c.l.b16 %v1646
    %v6328 = vunpack.c.h.b16 %v1646
    %v6329 = vunpack.c.l.b16 %v1647
    %v6330 = vunpack.c.h.b16 %v1647
    %v6331 = vunpack.c.l.b16 %v1648
    %v6332 = vunpack.c.h.b16 %v1648
    %v6333 = vunpack.c.l.b16 %v1649
    %v6334 = vunpack.c.h.b16 %v1649
    %v6335 = vunpack.c.l.b16 %v1650
    %v6336 = vunpack.c.h.b16 %v1650
    %v6337 = vunpack.c.l.b16 %v1651
    %v6338 = vunpack.c.h.b16 %v1651
    %v6339 = vunpack.c.l.b16 %v1652
    %v6340 = vunpack.c.h.b16 %v1652
    %v6341 = vunpack.c.l.b16 %v1653
    %v6342 = vunpack.c.h.b16 %v1653
    %v6343 = vunpack.c.l.b16 %v1654
    %v6344 = vunpack.c.h.b16 %v1654
    %v6345 = vunpack.c.l.b16 %v1655
    %v6346 = vunpack.c.h.b16 %v1655
    %v6347 = vunpack.c.l.b16 %v1656
    %v6348 = vunpack.c.h.b16 %v1656
    %v6349 = vunpack.c.l.b16 %v1657
    %v6350 = vunpack.c.h.b16 %v1657
    %v6351 = vunpack.c.l.b16 %v1658
    %v6352 = vunpack.c.h.b16 %v1658
    %v6353 = vunpack.c.l.b16 %v1659
    %v6354 = vunpack.c.h.b16 %v1659
    %v6355 = vunpack.c.l.b16 %v1660
    %v6356 = vunpack.c.h.b16 %v1660
    %v6357 = vunpack.c.l.b16 %v1661
    %v6358 = vunpack.c.h.b16 %v1661
    %v6359 = vunpack.c.l.b16 %v1662
    %v6360 = vunpack.c.h.b16 %v1662
    %v6361 = vunpack.c.l.b16 %v1663
    %v6362 = vunpack.c.h.b16 %v1663
    %v6363 = vunpack.c.l.b16 %v1664
    %v6364 = vunpack.c.h.b16 %v1664
    %v6365 = vunpack.c.l.b16 %v1665
    %v6366 = vunpack.c.h.b16 %v1665
    %v6367 = vunpack.c.l.b16 %v1666
    %v6368 = vunpack.c.h.b16 %v1666
    %v6369 = vunpack.c.l.b16 %v1667
    %v6370 = vunpack.c.h.b16 %v1667
    %v6371 = vunpack.c.l.b16 %v1668
    %v6372 = vunpack.c.h.b16 %v1668
    %v6373 = vunpack.c.l.b16 %v1669
    %v6374 = vunpack.c.h.b16 %v1669
    %v6375 = vunpack.c.l.b16 %v1670
    %v6376 = vunpack.c.h.b16 %v1670
    %v6377 = vunpack.c.l.b16 %v1671
    %v6378 = vunpack.c.h.b16 %v1671
    %v6379 = vunpack.c.l.b16 %v1672
    %v6380 = vunpack.c.h.b16 %v1672
    %v6381 = vunpack.c.l.b16 %v1673
    %v6382 = vunpack.c.h.b16 %v1673
    %v6383 = vunpack.c.l.b16 %v1674
    %v6384 = vunpack.c.h.b16 %v1674
    %v6385 = vunpack.c.l.b16 %v1675
    %v6386 = vunpack.c.h.b16 %v1675
    %v6387 = vunpack.c.l.b16 %v1676
    %v6388 = vunpack.c.h.b16 %v1676
    %v6389 = vunpack.c.l.b16 %v1677
    %v6390 = vunpack.c.h.b16 %v1677
    %v6391 = vunpack.c.l.b16 %v1678
    %v6392 = vunpack.c.h.b16 %v1678
    %v6393 = vunpack.c.l.b16 %v1679
    %v6394 = vunpack.c.h.b16 %v1679
    %v6395 = vunpack.c.l.b16 %v1680
    %v6396 = vunpack.c.h.b16 %v1680
    %v6397 = vunpack.c.l.b16 %v1681
    %v6398 = vunpack.c.h.b16 %v1681
    %v6399 = vunpack.c.l.b16 %v1682
    %v6400 = vunpack.c.h.b16 %v1682
    %v6401 = vunpack.c.l.b16 %v1683
    %v6402 = vunpack.c.h.b16 %v1683
    %v6403 = vunpack.c.l.b16 %v1684
    %v6404 = vunpack.c.h.b16 %v1684
    %v6405 = vunpack.c.l.b16 %v1685
    %v6406 = vunpack.c.h.b16 %v1685
    %v6407 = vunpack.c.l.b16 %v1686
    %v6408 = vunpack.c.h.b16 %v1686
    %v6409 = vunpack.c.l.b16 %v1687
    %v6410 = vunpack.c.h.b16 %v1687
    %v6411 = vunpack.c.l.b16 %v1688
    %v6412 = vunpack.c.h.b16 %v1688
    %v6413 = vunpack.c.l.b16 %v1689
    %v6414 = vunpack.c.h.b16 %v1689
    %v6415 = vunpack.c.l.b16 %v1690
    %v6416 = vunpack.c.h.b16 %v1690
    %v6417 = vunpack.c.l.b16 %v1691
    %v6418 = vunpack.c.h.b16 %v1691
    %v6419 = vunpack.c.l.b16 %v1692
    %v6420 = vunpack.c.h.b16 %v1692
    %v6421 = vunpack.c.l.b16 %v1693
    %v6422 = vunpack.c.h.b16 %v1693
    %v6423 = vunpack.c.l.b16 %v1694
    %v6424 = vunpack.c.h.b16 %v1694
    %v6425 = vunpack.c.l.b16 %v1695
    %v6426 = vunpack.c.h.b16 %v1695
    %v6427 = vunpack.c.l.b16 %v1696
    %v6428 = vunpack.c.h.b16 %v1696
    %v6429 = vunpack.c.l.b16 %v1697
    %v6430 = vunpack.c.h.b16 %v1697
    %v6431 = vunpack.c.l.b16 %v1698
    %v6432 = vunpack.c.h.b16 %v1698
    %v6433 = vunpack.c.l.b16 %v1699
    %v6434 = vunpack.c.h.b16 %v1699
    %v6435 = vunpack.c.l.b16 %v1700
    %v6436 = vunpack.c.h.b16 %v1700
    %v6437 = vunpack.c.l.b16 %v1701
    %v6438 = vunpack.c.h.b16 %v1701
    %v6439 = vunpack.c.l.b16 %v1702
    %v6440 = vunpack.c.h.b16 %v1702
    %v6441 = vunpack.c.l.b16 %v1703
    %v6442 = vunpack.c.h.b16 %v1703
    %v6443 = vunpack.c.l.b16 %v1704
    %v6444 = vunpack.c.h.b16 %v1704
    %v6445 = vunpack.c.l.b16 %v1705
    %v6446 = vunpack.c.h.b16 %v1705
    %v6447 = vunpack.c.l.b16 %v1706
    %v6448 = vunpack.c.h.b16 %v1706
    %v6449 = vunpack.c.l.b16 %v1707
    %v6450 = vunpack.c.h.b16 %v1707
    %v6451 = vunpack.c.l.b16 %v1708
    %v6452 = vunpack.c.h.b16 %v1708
    %v6453 = vunpack.c.l.b16 %v1709
    %v6454 = vunpack.c.h.b16 %v1709
    %v6455 = vunpack.c.l.b16 %v1710
    %v6456 = vunpack.c.h.b16 %v1710
    %v6457 = vunpack.c.l.b16 %v1711
    %v6458 = vunpack.c.h.b16 %v1711
    %v6459 = vunpack.c.l.b16 %v1712
    %v6460 = vunpack.c.h.b16 %v1712
    %v6461 = vunpack.c.l.b16 %v1713
    %v6462 = vunpack.c.h.b16 %v1713
    %v6463 = vunpack.c.l.b16 %v1714
    %v6464 = vunpack.c.h.b16 %v1714
    %v6465 = vunpack.c.l.b16 %v1715
    %v6466 = vunpack.c.h.b16 %v1715
    %v6467 = vunpack.c.l.b16 %v1716
    %v6468 = vunpack.c.h.b16 %v1716
    %v6469 = vunpack.c.l.b16 %v1717
    %v6470 = vunpack.c.h.b16 %v1717
    %v6471 = vunpack.c.l.b16 %v1718
    %v6472 = vunpack.c.h.b16 %v1718
    %v6473 = vunpack.c.l.b16 %v1719
    %v6474 = vunpack.c.h.b16 %v1719
    %v6475 = vunpack.c.l.b16 %v1720
    %v6476 = vunpack.c.h.b16 %v1720
    %v6477 = vunpack.c.l.b16 %v1721
    %v6478 = vunpack.c.h.b16 %v1721
    %v6479 = vunpack.c.l.b16 %v1722
    %v6480 = vunpack.c.h.b16 %v1722
    %v6481 = vunpack.c.l.b16 %v1723
    %v6482 = vunpack.c.h.b16 %v1723
    %v6483 = vunpack.c.l.b16 %v1724
    %v6484 = vunpack.c.h.b16 %v1724
    %v6485 = vunpack.c.l.b16 %v1725
    %v6486 = vunpack.c.h.b16 %v1725
    %v6487 = vunpack.c.l.b16 %v1726
    %v6488 = vunpack.c.h.b16 %v1726
    %v6489 = vunpack.c.l.b16 %v1727
    %v6490 = vunpack.c.h.b16 %v1727
    %v6491 = vunpack.c.l.b16 %v1728
    %v6492 = vunpack.c.h.b16 %v1728
    %v6493 = vunpack.c.l.b16 %v1729
    %v6494 = vunpack.c.h.b16 %v1729
    %v6495 = vunpack.c.l.b16 %v1730
    %v6496 = vunpack.c.h.b16 %v1730
    %v6497 = vunpack.c.l.b16 %v1731
    %v6498 = vunpack.c.h.b16 %v1731
    %v6499 = vunpack.c.l.b16 %v1732
    %v6500 = vunpack.c.h.b16 %v1732
    %v6501 = vunpack.c.l.b16 %v1733
    %v6502 = vunpack.c.h.b16 %v1733
    %v6503 = vunpack.c.l.b16 %v1734
    %v6504 = vunpack.c.h.b16 %v1734
    %v6505 = vunpack.c.l.b16 %v1735
    %v6506 = vunpack.c.h.b16 %v1735
    %v6507 = vunpack.c.l.b16 %v1736
    %v6508 = vunpack.c.h.b16 %v1736
    %v6509 = vunpack.c.l.b16 %v1737
    %v6510 = vunpack.c.h.b16 %v1737
    %v6511 = vunpack.c.l.b16 %v1738
    %v6512 = vunpack.c.h.b16 %v1738
    %v6513 = vunpack.c.l.b16 %v1739
    %v6514 = vunpack.c.h.b16 %v1739
    %v6515 = vunpack.c.l.b16 %v1740
    %v6516 = vunpack.c.h.b16 %v1740
    %v6517 = vunpack.c.l.b16 %v1741
    %v6518 = vunpack.c.h.b16 %v1741
    %v6519 = vunpack.c.l.b16 %v1742
    %v6520 = vunpack.c.h.b16 %v1742
    %v6521 = vunpack.c.l.b16 %v1743
    %v6522 = vunpack.c.h.b16 %v1743
    %v6523 = vunpack.c.l.b16 %v1744
    %v6524 = vunpack.c.h.b16 %v1744
    %v6525 = vunpack.c.l.b16 %v1745
    %v6526 = vunpack.c.h.b16 %v1745
    %v6527 = vunpack.c.l.b16 %v1746
    %v6528 = vunpack.c.h.b16 %v1746
    %v6529 = vunpack.c.l.b16 %v1747
    %v6530 = vunpack.c.h.b16 %v1747
    %v6531 = vunpack.c.l.b16 %v1748
    %v6532 = vunpack.c.h.b16 %v1748
    %v6533 = vunpack.c.l.b16 %v1749
    %v6534 = vunpack.c.h.b16 %v1749
    %v6535 = vunpack.c.l.b16 %v1750
    %v6536 = vunpack.c.h.b16 %v1750
    %v6537 = vunpack.c.l.b16 %v1751
    %v6538 = vunpack.c.h.b16 %v1751
    %v6539 = vunpack.c.l.b16 %v1752
    %v6540 = vunpack.c.h.b16 %v1752
    %v6541 = vunpack.c.l.b16 %v1753
    %v6542 = vunpack.c.h.b16 %v1753
    %v6543 = vunpack.c.l.b16 %v1754
    %v6544 = vunpack.c.h.b16 %v1754
    %v6545 = vunpack.c.l.b16 %v1755
    %v6546 = vunpack.c.h.b16 %v1755
    %v6547 = vunpack.c.l.b16 %v1756
    %v6548 = vunpack.c.h.b16 %v1756
    %v6549 = vunpack.c.l.b16 %v1757
    %v6550 = vunpack.c.h.b16 %v1757
    %v6551 = vunpack.c.l.b16 %v1758
    %v6552 = vunpack.c.h.b16 %v1758
    %v6553 = vunpack.c.l.b16 %v1759
    %v6554 = vunpack.c.h.b16 %v1759
    %v6555 = vunpack.c.l.b16 %v1760
    %v6556 = vunpack.c.h.b16 %v1760
    %v6557 = vunpack.c.l.b16 %v1761
    %v6558 = vunpack.c.h.b16 %v1761
    %v6559 = vunpack.c.l.b16 %v1762
    %v6560 = vunpack.c.h.b16 %v1762
    %v6561 = vunpack.c.l.b16 %v1763
    %v6562 = vunpack.c.h.b16 %v1763
    %v6563 = vunpack.c.l.b16 %v1764
    %v6564 = vunpack.c.h.b16 %v1764
    %v6565 = vunpack.c.l.b16 %v1765
    %v6566 = vunpack.c.h.b16 %v1765
    %v6567 = vunpack.c.l.b16 %v1766
    %v6568 = vunpack.c.h.b16 %v1766
    %v6569 = vunpack.c.l.b16 %v1767
    %v6570 = vunpack.c.h.b16 %v1767
    %v6571 = vunpack.c.l.b16 %v1768
    %v6572 = vunpack.c.h.b16 %v1768
    %v6573 = vunpack.c.l.b16 %v1769
    %v6574 = vunpack.c.h.b16 %v1769
    %v6575 = vunpack.c.l.b16 %v1770
    %v6576 = vunpack.c.h.b16 %v1770
    %v6577 = vunpack.c.l.b16 %v1771
    %v6578 = vunpack.c.h.b16 %v1771
    %v6579 = vunpack.c.l.b16 %v1772
    %v6580 = vunpack.c.h.b16 %v1772
    %v6581 = vunpack.c.l.b16 %v1773
    %v6582 = vunpack.c.h.b16 %v1773
    %v6583 = vunpack.c.l.b16 %v1774
    %v6584 = vunpack.c.h.b16 %v1774
    %v6585 = vunpack.c.l.b16 %v1775
    %v6586 = vunpack.c.h.b16 %v1775
    %v6587 = vunpack.c.l.b16 %v1776
    %v6588 = vunpack.c.h.b16 %v1776
    %v6589 = vunpack.c.l.b16 %v1777
    %v6590 = vunpack.c.h.b16 %v1777
    %v6591 = vunpack.c.l.b16 %v1778
    %v6592 = vunpack.c.h.b16 %v1778
    %v6593 = vunpack.c.l.b16 %v1779
    %v6594 = vunpack.c.h.b16 %v1779
    %v6595 = vunpack.c.l.b16 %v1780
    %v6596 = vunpack.c.h.b16 %v1780
    %v6597 = vunpack.c.l.b16 %v1781
    %v6598 = vunpack.c.h.b16 %v1781
    %v6599 = vunpack.c.l.b16 %v1782
    %v6600 = vunpack.c.h.b16 %v1782
    %v6601 = vunpack.c.l.b16 %v1783
    %v6602 = vunpack.c.h.b16 %v1783
    %v6603 = vunpack.c.l.b16 %v1784
    %v6604 = vunpack.c.h.b16 %v1784
    %v6605 = vunpack.c.l.b16 %v1785
    %v6606 = vunpack.c.h.b16 %v1785
    %v6607 = vunpack.c.l.b16 %v1786
    %v6608 = vunpack.c.h.b16 %v1786
    %v6609 = vunpack.c.l.b16 %v1787
    %v6610 = vunpack.c.h.b16 %v1787
    %v6611 = vunpack.c.l.b16 %v1788
    %v6612 = vunpack.c.h.b16 %v1788
    %v6613 = vunpack.c.l.b16 %v1789
    %v6614 = vunpack.c.h.b16 %v1789
    %v6615 = vunpack.c.l.b16 %v1790
    %v6616 = vunpack.c.h.b16 %v1790
    %v6617 = vunpack.c.l.b16 %v1791
    %v6618 = vunpack.c.h.b16 %v1791
    %v6619 = vunpack.c.l.b16 %v1792
    %v6620 = vunpack.c.h.b16 %v1792
    %v6621 = vunpack.c.l.b16 %v1793
    %v6622 = vunpack.c.h.b16 %v1793
    %v6623 = vunpack.c.l.b16 %v1794
    %v6624 = vunpack.c.h.b16 %v1794
    %v6625 = vunpack.c.l.b16 %v1795
    %v6626 = vunpack.c.h.b16 %v1795
    %v6627 = vunpack.c.l.b16 %v1796
    %v6628 = vunpack.c.h.b16 %v1796
    %v6629 = vunpack.c.l.b16 %v1797
    %v6630 = vunpack.c.h.b16 %v1797
    %v6631 = vunpack.c.l.b16 %v1798
    %v6632 = vunpack.c.h.b16 %v1798
    %v6633 = vunpack.c.l.b16 %v1799
    %v6634 = vunpack.c.h.b16 %v1799
    %v6635 = vunpack.c.l.b16 %v1800
    %v6636 = vunpack.c.h.b16 %v1800
    %v6637 = vunpack.c.l.b16 %v1801
    %v6638 = vunpack.c.h.b16 %v1801
    %v6639 = vunpack.c.l.b16 %v1802
    %v6640 = vunpack.c.h.b16 %v1802
    %v6641 = vunpack.c.l.b16 %v1803
    %v6642 = vunpack.c.h.b16 %v1803
    %v6643 = vunpack.c.l.b16 %v1804
    %v6644 = vunpack.c.h.b16 %v1804
    %v6645 = vunpack.c.l.b16 %v1805
    %v6646 = vunpack.c.h.b16 %v1805
    %v6647 = vunpack.c.l.b16 %v1806
    %v6648 = vunpack.c.h.b16 %v1806
    %v6649 = vunpack.c.l.b16 %v1807
    %v6650 = vunpack.c.h.b16 %v1807
    %v6651 = vunpack.c.l.b16 %v1808
    %v6652 = vunpack.c.h.b16 %v1808
    %v6653 = vunpack.c.l.b16 %v1809
    %v6654 = vunpack.c.h.b16 %v1809
    %v6655 = vunpack.c.l.b16 %v1810
    %v6656 = vunpack.c.h.b16 %v1810
    %v6657 = vunpack.c.l.b16 %v1811
    %v6658 = vunpack.c.h.b16 %v1811
    %v6659 = vunpack.c.l.b16 %v1812
    %v6660 = vunpack.c.h.b16 %v1812
    %v6661 = vunpack.c.l.b16 %v1813
    %v6662 = vunpack.c.h.b16 %v1813
    %v6663 = vunpack.c.l.b16 %v1814
    %v6664 = vunpack.c.h.b16 %v1814
    %v6665 = vunpack.c.l.b16 %v1815
    %v6666 = vunpack.c.h.b16 %v1815
    %v6667 = vunpack.c.l.b16 %v1816
    %v6668 = vunpack.c.h.b16 %v1816
    %v6669 = vunpack.c.l.b16 %v1817
    %v6670 = vunpack.c.h.b16 %v1817
    %v6671 = vunpack.c.l.b16 %v1818
    %v6672 = vunpack.c.h.b16 %v1818
    %v6673 = vpack.c.b16 %v3483, %v3473
    %v6674 = vpack.c.b16 %v3484, %v3474
    %v6675 = vpack.c.b16 %v3485, %v3475
    %v6676 = vpack.c.b16 %v3486, %v3476
    %v6677 = vpack.c.b16 %v3487, %v3477
    %v6678 = vpack.c.b16 %v3488, %v3478
    %v6679 = vpack.c.b16 %v3489, %v3479
    %v6680 = vpack.c.b16 %v3490, %v3480
    %v6681 = vpack.c.b16 %v3491, %v3481
    %v6682 = vpack.c.b16 %v3492, %v3482
    %v6683 = vpack.c.b16 %v3503, %v3493
    %v6684 = vpack.c.b16 %v3504, %v3494
    %v6685 = vpack.c.b16 %v3505, %v3495
    %v6686 = vpack.c.b16 %v3506, %v3496
    %v6687 = vpack.c.b16 %v3507, %v3497
    %v6688 = vpack.c.b16 %v3508, %v3498
    %v6689 = vpack.c.b16 %v3509, %v3499
    %v6690 = vpack.c.b16 %v3510, %v3500
    %v6691 = vpack.c.b16 %v3511, %v3501
    %v6692 = vpack.c.b16 %v3512, %v3502
    %v6693 = vpack.c.b16 %v3523, %v3513
    %v6694 = vpack.c.b16 %v3524, %v3514
    %v6695 = vpack.c.b16 %v3525, %v3515
    %v6696 = vpack.c.b16 %v3526, %v3516
    %v6697 = vpack.c.b16 %v3527, %v3517
    %v6698 = vpack.c.b16 %v3528, %v3518
    %v6699 = vpack.c.b16 %v3529, %v3519
    %v6700 = vpack.c.b16 %v3530, %v3520
    %v6701 = vpack.c.b16 %v3531, %v3521
    %v6702 = vpack.c.b16 %v3532, %v3522
    %v6703 = vpack.c.b16 %v3543, %v3533
    %v6704 = vpack.c.b16 %v3544, %v3534
    %v6705 = vpack.c.b16 %v3545, %v3535
    %v6706 = vpack.c.b16 %v3546, %v3536
    %v6707 = vpack.c.b16 %v3547, %v3537
    %v6708 = vpack.c.b16 %v3548, %v3538
    %v6709 = vpack.c.b16 %v3549, %v3539
    %v6710 = vpack.c.b16 %v3550, %v3540
    %v6711 = vpack.c.b16 %v3551, %v3541
    %v6712 = vpack.c.b16 %v3552, %v3542
    %v6713 = vpack.c.b16 %v3563, %v3553
    %v6714 = vpack.c.b16 %v3564, %v3554
    %v6715 = vpack.c.b16 %v3565, %v3555
    %v6716 = vpack.c.b16 %v3566, %v3556
    %v6717 = vpack.c.b16 %v3567, %v3557
    %v6718 = vpack.c.b16 %v3568, %v3558
    %v6719 = vpack.c.b16 %v3569, %v3559
    %v6720 = vpack.c.b16 %v3570, %v3560
    %v6721 = vpack.c.b16 %v3571, %v3561
    %v6722 = vpack.c.b16 %v3572, %v3562
    %v6723 = vpack.c.b16 %v3583, %v3573
    %v6724 = vpack.c.b16 %v3584, %v3574
    %v6725 = vpack.c.b16 %v3585, %v3575
    %v6726 = vpack.c.b16 %v3586, %v3576
    %v6727 = vpack.c.b16 %v3587, %v3577
    %v6728 = vpack.c.b16 %v3588, %v3578
    %v6729 = vpack.c.b16 %v3589, %v3579
    %v6730 = vpack.c.b16 %v3590, %v3580
    %v6731 = vpack.c.b16 %v3591, %v3581
    %v6732 = vpack.c.b16 %v3592, %v3582
    %v6733 = vpack.c.b16 %v3603, %v3593
    %v6734 = vpack.c.b16 %v3604, %v3594
    %v6735 = vpack.c.b16 %v3605, %v3595
    %v6736 = vpack.c.b16 %v3606, %v3596
    %v6737 = vpack.c.b16 %v3607, %v3597
    %v6738 = vpack.c.b16 %v3608, %v3598
    %v6739 = vpack.c.b16 %v3609, %v3599
    %v6740 = vpack.c.b16 %v3610, %v3600
    %v6741 = vpack.c.b16 %v3611, %v3601
    %v6742 = vpack.c.b16 %v3612, %v3602
    %v6743 = vpack.c.b16 %v3623, %v3613
    %v6744 = vpack.c.b16 %v3624, %v3614
    %v6745 = vpack.c.b16 %v3625, %v3615
    %v6746 = vpack.c.b16 %v3626, %v3616
    %v6747 = vpack.c.b16 %v3627, %v3617
    %v6748 = vpack.c.b16 %v3628, %v3618
    %v6749 = vpack.c.b16 %v3629, %v3619
    %v6750 = vpack.c.b16 %v3630, %v3620
    %v6751 = vpack.c.b16 %v3631, %v3621
    %v6752 = vpack.c.b16 %v3632, %v3622
    %v6753 = vpack.c.b16 %v3643, %v3633
    %v6754 = vpack.c.b16 %v3644, %v3634
    %v6755 = vpack.c.b16 %v3645, %v3635
    %v6756 = vpack.c.b16 %v3646, %v3636
    %v6757 = vpack.c.b16 %v3647, %v3637
    %v6758 = vpack.c.b16 %v3648, %v3638
    %v6759 = vpack.c.b16 %v3649, %v3639
    %v6760 = vpack.c.b16 %v3650, %v3640
    %v6761 = vpack.c.b16 %v3651, %v3641
    %v6762 = vpack.c.b16 %v3652, %v3642
    %v6763 = vpack.c.b16 %v3663, %v3653
    %v6764 = vpack.c.b16 %v3664, %v3654
    %v6765 = vpack.c.b16 %v3665, %v3655
    %v6766 = vpack.c.b16 %v3666, %v3656
    %v6767 = vpack.c.b16 %v3667, %v3657
    %v6768 = vpack.c.b16 %v3668, %v3658
    %v6769 = vpack.c.b16 %v3669, %v3659
    %v6770 = vpack.c.b16 %v3670, %v3660
    %v6771 = vpack.c.b16 %v3671, %v3661
    %v6772 = vpack.c.b16 %v3672, %v3662
    %v6773 = vpack.c.b16 %v3683, %v3673
    %v6774 = vpack.c.b16 %v3684, %v3674
    %v6775 = vpack.c.b16 %v3685, %v3675
    %v6776 = vpack.c.b16 %v3686, %v3676
    %v6777 = vpack.c.b16 %v3687, %v3677
    %v6778 = vpack.c.b16 %v3688, %v3678
    %v6779 = vpack.c.b16 %v3689, %v3679
    %v6780 = vpack.c.b16 %v3690, %v3680
    %v6781 = vpack.c.b16 %v3691, %v3681
    %v6782 = vpack.c.b16 %v3692, %v3682
    %v6783 = vpack.c.b16 %v3703, %v3693
    %v6784 = vpack.c.b16 %v3704, %v3694
    %v6785 = vpack.c.b16 %v3705, %v3695
    %v6786 = vpack.c.b16 %v3706, %v3696
    %v6787 = vpack.c.b16 %v3707, %v3697
    %v6788 = vpack.c.b16 %v3708, %v3698
    %v6789 = vpack.c.b16 %v3709, %v3699
    %v6790 = vpack.c.b16 %v3710, %v3700
    %v6791 = vpack.c.b16 %v3711, %v3701
    %v6792 = vpack.c.b16 %v3712, %v3702
    %v6793 = vpack.c.b16 %v3723, %v3713
    %v6794 = vpack.c.b16 %v3724, %v3714
    %v6795 = vpack.c.b16 %v3725, %v3715
    %v6796 = vpack.c.b16 %v3726, %v3716
    %v6797 = vpack.c.b16 %v3727, %v3717
    %v6798 = vpack.c.b16 %v3728, %v3718
    %v6799 = vpack.c.b16 %v3729, %v3719
    %v6800 = vpack.c.b16 %v3730, %v3720
    %v6801 = vpack.c.b16 %v3731, %v3721
    %v6802 = vpack.c.b16 %v3732, %v3722
    %v6803 = vpack.c.b16 %v3743, %v3733
    %v6804 = vpack.c.b16 %v3744, %v3734
    %v6805 = vpack.c.b16 %v3745, %v3735
    %v6806 = vpack.c.b16 %v3746, %v3736
    %v6807 = vpack.c.b16 %v3747, %v3737
    %v6808 = vpack.c.b16 %v3748, %v3738
    %v6809 = vpack.c.b16 %v3749, %v3739
    %v6810 = vpack.c.b16 %v3750, %v3740
    %v6811 = vpack.c.b16 %v3751, %v3741
    %v6812 = vpack.c.b16 %v3752, %v3742
    %v6813 = vpack.c.b16 %v3763, %v3753
    %v6814 = vpack.c.b16 %v3764, %v3754
    %v6815 = vpack.c.b16 %v3765, %v3755
    %v6816 = vpack.c.b16 %v3766, %v3756
    %v6817 = vpack.c.b16 %v3767, %v3757
    %v6818 = vpack.c.b16 %v3768, %v3758
    %v6819 = vpack.c.b16 %v3769, %v3759
    %v6820 = vpack.c.b16 %v3770, %v3760
    %v6821 = vpack.c.b16 %v3771, %v3761
    %v6822 = vpack.c.b16 %v3772, %v3762
    %v6823 = vpack.c.b16 %v3783, %v3773
    %v6824 = vpack.c.b16 %v3784, %v3774
    %v6825 = vpack.c.b16 %v3785, %v3775
    %v6826 = vpack.c.b16 %v3786, %v3776
    %v6827 = vpack.c.b16 %v3787, %v3777
    %v6828 = vpack.c.b16 %v3788, %v3778
    %v6829 = vpack.c.b16 %v3789, %v3779
    %v6830 = vpack.c.b16 %v3790, %v3780
    %v6831 = vpack.c.b16 %v3791, %v3781
    %v6832 = vpack.c.b16 %v3792, %v3782
    %v6833 = vpack.c.b16 %v3803, %v3793
    %v6834 = vpack.c.b16 %v3804, %v3794
    %v6835 = vpack.c.b16 %v3805, %v3795
    %v6836 = vpack.c.b16 %v3806, %v3796
    %v6837 = vpack.c.b16 %v3807, %v3797
    %v6838 = vpack.c.b16 %v3808, %v3798
    %v6839 = vpack.c.b16 %v3809, %v3799
    %v6840 = vpack.c.b16 %v3810, %v3800
    %v6841 = vpack.c.b16 %v3811, %v3801
    %v6842 = vpack.c.b16 %v3812, %v3802
    %v6843 = vpack.c.b16 %v3823, %v3813
    %v6844 = vpack.c.b16 %v3824, %v3814
    %v6845 = vpack.c.b16 %v3825, %v3815
    %v6846 = vpack.c.b16 %v3826, %v3816
    %v6847 = vpack.c.b16 %v3827, %v3817
    %v6848 = vpack.c.b16 %v3828, %v3818
    %v6849 = vpack.c.b16 %v3829, %v3819
    %v6850 = vpack.c.b16 %v3830, %v3820
    %v6851 = vpack.c.b16 %v3831, %v3821
    %v6852 = vpack.c.b16 %v3832, %v3822
    %v6853 = vpack.c.b16 %v3843, %v3833
    %v6854 = vpack.c.b16 %v3844, %v3834
    %v6855 = vpack.c.b16 %v3845, %v3835
    %v6856 = vpack.c.b16 %v3846, %v3836
    %v6857 = vpack.c.b16 %v3847, %v3837
    %v6858 = vpack.c.b16 %v3848, %v3838
    %v6859 = vpack.c.b16 %v3849, %v3839
    %v6860 = vpack.c.b16 %v3850, %v3840
    %v6861 = vpack.c.b16 %v3851, %v3841
    %v6862 = vpack.c.b16 %v3852, %v3842
    %v6863 = vpack.c.b16 %v3863, %v3853
    %v6864 = vpack.c.b16 %v3864, %v3854
    %v6865 = vpack.c.b16 %v3865, %v3855
    %v6866 = vpack.c.b16 %v3866, %v3856
    %v6867 = vpack.c.b16 %v3867, %v3857
    %v6868 = vpack.c.b16 %v3868, %v3858
    %v6869 = vpack.c.b16 %v3869, %v3859
    %v6870 = vpack.c.b16 %v3870, %v3860
    %v6871 = vpack.c.b16 %v3871, %v3861
    %v6872 = vpack.c.b16 %v3872, %v3862
    %v6873 = vpack.c.b16 %v3883, %v3873
    %v6874 = vpack.c.b16 %v3884, %v3874
    %v6875 = vpack.c.b16 %v3885, %v3875
    %v6876 = vpack.c.b16 %v3886, %v3876
    %v6877 = vpack.c.b16 %v3887, %v3877
    %v6878 = vpack.c.b16 %v3888, %v3878
    %v6879 = vpack.c.b16 %v3889, %v3879
    %v6880 = vpack.c.b16 %v3890, %v3880
    %v6881 = vpack.c.b16 %v3891, %v3881
    %v6882 = vpack.c.b16 %v3892, %v3882
    %v6883 = vpack.c.b16 %v3903, %v3893
    %v6884 = vpack.c.b16 %v3904, %v3894
    %v6885 = vpack.c.b16 %v3905, %v3895
    %v6886 = vpack.c.b16 %v3906, %v3896
    %v6887 = vpack.c.b16 %v3907, %v3897
    %v6888 = vpack.c.b16 %v3908, %v3898
    %v6889 = vpack.c.b16 %v3909, %v3899
    %v6890 = vpack.c.b16 %v3910, %v3900
    %v6891 = vpack.c.b16 %v3911, %v3901
    %v6892 = vpack.c.b16 %v3912, %v3902
    %v6893 = vpack.c.b16 %v3923, %v3913
    %v6894 = vpack.c.b16 %v3924, %v3914
    %v6895 = vpack.c.b16 %v3925, %v3915
    %v6896 = vpack.c.b16 %v3926, %v3916
    %v6897 = vpack.c.b16 %v3927, %v3917
    %v6898 = vpack.c.b16 %v3928, %v3918
    %v6899 = vpack.c.b16 %v3929, %v3919
    %v6900 = vpack.c.b16 %v3930, %v3920
    %v6901 = vpack.c.b16 %v3931, %v3921
    %v6902 = vpack.c.b16 %v3932, %v3922
    %v6903 = vpack.c.b16 %v3943, %v3933
    %v6904 = vpack.c.b16 %v3944, %v3934
    %v6905 = vpack.c.b16 %v3945, %v3935
    %v6906 = vpack.c.b16 %v3946, %v3936
    %v6907 = vpack.c.b16 %v3947, %v3937
    %v6908 = vpack.c.b16 %v3948, %v3938
    %v6909 = vpack.c.b16 %v3949, %v3939
    %v6910 = vpack.c.b16 %v3950, %v3940
    %v6911 = vpack.c.b16 %v3951, %v3941
    %v6912 = vpack.c.b16 %v3952, %v3942
    %v6913 = vpack.c.b16 %v3963, %v3953
    %v6914 = vpack.c.b16 %v3964, %v3954
    %v6915 = vpack.c.b16 %v3965, %v3955
    %v6916 = vpack.c.b16 %v3966, %v3956
    %v6917 = vpack.c.b16 %v3967, %v3957
    %v6918 = vpack.c.b16 %v3968, %v3958
    %v6919 = vpack.c.b16 %v3969, %v3959
    %v6920 = vpack.c.b16 %v3970, %v3960
    %v6921 = vpack.c.b16 %v3971, %v3961
    %v6922 = vpack.c.b16 %v3972, %v3962
    %v6923 = vpack.c.b16 %v3983, %v3973
    %v6924 = vpack.c.b16 %v3984, %v3974
    %v6925 = vpack.c.b16 %v3985, %v3975
    %v6926 = vpack.c.b16 %v3986, %v3976
    %v6927 = vpack.c.b16 %v3987, %v3977
    %v6928 = vpack.c.b16 %v3988, %v3978
    %v6929 = vpack.c.b16 %v3989, %v3979
    %v6930 = vpack.c.b16 %v3990, %v3980
    %v6931 = vpack.c.b16 %v3991, %v3981
    %v6932 = vpack.c.b16 %v3992, %v3982
    %v6933 = vpack.c.b16 %v4003, %v3993
    %v6934 = vpack.c.b16 %v4004, %v3994
    %v6935 = vpack.c.b16 %v4005, %v3995
    %v6936 = vpack.c.b16 %v4006, %v3996
    %v6937 = vpack.c.b16 %v4007, %v3997
    %v6938 = vpack.c.b16 %v4008, %v3998
    %v6939 = vpack.c.b16 %v4009, %v3999
    %v6940 = vpack.c.b16 %v4010, %v4000
    %v6941 = vpack.c.b16 %v4011, %v4001
    %v6942 = vpack.c.b16 %v4012, %v4002
    %v6943 = vpack.c.b16 %v4023, %v4013
    %v6944 = vpack.c.b16 %v4024, %v4014
    %v6945 = vpack.c.b16 %v4025, %v4015
    %v6946 = vpack.c.b16 %v4026, %v4016
    %v6947 = vpack.c.b16 %v4027, %v4017
    %v6948 = vpack.c.b16 %v4028, %v4018
    %v6949 = vpack.c.b16 %v4029, %v4019
    %v6950 = vpack.c.b16 %v4030, %v4020
    %v6951 = vpack.c.b16 %v4031, %v4021
    %v6952 = vpack.c.b16 %v4032, %v4022
    %v6953 = vpack.c.b16 %v4043, %v4033
    %v6954 = vpack.c.b16 %v4044, %v4034
    %v6955 = vpack.c.b16 %v4045, %v4035
    %v6956 = vpack.c.b16 %v4046, %v4036
    %v6957 = vpack.c.b16 %v4047, %v4037
    %v6958 = vpack.c.b16 %v4048, %v4038
    %v6959 = vpack.c.b16 %v4049, %v4039
    %v6960 = vpack.c.b16 %v4050, %v4040
    %v6961 = vpack.c.b16 %v4051, %v4041
    %v6962 = vpack.c.b16 %v4052, %v4042
    %v6963 = vpack.c.b16 %v4063, %v4053
    %v6964 = vpack.c.b16 %v4064, %v4054
    %v6965 = vpack.c.b16 %v4065, %v4055
    %v6966 = vpack.c.b16 %v4066, %v4056
    %v6967 = vpack.c.b16 %v4067, %v4057
    %v6968 = vpack.c.b16 %v4068, %v4058
    %v6969 = vpack.c.b16 %v4069, %v4059
    %v6970 = vpack.c.b16 %v4070, %v4060
    %v6971 = vpack.c.b16 %v4071, %v4061
    %v6972 = vpack.c.b16 %v4072, %v4062
    %v6973 = vpack.c.b16 %v4083, %v4073
    %v6974 = vpack.c.b16 %v4084, %v4074
    %v6975 = vpack.c.b16 %v4085, %v4075
    %v6976 = vpack.c.b16 %v4086, %v4076
    %v6977 = vpack.c.b16 %v4087, %v4077
    %v6978 = vpack.c.b16 %v4088, %v4078
    %v6979 = vpack.c.b16 %v4089, %v4079
    %v6980 = vpack.c.b16 %v4090, %v4080
    %v6981 = vpack.c.b16 %v4091, %v4081
    %v6982 = vpack.c.b16 %v4092, %v4082
    %v6983 = vpack.c.b16 %v4103, %v4093
    %v6984 = vpack.c.b16 %v4104, %v4094
    %v6985 = vpack.c.b16 %v4105, %v4095
    %v6986 = vpack.c.b16 %v4106, %v4096
    %v6987 = vpack.c.b16 %v4107, %v4097
    %v6988 = vpack.c.b16 %v4108, %v4098
    %v6989 = vpack.c.b16 %v4109, %v4099
    %v6990 = vpack.c.b16 %v4110, %v4100
    %v6991 = vpack.c.b16 %v4111, %v4101
    %v6992 = vpack.c.b16 %v4112, %v4102
    %v6993 = vpack.c.b16 %v4123, %v4113
    %v6994 = vpack.c.b16 %v4124, %v4114
    %v6995 = vpack.c.b16 %v4125, %v4115
    %v6996 = vpack.c.b16 %v4126, %v4116
    %v6997 = vpack.c.b16 %v4127, %v4117
    %v6998 = vpack.c.b16 %v4128, %v4118
    %v6999 = vpack.c.b16 %v4129, %v4119
    %v7000 = vpack.c.b16 %v4130, %v4120
    %v7001 = vpack.c.b16 %v4131, %v4121
    %v7002 = vpack.c.b16 %v4132, %v4122
    %v7003 = vpack.c.b16 %v4143, %v4133
    %v7004 = vpack.c.b16 %v4144, %v4134
    %v7005 = vpack.c.b16 %v4145, %v4135
    %v7006 = vpack.c.b16 %v4146, %v4136
    %v7007 = vpack.c.b16 %v4147, %v4137
    %v7008 = vpack.c.b16 %v4148, %v4138
    %v7009 = vpack.c.b16 %v4149, %v4139
    %v7010 = vpack.c.b16 %v4150, %v4140
    %v7011 = vpack.c.b16 %v4151, %v4141
    %v7012 = vpack.c.b16 %v4152, %v4142
    %v7013 = vpack.c.b16 %v4163, %v4153
    %v7014 = vpack.c.b16 %v4164, %v4154
    %v7015 = vpack.c.b16 %v4165, %v4155
    %v7016 = vpack.c.b16 %v4166, %v4156
    %v7017 = vpack.c.b16 %v4167, %v4157
    %v7018 = vpack.c.b16 %v4168, %v4158
    %v7019 = vpack.c.b16 %v4169, %v4159
    %v7020 = vpack.c.b16 %v4170, %v4160
    %v7021 = vpack.c.b16 %v4171, %v4161
    %v7022 = vpack.c.b16 %v4172, %v4162
    %v7023 = vpack.c.b16 %v4183, %v4173
    %v7024 = vpack.c.b16 %v4184, %v4174
    %v7025 = vpack.c.b16 %v4185, %v4175
    %v7026 = vpack.c.b16 %v4186, %v4176
    %v7027 = vpack.c.b16 %v4187, %v4177
    %v7028 = vpack.c.b16 %v4188, %v4178
    %v7029 = vpack.c.b16 %v4189, %v4179
    %v7030 = vpack.c.b16 %v4190, %v4180
    %v7031 = vpack.c.b16 %v4191, %v4181
    %v7032 = vpack.c.b16 %v4192, %v4182
    %v7033 = vpack.c.b16 %v4203, %v4193
    %v7034 = vpack.c.b16 %v4204, %v4194
    %v7035 = vpack.c.b16 %v4205, %v4195
    %v7036 = vpack.c.b16 %v4206, %v4196
    %v7037 = vpack.c.b16 %v4207, %v4197
    %v7038 = vpack.c.b16 %v4208, %v4198
    %v7039 = vpack.c.b16 %v4209, %v4199
    %v7040 = vpack.c.b16 %v4210, %v4200
    %v7041 = vpack.c.b16 %v4211, %v4201
    %v7042 = vpack.c.b16 %v4212, %v4202
    %v7043 = vpack.c.b16 %v4223, %v4213
    %v7044 = vpack.c.b16 %v4224, %v4214
    %v7045 = vpack.c.b16 %v4225, %v4215
    %v7046 = vpack.c.b16 %v4226, %v4216
    %v7047 = vpack.c.b16 %v4227, %v4217
    %v7048 = vpack.c.b16 %v4228, %v4218
    %v7049 = vpack.c.b16 %v4229, %v4219
    %v7050 = vpack.c.b16 %v4230, %v4220
    %v7051 = vpack.c.b16 %v4231, %v4221
    %v7052 = vpack.c.b16 %v4232, %v4222
    %v7053 = vpack.c.b16 %v4243, %v4233
    %v7054 = vpack.c.b16 %v4244, %v4234
    %v7055 = vpack.c.b16 %v4245, %v4235
    %v7056 = vpack.c.b16 %v4246, %v4236
    %v7057 = vpack.c.b16 %v4247, %v4237
    %v7058 = vpack.c.b16 %v4248, %v4238
    %v7059 = vpack.c.b16 %v4249, %v4239
    %v7060 = vpack.c.b16 %v4250, %v4240
    %v7061 = vpack.c.b16 %v4251, %v4241
    %v7062 = vpack.c.b16 %v4252, %v4242
    %v7063 = vpack.c.b16 %v4263, %v4253
    %v7064 = vpack.c.b16 %v4264, %v4254
    %v7065 = vpack.c.b16 %v4265, %v4255
    %v7066 = vpack.c.b16 %v4266, %v4256
    %v7067 = vpack.c.b16 %v4267, %v4257
    %v7068 = vpack.c.b16 %v4268, %v4258
    %v7069 = vpack.c.b16 %v4269, %v4259
    %v7070 = vpack.c.b16 %v4270, %v4260
    %v7071 = vpack.c.b16 %v4271, %v4261
    %v7072 = vpack.c.b16 %v4272, %v4262
    %v7073 = vpack.c.b16 %v4283, %v4273
    %v7074 = vpack.c.b16 %v4284, %v4274
    %v7075 = vpack.c.b16 %v4285, %v4275
    %v7076 = vpack.c.b16 %v4286, %v4276
    %v7077 = vpack.c.b16 %v4287, %v4277
    %v7078 = vpack.c.b16 %v4288, %v4278
    %v7079 = vpack.c.b16 %v4289, %v4279
    %v7080 = vpack.c.b16 %v4290, %v4280
    %v7081 = vpack.c.b16 %v4291, %v4281
    %v7082 = vpack.c.b16 %v4292, %v4282
    %v7083 = vpack.c.b16 %v4303, %v4293
    %v7084 = vpack.c.b16 %v4304, %v4294
    %v7085 = vpack.c.b16 %v4305, %v4295
    %v7086 = vpack.c.b16 %v4306, %v4296
    %v7087 = vpack.c.b16 %v4307, %v4297
    %v7088 = vpack.c.b16 %v4308, %v4298
    %v7089 = vpack.c.b16 %v4309, %v4299
    %v7090 = vpack.c.b16 %v4310, %v4300
    %v7091 = vpack.c.b16 %v4311, %v4301
    %v7092 = vpack.c.b16 %v4312, %v4302
    %v7093 = vpack.c.b16 %v4323, %v4313
    %v7094 = vpack.c.b16 %v4324, %v4314
    %v7095 = vpack.c.b16 %v4325, %v4315
    %v7096 = vpack.c.b16 %v4326, %v4316
    %v7097 = vpack.c.b16 %v4327, %v4317
    %v7098 = vpack.c.b16 %v4328, %v4318
    %v7099 = vpack.c.b16 %v4329, %v4319
    %v7100 = vpack.c.b16 %v4330, %v4320
    %v7101 = vpack.c.b16 %v4331, %v4321
    %v7102 = vpack.c.b16 %v4332, %v4322
    %v7103 = vpack.c.b16 %v4343, %v4333
    %v7104 = vpack.c.b16 %v4344, %v4334
    %v7105 = vpack.c.b16 %v4345, %v4335
    %v7106 = vpack.c.b16 %v4346, %v4336
    %v7107 = vpack.c.b16 %v4347, %v4337
    %v7108 = vpack.c.b16 %v4348, %v4338
    %v7109 = vpack.c.b16 %v4349, %v4339
    %v7110 = vpack.c.b16 %v4350, %v4340
    %v7111 = vpack.c.b16 %v4351, %v4341
    %v7112 = vpack.c.b16 %v4352, %v4342
    %v7113 = vpack.c.b16 %v4363, %v4353
    %v7114 = vpack.c.b16 %v4364, %v4354
    %v7115 = vpack.c.b16 %v4365, %v4355
    %v7116 = vpack.c.b16 %v4366, %v4356
    %v7117 = vpack.c.b16 %v4367, %v4357
    %v7118 = vpack.c.b16 %v4368, %v4358
    %v7119 = vpack.c.b16 %v4369, %v4359
    %v7120 = vpack.c.b16 %v4370, %v4360
    %v7121 = vpack.c.b16 %v4371, %v4361
    %v7122 = vpack.c.b16 %v4372, %v4362
    %v7123 = vpack.c.b16 %v4383, %v4373
    %v7124 = vpack.c.b16 %v4384, %v4374
    %v7125 = vpack.c.b16 %v4385, %v4375
    %v7126 = vpack.c.b16 %v4386, %v4376
    %v7127 = vpack.c.b16 %v4387, %v4377
    %v7128 = vpack.c.b16 %v4388, %v4378
    %v7129 = vpack.c.b16 %v4389, %v4379
    %v7130 = vpack.c.b16 %v4390, %v4380
    %v7131 = vpack.c.b16 %v4391, %v4381
    %v7132 = vpack.c.b16 %v4392, %v4382
    %v7133 = vpack.c.b16 %v4403, %v4393
    %v7134 = vpack.c.b16 %v4404, %v4394
    %v7135 = vpack.c.b16 %v4405, %v4395
    %v7136 = vpack.c.b16 %v4406, %v4396
    %v7137 = vpack.c.b16 %v4407, %v4397
    %v7138 = vpack.c.b16 %v4408, %v4398
    %v7139 = vpack.c.b16 %v4409, %v4399
    %v7140 = vpack.c.b16 %v4410, %v4400
    %v7141 = vpack.c.b16 %v4411, %v4401
    %v7142 = vpack.c.b16 %v4412, %v4402
    %v7143 = vpack.c.b16 %v4423, %v4413
    %v7144 = vpack.c.b16 %v4424, %v4414
    %v7145 = vpack.c.b16 %v4425, %v4415
    %v7146 = vpack.c.b16 %v4426, %v4416
    %v7147 = vpack.c.b16 %v4427, %v4417
    %v7148 = vpack.c.b16 %v4428, %v4418
    %v7149 = vpack.c.b16 %v4429, %v4419
    %v7150 = vpack.c.b16 %v4430, %v4420
    %v7151 = vpack.c.b16 %v4431, %v4421
    %v7152 = vpack.c.b16 %v4432, %v4422
    %v7153 = vpack.c.b16 %v4443, %v4433
    %v7154 = vpack.c.b16 %v4444, %v4434
    %v7155 = vpack.c.b16 %v4445, %v4435
    %v7156 = vpack.c.b16 %v4446, %v4436
    %v7157 = vpack.c.b16 %v4447, %v4437
    %v7158 = vpack.c.b16 %v4448, %v4438
    %v7159 = vpack.c.b16 %v4449, %v4439
    %v7160 = vpack.c.b16 %v4450, %v4440
    %v7161 = vpack.c.b16 %v4451, %v4441
    %v7162 = vpack.c.b16 %v4452, %v4442
    %v7163 = vpack.c.b16 %v4463, %v4453
    %v7164 = vpack.c.b16 %v4464, %v4454
    %v7165 = vpack.c.b16 %v4465, %v4455
    %v7166 = vpack.c.b16 %v4466, %v4456
    %v7167 = vpack.c.b16 %v4467, %v4457
    %v7168 = vpack.c.b16 %v4468, %v4458
    %v7169 = vpack.c.b16 %v4469, %v4459
    %v7170 = vpack.c.b16 %v4470, %v4460
    %v7171 = vpack.c.b16 %v4471, %v4461
    %v7172 = vpack.c.b16 %v4472, %v4462
    %v7173 = vpack.c.b16 %v4483, %v4473
    %v7174 = vpack.c.b16 %v4484, %v4474
    %v7175 = vpack.c.b16 %v4485, %v4475
    %v7176 = vpack.c.b16 %v4486, %v4476
    %v7177 = vpack.c.b16 %v4487, %v4477
    %v7178 = vpack.c.b16 %v4488, %v4478
    %v7179 = vpack.c.b16 %v4489, %v4479
    %v7180 = vpack.c.b16 %v4490, %v4480
    %v7181 = vpack.c.b16 %v4491, %v4481
    %v7182 = vpack.c.b16 %v4492, %v4482
    %v7183 = vpack.c.b16 %v4503, %v4493
    %v7184 = vpack.c.b16 %v4504, %v4494
    %v7185 = vpack.c.b16 %v4505, %v4495
    %v7186 = vpack.c.b16 %v4506, %v4496
    %v7187 = vpack.c.b16 %v4507, %v4497
    %v7188 = vpack.c.b16 %v4508, %v4498
    %v7189 = vpack.c.b16 %v4509, %v4499
    %v7190 = vpack.c.b16 %v4510, %v4500
    %v7191 = vpack.c.b16 %v4511, %v4501
    %v7192 = vpack.c.b16 %v4512, %v4502
    %v7193 = vpack.c.b16 %v4523, %v4513
    %v7194 = vpack.c.b16 %v4524, %v4514
    %v7195 = vpack.c.b16 %v4525, %v4515
    %v7196 = vpack.c.b16 %v4526, %v4516
    %v7197 = vpack.c.b16 %v4527, %v4517
    %v7198 = vpack.c.b16 %v4528, %v4518
    %v7199 = vpack.c.b16 %v4529, %v4519
    %v7200 = vpack.c.b16 %v4530, %v4520
    %v7201 = vpack.c.b16 %v4531, %v4521
    %v7202 = vpack.c.b16 %v4532, %v4522
    %v7203 = vpack.c.b16 %v4543, %v4533
    %v7204 = vpack.c.b16 %v4544, %v4534
    %v7205 = vpack.c.b16 %v4545, %v4535
    %v7206 = vpack.c.b16 %v4546, %v4536
    %v7207 = vpack.c.b16 %v4547, %v4537
    %v7208 = vpack.c.b16 %v4548, %v4538
    %v7209 = vpack.c.b16 %v4549, %v4539
    %v7210 = vpack.c.b16 %v4550, %v4540
    %v7211 = vpack.c.b16 %v4551, %v4541
    %v7212 = vpack.c.b16 %v4552, %v4542
    %v7213 = vpack.c.b16 %v4563, %v4553
    %v7214 = vpack.c.b16 %v4564, %v4554
    %v7215 = vpack.c.b16 %v4565, %v4555
    %v7216 = vpack.c.b16 %v4566, %v4556
    %v7217 = vpack.c.b16 %v4567, %v4557
    %v7218 = vpack.c.b16 %v4568, %v4558
    %v7219 = vpack.c.b16 %v4569, %v4559
    %v7220 = vpack.c.b16 %v4570, %v4560
    %v7221 = vpack.c.b16 %v4571, %v4561
    %v7222 = vpack.c.b16 %v4572, %v4562
    %v7223 = vpack.c.b16 %v4583, %v4573
    %v7224 = vpack.c.b16 %v4584, %v4574
    %v7225 = vpack.c.b16 %v4585, %v4575
    %v7226 = vpack.c.b16 %v4586, %v4576
    %v7227 = vpack.c.b16 %v4587, %v4577
    %v7228 = vpack.c.b16 %v4588, %v4578
    %v7229 = vpack.c.b16 %v4589, %v4579
    %v7230 = vpack.c.b16 %v4590, %v4580
    %v7231 = vpack.c.b16 %v4591, %v4581
    %v7232 = vpack.c.b16 %v4592, %v4582
    %v7233 = vpack.c.b16 %v4603, %v4593
    %v7234 = vpack.c.b16 %v4604, %v4594
    %v7235 = vpack.c.b16 %v4605, %v4595
    %v7236 = vpack.c.b16 %v4606, %v4596
    %v7237 = vpack.c.b16 %v4607, %v4597
    %v7238 = vpack.c.b16 %v4608, %v4598
    %v7239 = vpack.c.b16 %v4609, %v4599
    %v7240 = vpack.c.b16 %v4610, %v4600
    %v7241 = vpack.c.b16 %v4611, %v4601
    %v7242 = vpack.c.b16 %v4612, %v4602
    %v7243 = vpack.c.b16 %v4623, %v4613
    %v7244 = vpack.c.b16 %v4624, %v4614
    %v7245 = vpack.c.b16 %v4625, %v4615
    %v7246 = vpack.c.b16 %v4626, %v4616
    %v7247 = vpack.c.b16 %v4627, %v4617
    %v7248 = vpack.c.b16 %v4628, %v4618
    %v7249 = vpack.c.b16 %v4629, %v4619
    %v7250 = vpack.c.b16 %v4630, %v4620
    %v7251 = vpack.c.b16 %v4631, %v4621
    %v7252 = vpack.c.b16 %v4632, %v4622
    %v7253 = vpack.c.b16 %v4643, %v4633
    %v7254 = vpack.c.b16 %v4644, %v4634
    %v7255 = vpack.c.b16 %v4645, %v4635
    %v7256 = vpack.c.b16 %v4646, %v4636
    %v7257 = vpack.c.b16 %v4647, %v4637
    %v7258 = vpack.c.b16 %v4648, %v4638
    %v7259 = vpack.c.b16 %v4649, %v4639
    %v7260 = vpack.c.b16 %v4650, %v4640
    %v7261 = vpack.c.b16 %v4651, %v4641
    %v7262 = vpack.c.b16 %v4652, %v4642
    %v7263 = vpack.c.b16 %v4663, %v4653
    %v7264 = vpack.c.b16 %v4664, %v4654
    %v7265 = vpack.c.b16 %v4665, %v4655
    %v7266 = vpack.c.b16 %v4666, %v4656
    %v7267 = vpack.c.b16 %v4667, %v4657
    %v7268 = vpack.c.b16 %v4668, %v4658
    %v7269 = vpack.c.b16 %v4669, %v4659
    %v7270 = vpack.c.b16 %v4670, %v4660
    %v7271 = vpack.c.b16 %v4671, %v4661
    %v7272 = vpack.c.b16 %v4672, %v4662
    %v7273 = vpack.c.b16 %v4683, %v4673
    %v7274 = vpack.c.b16 %v4684, %v4674
    %v7275 = vpack.c.b16 %v4685, %v4675
    %v7276 = vpack.c.b16 %v4686, %v4676
    %v7277 = vpack.c.b16 %v4687, %v4677
    %v7278 = vpack.c.b16 %v4688, %v4678
    %v7279 = vpack.c.b16 %v4689, %v4679
    %v7280 = vpack.c.b16 %v4690, %v4680
    %v7281 = vpack.c.b16 %v4691, %v4681
    %v7282 = vpack.c.b16 %v4692, %v4682
    %v7283 = vpack.c.b16 %v4703, %v4693
    %v7284 = vpack.c.b16 %v4704, %v4694
    %v7285 = vpack.c.b16 %v4705, %v4695
    %v7286 = vpack.c.b16 %v4706, %v4696
    %v7287 = vpack.c.b16 %v4707, %v4697
    %v7288 = vpack.c.b16 %v4708, %v4698
    %v7289 = vpack.c.b16 %v4709, %v4699
    %v7290 = vpack.c.b16 %v4710, %v4700
    %v7291 = vpack.c.b16 %v4711, %v4701
    %v7292 = vpack.c.b16 %v4712, %v4702
    %v7293 = vpack.c.b16 %v4723, %v4713
    %v7294 = vpack.c.b16 %v4724, %v4714
    %v7295 = vpack.c.b16 %v4725, %v4715
    %v7296 = vpack.c.b16 %v4726, %v4716
    %v7297 = vpack.c.b16 %v4727, %v4717
    %v7298 = vpack.c.b16 %v4728, %v4718
    %v7299 = vpack.c.b16 %v4729, %v4719
    %v7300 = vpack.c.b16 %v4730, %v4720
    %v7301 = vpack.c.b16 %v4731, %v4721
    %v7302 = vpack.c.b16 %v4732, %v4722
    %v7303 = vpack.c.b16 %v4743, %v4733
    %v7304 = vpack.c.b16 %v4744, %v4734
    %v7305 = vpack.c.b16 %v4745, %v4735
    %v7306 = vpack.c.b16 %v4746, %v4736
    %v7307 = vpack.c.b16 %v4747, %v4737
    %v7308 = vpack.c.b16 %v4748, %v4738
    %v7309 = vpack.c.b16 %v4749, %v4739
    %v7310 = vpack.c.b16 %v4750, %v4740
    %v7311 = vpack.c.b16 %v4751, %v4741
    %v7312 = vpack.c.b16 %v4752, %v4742
    %v7313 = vpack.c.b16 %v4763, %v4753
    %v7314 = vpack.c.b16 %v4764, %v4754
    %v7315 = vpack.c.b16 %v4765, %v4755
    %v7316 = vpack.c.b16 %v4766, %v4756
    %v7317 = vpack.c.b16 %v4767, %v4757
    %v7318 = vpack.c.b16 %v4768, %v4758
    %v7319 = vpack.c.b16 %v4769, %v4759
    %v7320 = vpack.c.b16 %v4770, %v4760
    %v7321 = vpack.c.b16 %v4771, %v4761
    %v7322 = vpack.c.b16 %v4772, %v4762
    %v7323 = vpack.c.b16 %v4783, %v4773
    %v7324 = vpack.c.b16 %v4784, %v4774
    %v7325 = vpack.c.b16 %v4785, %v4775
    %v7326 = vpack.c.b16 %v4786, %v4776
    %v7327 = vpack.c.b16 %v4787, %v4777
    %v7328 = vpack.c.b16 %v4788, %v4778
    %v7329 = vpack.c.b16 %v4789, %v4779
    %v7330 = vpack.c.b16 %v4790, %v4780
    %v7331 = vpack.c.b16 %v4791, %v4781
    %v7332 = vpack.c.b16 %v4792, %v4782
    %v7333 = vpack.c.b16 %v4803, %v4793
    %v7334 = vpack.c.b16 %v4804, %v4794
    %v7335 = vpack.c.b16 %v4805, %v4795
    %v7336 = vpack.c.b16 %v4806, %v4796
    %v7337 = vpack.c.b16 %v4807, %v4797
    %v7338 = vpack.c.b16 %v4808, %v4798
    %v7339 = vpack.c.b16 %v4809, %v4799
    %v7340 = vpack.c.b16 %v4810, %v4800
    %v7341 = vpack.c.b16 %v4811, %v4801
    %v7342 = vpack.c.b16 %v4812, %v4802
    %v7343 = vpack.c.b16 %v4823, %v4813
    %v7344 = vpack.c.b16 %v4824, %v4814
    %v7345 = vpack.c.b16 %v4825, %v4815
    %v7346 = vpack.c.b16 %v4826, %v4816
    %v7347 = vpack.c.b16 %v4827, %v4817
    %v7348 = vpack.c.b16 %v4828, %v4818
    %v7349 = vpack.c.b16 %v4829, %v4819
    %v7350 = vpack.c.b16 %v4830, %v4820
    %v7351 = vpack.c.b16 %v4831, %v4821
    %v7352 = vpack.c.b16 %v4832, %v4822
    %v7353 = vpack.c.b16 %v4843, %v4833
    %v7354 = vpack.c.b16 %v4844, %v4834
    %v7355 = vpack.c.b16 %v4845, %v4835
    %v7356 = vpack.c.b16 %v4846, %v4836
    %v7357 = vpack.c.b16 %v4847, %v4837
    %v7358 = vpack.c.b16 %v4848, %v4838
    %v7359 = vpack.c.b16 %v4849, %v4839
    %v7360 = vpack.c.b16 %v4850, %v4840
    %v7361 = vpack.c.b16 %v4851, %v4841
    %v7362 = vpack.c.b16 %v4852, %v4842
    %v7363 = vpack.c.b16 %v4863, %v4853
    %v7364 = vpack.c.b16 %v4864, %v4854
    %v7365 = vpack.c.b16 %v4865, %v4855
    %v7366 = vpack.c.b16 %v4866, %v4856
    %v7367 = vpack.c.b16 %v4867, %v4857
    %v7368 = vpack.c.b16 %v4868, %v4858
    %v7369 = vpack.c.b16 %v4869, %v4859
    %v7370 = vpack.c.b16 %v4870, %v4860
    %v7371 = vpack.c.b16 %v4871, %v4861
    %v7372 = vpack.c.b16 %v4872, %v4862
    %v7373 = vpack.c.b16 %v4883, %v4873
    %v7374 = vpack.c.b16 %v4884, %v4874
    %v7375 = vpack.c.b16 %v4885, %v4875
    %v7376 = vpack.c.b16 %v4886, %v4876
    %v7377 = vpack.c.b16 %v4887, %v4877
    %v7378 = vpack.c.b16 %v4888, %v4878
    %v7379 = vpack.c.b16 %v4889, %v4879
    %v7380 = vpack.c.b16 %v4890, %v4880
    %v7381 = vpack.c.b16 %v4891, %v4881
    %v7382 = vpack.c.b16 %v4892, %v4882
    %v7383 = vpack.c.b16 %v4903, %v4893
    %v7384 = vpack.c.b16 %v4904, %v4894
    %v7385 = vpack.c.b16 %v4905, %v4895
    %v7386 = vpack.c.b16 %v4906, %v4896
    %v7387 = vpack.c.b16 %v4907, %v4897
    %v7388 = vpack.c.b16 %v4908, %v4898
    %v7389 = vpack.c.b16 %v4909, %v4899
    %v7390 = vpack.c.b16 %v4910, %v4900
    %v7391 = vpack.c.b16 %v4911, %v4901
    %v7392 = vpack.c.b16 %v4912, %v4902
    %v7393 = vpack.c.b16 %v4923, %v4913
    %v7394 = vpack.c.b16 %v4924, %v4914
    %v7395 = vpack.c.b16 %v4925, %v4915
    %v7396 = vpack.c.b16 %v4926, %v4916
    %v7397 = vpack.c.b16 %v4927, %v4917
    %v7398 = vpack.c.b16 %v4928, %v4918
    %v7399 = vpack.c.b16 %v4929, %v4919
    %v7400 = vpack.c.b16 %v4930, %v4920
    %v7401 = vpack.c.b16 %v4931, %v4921
    %v7402 = vpack.c.b16 %v4932, %v4922
    %v7403 = vpack.c.b16 %v4943, %v4933
    %v7404 = vpack.c.b16 %v4944, %v4934
    %v7405 = vpack.c.b16 %v4945, %v4935
    %v7406 = vpack.c.b16 %v4946, %v4936
    %v7407 = vpack.c.b16 %v4947, %v4937
    %v7408 = vpack.c.b16 %v4948, %v4938
    %v7409 = vpack.c.b16 %v4949, %v4939
    %v7410 = vpack.c.b16 %v4950, %v4940
    %v7411 = vpack.c.b16 %v4951, %v4941
    %v7412 = vpack.c.b16 %v4952, %v4942
    %v7413 = vpack.c.b16 %v4963, %v4953
    %v7414 = vpack.c.b16 %v4964, %v4954
    %v7415 = vpack.c.b16 %v4965, %v4955
    %v7416 = vpack.c.b16 %v4966, %v4956
    %v7417 = vpack.c.b16 %v4967, %v4957
    %v7418 = vpack.c.b16 %v4968, %v4958
    %v7419 = vpack.c.b16 %v4969, %v4959
    %v7420 = vpack.c.b16 %v4970, %v4960
    %v7421 = vpack.c.b16 %v4971, %v4961
    %v7422 = vpack.c.b16 %v4972, %v4962
    %v7423 = vpack.c.b16 %v4983, %v4973
    %v7424 = vpack.c.b16 %v4984, %v4974
    %v7425 = vpack.c.b16 %v4985, %v4975
    %v7426 = vpack.c.b16 %v4986, %v4976
    %v7427 = vpack.c.b16 %v4987, %v4977
    %v7428 = vpack.c.b16 %v4988, %v4978
    %v7429 = vpack.c.b16 %v4989, %v4979
    %v7430 = vpack.c.b16 %v4990, %v4980
    %v7431 = vpack.c.b16 %v4991, %v4981
    %v7432 = vpack.c.b16 %v4992, %v4982
    %v7433 = vpack.c.b16 %v5003, %v4993
    %v7434 = vpack.c.b16 %v5004, %v4994
    %v7435 = vpack.c.b16 %v5005, %v4995
    %v7436 = vpack.c.b16 %v5006, %v4996
    %v7437 = vpack.c.b16 %v5007, %v4997
    %v7438 = vpack.c.b16 %v5008, %v4998
    %v7439 = vpack.c.b16 %v5009, %v4999
    %v7440 = vpack.c.b16 %v5010, %v5000
    %v7441 = vpack.c.b16 %v5011, %v5001
    %v7442 = vpack.c.b16 %v5012, %v5002
    %v7443 = vpack.c.b16 %v5023, %v5013
    %v7444 = vpack.c.b16 %v5024, %v5014
    %v7445 = vpack.c.b16 %v5025, %v5015
    %v7446 = vpack.c.b16 %v5026, %v5016
    %v7447 = vpack.c.b16 %v5027, %v5017
    %v7448 = vpack.c.b16 %v5028, %v5018
    %v7449 = vpack.c.b16 %v5029, %v5019
    %v7450 = vpack.c.b16 %v5030, %v5020
    %v7451 = vpack.c.b16 %v5031, %v5021
    %v7452 = vpack.c.b16 %v5032, %v5022
    %v7453 = vpack.c.b16 %v5043, %v5033
    %v7454 = vpack.c.b16 %v5044, %v5034
    %v7455 = vpack.c.b16 %v5045, %v5035
    %v7456 = vpack.c.b16 %v5046, %v5036
    %v7457 = vpack.c.b16 %v5047, %v5037
    %v7458 = vpack.c.b16 %v5048, %v5038
    %v7459 = vpack.c.b16 %v5049, %v5039
    %v7460 = vpack.c.b16 %v5050, %v5040
    %v7461 = vpack.c.b16 %v5051, %v5041
    %v7462 = vpack.c.b16 %v5052, %v5042
    %v7463 = vpack.c.b16 %v5063, %v5053
    %v7464 = vpack.c.b16 %v5064, %v5054
    %v7465 = vpack.c.b16 %v5065, %v5055
    %v7466 = vpack.c.b16 %v5066, %v5056
    %v7467 = vpack.c.b16 %v5067, %v5057
    %v7468 = vpack.c.b16 %v5068, %v5058
    %v7469 = vpack.c.b16 %v5069, %v5059
    %v7470 = vpack.c.b16 %v5070, %v5060
    %v7471 = vpack.c.b16 %v5071, %v5061
    %v7472 = vpack.c.b16 %v5072, %v5062
    %v7473 = vpack.c.b16 %v5083, %v5073
    %v7474 = vpack.c.b16 %v5084, %v5074
    %v7475 = vpack.c.b16 %v5085, %v5075
    %v7476 = vpack.c.b16 %v5086, %v5076
    %v7477 = vpack.c.b16 %v5087, %v5077
    %v7478 = vpack.c.b16 %v5088, %v5078
    %v7479 = vpack.c.b16 %v5089, %v5079
    %v7480 = vpack.c.b16 %v5090, %v5080
    %v7481 = vpack.c.b16 %v5091, %v5081
    %v7482 = vpack.c.b16 %v5092, %v5082
    %v7483 = vpack.c.b16 %v5103, %v5093
    %v7484 = vpack.c.b16 %v5104, %v5094
    %v7485 = vpack.c.b16 %v5105, %v5095
    %v7486 = vpack.c.b16 %v5106, %v5096
    %v7487 = vpack.c.b16 %v5107, %v5097
    %v7488 = vpack.c.b16 %v5108, %v5098
    %v7489 = vpack.c.b16 %v5109, %v5099
    %v7490 = vpack.c.b16 %v5110, %v5100
    %v7491 = vpack.c.b16 %v5111, %v5101
    %v7492 = vpack.c.b16 %v5112, %v5102
    %v7493 = vpack.c.b16 %v5123, %v5113
    %v7494 = vpack.c.b16 %v5124, %v5114
    %v7495 = vpack.c.b16 %v5125, %v5115
    %v7496 = vpack.c.b16 %v5126, %v5116
    %v7497 = vpack.c.b16 %v5127, %v5117
    %v7498 = vpack.c.b16 %v5128, %v5118
    %v7499 = vpack.c.b16 %v5129, %v5119
    %v7500 = vpack.c.b16 %v5130, %v5120
    %v7501 = vpack.c.b16 %v5131, %v5121
    %v7502 = vpack.c.b16 %v5132, %v5122
    %v7503 = vpack.c.b16 %v5143, %v5133
    %v7504 = vpack.c.b16 %v5144, %v5134
    %v7505 = vpack.c.b16 %v5145, %v5135
    %v7506 = vpack.c.b16 %v5146, %v5136
    %v7507 = vpack.c.b16 %v5147, %v5137
    %v7508 = vpack.c.b16 %v5148, %v5138
    %v7509 = vpack.c.b16 %v5149, %v5139
    %v7510 = vpack.c.b16 %v5150, %v5140
    %v7511 = vpack.c.b16 %v5151, %v5141
    %v7512 = vpack.c.b16 %v5152, %v5142
    %v7513 = vpack.c.b16 %v5163, %v5153
    %v7514 = vpack.c.b16 %v5164, %v5154
    %v7515 = vpack.c.b16 %v5165, %v5155
    %v7516 = vpack.c.b16 %v5166, %v5156
    %v7517 = vpack.c.b16 %v5167, %v5157
    %v7518 = vpack.c.b16 %v5168, %v5158
    %v7519 = vpack.c.b16 %v5169, %v5159
    %v7520 = vpack.c.b16 %v5170, %v5160
    %v7521 = vpack.c.b16 %v5171, %v5161
    %v7522 = vpack.c.b16 %v5172, %v5162
    %v7523 = vpack.c.b16 %v5183, %v5173
    %v7524 = vpack.c.b16 %v5184, %v5174
    %v7525 = vpack.c.b16 %v5185, %v5175
    %v7526 = vpack.c.b16 %v5186, %v5176
    %v7527 = vpack.c.b16 %v5187, %v5177
    %v7528 = vpack.c.b16 %v5188, %v5178
    %v7529 = vpack.c.b16 %v5189, %v5179
    %v7530 = vpack.c.b16 %v5190, %v5180
    %v7531 = vpack.c.b16 %v5191, %v5181
    %v7532 = vpack.c.b16 %v5192, %v5182
    %v7533 = vpack.c.b16 %v5203, %v5193
    %v7534 = vpack.c.b16 %v5204, %v5194
    %v7535 = vpack.c.b16 %v5205, %v5195
    %v7536 = vpack.c.b16 %v5206, %v5196
    %v7537 = vpack.c.b16 %v5207, %v5197
    %v7538 = vpack.c.b16 %v5208, %v5198
    %v7539 = vpack.c.b16 %v5209, %v5199
    %v7540 = vpack.c.b16 %v5210, %v5200
    %v7541 = vpack.c.b16 %v5211, %v5201
    %v7542 = vpack.c.b16 %v5212, %v5202
    %v7543 = vpack.c.b16 %v5223, %v5213
    %v7544 = vpack.c.b16 %v5224, %v5214
    %v7545 = vpack.c.b16 %v5225, %v5215
    %v7546 = vpack.c.b16 %v5226, %v5216
    %v7547 = vpack.c.b16 %v5227, %v5217
    %v7548 = vpack.c.b16 %v5228, %v5218
    %v7549 = vpack.c.b16 %v5229, %v5219
    %v7550 = vpack.c.b16 %v5230, %v5220
    %v7551 = vpack.c.b16 %v5231, %v5221
    %v7552 = vpack.c.b16 %v5232, %v5222
    %v7553 = vpack.c.b16 %v5243, %v5233
    %v7554 = vpack.c.b16 %v5244, %v5234
    %v7555 = vpack.c.b16 %v5245, %v5235
    %v7556 = vpack.c.b16 %v5246, %v5236
    %v7557 = vpack.c.b16 %v5247, %v5237
    %v7558 = vpack.c.b16 %v5248, %v5238
    %v7559 = vpack.c.b16 %v5249, %v5239
    %v7560 = vpack.c.b16 %v5250, %v5240
    %v7561 = vpack.c.b16 %v5251, %v5241
    %v7562 = vpack.c.b16 %v5252, %v5242
    %v7563 = vpack.c.b16 %v5263, %v5253
    %v7564 = vpack.c.b16 %v5264, %v5254
    %v7565 = vpack.c.b16 %v5265, %v5255
    %v7566 = vpack.c.b16 %v5266, %v5256
    %v7567 = vpack.c.b16 %v5267, %v5257
    %v7568 = vpack.c.b16 %v5268, %v5258
    %v7569 = vpack.c.b16 %v5269, %v5259
    %v7570 = vpack.c.b16 %v5270, %v5260
    %v7571 = vpack.c.b16 %v5271, %v5261
    %v7572 = vpack.c.b16 %v5272, %v5262
    %v7573 = vpack.c.b16 %v5283, %v5273
    %v7574 = vpack.c.b16 %v5284, %v5274
    %v7575 = vpack.c.b16 %v5285, %v5275
    %v7576 = vpack.c.b16 %v5286, %v5276
    %v7577 = vpack.c.b16 %v5287, %v5277
    %v7578 = vpack.c.b16 %v5288, %v5278
    %v7579 = vpack.c.b16 %v5289, %v5279
    %v7580 = vpack.c.b16 %v5290, %v5280
    %v7581 = vpack.c.b16 %v5291, %v5281
    %v7582 = vpack.c.b16 %v5292, %v5282
    %v7583 = vpack.c.b16 %v5303, %v5293
    %v7584 = vpack.c.b16 %v5304, %v5294
    %v7585 = vpack.c.b16 %v5305, %v5295
    %v7586 = vpack.c.b16 %v5306, %v5296
    %v7587 = vpack.c.b16 %v5307, %v5297
    %v7588 = vpack.c.b16 %v5308, %v5298
    %v7589 = vpack.c.b16 %v5309, %v5299
    %v7590 = vpack.c.b16 %v5310, %v5300
    %v7591 = vpack.c.b16 %v5311, %v5301
    %v7592 = vpack.c.b16 %v5312, %v5302
    %v7593 = vpack.c.b16 %v5323, %v5313
    %v7594 = vpack.c.b16 %v5324, %v5314
    %v7595 = vpack.c.b16 %v5325, %v5315
    %v7596 = vpack.c.b16 %v5326, %v5316
    %v7597 = vpack.c.b16 %v5327, %v5317
    %v7598 = vpack.c.b16 %v5328, %v5318
    %v7599 = vpack.c.b16 %v5329, %v5319
    %v7600 = vpack.c.b16 %v5330, %v5320
    %v7601 = vpack.c.b16 %v5331, %v5321
    %v7602 = vpack.c.b16 %v5332, %v5322
    %v7603 = vpack.c.b16 %v5343, %v5333
    %v7604 = vpack.c.b16 %v5344, %v5334
    %v7605 = vpack.c.b16 %v5345, %v5335
    %v7606 = vpack.c.b16 %v5346, %v5336
    %v7607 = vpack.c.b16 %v5347, %v5337
    %v7608 = vpack.c.b16 %v5348, %v5338
    %v7609 = vpack.c.b16 %v5349, %v5339
    %v7610 = vpack.c.b16 %v5350, %v5340
    %v7611 = vpack.c.b16 %v5351, %v5341
    %v7612 = vpack.c.b16 %v5352, %v5342
    %v7613 = vpack.c.b16 %v5363, %v5353
    %v7614 = vpack.c.b16 %v5364, %v5354
    %v7615 = vpack.c.b16 %v5365, %v5355
    %v7616 = vpack.c.b16 %v5366, %v5356
    %v7617 = vpack.c.b16 %v5367, %v5357
    %v7618 = vpack.c.b16 %v5368, %v5358
    %v7619 = vpack.c.b16 %v5369, %v5359
    %v7620 = vpack.c.b16 %v5370, %v5360
    %v7621 = vpack.c.b16 %v5371, %v5361
    %v7622 = vpack.c.b16 %v5372, %v5362
    %v7623 = vpack.c.b16 %v5383, %v5373
    %v7624 = vpack.c.b16 %v5384, %v5374
    %v7625 = vpack.c.b16 %v5385, %v5375
    %v7626 = vpack.c.b16 %v5386, %v5376
    %v7627 = vpack.c.b16 %v5387, %v5377
    %v7628 = vpack.c.b16 %v5388, %v5378
    %v7629 = vpack.c.b16 %v5389, %v5379
    %v7630 = vpack.c.b16 %v5390, %v5380
    %v7631 = vpack.c.b16 %v5391, %v5381
    %v7632 = vpack.c.b16 %v5392, %v5382
    %v7633 = vpack.c.b16 %v5403, %v5393
    %v7634 = vpack.c.b16 %v5404, %v5394
    %v7635 = vpack.c.b16 %v5405, %v5395
    %v7636 = vpack.c.b16 %v5406, %v5396
    %v7637 = vpack.c.b16 %v5407, %v5397
    %v7638 = vpack.c.b16 %v5408, %v5398
    %v7639 = vpack.c.b16 %v5409, %v5399
    %v7640 = vpack.c.b16 %v5410, %v5400
    %v7641 = vpack.c.b16 %v5411, %v5401
    %v7642 = vpack.c.b16 %v5412, %v5402
    %v7643 = vpack.c.b16 %v5423, %v5413
    %v7644 = vpack.c.b16 %v5424, %v5414
    %v7645 = vpack.c.b16 %v5425, %v5415
    %v7646 = vpack.c.b16 %v5426, %v5416
    %v7647 = vpack.c.b16 %v5427, %v5417
    %v7648 = vpack.c.b16 %v5428, %v5418
    %v7649 = vpack.c.b16 %v5429, %v5419
    %v7650 = vpack.c.b16 %v5430, %v5420
    %v7651 = vpack.c.b16 %v5431, %v5421
    %v7652 = vpack.c.b16 %v5432, %v5422
    %v7653 = vpack.c.b16 %v5443, %v5433
    %v7654 = vpack.c.b16 %v5444, %v5434
    %v7655 = vpack.c.b16 %v5445, %v5435
    %v7656 = vpack.c.b16 %v5446, %v5436
    %v7657 = vpack.c.b16 %v5447, %v5437
    %v7658 = vpack.c.b16 %v5448, %v5438
    %v7659 = vpack.c.b16 %v5449, %v5439
    %v7660 = vpack.c.b16 %v5450, %v5440
    %v7661 = vpack.c.b16 %v5451, %v5441
    %v7662 = vpack.c.b16 %v5452, %v5442
    %v7663 = vpack.c.b16 %v5463, %v5453
    %v7664 = vpack.c.b16 %v5464, %v5454
    %v7665 = vpack.c.b16 %v5465, %v5455
    %v7666 = vpack.c.b16 %v5466, %v5456
    %v7667 = vpack.c.b16 %v5467, %v5457
    %v7668 = vpack.c.b16 %v5468, %v5458
    %v7669 = vpack.c.b16 %v5469, %v5459
    %v7670 = vpack.c.b16 %v5470, %v5460
    %v7671 = vpack.c.b16 %v5471, %v5461
    %v7672 = vpack.c.b16 %v5472, %v5462
    %v7673 = vpack.c.b16 %v5483, %v5473
    %v7674 = vpack.c.b16 %v5484, %v5474
    %v7675 = vpack.c.b16 %v5485, %v5475
    %v7676 = vpack.c.b16 %v5486, %v5476
    %v7677 = vpack.c.b16 %v5487, %v5477
    %v7678 = vpack.c.b16 %v5488, %v5478
    %v7679 = vpack.c.b16 %v5489, %v5479
    %v7680 = vpack.c.b16 %v5490, %v5480
    %v7681 = vpack.c.b16 %v5491, %v5481
    %v7682 = vpack.c.b16 %v5492, %v5482
    %v7683 = vpack.c.b16 %v5503, %v5493
    %v7684 = vpack.c.b16 %v5504, %v5494
    %v7685 = vpack.c.b16 %v5505, %v5495
    %v7686 = vpack.c.b16 %v5506, %v5496
    %v7687 = vpack.c.b16 %v5507, %v5497
    %v7688 = vpack.c.b16 %v5508, %v5498
    %v7689 = vpack.c.b16 %v5509, %v5499
    %v7690 = vpack.c.b16 %v5510, %v5500
    %v7691 = vpack.c.b16 %v5511, %v5501
    %v7692 = vpack.c.b16 %v5512, %v5502
    %v7693 = vpack.c.b16 %v5523, %v5513
    %v7694 = vpack.c.b16 %v5524, %v5514
    %v7695 = vpack.c.b16 %v5525, %v5515
    %v7696 = vpack.c.b16 %v5526, %v5516
    %v7697 = vpack.c.b16 %v5527, %v5517
    %v7698 = vpack.c.b16 %v5528, %v5518
    %v7699 = vpack.c.b16 %v5529, %v5519
    %v7700 = vpack.c.b16 %v5530, %v5520
    %v7701 = vpack.c.b16 %v5531, %v5521
    %v7702 = vpack.c.b16 %v5532, %v5522
    %v7703 = vpack.c.b16 %v5543, %v5533
    %v7704 = vpack.c.b16 %v5544, %v5534
    %v7705 = vpack.c.b16 %v5545, %v5535
    %v7706 = vpack.c.b16 %v5546, %v5536
    %v7707 = vpack.c.b16 %v5547, %v5537
    %v7708 = vpack.c.b16 %v5548, %v5538
    %v7709 = vpack.c.b16 %v5549, %v5539
    %v7710 = vpack.c.b16 %v5550, %v5540
    %v7711 = vpack.c.b16 %v5551, %v5541
    %v7712 = vpack.c.b16 %v5552, %v5542
    %v7713 = vpack.c.b16 %v5563, %v5553
    %v7714 = vpack.c.b16 %v5564, %v5554
    %v7715 = vpack.c.b16 %v5565, %v5555
    %v7716 = vpack.c.b16 %v5566, %v5556
    %v7717 = vpack.c.b16 %v5567, %v5557
    %v7718 = vpack.c.b16 %v5568, %v5558
    %v7719 = vpack.c.b16 %v5569, %v5559
    %v7720 = vpack.c.b16 %v5570, %v5560
    %v7721 = vpack.c.b16 %v5571, %v5561
    %v7722 = vpack.c.b16 %v5572, %v5562
    %v7723 = vpack.c.b16 %v5583, %v5573
    %v7724 = vpack.c.b16 %v5584, %v5574
    %v7725 = vpack.c.b16 %v5585, %v5575
    %v7726 = vpack.c.b16 %v5586, %v5576
    %v7727 = vpack.c.b16 %v5587, %v5577
    %v7728 = vpack.c.b16 %v5588, %v5578
    %v7729 = vpack.c.b16 %v5589, %v5579
    %v7730 = vpack.c.b16 %v5590, %v5580
    %v7731 = vpack.c.b16 %v5591, %v5581
    %v7732 = vpack.c.b16 %v5592, %v5582
    %v7733 = vpack.c.b16 %v5603, %v5593
    %v7734 = vpack.c.b16 %v5604, %v5594
    %v7735 = vpack.c.b16 %v5605, %v5595
    %v7736 = vpack.c.b16 %v5606, %v5596
    %v7737 = vpack.c.b16 %v5607, %v5597
    %v7738 = vpack.c.b16 %v5608, %v5598
    %v7739 = vpack.c.b16 %v5609, %v5599
    %v7740 = vpack.c.b16 %v5610, %v5600
    %v7741 = vpack.c.b16 %v5611, %v5601
    %v7742 = vpack.c.b16 %v5612, %v5602
    %v7743 = vpack.c.b16 %v5623, %v5613
    %v7744 = vpack.c.b16 %v5624, %v5614
    %v7745 = vpack.c.b16 %v5625, %v5615
    %v7746 = vpack.c.b16 %v5626, %v5616
    %v7747 = vpack.c.b16 %v5627, %v5617
    %v7748 = vpack.c.b16 %v5628, %v5618
    %v7749 = vpack.c.b16 %v5629, %v5619
    %v7750 = vpack.c.b16 %v5630, %v5620
    %v7751 = vpack.c.b16 %v5631, %v5621
    %v7752 = vpack.c.b16 %v5632, %v5622
    %v7753 = vpack.c.b16 %v5643, %v5633
    %v7754 = vpack.c.b16 %v5644, %v5634
    %v7755 = vpack.c.b16 %v5645, %v5635
    %v7756 = vpack.c.b16 %v5646, %v5636
    %v7757 = vpack.c.b16 %v5647, %v5637
    %v7758 = vpack.c.b16 %v5648, %v5638
    %v7759 = vpack.c.b16 %v5649, %v5639
    %v7760 = vpack.c.b16 %v5650, %v5640
    %v7761 = vpack.c.b16 %v5651, %v5641
    %v7762 = vpack.c.b16 %v5652, %v5642
    %v7763 = vpack.c.b16 %v5663, %v5653
    %v7764 = vpack.c.b16 %v5664, %v5654
    %v7765 = vpack.c.b16 %v5665, %v5655
    %v7766 = vpack.c.b16 %v5666, %v5656
    %v7767 = vpack.c.b16 %v5667, %v5657
    %v7768 = vpack.c.b16 %v5668, %v5658
    %v7769 = vpack.c.b16 %v5669, %v5659
    %v7770 = vpack.c.b16 %v5670, %v5660
    %v7771 = vpack.c.b16 %v5671, %v5661
    %v7772 = vpack.c.b16 %v5672, %v5662
    %v7773 = vpack.c.b16 %v5683, %v5673
    %v7774 = vpack.c.b16 %v5684, %v5674
    %v7775 = vpack.c.b16 %v5685, %v5675
    %v7776 = vpack.c.b16 %v5686, %v5676
    %v7777 = vpack.c.b16 %v5687, %v5677
    %v7778 = vpack.c.b16 %v5688, %v5678
    %v7779 = vpack.c.b16 %v5689, %v5679
    %v7780 = vpack.c.b16 %v5690, %v5680
    %v7781 = vpack.c.b16 %v5691, %v5681
    %v7782 = vpack.c.b16 %v5692, %v5682
    %v7783 = vpack.c.b16 %v5703, %v5693
    %v7784 = vpack.c.b16 %v5704, %v5694
    %v7785 = vpack.c.b16 %v5705, %v5695
    %v7786 = vpack.c.b16 %v5706, %v5696
    %v7787 = vpack.c.b16 %v5707, %v5697
    %v7788 = vpack.c.b16 %v5708, %v5698
    %v7789 = vpack.c.b16 %v5709, %v5699
    %v7790 = vpack.c.b16 %v5710, %v5700
    %v7791 = vpack.c.b16 %v5711, %v5701
    %v7792 = vpack.c.b16 %v5712, %v5702
    %v7793 = vpack.c.b16 %v5723, %v5713
    %v7794 = vpack.c.b16 %v5724, %v5714
    %v7795 = vpack.c.b16 %v5725, %v5715
    %v7796 = vpack.c.b16 %v5726, %v5716
    %v7797 = vpack.c.b16 %v5727, %v5717
    %v7798 = vpack.c.b16 %v5728, %v5718
    %v7799 = vpack.c.b16 %v5729, %v5719
    %v7800 = vpack.c.b16 %v5730, %v5720
    %v7801 = vpack.c.b16 %v5731, %v5721
    %v7802 = vpack.c.b16 %v5732, %v5722
    %v7803 = vpack.c.b16 %v5743, %v5733
    %v7804 = vpack.c.b16 %v5744, %v5734
    %v7805 = vpack.c.b16 %v5745, %v5735
    %v7806 = vpack.c.b16 %v5746, %v5736
    %v7807 = vpack.c.b16 %v5747, %v5737
    %v7808 = vpack.c.b16 %v5748, %v5738
    %v7809 = vpack.c.b16 %v5749, %v5739
    %v7810 = vpack.c.b16 %v5750, %v5740
    %v7811 = vpack.c.b16 %v5751, %v5741
    %v7812 = vpack.c.b16 %v5752, %v5742
    %v7813 = vpack.c.b16 %v5763, %v5753
    %v7814 = vpack.c.b16 %v5764, %v5754
    %v7815 = vpack.c.b16 %v5765, %v5755
    %v7816 = vpack.c.b16 %v5766, %v5756
    %v7817 = vpack.c.b16 %v5767, %v5757
    %v7818 = vpack.c.b16 %v5768, %v5758
    %v7819 = vpack.c.b16 %v5769, %v5759
    %v7820 = vpack.c.b16 %v5770, %v5760
    %v7821 = vpack.c.b16 %v5771, %v5761
    %v7822 = vpack.c.b16 %v5772, %v5762
    %v7823 = vpack.c.b16 %v5783, %v5773
    %v7824 = vpack.c.b16 %v5784, %v5774
    %v7825 = vpack.c.b16 %v5785, %v5775
    %v7826 = vpack.c.b16 %v5786, %v5776
    %v7827 = vpack.c.b16 %v5787, %v5777
    %v7828 = vpack.c.b16 %v5788, %v5778
    %v7829 = vpack.c.b16 %v5789, %v5779
    %v7830 = vpack.c.b16 %v5790, %v5780
    %v7831 = vpack.c.b16 %v5791, %v5781
    %v7832 = vpack.c.b16 %v5792, %v5782
    %v7833 = vpack.c.b16 %v5803, %v5793
    %v7834 = vpack.c.b16 %v5804, %v5794
    %v7835 = vpack.c.b16 %v5805, %v5795
    %v7836 = vpack.c.b16 %v5806, %v5796
    %v7837 = vpack.c.b16 %v5807, %v5797
    %v7838 = vpack.c.b16 %v5808, %v5798
    %v7839 = vpack.c.b16 %v5809, %v5799
    %v7840 = vpack.c.b16 %v5810, %v5800
    %v7841 = vpack.c.b16 %v5811, %v5801
    %v7842 = vpack.c.b16 %v5812, %v5802
    %v7843 = vpack.c.b16 %v5823, %v5813
    %v7844 = vpack.c.b16 %v5824, %v5814
    %v7845 = vpack.c.b16 %v5825, %v5815
    %v7846 = vpack.c.b16 %v5826, %v5816
    %v7847 = vpack.c.b16 %v5827, %v5817
    %v7848 = vpack.c.b16 %v5828, %v5818
    %v7849 = vpack.c.b16 %v5829, %v5819
    %v7850 = vpack.c.b16 %v5830, %v5820
    %v7851 = vpack.c.b16 %v5831, %v5821
    %v7852 = vpack.c.b16 %v5832, %v5822
    %v7853 = vpack.c.b16 %v5843, %v5833
    %v7854 = vpack.c.b16 %v5844, %v5834
    %v7855 = vpack.c.b16 %v5845, %v5835
    %v7856 = vpack.c.b16 %v5846, %v5836
    %v7857 = vpack.c.b16 %v5847, %v5837
    %v7858 = vpack.c.b16 %v5848, %v5838
    %v7859 = vpack.c.b16 %v5849, %v5839
    %v7860 = vpack.c.b16 %v5850, %v5840
    %v7861 = vpack.c.b16 %v5851, %v5841
    %v7862 = vpack.c.b16 %v5852, %v5842
    %v7863 = vpack.c.b16 %v5863, %v5853
    %v7864 = vpack.c.b16 %v5864, %v5854
    %v7865 = vpack.c.b16 %v5865, %v5855
    %v7866 = vpack.c.b16 %v5866, %v5856
    %v7867 = vpack.c.b16 %v5867, %v5857
    %v7868 = vpack.c.b16 %v5868, %v5858
    %v7869 = vpack.c.b16 %v5869, %v5859
    %v7870 = vpack.c.b16 %v5870, %v5860
    %v7871 = vpack.c.b16 %v5871, %v5861
    %v7872 = vpack.c.b16 %v5872, %v5862
    %v7873 = vpack.c.b16 %v5883, %v5873
    %v7874 = vpack.c.b16 %v5884, %v5874
    %v7875 = vpack.c.b16 %v5885, %v5875
    %v7876 = vpack.c.b16 %v5886, %v5876
    %v7877 = vpack.c.b16 %v5887, %v5877
    %v7878 = vpack.c.b16 %v5888, %v5878
    %v7879 = vpack.c.b16 %v5889, %v5879
    %v7880 = vpack.c.b16 %v5890, %v5880
    %v7881 = vpack.c.b16 %v5891, %v5881
    %v7882 = vpack.c.b16 %v5892, %v5882
    %v7883 = vpack.c.b16 %v5903, %v5893
    %v7884 = vpack.c.b16 %v5904, %v5894
    %v7885 = vpack.c.b16 %v5905, %v5895
    %v7886 = vpack.c.b16 %v5906, %v5896
    %v7887 = vpack.c.b16 %v5907, %v5897
    %v7888 = vpack.c.b16 %v5908, %v5898
    %v7889 = vpack.c.b16 %v5909, %v5899
    %v7890 = vpack.c.b16 %v5910, %v5900
    %v7891 = vpack.c.b16 %v5911, %v5901
    %v7892 = vpack.c.b16 %v5912, %v5902
    %v7893 = vpack.c.b16 %v5923, %v5913
    %v7894 = vpack.c.b16 %v5924, %v5914
    %v7895 = vpack.c.b16 %v5925, %v5915
    %v7896 = vpack.c.b16 %v5926, %v5916
    %v7897 = vpack.c.b16 %v5927, %v5917
    %v7898 = vpack.c.b16 %v5928, %v5918
    %v7899 = vpack.c.b16 %v5929, %v5919
    %v7900 = vpack.c.b16 %v5930, %v5920
    %v7901 = vpack.c.b16 %v5931, %v5921
    %v7902 = vpack.c.b16 %v5932, %v5922
    %v7903 = vpack.c.b16 %v5943, %v5933
    %v7904 = vpack.c.b16 %v5944, %v5934
    %v7905 = vpack.c.b16 %v5945, %v5935
    %v7906 = vpack.c.b16 %v5946, %v5936
    %v7907 = vpack.c.b16 %v5947, %v5937
    %v7908 = vpack.c.b16 %v5948, %v5938
    %v7909 = vpack.c.b16 %v5949, %v5939
    %v7910 = vpack.c.b16 %v5950, %v5940
    %v7911 = vpack.c.b16 %v5951, %v5941
    %v7912 = vpack.c.b16 %v5952, %v5942
    %v7913 = vpack.c.b16 %v5963, %v5953
    %v7914 = vpack.c.b16 %v5964, %v5954
    %v7915 = vpack.c.b16 %v5965, %v5955
    %v7916 = vpack.c.b16 %v5966, %v5956
    %v7917 = vpack.c.b16 %v5967, %v5957
    %v7918 = vpack.c.b16 %v5968, %v5958
    %v7919 = vpack.c.b16 %v5969, %v5959
    %v7920 = vpack.c.b16 %v5970, %v5960
    %v7921 = vpack.c.b16 %v5971, %v5961
    %v7922 = vpack.c.b16 %v5972, %v5962
    %v7923 = vpack.c.b16 %v5983, %v5973
    %v7924 = vpack.c.b16 %v5984, %v5974
    %v7925 = vpack.c.b16 %v5985, %v5975
    %v7926 = vpack.c.b16 %v5986, %v5976
    %v7927 = vpack.c.b16 %v5987, %v5977
    %v7928 = vpack.c.b16 %v5988, %v5978
    %v7929 = vpack.c.b16 %v5989, %v5979
    %v7930 = vpack.c.b16 %v5990, %v5980
    %v7931 = vpack.c.b16 %v5991, %v5981
    %v7932 = vpack.c.b16 %v5992, %v5982
    %v7933 = vpack.c.b16 %v6003, %v5993
    %v7934 = vpack.c.b16 %v6004, %v5994
    %v7935 = vpack.c.b16 %v6005, %v5995
    %v7936 = vpack.c.b16 %v6006, %v5996
    %v7937 = vpack.c.b16 %v6007, %v5997
    %v7938 = vpack.c.b16 %v6008, %v5998
    %v7939 = vpack.c.b16 %v6009, %v5999
    %v7940 = vpack.c.b16 %v6010, %v6000
    %v7941 = vpack.c.b16 %v6011, %v6001
    %v7942 = vpack.c.b16 %v6012, %v6002
    %v7943 = vpack.c.b16 %v6023, %v6013
    %v7944 = vpack.c.b16 %v6024, %v6014
    %v7945 = vpack.c.b16 %v6025, %v6015
    %v7946 = vpack.c.b16 %v6026, %v6016
    %v7947 = vpack.c.b16 %v6027, %v6017
    %v7948 = vpack.c.b16 %v6028, %v6018
    %v7949 = vpack.c.b16 %v6029, %v6019
    %v7950 = vpack.c.b16 %v6030, %v6020
    %v7951 = vpack.c.b16 %v6031, %v6021
    %v7952 = vpack.c.b16 %v6032, %v6022
    %v7953 = vpack.c.b16 %v6043, %v6033
    %v7954 = vpack.c.b16 %v6044, %v6034
    %v7955 = vpack.c.b16 %v6045, %v6035
    %v7956 = vpack.c.b16 %v6046, %v6036
    %v7957 = vpack.c.b16 %v6047, %v6037
    %v7958 = vpack.c.b16 %v6048, %v6038
    %v7959 = vpack.c.b16 %v6049, %v6039
    %v7960 = vpack.c.b16 %v6050, %v6040
    %v7961 = vpack.c.b16 %v6051, %v6041
    %v7962 = vpack.c.b16 %v6052, %v6042
    %v7963 = vpack.c.b16 %v6063, %v6053
    %v7964 = vpack.c.b16 %v6064, %v6054
    %v7965 = vpack.c.b16 %v6065, %v6055
    %v7966 = vpack.c.b16 %v6066, %v6056
    %v7967 = vpack.c.b16 %v6067, %v6057
    %v7968 = vpack.c.b16 %v6068, %v6058
    %v7969 = vpack.c.b16 %v6069, %v6059
    %v7970 = vpack.c.b16 %v6070, %v6060
    %v7971 = vpack.c.b16 %v6071, %v6061
    %v7972 = vpack.c.b16 %v6072, %v6062
    %v7973 = vpack.c.b16 %v6083, %v6073
    %v7974 = vpack.c.b16 %v6084, %v6074
    %v7975 = vpack.c.b16 %v6085, %v6075
    %v7976 = vpack.c.b16 %v6086, %v6076
    %v7977 = vpack.c.b16 %v6087, %v6077
    %v7978 = vpack.c.b16 %v6088, %v6078
    %v7979 = vpack.c.b16 %v6089, %v6079
    %v7980 = vpack.c.b16 %v6090, %v6080
    %v7981 = vpack.c.b16 %v6091, %v6081
    %v7982 = vpack.c.b16 %v6092, %v6082
    %v7983 = vpack.c.b16 %v6103, %v6093
    %v7984 = vpack.c.b16 %v6104, %v6094
    %v7985 = vpack.c.b16 %v6105, %v6095
    %v7986 = vpack.c.b16 %v6106, %v6096
    %v7987 = vpack.c.b16 %v6107, %v6097
    %v7988 = vpack.c.b16 %v6108, %v6098
    %v7989 = vpack.c.b16 %v6109, %v6099
    %v7990 = vpack.c.b16 %v6110, %v6100
    %v7991 = vpack.c.b16 %v6111, %v6101
    %v7992 = vpack.c.b16 %v6112, %v6102
    %v7993 = vpack.c.b16 %v6123, %v6113
    %v7994 = vpack.c.b16 %v6124, %v6114
    %v7995 = vpack.c.b16 %v6125, %v6115
    %v7996 = vpack.c.b16 %v6126, %v6116
    %v7997 = vpack.c.b16 %v6127, %v6117
    %v7998 = vpack.c.b16 %v6128, %v6118
    %v7999 = vpack.c.b16 %v6129, %v6119
    %v8000 = vpack.c.b16 %v6130, %v6120
    %v8001 = vpack.c.b16 %v6131, %v6121
    %v8002 = vpack.c.b16 %v6132, %v6122
    %v8003 = vpack.c.b16 %v6143, %v6133
    %v8004 = vpack.c.b16 %v6144, %v6134
    %v8005 = vpack.c.b16 %v6145, %v6135
    %v8006 = vpack.c.b16 %v6146, %v6136
    %v8007 = vpack.c.b16 %v6147, %v6137
    %v8008 = vpack.c.b16 %v6148, %v6138
    %v8009 = vpack.c.b16 %v6149, %v6139
    %v8010 = vpack.c.b16 %v6150, %v6140
    %v8011 = vpack.c.b16 %v6151, %v6141
    %v8012 = vpack.c.b16 %v6152, %v6142
    %v8013 = vpack.c.b16 %v6163, %v6153
    %v8014 = vpack.c.b16 %v6164, %v6154
    %v8015 = vpack.c.b16 %v6165, %v6155
    %v8016 = vpack.c.b16 %v6166, %v6156
    %v8017 = vpack.c.b16 %v6167, %v6157
    %v8018 = vpack.c.b16 %v6168, %v6158
    %v8019 = vpack.c.b16 %v6169, %v6159
    %v8020 = vpack.c.b16 %v6170, %v6160
    %v8021 = vpack.c.b16 %v6171, %v6161
    %v8022 = vpack.c.b16 %v6172, %v6162
    %v8023 = vpack.c.b16 %v6183, %v6173
    %v8024 = vpack.c.b16 %v6184, %v6174
    %v8025 = vpack.c.b16 %v6185, %v6175
    %v8026 = vpack.c.b16 %v6186, %v6176
    %v8027 = vpack.c.b16 %v6187, %v6177
    %v8028 = vpack.c.b16 %v6188, %v6178
    %v8029 = vpack.c.b16 %v6189, %v6179
    %v8030 = vpack.c.b16 %v6190, %v6180
    %v8031 = vpack.c.b16 %v6191, %v6181
    %v8032 = vpack.c.b16 %v6192, %v6182
    %v8033 = vpack.c.b16 %v6203, %v6193
    %v8034 = vpack.c.b16 %v6204, %v6194
    %v8035 = vpack.c.b16 %v6205, %v6195
    %v8036 = vpack.c.b16 %v6206, %v6196
    %v8037 = vpack.c.b16 %v6207, %v6197
    %v8038 = vpack.c.b16 %v6208, %v6198
    %v8039 = vpack.c.b16 %v6209, %v6199
    %v8040 = vpack.c.b16 %v6210, %v6200
    %v8041 = vpack.c.b16 %v6211, %v6201
    %v8042 = vpack.c.b16 %v6212, %v6202
    %v8043 = vpack.c.b16 %v6223, %v6213
    %v8044 = vpack.c.b16 %v6224, %v6214
    %v8045 = vpack.c.b16 %v6225, %v6215
    %v8046 = vpack.c.b16 %v6226, %v6216
    %v8047 = vpack.c.b16 %v6227, %v6217
    %v8048 = vpack.c.b16 %v6228, %v6218
    %v8049 = vpack.c.b16 %v6229, %v6219
    %v8050 = vpack.c.b16 %v6230, %v6220
    %v8051 = vpack.c.b16 %v6231, %v6221
    %v8052 = vpack.c.b16 %v6232, %v6222
    %v8053 = vpack.c.b16 %v6243, %v6233
    %v8054 = vpack.c.b16 %v6244, %v6234
    %v8055 = vpack.c.b16 %v6245, %v6235
    %v8056 = vpack.c.b16 %v6246, %v6236
    %v8057 = vpack.c.b16 %v6247, %v6237
    %v8058 = vpack.c.b16 %v6248, %v6238
    %v8059 = vpack.c.b16 %v6249, %v6239
    %v8060 = vpack.c.b16 %v6250, %v6240
    %v8061 = vpack.c.b16 %v6251, %v6241
    %v8062 = vpack.c.b16 %v6252, %v6242
    %v8063 = vpack.c.b16 %v6263, %v6253
    %v8064 = vpack.c.b16 %v6264, %v6254
    %v8065 = vpack.c.b16 %v6265, %v6255
    %v8066 = vpack.c.b16 %v6266, %v6256
    %v8067 = vpack.c.b16 %v6267, %v6257
    %v8068 = vpack.c.b16 %v6268, %v6258
    %v8069 = vpack.c.b16 %v6269, %v6259
    %v8070 = vpack.c.b16 %v6270, %v6260
    %v8071 = vpack.c.b16 %v6271, %v6261
    %v8072 = vpack.c.b16 %v6272, %v6262
    %v8073 = vpack.c.b16 %v6283, %v6273
    %v8074 = vpack.c.b16 %v6284, %v6274
    %v8075 = vpack.c.b16 %v6285, %v6275
    %v8076 = vpack.c.b16 %v6286, %v6276
    %v8077 = vpack.c.b16 %v6287, %v6277
    %v8078 = vpack.c.b16 %v6288, %v6278
    %v8079 = vpack.c.b16 %v6289, %v6279
    %v8080 = vpack.c.b16 %v6290, %v6280
    %v8081 = vpack.c.b16 %v6291, %v6281
    %v8082 = vpack.c.b16 %v6292, %v6282
    %v8083 = vpack.c.b16 %v6303, %v6293
    %v8084 = vpack.c.b16 %v6304, %v6294
    %v8085 = vpack.c.b16 %v6305, %v6295
    %v8086 = vpack.c.b16 %v6306, %v6296
    %v8087 = vpack.c.b16 %v6307, %v6297
    %v8088 = vpack.c.b16 %v6308, %v6298
    %v8089 = vpack.c.b16 %v6309, %v6299
    %v8090 = vpack.c.b16 %v6310, %v6300
    %v8091 = vpack.c.b16 %v6311, %v6301
    %v8092 = vpack.c.b16 %v6312, %v6302
    %v8093 = vpack.c.b16 %v6323, %v6313
    %v8094 = vpack.c.b16 %v6324, %v6314
    %v8095 = vpack.c.b16 %v6325, %v6315
    %v8096 = vpack.c.b16 %v6326, %v6316
    %v8097 = vpack.c.b16 %v6327, %v6317
    %v8098 = vpack.c.b16 %v6328, %v6318
    %v8099 = vpack.c.b16 %v6329, %v6319
    %v8100 = vpack.c.b16 %v6330, %v6320
    %v8101 = vpack.c.b16 %v6331, %v6321
    %v8102 = vpack.c.b16 %v6332, %v6322
    %v8103 = vpack.c.b16 %v6343, %v6333
    %v8104 = vpack.c.b16 %v6344, %v6334
    %v8105 = vpack.c.b16 %v6345, %v6335
    %v8106 = vpack.c.b16 %v6346, %v6336
    %v8107 = vpack.c.b16 %v6347, %v6337
    %v8108 = vpack.c.b16 %v6348, %v6338
    %v8109 = vpack.c.b16 %v6349, %v6339
    %v8110 = vpack.c.b16 %v6350, %v6340
    %v8111 = vpack.c.b16 %v6351, %v6341
    %v8112 = vpack.c.b16 %v6352, %v6342
    %v8113 = vpack.c.b16 %v6363, %v6353
    %v8114 = vpack.c.b16 %v6364, %v6354
    %v8115 = vpack.c.b16 %v6365, %v6355
    %v8116 = vpack.c.b16 %v6366, %v6356
    %v8117 = vpack.c.b16 %v6367, %v6357
    %v8118 = vpack.c.b16 %v6368, %v6358
    %v8119 = vpack.c.b16 %v6369, %v6359
    %v8120 = vpack.c.b16 %v6370, %v6360
    %v8121 = vpack.c.b16 %v6371, %v6361
    %v8122 = vpack.c.b16 %v6372, %v6362
    %v8123 = vpack.c.b16 %v6383, %v6373
    %v8124 = vpack.c.b16 %v6384, %v6374
    %v8125 = vpack.c.b16 %v6385, %v6375
    %v8126 = vpack.c.b16 %v6386, %v6376
    %v8127 = vpack.c.b16 %v6387, %v6377
    %v8128 = vpack.c.b16 %v6388, %v6378
    %v8129 = vpack.c.b16 %v6389, %v6379
    %v8130 = vpack.c.b16 %v6390, %v6380
    %v8131 = vpack.c.b16 %v6391, %v6381
    %v8132 = vpack.c.b16 %v6392, %v6382
    %v8133 = vpack.c.b16 %v6403, %v6393
    %v8134 = vpack.c.b16 %v6404, %v6394
    %v8135 = vpack.c.b16 %v6405, %v6395
    %v8136 = vpack.c.b16 %v6406, %v6396
    %v8137 = vpack.c.b16 %v6407, %v6397
    %v8138 = vpack.c.b16 %v6408, %v6398
    %v8139 = vpack.c.b16 %v6409, %v6399
    %v8140 = vpack.c.b16 %v6410, %v6400
    %v8141 = vpack.c.b16 %v6411, %v6401
    %v8142 = vpack.c.b16 %v6412, %v6402
    %v8143 = vpack.c.b16 %v6423, %v6413
    %v8144 = vpack.c.b16 %v6424, %v6414
    %v8145 = vpack.c.b16 %v6425, %v6415
    %v8146 = vpack.c.b16 %v6426, %v6416
    %v8147 = vpack.c.b16 %v6427, %v6417
    %v8148 = vpack.c.b16 %v6428, %v6418
    %v8149 = vpack.c.b16 %v6429, %v6419
    %v8150 = vpack.c.b16 %v6430, %v6420
    %v8151 = vpack.c.b16 %v6431, %v6421
    %v8152 = vpack.c.b16 %v6432, %v6422
    %v8153 = vpack.c.b16 %v6443, %v6433
    %v8154 = vpack.c.b16 %v6444, %v6434
    %v8155 = vpack.c.b16 %v6445, %v6435
    %v8156 = vpack.c.b16 %v6446, %v6436
    %v8157 = vpack.c.b16 %v6447, %v6437
    %v8158 = vpack.c.b16 %v6448, %v6438
    %v8159 = vpack.c.b16 %v6449, %v6439
    %v8160 = vpack.c.b16 %v6450, %v6440
    %v8161 = vpack.c.b16 %v6451, %v6441
    %v8162 = vpack.c.b16 %v6452, %v6442
    %v8163 = vpack.c.b16 %v6463, %v6453
    %v8164 = vpack.c.b16 %v6464, %v6454
    %v8165 = vpack.c.b16 %v6465, %v6455
    %v8166 = vpack.c.b16 %v6466, %v6456
    %v8167 = vpack.c.b16 %v6467, %v6457
    %v8168 = vpack.c.b16 %v6468, %v6458
    %v8169 = vpack.c.b16 %v6469, %v6459
    %v8170 = vpack.c.b16 %v6470, %v6460
    %v8171 = vpack.c.b16 %v6471, %v6461
    %v8172 = vpack.c.b16 %v6472, %v6462
    %v8173 = vpack.c.b16 %v6483, %v6473
    %v8174 = vpack.c.b16 %v6484, %v6474
    %v8175 = vpack.c.b16 %v6485, %v6475
    %v8176 = vpack.c.b16 %v6486, %v6476
    %v8177 = vpack.c.b16 %v6487, %v6477
    %v8178 = vpack.c.b16 %v6488, %v6478
    %v8179 = vpack.c.b16 %v6489, %v6479
    %v8180 = vpack.c.b16 %v6490, %v6480
    %v8181 = vpack.c.b16 %v6491, %v6481
    %v8182 = vpack.c.b16 %v6492, %v6482
    %v8183 = vpack.c.b16 %v6503, %v6493
    %v8184 = vpack.c.b16 %v6504, %v6494
    %v8185 = vpack.c.b16 %v6505, %v6495
    %v8186 = vpack.c.b16 %v6506, %v6496
    %v8187 = vpack.c.b16 %v6507, %v6497
    %v8188 = vpack.c.b16 %v6508, %v6498
    %v8189 = vpack.c.b16 %v6509, %v6499
    %v8190 = vpack.c.b16 %v6510, %v6500
    %v8191 = vpack.c.b16 %v6511, %v6501
    %v8192 = vpack.c.b16 %v6512, %v6502
    %v8193 = vpack.c.b16 %v6523, %v6513
    %v8194 = vpack.c.b16 %v6524, %v6514
    %v8195 = vpack.c.b16 %v6525, %v6515
    %v8196 = vpack.c.b16 %v6526, %v6516
    %v8197 = vpack.c.b16 %v6527, %v6517
    %v8198 = vpack.c.b16 %v6528, %v6518
    %v8199 = vpack.c.b16 %v6529, %v6519
    %v8200 = vpack.c.b16 %v6530, %v6520
    %v8201 = vpack.c.b16 %v6531, %v6521
    %v8202 = vpack.c.b16 %v6532, %v6522
    %v8203 = vpack.c.b16 %v6543, %v6533
    %v8204 = vpack.c.b16 %v6544, %v6534
    %v8205 = vpack.c.b16 %v6545, %v6535
    %v8206 = vpack.c.b16 %v6546, %v6536
    %v8207 = vpack.c.b16 %v6547, %v6537
    %v8208 = vpack.c.b16 %v6548, %v6538
    %v8209 = vpack.c.b16 %v6549, %v6539
    %v8210 = vpack.c.b16 %v6550, %v6540
    %v8211 = vpack.c.b16 %v6551, %v6541
    %v8212 = vpack.c.b16 %v6552, %v6542
    %v8213 = vpack.c.b16 %v6563, %v6553
    %v8214 = vpack.c.b16 %v6564, %v6554
    %v8215 = vpack.c.b16 %v6565, %v6555
    %v8216 = vpack.c.b16 %v6566, %v6556
    %v8217 = vpack.c.b16 %v6567, %v6557
    %v8218 = vpack.c.b16 %v6568, %v6558
    %v8219 = vpack.c.b16 %v6569, %v6559
    %v8220 = vpack.c.b16 %v6570, %v6560
    %v8221 = vpack.c.b16 %v6571, %v6561
    %v8222 = vpack.c.b16 %v6572, %v6562
    %v8223 = vpack.c.b16 %v6583, %v6573
    %v8224 = vpack.c.b16 %v6584, %v6574
    %v8225 = vpack.c.b16 %v6585, %v6575
    %v8226 = vpack.c.b16 %v6586, %v6576
    %v8227 = vpack.c.b16 %v6587, %v6577
    %v8228 = vpack.c.b16 %v6588, %v6578
    %v8229 = vpack.c.b16 %v6589, %v6579
    %v8230 = vpack.c.b16 %v6590, %v6580
    %v8231 = vpack.c.b16 %v6591, %v6581
    %v8232 = vpack.c.b16 %v6592, %v6582
    %v8233 = vpack.c.b16 %v6603, %v6593
    %v8234 = vpack.c.b16 %v6604, %v6594
    %v8235 = vpack.c.b16 %v6605, %v6595
    %v8236 = vpack.c.b16 %v6606, %v6596
    %v8237 = vpack.c.b16 %v6607, %v6597
    %v8238 = vpack.c.b16 %v6608, %v6598
    %v8239 = vpack.c.b16 %v6609, %v6599
    %v8240 = vpack.c.b16 %v6610, %v6600
    %v8241 = vpack.c.b16 %v6611, %v6601
    %v8242 = vpack.c.b16 %v6612, %v6602
    %v8243 = vpack.c.b16 %v6623, %v6613
    %v8244 = vpack.c.b16 %v6624, %v6614
    %v8245 = vpack.c.b16 %v6625, %v6615
    %v8246 = vpack.c.b16 %v6626, %v6616
    %v8247 = vpack.c.b16 %v6627, %v6617
    %v8248 = vpack.c.b16 %v6628, %v6618
    %v8249 = vpack.c.b16 %v6629, %v6619
    %v8250 = vpack.c.b16 %v6630, %v6620
    %v8251 = vpack.c.b16 %v6631, %v6621
    %v8252 = vpack.c.b16 %v6632, %v6622
    %v8253 = vpack.c.b16 %v6643, %v6633
    %v8254 = vpack.c.b16 %v6644, %v6634
    %v8255 = vpack.c.b16 %v6645, %v6635
    %v8256 = vpack.c.b16 %v6646, %v6636
    %v8257 = vpack.c.b16 %v6647, %v6637
    %v8258 = vpack.c.b16 %v6648, %v6638
    %v8259 = vpack.c.b16 %v6649, %v6639
    %v8260 = vpack.c.b16 %v6650, %v6640
    %v8261 = vpack.c.b16 %v6651, %v6641
    %v8262 = vpack.c.b16 %v6652, %v6642
    %v8263 = vpack.c.b16 %v6663, %v6653
    %v8264 = vpack.c.b16 %v6664, %v6654
    %v8265 = vpack.c.b16 %v6665, %v6655
    %v8266 = vpack.c.b16 %v6666, %v6656
    %v8267 = vpack.c.b16 %v6667, %v6657
    %v8268 = vpack.c.b16 %v6668, %v6658
    %v8269 = vpack.c.b16 %v6669, %v6659
    %v8270 = vpack.c.b16 %v6670, %v6660
    %v8271 = vpack.c.b16 %v6671, %v6661
    %v8272 = vpack.c.b16 %v6672, %v6662
    %9873 = vmatprep.subr.bf16.mxu0 %v6674
    %9874 = vmatpush1.bf16.msra.mxu0 %v6673
    %9875 = vmatprep.subr.bf16.mxu0 %v6684
    %9876 = vmatpush1.bf16.msra.mxu0 %v6683
    %9877 = vmatprep.subr.bf16.mxu0 %v6694
    %9878 = vmatpush1.bf16.msra.mxu0 %v6693
    %9879 = vmatprep.subr.bf16.mxu0 %v6704
    %9880 = vmatpush1.bf16.msra.mxu0 %v6703
    %9881 = vmatprep.subr.bf16.mxu0 %v6714
    %9882 = vmatpush1.bf16.msra.mxu0 %v6713
    %9883 = vmatprep.subr.bf16.mxu0 %v6724
    %9884 = vmatpush1.bf16.msra.mxu0 %v6723
    %9885 = vmatprep.subr.bf16.mxu0 %v6734
    %9886 = vmatpush1.bf16.msra.mxu0 %v6733
    %9887 = vmatprep.subr.bf16.mxu0 %v6744
    %9888 = vmatpush1.bf16.msra.mxu0 %v6743
    %9889 = vmatprep.subr.bf16.mxu0 %v6754
    %9890 = vmatpush1.bf16.msra.mxu0 %v6753
    %9891 = vmatprep.subr.bf16.mxu0 %v6764
    %9892 = vmatpush1.bf16.msra.mxu0 %v6763
    %9893 = vmatprep.subr.bf16.mxu0 %v6774
    %9894 = vmatpush1.bf16.msra.mxu0 %v6773
    %9895 = vmatprep.subr.bf16.mxu0 %v6784
    %9896 = vmatpush1.bf16.msra.mxu0 %v6783
    %9897 = vmatprep.subr.bf16.mxu0 %v6794
    %9898 = vmatpush1.bf16.msra.mxu0 %v6793
    %9899 = vmatprep.subr.bf16.mxu0 %v6804
    %9900 = vmatpush1.bf16.msra.mxu0 %v6803
    %9901 = vmatprep.subr.bf16.mxu0 %v6814
    %9902 = vmatpush1.bf16.msra.mxu0 %v6813
    %9903 = vmatprep.subr.bf16.mxu0 %v6824
    %9904 = vmatpush1.bf16.msra.mxu0 %v6823
    %9905 = vmatprep.mubr.bf16.mxu0 %v200
    %9906 = vmatmul.mubr.bf16.gmra.mrb[0].mxu0 %v199
    %v9907 = vpop.f32.mrb[0].mxu0
    %v9908 = vadd.f32 %v1826, %v9907
    %v9909 = vpop.f32.mrb[0].mxu0
    %v9910 = vadd.f32 %v1830, %v9909
    %v9911 = vpop.f32.mrb[0].mxu0
    %v9912 = vpop.f32.mrb[0].mxu0
    %9913 = vdwg.mxu0
    %9914 = vmatprep.subr.bf16.mxu0 %v6834
    %9915 = vmatpush1.bf16.msra.mxu0 %v6833
    %9916 = vmatprep.subr.bf16.mxu0 %v6844
    %9917 = vmatpush1.bf16.msra.mxu0 %v6843
    %9918 = vmatprep.subr.bf16.mxu0 %v6854
    %9919 = vmatpush1.bf16.msra.mxu0 %v6853
    %9920 = vmatprep.subr.bf16.mxu0 %v6864
    %9921 = vmatpush1.bf16.msra.mxu0 %v6863
    %9922 = vmatprep.subr.bf16.mxu0 %v6874
    %9923 = vmatpush1.bf16.msra.mxu0 %v6873
    %9924 = vmatprep.subr.bf16.mxu0 %v6884
    %9925 = vmatpush1.bf16.msra.mxu0 %v6883
    %9926 = vmatprep.subr.bf16.mxu0 %v6894
    %9927 = vmatpush1.bf16.msra.mxu0 %v6893
    %9928 = vmatprep.subr.bf16.mxu0 %v6904
    %9929 = vmatpush1.bf16.msra.mxu0 %v6903
    %9930 = vmatprep.subr.bf16.mxu0 %v6914
    %9931 = vmatpush1.bf16.msra.mxu0 %v6913
    %9932 = vmatprep.subr.bf16.mxu0 %v6924
    %9933 = vmatpush1.bf16.msra.mxu0 %v6923
    %9934 = vmatprep.subr.bf16.mxu0 %v6934
    %9935 = vmatpush1.bf16.msra.mxu0 %v6933
    %9936 = vmatprep.subr.bf16.mxu0 %v6944
    %9937 = vmatpush1.bf16.msra.mxu0 %v6943
    %9938 = vmatprep.subr.bf16.mxu0 %v6954
    %9939 = vmatpush1.bf16.msra.mxu0 %v6953
    %9940 = vmatprep.subr.bf16.mxu0 %v6964
    %9941 = vmatpush1.bf16.msra.mxu0 %v6963
    %9942 = vmatprep.subr.bf16.mxu0 %v6974
    %9943 = vmatpush1.bf16.msra.mxu0 %v6973
    %9944 = vmatprep.subr.bf16.mxu0 %v6984
    %9945 = vmatpush1.bf16.msra.mxu0 %v6983
    %9946 = vmatprep.mubr.bf16.mxu0 %v202
    %9947 = vmatmul.mubr.bf16.gmra.mrb[0].mxu0 %v201
    %v9948 = vpop.f32.mrb[0].mxu0
    %v9949 = vadd.f32 %v9908, %v9948
    %v9950 = vpop.f32.mrb[0].mxu0
    %v9951 = vadd.f32 %v9910, %v9950
    %v9952 = vpop.f32.mrb[0].mxu0
    %v9953 = vpop.f32.mrb[0].mxu0
    %9954 = vdwg.mxu0
    %9955 = vmatprep.subr.bf16.mxu0 %v6994
    %9956 = vmatpush1.bf16.msra.mxu0 %v6993
    %9957 = vmatprep.subr.bf16.mxu0 %v7004
    %9958 = vmatpush1.bf16.msra.mxu0 %v7003
    %9959 = vmatprep.subr.bf16.mxu0 %v7014
    %9960 = vmatpush1.bf16.msra.mxu0 %v7013
    %9961 = vmatprep.subr.bf16.mxu0 %v7024
    %9962 = vmatpush1.bf16.msra.mxu0 %v7023
    %9963 = vmatprep.subr.bf16.mxu0 %v7034
    %9964 = vmatpush1.bf16.msra.mxu0 %v7033
    %9965 = vmatprep.subr.bf16.mxu0 %v7044
    %9966 = vmatpush1.bf16.msra.mxu0 %v7043
    %9967 = vmatprep.subr.bf16.mxu0 %v7054
    %9968 = vmatpush1.bf16.msra.mxu0 %v7053
    %9969 = vmatprep.subr.bf16.mxu0 %v7064
    %9970 = vmatpush1.bf16.msra.mxu0 %v7063
    %9971 = vmatprep.subr.bf16.mxu0 %v7074
    %9972 = vmatpush1.bf16.msra.mxu0 %v7073
    %9973 = vmatprep.subr.bf16.mxu0 %v7084
    %9974 = vmatpush1.bf16.msra.mxu0 %v7083
    %9975 = vmatprep.subr.bf16.mxu0 %v7094
    %9976 = vmatpush1.bf16.msra.mxu0 %v7093
    %9977 = vmatprep.subr.bf16.mxu0 %v7104
    %9978 = vmatpush1.bf16.msra.mxu0 %v7103
    %9979 = vmatprep.subr.bf16.mxu0 %v7114
    %9980 = vmatpush1.bf16.msra.mxu0 %v7113
    %9981 = vmatprep.subr.bf16.mxu0 %v7124
    %9982 = vmatpush1.bf16.msra.mxu0 %v7123
    %9983 = vmatprep.subr.bf16.mxu0 %v7134
    %9984 = vmatpush1.bf16.msra.mxu0 %v7133
    %9985 = vmatprep.subr.bf16.mxu0 %v7144
    %9986 = vmatpush1.bf16.msra.mxu0 %v7143
    %9987 = vmatprep.mubr.bf16.mxu0 %v204
    %9988 = vmatmul.mubr.bf16.gmra.mrb[0].mxu0 %v203
    %v9989 = vpop.f32.mrb[0].mxu0
    %v9990 = vadd.f32 %v9949, %v9989
    %v9991 = vpop.f32.mrb[0].mxu0
    %v9992 = vadd.f32 %v9951, %v9991
    %v9993 = vpop.f32.mrb[0].mxu0
    %v9994 = vpop.f32.mrb[0].mxu0
    %9995 = vdwg.mxu0
    %9996 = vmatprep.subr.bf16.mxu0 %v7154
    %9997 = vmatpush1.bf16.msra.mxu0 %v7153
    %9998 = vmatprep.subr.bf16.mxu0 %v7164
    %9999 = vmatpush1.bf16.msra.mxu0 %v7163
    %10000 = vmatprep.subr.bf16.mxu0 %v7174
    %10001 = vmatpush1.bf16.msra.mxu0 %v7173
    %10002 = vmatprep.subr.bf16.mxu0 %v7184
    %10003 = vmatpush1.bf16.msra.mxu0 %v7183
    %10004 = vmatprep.subr.bf16.mxu0 %v7194
    %10005 = vmatpush1.bf16.msra.mxu0 %v7193
    %10006 = vmatprep.subr.bf16.mxu0 %v7204
    %10007 = vmatpush1.bf16.msra.mxu0 %v7203
    %10008 = vmatprep.subr.bf16.mxu0 %v7214
    %10009 = vmatpush1.bf16.msra.mxu0 %v7213
    %10010 = vmatprep.subr.bf16.mxu0 %v7224
    %10011 = vmatpush1.bf16.msra.mxu0 %v7223
    %10012 = vmatprep.subr.bf16.mxu0 %v7234
    %10013 = vmatpush1.bf16.msra.mxu0 %v7233
    %10014 = vmatprep.subr.bf16.mxu0 %v7244
    %10015 = vmatpush1.bf16.msra.mxu0 %v7243
    %10016 = vmatprep.subr.bf16.mxu0 %v7254
    %10017 = vmatpush1.bf16.msra.mxu0 %v7253
    %10018 = vmatprep.subr.bf16.mxu0 %v7264
    %10019 = vmatpush1.bf16.msra.mxu0 %v7263
    %10020 = vmatprep.subr.bf16.mxu0 %v7274
    %10021 = vmatpush1.bf16.msra.mxu0 %v7273
    %10022 = vmatprep.subr.bf16.mxu0 %v7284
    %10023 = vmatpush1.bf16.msra.mxu0 %v7283
    %10024 = vmatprep.subr.bf16.mxu0 %v7294
    %10025 = vmatpush1.bf16.msra.mxu0 %v7293
    %10026 = vmatprep.subr.bf16.mxu0 %v7304
    %10027 = vmatpush1.bf16.msra.mxu0 %v7303
    %10028 = vmatprep.mubr.bf16.mxu0 %v206
    %10029 = vmatmul.mubr.bf16.gmra.mrb[0].mxu0 %v205
    %v10030 = vpop.f32.mrb[0].mxu0
    %v10031 = vadd.f32 %v9990, %v10030
    %v10032 = vpop.f32.mrb[0].mxu0
    %v10033 = vadd.f32 %v9992, %v10032
    %v10034 = vpop.f32.mrb[0].mxu0
    %v10035 = vpop.f32.mrb[0].mxu0
    %10036 = vdwg.mxu0
    %10037 = vmatprep.subr.bf16.mxu0 %v7314
    %10038 = vmatpush1.bf16.msra.mxu0 %v7313
    %10039 = vmatprep.subr.bf16.mxu0 %v7324
    %10040 = vmatpush1.bf16.msra.mxu0 %v7323
    %10041 = vmatprep.subr.bf16.mxu0 %v7334
    %10042 = vmatpush1.bf16.msra.mxu0 %v7333
    %10043 = vmatprep.subr.bf16.mxu0 %v7344
    %10044 = vmatpush1.bf16.msra.mxu0 %v7343
    %10045 = vmatprep.subr.bf16.mxu0 %v7354
    %10046 = vmatpush1.bf16.msra.mxu0 %v7353
    %10047 = vmatprep.subr.bf16.mxu0 %v7364
    %10048 = vmatpush1.bf16.msra.mxu0 %v7363
    %10049 = vmatprep.subr.bf16.mxu0 %v7374
    %10050 = vmatpush1.bf16.msra.mxu0 %v7373
    %10051 = vmatprep.subr.bf16.mxu0 %v7384
    %10052 = vmatpush1.bf16.msra.mxu0 %v7383
    %10053 = vmatprep.subr.bf16.mxu0 %v7394
    %10054 = vmatpush1.bf16.msra.mxu0 %v7393
    %10055 = vmatprep.subr.bf16.mxu0 %v7404
    %10056 = vmatpush1.bf16.msra.mxu0 %v7403
    %10057 = vmatprep.subr.bf16.mxu0 %v7414
    %10058 = vmatpush1.bf16.msra.mxu0 %v7413
    %10059 = vmatprep.subr.bf16.mxu0 %v7424
    %10060 = vmatpush1.bf16.msra.mxu0 %v7423
    %10061 = vmatprep.subr.bf16.mxu0 %v7434
    %10062 = vmatpush1.bf16.msra.mxu0 %v7433
    %10063 = vmatprep.subr.bf16.mxu0 %v7444
    %10064 = vmatpush1.bf16.msra.mxu0 %v7443
    %10065 = vmatprep.subr.bf16.mxu0 %v7454
    %10066 = vmatpush1.bf16.msra.mxu0 %v7453
    %10067 = vmatprep.subr.bf16.mxu0 %v7464
    %10068 = vmatpush1.bf16.msra.mxu0 %v7463
    %10069 = vmatprep.mubr.bf16.mxu0 %v208
    %10070 = vmatmul.mubr.bf16.gmra.mrb[0].mxu0 %v207
    %v10071 = vpop.f32.mrb[0].mxu0
    %v10072 = vadd.f32 %v10031, %v10071
    %v10073 = vpop.f32.mrb[0].mxu0
    %v10074 = vadd.f32 %v10033, %v10073
    %v10075 = vpop.f32.mrb[0].mxu0
    %v10076 = vpop.f32.mrb[0].mxu0
    %10077 = vdwg.mxu0
    %10078 = vmatprep.subr.bf16.mxu0 %v7474
    %10079 = vmatpush1.bf16.msra.mxu0 %v7473
    %10080 = vmatprep.subr.bf16.mxu0 %v7484
    %10081 = vmatpush1.bf16.msra.mxu0 %v7483
    %10082 = vmatprep.subr.bf16.mxu0 %v7494
    %10083 = vmatpush1.bf16.msra.mxu0 %v7493
    %10084 = vmatprep.subr.bf16.mxu0 %v7504
    %10085 = vmatpush1.bf16.msra.mxu0 %v7503
    %10086 = vmatprep.subr.bf16.mxu0 %v7514
    %10087 = vmatpush1.bf16.msra.mxu0 %v7513
    %10088 = vmatprep.subr.bf16.mxu0 %v7524
    %10089 = vmatpush1.bf16.msra.mxu0 %v7523
    %10090 = vmatprep.subr.bf16.mxu0 %v7534
    %10091 = vmatpush1.bf16.msra.mxu0 %v7533
    %10092 = vmatprep.subr.bf16.mxu0 %v7544
    %10093 = vmatpush1.bf16.msra.mxu0 %v7543
    %10094 = vmatprep.subr.bf16.mxu0 %v7554
    %10095 = vmatpush1.bf16.msra.mxu0 %v7553
    %10096 = vmatprep.subr.bf16.mxu0 %v7564
    %10097 = vmatpush1.bf16.msra.mxu0 %v7563
    %10098 = vmatprep.subr.bf16.mxu0 %v7574
    %10099 = vmatpush1.bf16.msra.mxu0 %v7573
    %10100 = vmatprep.subr.bf16.mxu0 %v7584
    %10101 = vmatpush1.bf16.msra.mxu0 %v7583
    %10102 = vmatprep.subr.bf16.mxu0 %v7594
    %10103 = vmatpush1.bf16.msra.mxu0 %v7593
    %10104 = vmatprep.subr.bf16.mxu0 %v7604
    %10105 = vmatpush1.bf16.msra.mxu0 %v7603
    %10106 = vmatprep.subr.bf16.mxu0 %v7614
    %10107 = vmatpush1.bf16.msra.mxu0 %v7613
    %10108 = vmatprep.subr.bf16.mxu0 %v7624
    %10109 = vmatpush1.bf16.msra.mxu0 %v7623
    %10110 = vmatprep.mubr.bf16.mxu0 %v210
    %10111 = vmatmul.mubr.bf16.gmra.mrb[0].mxu0 %v209
    %v10112 = vpop.f32.mrb[0].mxu0
    %v10113 = vadd.f32 %v10072, %v10112
    %v10114 = vpop.f32.mrb[0].mxu0
    %v10115 = vadd.f32 %v10074, %v10114
    %v10116 = vpop.f32.mrb[0].mxu0
    %v10117 = vpop.f32.mrb[0].mxu0
    %10118 = vdwg.mxu0
    %10119 = vmatprep.subr.bf16.mxu0 %v7634
    %10120 = vmatpush1.bf16.msra.mxu0 %v7633
    %10121 = vmatprep.subr.bf16.mxu0 %v7644
    %10122 = vmatpush1.bf16.msra.mxu0 %v7643
    %10123 = vmatprep.subr.bf16.mxu0 %v7654
    %10124 = vmatpush1.bf16.msra.mxu0 %v7653
    %10125 = vmatprep.subr.bf16.mxu0 %v7664
    %10126 = vmatpush1.bf16.msra.mxu0 %v7663
    %10127 = vmatprep.subr.bf16.mxu0 %v7674
    %10128 = vmatpush1.bf16.msra.mxu0 %v7673
    %10129 = vmatprep.subr.bf16.mxu0 %v7684
    %10130 = vmatpush1.bf16.msra.mxu0 %v7683
    %10131 = vmatprep.subr.bf16.mxu0 %v7694
    %10132 = vmatpush1.bf16.msra.mxu0 %v7693
    %10133 = vmatprep.subr.bf16.mxu0 %v7704
    %10134 = vmatpush1.bf16.msra.mxu0 %v7703
    %10135 = vmatprep.subr.bf16.mxu0 %v7714
    %10136 = vmatpush1.bf16.msra.mxu0 %v7713
    %10137 = vmatprep.subr.bf16.mxu0 %v7724
    %10138 = vmatpush1.bf16.msra.mxu0 %v7723
    %10139 = vmatprep.subr.bf16.mxu0 %v7734
    %10140 = vmatpush1.bf16.msra.mxu0 %v7733
    %10141 = vmatprep.subr.bf16.mxu0 %v7744
    %10142 = vmatpush1.bf16.msra.mxu0 %v7743
    %10143 = vmatprep.subr.bf16.mxu0 %v7754
    %10144 = vmatpush1.bf16.msra.mxu0 %v7753
    %10145 = vmatprep.subr.bf16.mxu0 %v7764
    %10146 = vmatpush1.bf16.msra.mxu0 %v7763
    %10147 = vmatprep.subr.bf16.mxu0 %v7774
    %10148 = vmatpush1.bf16.msra.mxu0 %v7773
    %10149 = vmatprep.subr.bf16.mxu0 %v7784
    %10150 = vmatpush1.bf16.msra.mxu0 %v7783
    %10151 = vmatprep.mubr.bf16.mxu0 %v212
    %10152 = vmatmul.mubr.bf16.gmra.mrb[0].mxu0 %v211
    %v10153 = vpop.f32.mrb[0].mxu0
    %v10154 = vadd.f32 %v10113, %v10153
    %v10155 = vpop.f32.mrb[0].mxu0
    %v10156 = vadd.f32 %v10115, %v10155
    %v10157 = vpop.f32.mrb[0].mxu0
    %v10158 = vpop.f32.mrb[0].mxu0
    %10159 = vdwg.mxu0
    %10160 = vmatprep.subr.bf16.mxu0 %v7794
    %10161 = vmatpush1.bf16.msra.mxu0 %v7793
    %10162 = vmatprep.subr.bf16.mxu0 %v7804
    %10163 = vmatpush1.bf16.msra.mxu0 %v7803
    %10164 = vmatprep.subr.bf16.mxu0 %v7814
    %10165 = vmatpush1.bf16.msra.mxu0 %v7813
    %10166 = vmatprep.subr.bf16.mxu0 %v7824
    %10167 = vmatpush1.bf16.msra.mxu0 %v7823
    %10168 = vmatprep.subr.bf16.mxu0 %v7834
    %10169 = vmatpush1.bf16.msra.mxu0 %v7833
    %10170 = vmatprep.subr.bf16.mxu0 %v7844
    %10171 = vmatpush1.bf16.msra.mxu0 %v7843
    %10172 = vmatprep.subr.bf16.mxu0 %v7854
    %10173 = vmatpush1.bf16.msra.mxu0 %v7853
    %10174 = vmatprep.subr.bf16.mxu0 %v7864
    %10175 = vmatpush1.bf16.msra.mxu0 %v7863
    %10176 = vmatprep.subr.bf16.mxu0 %v7874
    %10177 = vmatpush1.bf16.msra.mxu0 %v7873
    %10178 = vmatprep.subr.bf16.mxu0 %v7884
    %10179 = vmatpush1.bf16.msra.mxu0 %v7883
    %10180 = vmatprep.subr.bf16.mxu0 %v7894
    %10181 = vmatpush1.bf16.msra.mxu0 %v7893
    %10182 = vmatprep.subr.bf16.mxu0 %v7904
    %10183 = vmatpush1.bf16.msra.mxu0 %v7903
    %10184 = vmatprep.subr.bf16.mxu0 %v7914
    %10185 = vmatpush1.bf16.msra.mxu0 %v7913
    %10186 = vmatprep.subr.bf16.mxu0 %v7924
    %10187 = vmatpush1.bf16.msra.mxu0 %v7923
    %10188 = vmatprep.subr.bf16.mxu0 %v7934
    %10189 = vmatpush1.bf16.msra.mxu0 %v7933
    %10190 = vmatprep.subr.bf16.mxu0 %v7944
    %10191 = vmatpush1.bf16.msra.mxu0 %v7943
    %10192 = vmatprep.mubr.bf16.mxu0 %v214
    %10193 = vmatmul.mubr.bf16.gmra.mrb[0].mxu0 %v213
    %v10194 = vpop.f32.mrb[0].mxu0
    %v10195 = vadd.f32 %v10154, %v10194
    %v10196 = vpop.f32.mrb[0].mxu0
    %v10197 = vadd.f32 %v10156, %v10196
    %v10198 = vpop.f32.mrb[0].mxu0
    %v10199 = vpop.f32.mrb[0].mxu0
    %10200 = vdwg.mxu0
    %10201 = vmatprep.subr.bf16.mxu0 %v7954
    %10202 = vmatpush1.bf16.msra.mxu0 %v7953
    %10203 = vmatprep.subr.bf16.mxu0 %v7964
    %10204 = vmatpush1.bf16.msra.mxu0 %v7963
    %10205 = vmatprep.subr.bf16.mxu0 %v7974
    %10206 = vmatpush1.bf16.msra.mxu0 %v7973
    %10207 = vmatprep.subr.bf16.mxu0 %v7984
    %10208 = vmatpush1.bf16.msra.mxu0 %v7983
    %10209 = vmatprep.subr.bf16.mxu0 %v7994
    %10210 = vmatpush1.bf16.msra.mxu0 %v7993
    %10211 = vmatprep.subr.bf16.mxu0 %v8004
    %10212 = vmatpush1.bf16.msra.mxu0 %v8003
    %10213 = vmatprep.subr.bf16.mxu0 %v8014
    %10214 = vmatpush1.bf16.msra.mxu0 %v8013
    %10215 = vmatprep.subr.bf16.mxu0 %v8024
    %10216 = vmatpush1.bf16.msra.mxu0 %v8023
    %10217 = vmatprep.subr.bf16.mxu0 %v8034
    %10218 = vmatpush1.bf16.msra.mxu0 %v8033
    %10219 = vmatprep.subr.bf16.mxu0 %v8044
    %10220 = vmatpush1.bf16.msra.mxu0 %v8043
    %10221 = vmatprep.subr.bf16.mxu0 %v8054
    %10222 = vmatpush1.bf16.msra.mxu0 %v8053
    %10223 = vmatprep.subr.bf16.mxu0 %v8064
    %10224 = vmatpush1.bf16.msra.mxu0 %v8063
    %10225 = vmatprep.subr.bf16.mxu0 %v8074
    %10226 = vmatpush1.bf16.msra.mxu0 %v8073
    %10227 = vmatprep.subr.bf16.mxu0 %v8084
    %10228 = vmatpush1.bf16.msra.mxu0 %v8083
    %10229 = vmatprep.subr.bf16.mxu0 %v8094
    %10230 = vmatpush1.bf16.msra.mxu0 %v8093
    %10231 = vmatprep.subr.bf16.mxu0 %v8104
    %10232 = vmatpush1.bf16.msra.mxu0 %v8103
    %10233 = vmatprep.mubr.bf16.mxu0 %v216
    %10234 = vmatmul.mubr.bf16.gmra.mrb[0].mxu0 %v215
    %v10235 = vpop.f32.mrb[0].mxu0
    %v10236 = vadd.f32 %v10195, %v10235
    %v10237 = vpop.f32.mrb[0].mxu0
    %v10238 = vadd.f32 %v10197, %v10237
    %v10239 = vpop.f32.mrb[0].mxu0
    %v10240 = vpop.f32.mrb[0].mxu0
    %10241 = vdwg.mxu0
    %10242 = vmatprep.subr.bf16.mxu0 %v8114
    %10243 = vmatpush1.bf16.msra.mxu0 %v8113
    %10244 = vmatprep.subr.bf16.mxu0 %v8124
    %10245 = vmatpush1.bf16.msra.mxu0 %v8123
    %10246 = vmatprep.subr.bf16.mxu0 %v8134
    %10247 = vmatpush1.bf16.msra.mxu0 %v8133
    %10248 = vmatprep.subr.bf16.mxu0 %v8144
    %10249 = vmatpush1.bf16.msra.mxu0 %v8143
    %10250 = vmatprep.subr.bf16.mxu0 %v8154
    %10251 = vmatpush1.bf16.msra.mxu0 %v8153
    %10252 = vmatprep.subr.bf16.mxu0 %v8164
    %10253 = vmatpush1.bf16.msra.mxu0 %v8163
    %10254 = vmatprep.subr.bf16.mxu0 %v8174
    %10255 = vmatpush1.bf16.msra.mxu0 %v8173
    %10256 = vmatprep.subr.bf16.mxu0 %v8184
    %10257 = vmatpush1.bf16.msra.mxu0 %v8183
    %10258 = vmatprep.subr.bf16.mxu0 %v8194
    %10259 = vmatpush1.bf16.msra.mxu0 %v8193
    %10260 = vmatprep.subr.bf16.mxu0 %v8204
    %10261 = vmatpush1.bf16.msra.mxu0 %v8203
    %10262 = vmatprep.subr.bf16.mxu0 %v8214
    %10263 = vmatpush1.bf16.msra.mxu0 %v8213
    %10264 = vmatprep.subr.bf16.mxu0 %v8224
    %10265 = vmatpush1.bf16.msra.mxu0 %v8223
    %10266 = vmatprep.subr.bf16.mxu0 %v8234
    %10267 = vmatpush1.bf16.msra.mxu0 %v8233
    %10268 = vmatprep.subr.bf16.mxu0 %v8244
    %10269 = vmatpush1.bf16.msra.mxu0 %v8243
    %10270 = vmatprep.subr.bf16.mxu0 %v8254
    %10271 = vmatpush1.bf16.msra.mxu0 %v8253
    %10272 = vmatprep.subr.bf16.mxu0 %v8264
    %10273 = vmatpush1.bf16.msra.mxu0 %v8263
    %10274 = vmatprep.mubr.bf16.mxu0 %v218
    %10275 = vmatmul.mubr.bf16.gmra.mrb[0].mxu0 %v217
    %v10276 = vpop.f32.mrb[0].mxu0
    %v10277 = vadd.f32 %v10236, %v10276
    %v10278 = vpop.f32.mrb[0].mxu0
    %v10279 = vadd.f32 %v10238, %v10278
    %v10280 = vpop.f32.mrb[0].mxu0
    %v10281 = vpop.f32.mrb[0].mxu0
    %10282 = vdwg.mxu0
    %10283 = vmatprep.subr.bf16.mxu0 %v6676
    %10284 = vmatpush1.bf16.msra.mxu0 %v6675
    %10285 = vmatprep.subr.bf16.mxu0 %v6686
    %10286 = vmatpush1.bf16.msra.mxu0 %v6685
    %10287 = vmatprep.subr.bf16.mxu0 %v6696
    %10288 = vmatpush1.bf16.msra.mxu0 %v6695
    %10289 = vmatprep.subr.bf16.mxu0 %v6706
    %10290 = vmatpush1.bf16.msra.mxu0 %v6705
    %10291 = vmatprep.subr.bf16.mxu0 %v6716
    %10292 = vmatpush1.bf16.msra.mxu0 %v6715
    %10293 = vmatprep.subr.bf16.mxu0 %v6726
    %10294 = vmatpush1.bf16.msra.mxu0 %v6725
    %10295 = vmatprep.subr.bf16.mxu0 %v6736
    %10296 = vmatpush1.bf16.msra.mxu0 %v6735
    %10297 = vmatprep.subr.bf16.mxu0 %v6746
    %10298 = vmatpush1.bf16.msra.mxu0 %v6745
    %10299 = vmatprep.subr.bf16.mxu0 %v6756
    %10300 = vmatpush1.bf16.msra.mxu0 %v6755
    %10301 = vmatprep.subr.bf16.mxu0 %v6766
    %10302 = vmatpush1.bf16.msra.mxu0 %v6765
    %10303 = vmatprep.subr.bf16.mxu0 %v6776
    %10304 = vmatpush1.bf16.msra.mxu0 %v6775
    %10305 = vmatprep.subr.bf16.mxu0 %v6786
    %10306 = vmatpush1.bf16.msra.mxu0 %v6785
    %10307 = vmatprep.subr.bf16.mxu0 %v6796
    %10308 = vmatpush1.bf16.msra.mxu0 %v6795
    %10309 = vmatprep.subr.bf16.mxu0 %v6806
    %10310 = vmatpush1.bf16.msra.mxu0 %v6805
    %10311 = vmatprep.subr.bf16.mxu0 %v6816
    %10312 = vmatpush1.bf16.msra.mxu0 %v6815
    %10313 = vmatprep.subr.bf16.mxu0 %v6826
    %10314 = vmatpush1.bf16.msra.mxu0 %v6825
    %10315 = vmatprep.mubr.bf16.mxu0 %v200
    %10316 = vmatmul.mubr.bf16.gmra.mrb[0].mxu0 %v199
    %v10317 = vpop.f32.mrb[0].mxu0
    %v10318 = vadd.f32 %v1834, %v10317
    %v10319 = vpop.f32.mrb[0].mxu0
    %v10320 = vadd.f32 %v1838, %v10319
    %v10321 = vpop.f32.mrb[0].mxu0
    %v10322 = vpop.f32.mrb[0].mxu0
    %10323 = vdwg.mxu0
    %10324 = vmatprep.subr.bf16.mxu0 %v6836
    %10325 = vmatpush1.bf16.msra.mxu0 %v6835
    %10326 = vmatprep.subr.bf16.mxu0 %v6846
    %10327 = vmatpush1.bf16.msra.mxu0 %v6845
    %10328 = vmatprep.subr.bf16.mxu0 %v6856
    %10329 = vmatpush1.bf16.msra.mxu0 %v6855
    %10330 = vmatprep.subr.bf16.mxu0 %v6866
    %10331 = vmatpush1.bf16.msra.mxu0 %v6865
    %10332 = vmatprep.subr.bf16.mxu0 %v6876
    %10333 = vmatpush1.bf16.msra.mxu0 %v6875
    %10334 = vmatprep.subr.bf16.mxu0 %v6886
    %10335 = vmatpush1.bf16.msra.mxu0 %v6885
    %10336 = vmatprep.subr.bf16.mxu0 %v6896
    %10337 = vmatpush1.bf16.msra.mxu0 %v6895
    %10338 = vmatprep.subr.bf16.mxu0 %v6906
    %10339 = vmatpush1.bf16.msra.mxu0 %v6905
    %10340 = vmatprep.subr.bf16.mxu0 %v6916
    %10341 = vmatpush1.bf16.msra.mxu0 %v6915
    %10342 = vmatprep.subr.bf16.mxu0 %v6926
    %10343 = vmatpush1.bf16.msra.mxu0 %v6925
    %10344 = vmatprep.subr.bf16.mxu0 %v6936
    %10345 = vmatpush1.bf16.msra.mxu0 %v6935
    %10346 = vmatprep.subr.bf16.mxu0 %v6946
    %10347 = vmatpush1.bf16.msra.mxu0 %v6945
    %10348 = vmatprep.subr.bf16.mxu0 %v6956
    %10349 = vmatpush1.bf16.msra.mxu0 %v6955
    %10350 = vmatprep.subr.bf16.mxu0 %v6966
    %10351 = vmatpush1.bf16.msra.mxu0 %v6965
    %10352 = vmatprep.subr.bf16.mxu0 %v6976
    %10353 = vmatpush1.bf16.msra.mxu0 %v6975
    %10354 = vmatprep.subr.bf16.mxu0 %v6986
    %10355 = vmatpush1.bf16.msra.mxu0 %v6985
    %10356 = vmatprep.mubr.bf16.mxu0 %v202
    %10357 = vmatmul.mubr.bf16.gmra.mrb[0].mxu0 %v201
    %v10358 = vpop.f32.mrb[0].mxu0
    %v10359 = vadd.f32 %v10318, %v10358
    %v10360 = vpop.f32.mrb[0].mxu0
    %v10361 = vadd.f32 %v10320, %v10360
    %v10362 = vpop.f32.mrb[0].mxu0
    %v10363 = vpop.f32.mrb[0].mxu0
    %10364 = vdwg.mxu0
    %10365 = vmatprep.subr.bf16.mxu0 %v6996
    %10366 = vmatpush1.bf16.msra.mxu0 %v6995
    %10367 = vmatprep.subr.bf16.mxu0 %v7006
    %10368 = vmatpush1.bf16.msra.mxu0 %v7005
    %10369 = vmatprep.subr.bf16.mxu0 %v7016
    %10370 = vmatpush1.bf16.msra.mxu0 %v7015
    %10371 = vmatprep.subr.bf16.mxu0 %v7026
    %10372 = vmatpush1.bf16.msra.mxu0 %v7025
    %10373 = vmatprep.subr.bf16.mxu0 %v7036
    %10374 = vmatpush1.bf16.msra.mxu0 %v7035
    %10375 = vmatprep.subr.bf16.mxu0 %v7046
    %10376 = vmatpush1.bf16.msra.mxu0 %v7045
    %10377 = vmatprep.subr.bf16.mxu0 %v7056
    %10378 = vmatpush1.bf16.msra.mxu0 %v7055
    %10379 = vmatprep.subr.bf16.mxu0 %v7066
    %10380 = vmatpush1.bf16.msra.mxu0 %v7065
    %10381 = vmatprep.subr.bf16.mxu0 %v7076
    %10382 = vmatpush1.bf16.msra.mxu0 %v7075
    %10383 = vmatprep.subr.bf16.mxu0 %v7086
    %10384 = vmatpush1.bf16.msra.mxu0 %v7085
    %10385 = vmatprep.subr.bf16.mxu0 %v7096
    %10386 = vmatpush1.bf16.msra.mxu0 %v7095
    %10387 = vmatprep.subr.bf16.mxu0 %v7106
    %10388 = vmatpush1.bf16.msra.mxu0 %v7105
    %10389 = vmatprep.subr.bf16.mxu0 %v7116
    %10390 = vmatpush1.bf16.msra.mxu0 %v7115
    %10391 = vmatprep.subr.bf16.mxu0 %v7126
    %10392 = vmatpush1.bf16.msra.mxu0 %v7125
    %10393 = vmatprep.subr.bf16.mxu0 %v7136
    %10394 = vmatpush1.bf16.msra.mxu0 %v7135
    %10395 = vmatprep.subr.bf16.mxu0 %v7146
    %10396 = vmatpush1.bf16.msra.mxu0 %v7145
    %10397 = vmatprep.mubr.bf16.mxu0 %v204
    %10398 = vmatmul.mubr.bf16.gmra.mrb[0].mxu0 %v203
    %v10399 = vpop.f32.mrb[0].mxu0
    %v10400 = vadd.f32 %v10359, %v10399
    %v10401 = vpop.f32.mrb[0].mxu0
    %v10402 = vadd.f32 %v10361, %v10401
    %v10403 = vpop.f32.mrb[0].mxu0
    %v10404 = vpop.f32.mrb[0].mxu0
    %10405 = vdwg.mxu0
    %10406 = vmatprep.subr.bf16.mxu0 %v7156
    %10407 = vmatpush1.bf16.msra.mxu0 %v7155
    %10408 = vmatprep.subr.bf16.mxu0 %v7166
    %10409 = vmatpush1.bf16.msra.mxu0 %v7165
    %10410 = vmatprep.subr.bf16.mxu0 %v7176
    %10411 = vmatpush1.bf16.msra.mxu0 %v7175
    %10412 = vmatprep.subr.bf16.mxu0 %v7186
    %10413 = vmatpush1.bf16.msra.mxu0 %v7185
    %10414 = vmatprep.subr.bf16.mxu0 %v7196
    %10415 = vmatpush1.bf16.msra.mxu0 %v7195
    %10416 = vmatprep.subr.bf16.mxu0 %v7206
    %10417 = vmatpush1.bf16.msra.mxu0 %v7205
    %10418 = vmatprep.subr.bf16.mxu0 %v7216
    %10419 = vmatpush1.bf16.msra.mxu0 %v7215
    %10420 = vmatprep.subr.bf16.mxu0 %v7226
    %10421 = vmatpush1.bf16.msra.mxu0 %v7225
    %10422 = vmatprep.subr.bf16.mxu0 %v7236
    %10423 = vmatpush1.bf16.msra.mxu0 %v7235
    %10424 = vmatprep.subr.bf16.mxu0 %v7246
    %10425 = vmatpush1.bf16.msra.mxu0 %v7245
    %10426 = vmatprep.subr.bf16.mxu0 %v7256
    %10427 = vmatpush1.bf16.msra.mxu0 %v7255
    %10428 = vmatprep.subr.bf16.mxu0 %v7266
    %10429 = vmatpush1.bf16.msra.mxu0 %v7265
    %10430 = vmatprep.subr.bf16.mxu0 %v7276
    %10431 = vmatpush1.bf16.msra.mxu0 %v7275
    %10432 = vmatprep.subr.bf16.mxu0 %v7286
    %10433 = vmatpush1.bf16.msra.mxu0 %v7285
    %10434 = vmatprep.subr.bf16.mxu0 %v7296
    %10435 = vmatpush1.bf16.msra.mxu0 %v7295
    %10436 = vmatprep.subr.bf16.mxu0 %v7306
    %10437 = vmatpush1.bf16.msra.mxu0 %v7305
    %10438 = vmatprep.mubr.bf16.mxu0 %v206
    %10439 = vmatmul.mubr.bf16.gmra.mrb[0].mxu0 %v205
    %v10440 = vpop.f32.mrb[0].mxu0
    %v10441 = vadd.f32 %v10400, %v10440
    %v10442 = vpop.f32.mrb[0].mxu0
    %v10443 = vadd.f32 %v10402, %v10442
    %v10444 = vpop.f32.mrb[0].mxu0
    %v10445 = vpop.f32.mrb[0].mxu0
    %10446 = vdwg.mxu0
    %10447 = vmatprep.subr.bf16.mxu0 %v7316
    %10448 = vmatpush1.bf16.msra.mxu0 %v7315
    %10449 = vmatprep.subr.bf16.mxu0 %v7326
    %10450 = vmatpush1.bf16.msra.mxu0 %v7325
    %10451 = vmatprep.subr.bf16.mxu0 %v7336
    %10452 = vmatpush1.bf16.msra.mxu0 %v7335
    %10453 = vmatprep.subr.bf16.mxu0 %v7346
    %10454 = vmatpush1.bf16.msra.mxu0 %v7345
    %10455 = vmatprep.subr.bf16.mxu0 %v7356
    %10456 = vmatpush1.bf16.msra.mxu0 %v7355
    %10457 = vmatprep.subr.bf16.mxu0 %v7366
    %10458 = vmatpush1.bf16.msra.mxu0 %v7365
    %10459 = vmatprep.subr.bf16.mxu0 %v7376
    %10460 = vmatpush1.bf16.msra.mxu0 %v7375
    %10461 = vmatprep.subr.bf16.mxu0 %v7386
    %10462 = vmatpush1.bf16.msra.mxu0 %v7385
    %10463 = vmatprep.subr.bf16.mxu0 %v7396
    %10464 = vmatpush1.bf16.msra.mxu0 %v7395
    %10465 = vmatprep.subr.bf16.mxu0 %v7406
    %10466 = vmatpush1.bf16.msra.mxu0 %v7405
    %10467 = vmatprep.subr.bf16.mxu0 %v7416
    %10468 = vmatpush1.bf16.msra.mxu0 %v7415
    %10469 = vmatprep.subr.bf16.mxu0 %v7426
    %10470 = vmatpush1.bf16.msra.mxu0 %v7425
    %10471 = vmatprep.subr.bf16.mxu0 %v7436
    %10472 = vmatpush1.bf16.msra.mxu0 %v7435
    %10473 = vmatprep.subr.bf16.mxu0 %v7446
    %10474 = vmatpush1.bf16.msra.mxu0 %v7445
    %10475 = vmatprep.subr.bf16.mxu0 %v7456
    %10476 = vmatpush1.bf16.msra.mxu0 %v7455
    %10477 = vmatprep.subr.bf16.mxu0 %v7466
    %10478 = vmatpush1.bf16.msra.mxu0 %v7465
    %10479 = vmatprep.mubr.bf16.mxu0 %v208
    %10480 = vmatmul.mubr.bf16.gmra.mrb[0].mxu0 %v207
    %v10481 = vpop.f32.mrb[0].mxu0
    %v10482 = vadd.f32 %v10441, %v10481
    %v10483 = vpop.f32.mrb[0].mxu0
    %v10484 = vadd.f32 %v10443, %v10483
    %v10485 = vpop.f32.mrb[0].mxu0
    %v10486 = vpop.f32.mrb[0].mxu0
    %10487 = vdwg.mxu0
    %10488 = vmatprep.subr.bf16.mxu0 %v7476
    %10489 = vmatpush1.bf16.msra.mxu0 %v7475
    %10490 = vmatprep.subr.bf16.mxu0 %v7486
    %10491 = vmatpush1.bf16.msra.mxu0 %v7485
    %10492 = vmatprep.subr.bf16.mxu0 %v7496
    %10493 = vmatpush1.bf16.msra.mxu0 %v7495
    %10494 = vmatprep.subr.bf16.mxu0 %v7506
    %10495 = vmatpush1.bf16.msra.mxu0 %v7505
    %10496 = vmatprep.subr.bf16.mxu0 %v7516
    %10497 = vmatpush1.bf16.msra.mxu0 %v7515
    %10498 = vmatprep.subr.bf16.mxu0 %v7526
    %10499 = vmatpush1.bf16.msra.mxu0 %v7525
    %10500 = vmatprep.subr.bf16.mxu0 %v7536
    %10501 = vmatpush1.bf16.msra.mxu0 %v7535
    %10502 = vmatprep.subr.bf16.mxu0 %v7546
    %10503 = vmatpush1.bf16.msra.mxu0 %v7545
    %10504 = vmatprep.subr.bf16.mxu0 %v7556
    %10505 = vmatpush1.bf16.msra.mxu0 %v7555
    %10506 = vmatprep.subr.bf16.mxu0 %v7566
    %10507 = vmatpush1.bf16.msra.mxu0 %v7565
    %10508 = vmatprep.subr.bf16.mxu0 %v7576
    %10509 = vmatpush1.bf16.msra.mxu0 %v7575
    %10510 = vmatprep.subr.bf16.mxu0 %v7586
    %10511 = vmatpush1.bf16.msra.mxu0 %v7585
    %10512 = vmatprep.subr.bf16.mxu0 %v7596
    %10513 = vmatpush1.bf16.msra.mxu0 %v7595
    %10514 = vmatprep.subr.bf16.mxu0 %v7606
    %10515 = vmatpush1.bf16.msra.mxu0 %v7605
    %10516 = vmatprep.subr.bf16.mxu0 %v7616
    %10517 = vmatpush1.bf16.msra.mxu0 %v7615
    %10518 = vmatprep.subr.bf16.mxu0 %v7626
    %10519 = vmatpush1.bf16.msra.mxu0 %v7625
    %10520 = vmatprep.mubr.bf16.mxu0 %v210
    %10521 = vmatmul.mubr.bf16.gmra.mrb[0].mxu0 %v209
    %v10522 = vpop.f32.mrb[0].mxu0
    %v10523 = vadd.f32 %v10482, %v10522
    %v10524 = vpop.f32.mrb[0].mxu0
    %v10525 = vadd.f32 %v10484, %v10524
    %v10526 = vpop.f32.mrb[0].mxu0
    %v10527 = vpop.f32.mrb[0].mxu0
    %10528 = vdwg.mxu0
    %10529 = vmatprep.subr.bf16.mxu0 %v7636
    %10530 = vmatpush1.bf16.msra.mxu0 %v7635
    %10531 = vmatprep.subr.bf16.mxu0 %v7646
    %10532 = vmatpush1.bf16.msra.mxu0 %v7645
    %10533 = vmatprep.subr.bf16.mxu0 %v7656
    %10534 = vmatpush1.bf16.msra.mxu0 %v7655
    %10535 = vmatprep.subr.bf16.mxu0 %v7666
    %10536 = vmatpush1.bf16.msra.mxu0 %v7665
    %10537 = vmatprep.subr.bf16.mxu0 %v7676
    %10538 = vmatpush1.bf16.msra.mxu0 %v7675
    %10539 = vmatprep.subr.bf16.mxu0 %v7686
    %10540 = vmatpush1.bf16.msra.mxu0 %v7685
    %10541 = vmatprep.subr.bf16.mxu0 %v7696
    %10542 = vmatpush1.bf16.msra.mxu0 %v7695
    %10543 = vmatprep.subr.bf16.mxu0 %v7706
    %10544 = vmatpush1.bf16.msra.mxu0 %v7705
    %10545 = vmatprep.subr.bf16.mxu0 %v7716
    %10546 = vmatpush1.bf16.msra.mxu0 %v7715
    %10547 = vmatprep.subr.bf16.mxu0 %v7726
    %10548 = vmatpush1.bf16.msra.mxu0 %v7725
    %10549 = vmatprep.subr.bf16.mxu0 %v7736
    %10550 = vmatpush1.bf16.msra.mxu0 %v7735
    %10551 = vmatprep.subr.bf16.mxu0 %v7746
    %10552 = vmatpush1.bf16.msra.mxu0 %v7745
    %10553 = vmatprep.subr.bf16.mxu0 %v7756
    %10554 = vmatpush1.bf16.msra.mxu0 %v7755
    %10555 = vmatprep.subr.bf16.mxu0 %v7766
    %10556 = vmatpush1.bf16.msra.mxu0 %v7765
    %10557 = vmatprep.subr.bf16.mxu0 %v7776
    %10558 = vmatpush1.bf16.msra.mxu0 %v7775
    %10559 = vmatprep.subr.bf16.mxu0 %v7786
    %10560 = vmatpush1.bf16.msra.mxu0 %v7785
    %10561 = vmatprep.mubr.bf16.mxu0 %v212
    %10562 = vmatmul.mubr.bf16.gmra.mrb[0].mxu0 %v211
    %v10563 = vpop.f32.mrb[0].mxu0
    %v10564 = vadd.f32 %v10523, %v10563
    %v10565 = vpop.f32.mrb[0].mxu0
    %v10566 = vadd.f32 %v10525, %v10565
    %v10567 = vpop.f32.mrb[0].mxu0
    %v10568 = vpop.f32.mrb[0].mxu0
    %10569 = vdwg.mxu0
    %10570 = vmatprep.subr.bf16.mxu0 %v7796
    %10571 = vmatpush1.bf16.msra.mxu0 %v7795
    %10572 = vmatprep.subr.bf16.mxu0 %v7806
    %10573 = vmatpush1.bf16.msra.mxu0 %v7805
    %10574 = vmatprep.subr.bf16.mxu0 %v7816
    %10575 = vmatpush1.bf16.msra.mxu0 %v7815
    %10576 = vmatprep.subr.bf16.mxu0 %v7826
    %10577 = vmatpush1.bf16.msra.mxu0 %v7825
    %10578 = vmatprep.subr.bf16.mxu0 %v7836
    %10579 = vmatpush1.bf16.msra.mxu0 %v7835
    %10580 = vmatprep.subr.bf16.mxu0 %v7846
    %10581 = vmatpush1.bf16.msra.mxu0 %v7845
    %10582 = vmatprep.subr.bf16.mxu0 %v7856
    %10583 = vmatpush1.bf16.msra.mxu0 %v7855
    %10584 = vmatprep.subr.bf16.mxu0 %v7866
    %10585 = vmatpush1.bf16.msra.mxu0 %v7865
    %10586 = vmatprep.subr.bf16.mxu0 %v7876
    %10587 = vmatpush1.bf16.msra.mxu0 %v7875
    %10588 = vmatprep.subr.bf16.mxu0 %v7886
    %10589 = vmatpush1.bf16.msra.mxu0 %v7885
    %10590 = vmatprep.subr.bf16.mxu0 %v7896
    %10591 = vmatpush1.bf16.msra.mxu0 %v7895
    %10592 = vmatprep.subr.bf16.mxu0 %v7906
    %10593 = vmatpush1.bf16.msra.mxu0 %v7905
    %10594 = vmatprep.subr.bf16.mxu0 %v7916
    %10595 = vmatpush1.bf16.msra.mxu0 %v7915
    %10596 = vmatprep.subr.bf16.mxu0 %v7926
    %10597 = vmatpush1.bf16.msra.mxu0 %v7925
    %10598 = vmatprep.subr.bf16.mxu0 %v7936
    %10599 = vmatpush1.bf16.msra.mxu0 %v7935
    %10600 = vmatprep.subr.bf16.mxu0 %v7946
    %10601 = vmatpush1.bf16.msra.mxu0 %v7945
    %10602 = vmatprep.mubr.bf16.mxu0 %v214
    %10603 = vmatmul.mubr.bf16.gmra.mrb[0].mxu0 %v213
    %v10604 = vpop.f32.mrb[0].mxu0
    %v10605 = vadd.f32 %v10564, %v10604
    %v10606 = vpop.f32.mrb[0].mxu0
    %v10607 = vadd.f32 %v10566, %v10606
    %v10608 = vpop.f32.mrb[0].mxu0
    %v10609 = vpop.f32.mrb[0].mxu0
    %10610 = vdwg.mxu0
    %10611 = vmatprep.subr.bf16.mxu0 %v7956
    %10612 = vmatpush1.bf16.msra.mxu0 %v7955
    %10613 = vmatprep.subr.bf16.mxu0 %v7966
    %10614 = vmatpush1.bf16.msra.mxu0 %v7965
    %10615 = vmatprep.subr.bf16.mxu0 %v7976
    %10616 = vmatpush1.bf16.msra.mxu0 %v7975
    %10617 = vmatprep.subr.bf16.mxu0 %v7986
    %10618 = vmatpush1.bf16.msra.mxu0 %v7985
    %10619 = vmatprep.subr.bf16.mxu0 %v7996
    %10620 = vmatpush1.bf16.msra.mxu0 %v7995
    %10621 = vmatprep.subr.bf16.mxu0 %v8006
    %10622 = vmatpush1.bf16.msra.mxu0 %v8005
    %10623 = vmatprep.subr.bf16.mxu0 %v8016
    %10624 = vmatpush1.bf16.msra.mxu0 %v8015
    %10625 = vmatprep.subr.bf16.mxu0 %v8026
    %10626 = vmatpush1.bf16.msra.mxu0 %v8025
    %10627 = vmatprep.subr.bf16.mxu0 %v8036
    %10628 = vmatpush1.bf16.msra.mxu0 %v8035
    %10629 = vmatprep.subr.bf16.mxu0 %v8046
    %10630 = vmatpush1.bf16.msra.mxu0 %v8045
    %10631 = vmatprep.subr.bf16.mxu0 %v8056
    %10632 = vmatpush1.bf16.msra.mxu0 %v8055
    %10633 = vmatprep.subr.bf16.mxu0 %v8066
    %10634 = vmatpush1.bf16.msra.mxu0 %v8065
    %10635 = vmatprep.subr.bf16.mxu0 %v8076
    %10636 = vmatpush1.bf16.msra.mxu0 %v8075
    %10637 = vmatprep.subr.bf16.mxu0 %v8086
    %10638 = vmatpush1.bf16.msra.mxu0 %v8085
    %10639 = vmatprep.subr.bf16.mxu0 %v8096
    %10640 = vmatpush1.bf16.msra.mxu0 %v8095
    %10641 = vmatprep.subr.bf16.mxu0 %v8106
    %10642 = vmatpush1.bf16.msra.mxu0 %v8105
    %10643 = vmatprep.mubr.bf16.mxu0 %v216
    %10644 = vmatmul.mubr.bf16.gmra.mrb[0].mxu0 %v215
    %v10645 = vpop.f32.mrb[0].mxu0
    %v10646 = vadd.f32 %v10605, %v10645
    %v10647 = vpop.f32.mrb[0].mxu0
    %v10648 = vadd.f32 %v10607, %v10647
    %v10649 = vpop.f32.mrb[0].mxu0
    %v10650 = vpop.f32.mrb[0].mxu0
    %10651 = vdwg.mxu0
    %10652 = vmatprep.subr.bf16.mxu0 %v8116
    %10653 = vmatpush1.bf16.msra.mxu0 %v8115
    %10654 = vmatprep.subr.bf16.mxu0 %v8126
    %10655 = vmatpush1.bf16.msra.mxu0 %v8125
    %10656 = vmatprep.subr.bf16.mxu0 %v8136
    %10657 = vmatpush1.bf16.msra.mxu0 %v8135
    %10658 = vmatprep.subr.bf16.mxu0 %v8146
    %10659 = vmatpush1.bf16.msra.mxu0 %v8145
    %10660 = vmatprep.subr.bf16.mxu0 %v8156
    %10661 = vmatpush1.bf16.msra.mxu0 %v8155
    %10662 = vmatprep.subr.bf16.mxu0 %v8166
    %10663 = vmatpush1.bf16.msra.mxu0 %v8165
    %10664 = vmatprep.subr.bf16.mxu0 %v8176
    %10665 = vmatpush1.bf16.msra.mxu0 %v8175
    %10666 = vmatprep.subr.bf16.mxu0 %v8186
    %10667 = vmatpush1.bf16.msra.mxu0 %v8185
    %10668 = vmatprep.subr.bf16.mxu0 %v8196
    %10669 = vmatpush1.bf16.msra.mxu0 %v8195
    %10670 = vmatprep.subr.bf16.mxu0 %v8206
    %10671 = vmatpush1.bf16.msra.mxu0 %v8205
    %10672 = vmatprep.subr.bf16.mxu0 %v8216
    %10673 = vmatpush1.bf16.msra.mxu0 %v8215
    %10674 = vmatprep.subr.bf16.mxu0 %v8226
    %10675 = vmatpush1.bf16.msra.mxu0 %v8225
    %10676 = vmatprep.subr.bf16.mxu0 %v8236
    %10677 = vmatpush1.bf16.msra.mxu0 %v8235
    %10678 = vmatprep.subr.bf16.mxu0 %v8246
    %10679 = vmatpush1.bf16.msra.mxu0 %v8245
    %10680 = vmatprep.subr.bf16.mxu0 %v8256
    %10681 = vmatpush1.bf16.msra.mxu0 %v8255
    %10682 = vmatprep.subr.bf16.mxu0 %v8266
    %10683 = vmatpush1.bf16.msra.mxu0 %v8265
    %10684 = vmatprep.mubr.bf16.mxu0 %v218
    %10685 = vmatmul.mubr.bf16.gmra.mrb[0].mxu0 %v217
    %v10686 = vpop.f32.mrb[0].mxu0
    %v10687 = vadd.f32 %v10646, %v10686
    %v10688 = vpop.f32.mrb[0].mxu0
    %v10689 = vadd.f32 %v10648, %v10688
    %v10690 = vpop.f32.mrb[0].mxu0
    %v10691 = vpop.f32.mrb[0].mxu0
    %10692 = vdwg.mxu0
    %10693 = vmatprep.subr.bf16.mxu0 %v6678
    %10694 = vmatpush1.bf16.msra.mxu0 %v6677
    %10695 = vmatprep.subr.bf16.mxu0 %v6688
    %10696 = vmatpush1.bf16.msra.mxu0 %v6687
    %10697 = vmatprep.subr.bf16.mxu0 %v6698
    %10698 = vmatpush1.bf16.msra.mxu0 %v6697
    %10699 = vmatprep.subr.bf16.mxu0 %v6708
    %10700 = vmatpush1.bf16.msra.mxu0 %v6707
    %10701 = vmatprep.subr.bf16.mxu0 %v6718
    %10702 = vmatpush1.bf16.msra.mxu0 %v6717
    %10703 = vmatprep.subr.bf16.mxu0 %v6728
    %10704 = vmatpush1.bf16.msra.mxu0 %v6727
    %10705 = vmatprep.subr.bf16.mxu0 %v6738
    %10706 = vmatpush1.bf16.msra.mxu0 %v6737
    %10707 = vmatprep.subr.bf16.mxu0 %v6748
    %10708 = vmatpush1.bf16.msra.mxu0 %v6747
    %10709 = vmatprep.subr.bf16.mxu0 %v6758
    %10710 = vmatpush1.bf16.msra.mxu0 %v6757
    %10711 = vmatprep.subr.bf16.mxu0 %v6768
    %10712 = vmatpush1.bf16.msra.mxu0 %v6767
    %10713 = vmatprep.subr.bf16.mxu0 %v6778
    %10714 = vmatpush1.bf16.msra.mxu0 %v6777
    %10715 = vmatprep.subr.bf16.mxu0 %v6788
    %10716 = vmatpush1.bf16.msra.mxu0 %v6787
    %10717 = vmatprep.subr.bf16.mxu0 %v6798
    %10718 = vmatpush1.bf16.msra.mxu0 %v6797
    %10719 = vmatprep.subr.bf16.mxu0 %v6808
    %10720 = vmatpush1.bf16.msra.mxu0 %v6807
    %10721 = vmatprep.subr.bf16.mxu0 %v6818
    %10722 = vmatpush1.bf16.msra.mxu0 %v6817
    %10723 = vmatprep.subr.bf16.mxu0 %v6828
    %10724 = vmatpush1.bf16.msra.mxu0 %v6827
    %10725 = vmatprep.mubr.bf16.mxu0 %v200
    %10726 = vmatmul.mubr.bf16.gmra.mrb[0].mxu0 %v199
    %v10727 = vpop.f32.mrb[0].mxu0
    %v10728 = vadd.f32 %v1842, %v10727
    %v10729 = vpop.f32.mrb[0].mxu0
    %v10730 = vadd.f32 %v1846, %v10729
    %v10731 = vpop.f32.mrb[0].mxu0
    %v10732 = vpop.f32.mrb[0].mxu0
    %10733 = vdwg.mxu0
    %10734 = vmatprep.subr.bf16.mxu0 %v6838
    %10735 = vmatpush1.bf16.msra.mxu0 %v6837
    %10736 = vmatprep.subr.bf16.mxu0 %v6848
    %10737 = vmatpush1.bf16.msra.mxu0 %v6847
    %10738 = vmatprep.subr.bf16.mxu0 %v6858
    %10739 = vmatpush1.bf16.msra.mxu0 %v6857
    %10740 = vmatprep.subr.bf16.mxu0 %v6868
    %10741 = vmatpush1.bf16.msra.mxu0 %v6867
    %10742 = vmatprep.subr.bf16.mxu0 %v6878
    %10743 = vmatpush1.bf16.msra.mxu0 %v6877
    %10744 = vmatprep.subr.bf16.mxu0 %v6888
    %10745 = vmatpush1.bf16.msra.mxu0 %v6887
    %10746 = vmatprep.subr.bf16.mxu0 %v6898
    %10747 = vmatpush1.bf16.msra.mxu0 %v6897
    %10748 = vmatprep.subr.bf16.mxu0 %v6908
    %10749 = vmatpush1.bf16.msra.mxu0 %v6907
    %10750 = vmatprep.subr.bf16.mxu0 %v6918
    %10751 = vmatpush1.bf16.msra.mxu0 %v6917
    %10752 = vmatprep.subr.bf16.mxu0 %v6928
    %10753 = vmatpush1.bf16.msra.mxu0 %v6927
    %10754 = vmatprep.subr.bf16.mxu0 %v6938
    %10755 = vmatpush1.bf16.msra.mxu0 %v6937
    %10756 = vmatprep.subr.bf16.mxu0 %v6948
    %10757 = vmatpush1.bf16.msra.mxu0 %v6947
    %10758 = vmatprep.subr.bf16.mxu0 %v6958
    %10759 = vmatpush1.bf16.msra.mxu0 %v6957
    %10760 = vmatprep.subr.bf16.mxu0 %v6968
    %10761 = vmatpush1.bf16.msra.mxu0 %v6967
    %10762 = vmatprep.subr.bf16.mxu0 %v6978
    %10763 = vmatpush1.bf16.msra.mxu0 %v6977
    %10764 = vmatprep.subr.bf16.mxu0 %v6988
    %10765 = vmatpush1.bf16.msra.mxu0 %v6987
    %10766 = vmatprep.mubr.bf16.mxu0 %v202
    %10767 = vmatmul.mubr.bf16.gmra.mrb[0].mxu0 %v201
    %v10768 = vpop.f32.mrb[0].mxu0
    %v10769 = vadd.f32 %v10728, %v10768
    %v10770 = vpop.f32.mrb[0].mxu0
    %v10771 = vadd.f32 %v10730, %v10770
    %v10772 = vpop.f32.mrb[0].mxu0
    %v10773 = vpop.f32.mrb[0].mxu0
    %10774 = vdwg.mxu0
    %10775 = vmatprep.subr.bf16.mxu0 %v6998
    %10776 = vmatpush1.bf16.msra.mxu0 %v6997
    %10777 = vmatprep.subr.bf16.mxu0 %v7008
    %10778 = vmatpush1.bf16.msra.mxu0 %v7007
    %10779 = vmatprep.subr.bf16.mxu0 %v7018
    %10780 = vmatpush1.bf16.msra.mxu0 %v7017
    %10781 = vmatprep.subr.bf16.mxu0 %v7028
    %10782 = vmatpush1.bf16.msra.mxu0 %v7027
    %10783 = vmatprep.subr.bf16.mxu0 %v7038
    %10784 = vmatpush1.bf16.msra.mxu0 %v7037
    %10785 = vmatprep.subr.bf16.mxu0 %v7048
    %10786 = vmatpush1.bf16.msra.mxu0 %v7047
    %10787 = vmatprep.subr.bf16.mxu0 %v7058
    %10788 = vmatpush1.bf16.msra.mxu0 %v7057
    %10789 = vmatprep.subr.bf16.mxu0 %v7068
    %10790 = vmatpush1.bf16.msra.mxu0 %v7067
    %10791 = vmatprep.subr.bf16.mxu0 %v7078
    %10792 = vmatpush1.bf16.msra.mxu0 %v7077
    %10793 = vmatprep.subr.bf16.mxu0 %v7088
    %10794 = vmatpush1.bf16.msra.mxu0 %v7087
    %10795 = vmatprep.subr.bf16.mxu0 %v7098
    %10796 = vmatpush1.bf16.msra.mxu0 %v7097
    %10797 = vmatprep.subr.bf16.mxu0 %v7108
    %10798 = vmatpush1.bf16.msra.mxu0 %v7107
    %10799 = vmatprep.subr.bf16.mxu0 %v7118
    %10800 = vmatpush1.bf16.msra.mxu0 %v7117
    %10801 = vmatprep.subr.bf16.mxu0 %v7128
    %10802 = vmatpush1.bf16.msra.mxu0 %v7127
    %10803 = vmatprep.subr.bf16.mxu0 %v7138
    %10804 = vmatpush1.bf16.msra.mxu0 %v7137
    %10805 = vmatprep.subr.bf16.mxu0 %v7148
    %10806 = vmatpush1.bf16.msra.mxu0 %v7147
    %10807 = vmatprep.mubr.bf16.mxu0 %v204
    %10808 = vmatmul.mubr.bf16.gmra.mrb[0].mxu0 %v203
    %v10809 = vpop.f32.mrb[0].mxu0
    %v10810 = vadd.f32 %v10769, %v10809
    %v10811 = vpop.f32.mrb[0].mxu0
    %v10812 = vadd.f32 %v10771, %v10811
    %v10813 = vpop.f32.mrb[0].mxu0
    %v10814 = vpop.f32.mrb[0].mxu0
    %10815 = vdwg.mxu0
    %10816 = vmatprep.subr.bf16.mxu0 %v7158
    %10817 = vmatpush1.bf16.msra.mxu0 %v7157
    %10818 = vmatprep.subr.bf16.mxu0 %v7168
    %10819 = vmatpush1.bf16.msra.mxu0 %v7167
    %10820 = vmatprep.subr.bf16.mxu0 %v7178
    %10821 = vmatpush1.bf16.msra.mxu0 %v7177
    %10822 = vmatprep.subr.bf16.mxu0 %v7188
    %10823 = vmatpush1.bf16.msra.mxu0 %v7187
    %10824 = vmatprep.subr.bf16.mxu0 %v7198
    %10825 = vmatpush1.bf16.msra.mxu0 %v7197
    %10826 = vmatprep.subr.bf16.mxu0 %v7208
    %10827 = vmatpush1.bf16.msra.mxu0 %v7207
    %10828 = vmatprep.subr.bf16.mxu0 %v7218
    %10829 = vmatpush1.bf16.msra.mxu0 %v7217
    %10830 = vmatprep.subr.bf16.mxu0 %v7228
    %10831 = vmatpush1.bf16.msra.mxu0 %v7227
    %10832 = vmatprep.subr.bf16.mxu0 %v7238
    %10833 = vmatpush1.bf16.msra.mxu0 %v7237
    %10834 = vmatprep.subr.bf16.mxu0 %v7248
    %10835 = vmatpush1.bf16.msra.mxu0 %v7247
    %10836 = vmatprep.subr.bf16.mxu0 %v7258
    %10837 = vmatpush1.bf16.msra.mxu0 %v7257
    %10838 = vmatprep.subr.bf16.mxu0 %v7268
    %10839 = vmatpush1.bf16.msra.mxu0 %v7267
    %10840 = vmatprep.subr.bf16.mxu0 %v7278
    %10841 = vmatpush1.bf16.msra.mxu0 %v7277
    %10842 = vmatprep.subr.bf16.mxu0 %v7288
    %10843 = vmatpush1.bf16.msra.mxu0 %v7287
    %10844 = vmatprep.subr.bf16.mxu0 %v7298
    %10845 = vmatpush1.bf16.msra.mxu0 %v7297
    %10846 = vmatprep.subr.bf16.mxu0 %v7308
    %10847 = vmatpush1.bf16.msra.mxu0 %v7307
    %10848 = vmatprep.mubr.bf16.mxu0 %v206
    %10849 = vmatmul.mubr.bf16.gmra.mrb[0].mxu0 %v205
    %v10850 = vpop.f32.mrb[0].mxu0
    %v10851 = vadd.f32 %v10810, %v10850
    %v10852 = vpop.f32.mrb[0].mxu0
    %v10853 = vadd.f32 %v10812, %v10852
    %v10854 = vpop.f32.mrb[0].mxu0
    %v10855 = vpop.f32.mrb[0].mxu0
    %10856 = vdwg.mxu0
    %10857 = vmatprep.subr.bf16.mxu0 %v7318
    %10858 = vmatpush1.bf16.msra.mxu0 %v7317
    %10859 = vmatprep.subr.bf16.mxu0 %v7328
    %10860 = vmatpush1.bf16.msra.mxu0 %v7327
    %10861 = vmatprep.subr.bf16.mxu0 %v7338
    %10862 = vmatpush1.bf16.msra.mxu0 %v7337
    %10863 = vmatprep.subr.bf16.mxu0 %v7348
    %10864 = vmatpush1.bf16.msra.mxu0 %v7347
    %10865 = vmatprep.subr.bf16.mxu0 %v7358
    %10866 = vmatpush1.bf16.msra.mxu0 %v7357
    %10867 = vmatprep.subr.bf16.mxu0 %v7368
    %10868 = vmatpush1.bf16.msra.mxu0 %v7367
    %10869 = vmatprep.subr.bf16.mxu0 %v7378
    %10870 = vmatpush1.bf16.msra.mxu0 %v7377
    %10871 = vmatprep.subr.bf16.mxu0 %v7388
    %10872 = vmatpush1.bf16.msra.mxu0 %v7387
    %10873 = vmatprep.subr.bf16.mxu0 %v7398
    %10874 = vmatpush1.bf16.msra.mxu0 %v7397
    %10875 = vmatprep.subr.bf16.mxu0 %v7408
    %10876 = vmatpush1.bf16.msra.mxu0 %v7407
    %10877 = vmatprep.subr.bf16.mxu0 %v7418
    %10878 = vmatpush1.bf16.msra.mxu0 %v7417
    %10879 = vmatprep.subr.bf16.mxu0 %v7428
    %10880 = vmatpush1.bf16.msra.mxu0 %v7427
    %10881 = vmatprep.subr.bf16.mxu0 %v7438
    %10882 = vmatpush1.bf16.msra.mxu0 %v7437
    %10883 = vmatprep.subr.bf16.mxu0 %v7448
    %10884 = vmatpush1.bf16.msra.mxu0 %v7447
    %10885 = vmatprep.subr.bf16.mxu0 %v7458
    %10886 = vmatpush1.bf16.msra.mxu0 %v7457
    %10887 = vmatprep.subr.bf16.mxu0 %v7468
    %10888 = vmatpush1.bf16.msra.mxu0 %v7467
    %10889 = vmatprep.mubr.bf16.mxu0 %v208
    %10890 = vmatmul.mubr.bf16.gmra.mrb[0].mxu0 %v207
    %v10891 = vpop.f32.mrb[0].mxu0
    %v10892 = vadd.f32 %v10851, %v10891
    %v10893 = vpop.f32.mrb[0].mxu0
    %v10894 = vadd.f32 %v10853, %v10893
    %v10895 = vpop.f32.mrb[0].mxu0
    %v10896 = vpop.f32.mrb[0].mxu0
    %10897 = vdwg.mxu0
    %10898 = vmatprep.subr.bf16.mxu0 %v7478
    %10899 = vmatpush1.bf16.msra.mxu0 %v7477
    %10900 = vmatprep.subr.bf16.mxu0 %v7488
    %10901 = vmatpush1.bf16.msra.mxu0 %v7487
    %10902 = vmatprep.subr.bf16.mxu0 %v7498
    %10903 = vmatpush1.bf16.msra.mxu0 %v7497
    %10904 = vmatprep.subr.bf16.mxu0 %v7508
    %10905 = vmatpush1.bf16.msra.mxu0 %v7507
    %10906 = vmatprep.subr.bf16.mxu0 %v7518
    %10907 = vmatpush1.bf16.msra.mxu0 %v7517
    %10908 = vmatprep.subr.bf16.mxu0 %v7528
    %10909 = vmatpush1.bf16.msra.mxu0 %v7527
    %10910 = vmatprep.subr.bf16.mxu0 %v7538
    %10911 = vmatpush1.bf16.msra.mxu0 %v7537
    %10912 = vmatprep.subr.bf16.mxu0 %v7548
    %10913 = vmatpush1.bf16.msra.mxu0 %v7547
    %10914 = vmatprep.subr.bf16.mxu0 %v7558
    %10915 = vmatpush1.bf16.msra.mxu0 %v7557
    %10916 = vmatprep.subr.bf16.mxu0 %v7568
    %10917 = vmatpush1.bf16.msra.mxu0 %v7567
    %10918 = vmatprep.subr.bf16.mxu0 %v7578
    %10919 = vmatpush1.bf16.msra.mxu0 %v7577
    %10920 = vmatprep.subr.bf16.mxu0 %v7588
    %10921 = vmatpush1.bf16.msra.mxu0 %v7587
    %10922 = vmatprep.subr.bf16.mxu0 %v7598
    %10923 = vmatpush1.bf16.msra.mxu0 %v7597
    %10924 = vmatprep.subr.bf16.mxu0 %v7608
    %10925 = vmatpush1.bf16.msra.mxu0 %v7607
    %10926 = vmatprep.subr.bf16.mxu0 %v7618
    %10927 = vmatpush1.bf16.msra.mxu0 %v7617
    %10928 = vmatprep.subr.bf16.mxu0 %v7628
    %10929 = vmatpush1.bf16.msra.mxu0 %v7627
    %10930 = vmatprep.mubr.bf16.mxu0 %v210
    %10931 = vmatmul.mubr.bf16.gmra.mrb[0].mxu0 %v209
    %v10932 = vpop.f32.mrb[0].mxu0
    %v10933 = vadd.f32 %v10892, %v10932
    %v10934 = vpop.f32.mrb[0].mxu0
    %v10935 = vadd.f32 %v10894, %v10934
    %v10936 = vpop.f32.mrb[0].mxu0
    %v10937 = vpop.f32.mrb[0].mxu0
    %10938 = vdwg.mxu0
    %10939 = vmatprep.subr.bf16.mxu0 %v7638
    %10940 = vmatpush1.bf16.msra.mxu0 %v7637
    %10941 = vmatprep.subr.bf16.mxu0 %v7648
    %10942 = vmatpush1.bf16.msra.mxu0 %v7647
    %10943 = vmatprep.subr.bf16.mxu0 %v7658
    %10944 = vmatpush1.bf16.msra.mxu0 %v7657
    %10945 = vmatprep.subr.bf16.mxu0 %v7668
    %10946 = vmatpush1.bf16.msra.mxu0 %v7667
    %10947 = vmatprep.subr.bf16.mxu0 %v7678
    %10948 = vmatpush1.bf16.msra.mxu0 %v7677
    %10949 = vmatprep.subr.bf16.mxu0 %v7688
    %10950 = vmatpush1.bf16.msra.mxu0 %v7687
    %10951 = vmatprep.subr.bf16.mxu0 %v7698
    %10952 = vmatpush1.bf16.msra.mxu0 %v7697
    %10953 = vmatprep.subr.bf16.mxu0 %v7708
    %10954 = vmatpush1.bf16.msra.mxu0 %v7707
    %10955 = vmatprep.subr.bf16.mxu0 %v7718
    %10956 = vmatpush1.bf16.msra.mxu0 %v7717
    %10957 = vmatprep.subr.bf16.mxu0 %v7728
    %10958 = vmatpush1.bf16.msra.mxu0 %v7727
    %10959 = vmatprep.subr.bf16.mxu0 %v7738
    %10960 = vmatpush1.bf16.msra.mxu0 %v7737
    %10961 = vmatprep.subr.bf16.mxu0 %v7748
    %10962 = vmatpush1.bf16.msra.mxu0 %v7747
    %10963 = vmatprep.subr.bf16.mxu0 %v7758
    %10964 = vmatpush1.bf16.msra.mxu0 %v7757
    %10965 = vmatprep.subr.bf16.mxu0 %v7768
    %10966 = vmatpush1.bf16.msra.mxu0 %v7767
    %10967 = vmatprep.subr.bf16.mxu0 %v7778
    %10968 = vmatpush1.bf16.msra.mxu0 %v7777
    %10969 = vmatprep.subr.bf16.mxu0 %v7788
    %10970 = vmatpush1.bf16.msra.mxu0 %v7787
    %10971 = vmatprep.mubr.bf16.mxu0 %v212
    %10972 = vmatmul.mubr.bf16.gmra.mrb[0].mxu0 %v211
    %v10973 = vpop.f32.mrb[0].mxu0
    %v10974 = vadd.f32 %v10933, %v10973
    %v10975 = vpop.f32.mrb[0].mxu0
    %v10976 = vadd.f32 %v10935, %v10975
    %v10977 = vpop.f32.mrb[0].mxu0
    %v10978 = vpop.f32.mrb[0].mxu0
    %10979 = vdwg.mxu0
    %10980 = vmatprep.subr.bf16.mxu0 %v7798
    %10981 = vmatpush1.bf16.msra.mxu0 %v7797
    %10982 = vmatprep.subr.bf16.mxu0 %v7808
    %10983 = vmatpush1.bf16.msra.mxu0 %v7807
    %10984 = vmatprep.subr.bf16.mxu0 %v7818
    %10985 = vmatpush1.bf16.msra.mxu0 %v7817
    %10986 = vmatprep.subr.bf16.mxu0 %v7828
    %10987 = vmatpush1.bf16.msra.mxu0 %v7827
    %10988 = vmatprep.subr.bf16.mxu0 %v7838
    %10989 = vmatpush1.bf16.msra.mxu0 %v7837
    %10990 = vmatprep.subr.bf16.mxu0 %v7848
    %10991 = vmatpush1.bf16.msra.mxu0 %v7847
    %10992 = vmatprep.subr.bf16.mxu0 %v7858
    %10993 = vmatpush1.bf16.msra.mxu0 %v7857
    %10994 = vmatprep.subr.bf16.mxu0 %v7868
    %10995 = vmatpush1.bf16.msra.mxu0 %v7867
    %10996 = vmatprep.subr.bf16.mxu0 %v7878
    %10997 = vmatpush1.bf16.msra.mxu0 %v7877
    %10998 = vmatprep.subr.bf16.mxu0 %v7888
    %10999 = vmatpush1.bf16.msra.mxu0 %v7887
    %11000 = vmatprep.subr.bf16.mxu0 %v7898
    %11001 = vmatpush1.bf16.msra.mxu0 %v7897
    %11002 = vmatprep.subr.bf16.mxu0 %v7908
    %11003 = vmatpush1.bf16.msra.mxu0 %v7907
    %11004 = vmatprep.subr.bf16.mxu0 %v7918
    %11005 = vmatpush1.bf16.msra.mxu0 %v7917
    %11006 = vmatprep.subr.bf16.mxu0 %v7928
    %11007 = vmatpush1.bf16.msra.mxu0 %v7927
    %11008 = vmatprep.subr.bf16.mxu0 %v7938
    %11009 = vmatpush1.bf16.msra.mxu0 %v7937
    %11010 = vmatprep.subr.bf16.mxu0 %v7948
    %11011 = vmatpush1.bf16.msra.mxu0 %v7947
    %11012 = vmatprep.mubr.bf16.mxu0 %v214
    %11013 = vmatmul.mubr.bf16.gmra.mrb[0].mxu0 %v213
    %v11014 = vpop.f32.mrb[0].mxu0
    %v11015 = vadd.f32 %v10974, %v11014
    %v11016 = vpop.f32.mrb[0].mxu0
    %v11017 = vadd.f32 %v10976, %v11016
    %v11018 = vpop.f32.mrb[0].mxu0
    %v11019 = vpop.f32.mrb[0].mxu0
    %11020 = vdwg.mxu0
    %11021 = vmatprep.subr.bf16.mxu0 %v7958
    %11022 = vmatpush1.bf16.msra.mxu0 %v7957
    %11023 = vmatprep.subr.bf16.mxu0 %v7968
    %11024 = vmatpush1.bf16.msra.mxu0 %v7967
    %11025 = vmatprep.subr.bf16.mxu0 %v7978
    %11026 = vmatpush1.bf16.msra.mxu0 %v7977
    %11027 = vmatprep.subr.bf16.mxu0 %v7988
    %11028 = vmatpush1.bf16.msra.mxu0 %v7987
    %11029 = vmatprep.subr.bf16.mxu0 %v7998
    %11030 = vmatpush1.bf16.msra.mxu0 %v7997
    %11031 = vmatprep.subr.bf16.mxu0 %v8008
    %11032 = vmatpush1.bf16.msra.mxu0 %v8007
    %11033 = vmatprep.subr.bf16.mxu0 %v8018
    %11034 = vmatpush1.bf16.msra.mxu0 %v8017
    %11035 = vmatprep.subr.bf16.mxu0 %v8028
    %11036 = vmatpush1.bf16.msra.mxu0 %v8027
    %11037 = vmatprep.subr.bf16.mxu0 %v8038
    %11038 = vmatpush1.bf16.msra.mxu0 %v8037
    %11039 = vmatprep.subr.bf16.mxu0 %v8048
    %11040 = vmatpush1.bf16.msra.mxu0 %v8047
    %11041 = vmatprep.subr.bf16.mxu0 %v8058
    %11042 = vmatpush1.bf16.msra.mxu0 %v8057
    %11043 = vmatprep.subr.bf16.mxu0 %v8068
    %11044 = vmatpush1.bf16.msra.mxu0 %v8067
    %11045 = vmatprep.subr.bf16.mxu0 %v8078
    %11046 = vmatpush1.bf16.msra.mxu0 %v8077
    %11047 = vmatprep.subr.bf16.mxu0 %v8088
    %11048 = vmatpush1.bf16.msra.mxu0 %v8087
    %11049 = vmatprep.subr.bf16.mxu0 %v8098
    %11050 = vmatpush1.bf16.msra.mxu0 %v8097
    %11051 = vmatprep.subr.bf16.mxu0 %v8108
    %11052 = vmatpush1.bf16.msra.mxu0 %v8107
    %11053 = vmatprep.mubr.bf16.mxu0 %v216
    %11054 = vmatmul.mubr.bf16.gmra.mrb[0].mxu0 %v215
    %v11055 = vpop.f32.mrb[0].mxu0
    %v11056 = vadd.f32 %v11015, %v11055
    %v11057 = vpop.f32.mrb[0].mxu0
    %v11058 = vadd.f32 %v11017, %v11057
    %v11059 = vpop.f32.mrb[0].mxu0
    %v11060 = vpop.f32.mrb[0].mxu0
    %11061 = vdwg.mxu0
    %11062 = vmatprep.subr.bf16.mxu0 %v8118
    %11063 = vmatpush1.bf16.msra.mxu0 %v8117
    %11064 = vmatprep.subr.bf16.mxu0 %v8128
    %11065 = vmatpush1.bf16.msra.mxu0 %v8127
    %11066 = vmatprep.subr.bf16.mxu0 %v8138
    %11067 = vmatpush1.bf16.msra.mxu0 %v8137
    %11068 = vmatprep.subr.bf16.mxu0 %v8148
    %11069 = vmatpush1.bf16.msra.mxu0 %v8147
    %11070 = vmatprep.subr.bf16.mxu0 %v8158
    %11071 = vmatpush1.bf16.msra.mxu0 %v8157
    %11072 = vmatprep.subr.bf16.mxu0 %v8168
    %11073 = vmatpush1.bf16.msra.mxu0 %v8167
    %11074 = vmatprep.subr.bf16.mxu0 %v8178
    %11075 = vmatpush1.bf16.msra.mxu0 %v8177
    %11076 = vmatprep.subr.bf16.mxu0 %v8188
    %11077 = vmatpush1.bf16.msra.mxu0 %v8187
    %11078 = vmatprep.subr.bf16.mxu0 %v8198
    %11079 = vmatpush1.bf16.msra.mxu0 %v8197
    %11080 = vmatprep.subr.bf16.mxu0 %v8208
    %11081 = vmatpush1.bf16.msra.mxu0 %v8207
    %11082 = vmatprep.subr.bf16.mxu0 %v8218
    %11083 = vmatpush1.bf16.msra.mxu0 %v8217
    %11084 = vmatprep.subr.bf16.mxu0 %v8228
    %11085 = vmatpush1.bf16.msra.mxu0 %v8227
    %11086 = vmatprep.subr.bf16.mxu0 %v8238
    %11087 = vmatpush1.bf16.msra.mxu0 %v8237
    %11088 = vmatprep.subr.bf16.mxu0 %v8248
    %11089 = vmatpush1.bf16.msra.mxu0 %v8247
    %11090 = vmatprep.subr.bf16.mxu0 %v8258
    %11091 = vmatpush1.bf16.msra.mxu0 %v8257
    %11092 = vmatprep.subr.bf16.mxu0 %v8268
    %11093 = vmatpush1.bf16.msra.mxu0 %v8267
    %11094 = vmatprep.mubr.bf16.mxu0 %v218
    %11095 = vmatmul.mubr.bf16.gmra.mrb[0].mxu0 %v217
    %v11096 = vpop.f32.mrb[0].mxu0
    %v11097 = vadd.f32 %v11056, %v11096
    %v11098 = vpop.f32.mrb[0].mxu0
    %v11099 = vadd.f32 %v11058, %v11098
    %v11100 = vpop.f32.mrb[0].mxu0
    %v11101 = vpop.f32.mrb[0].mxu0
    %11102 = vdwg.mxu0
    %11103 = vmatprep.subr.bf16.mxu0 %v6680
    %11104 = vmatpush1.bf16.msra.mxu0 %v6679
    %11105 = vmatprep.subr.bf16.mxu0 %v6690
    %11106 = vmatpush1.bf16.msra.mxu0 %v6689
    %11107 = vmatprep.subr.bf16.mxu0 %v6700
    %11108 = vmatpush1.bf16.msra.mxu0 %v6699
    %11109 = vmatprep.subr.bf16.mxu0 %v6710
    %11110 = vmatpush1.bf16.msra.mxu0 %v6709
    %11111 = vmatprep.subr.bf16.mxu0 %v6720
    %11112 = vmatpush1.bf16.msra.mxu0 %v6719
    %11113 = vmatprep.subr.bf16.mxu0 %v6730
    %11114 = vmatpush1.bf16.msra.mxu0 %v6729
    %11115 = vmatprep.subr.bf16.mxu0 %v6740
    %11116 = vmatpush1.bf16.msra.mxu0 %v6739
    %11117 = vmatprep.subr.bf16.mxu0 %v6750
    %11118 = vmatpush1.bf16.msra.mxu0 %v6749
    %11119 = vmatprep.subr.bf16.mxu0 %v6760
    %11120 = vmatpush1.bf16.msra.mxu0 %v6759
    %11121 = vmatprep.subr.bf16.mxu0 %v6770
    %11122 = vmatpush1.bf16.msra.mxu0 %v6769
    %11123 = vmatprep.subr.bf16.mxu0 %v6780
    %11124 = vmatpush1.bf16.msra.mxu0 %v6779
    %11125 = vmatprep.subr.bf16.mxu0 %v6790
    %11126 = vmatpush1.bf16.msra.mxu0 %v6789
    %11127 = vmatprep.subr.bf16.mxu0 %v6800
    %11128 = vmatpush1.bf16.msra.mxu0 %v6799
    %11129 = vmatprep.subr.bf16.mxu0 %v6810
    %11130 = vmatpush1.bf16.msra.mxu0 %v6809
    %11131 = vmatprep.subr.bf16.mxu0 %v6820
    %11132 = vmatpush1.bf16.msra.mxu0 %v6819
    %11133 = vmatprep.subr.bf16.mxu0 %v6830
    %11134 = vmatpush1.bf16.msra.mxu0 %v6829
    %11135 = vmatprep.mubr.bf16.mxu0 %v200
    %11136 = vmatmul.mubr.bf16.gmra.mrb[0].mxu0 %v199
    %v11137 = vpop.f32.mrb[0].mxu0
    %v11138 = vadd.f32 %v1850, %v11137
    %v11139 = vpop.f32.mrb[0].mxu0
    %v11140 = vadd.f32 %v1854, %v11139
    %v11141 = vpop.f32.mrb[0].mxu0
    %v11142 = vpop.f32.mrb[0].mxu0
    %11143 = vdwg.mxu0
    %11144 = vmatprep.subr.bf16.mxu0 %v6840
    %11145 = vmatpush1.bf16.msra.mxu0 %v6839
    %11146 = vmatprep.subr.bf16.mxu0 %v6850
    %11147 = vmatpush1.bf16.msra.mxu0 %v6849
    %11148 = vmatprep.subr.bf16.mxu0 %v6860
    %11149 = vmatpush1.bf16.msra.mxu0 %v6859
    %11150 = vmatprep.subr.bf16.mxu0 %v6870
    %11151 = vmatpush1.bf16.msra.mxu0 %v6869
    %11152 = vmatprep.subr.bf16.mxu0 %v6880
    %11153 = vmatpush1.bf16.msra.mxu0 %v6879
    %11154 = vmatprep.subr.bf16.mxu0 %v6890
    %11155 = vmatpush1.bf16.msra.mxu0 %v6889
    %11156 = vmatprep.subr.bf16.mxu0 %v6900
    %11157 = vmatpush1.bf16.msra.mxu0 %v6899
    %11158 = vmatprep.subr.bf16.mxu0 %v6910
    %11159 = vmatpush1.bf16.msra.mxu0 %v6909
    %11160 = vmatprep.subr.bf16.mxu0 %v6920
    %11161 = vmatpush1.bf16.msra.mxu0 %v6919
    %11162 = vmatprep.subr.bf16.mxu0 %v6930
    %11163 = vmatpush1.bf16.msra.mxu0 %v6929
    %11164 = vmatprep.subr.bf16.mxu0 %v6940
    %11165 = vmatpush1.bf16.msra.mxu0 %v6939
    %11166 = vmatprep.subr.bf16.mxu0 %v6950
    %11167 = vmatpush1.bf16.msra.mxu0 %v6949
    %11168 = vmatprep.subr.bf16.mxu0 %v6960
    %11169 = vmatpush1.bf16.msra.mxu0 %v6959
    %11170 = vmatprep.subr.bf16.mxu0 %v6970
    %11171 = vmatpush1.bf16.msra.mxu0 %v6969
    %11172 = vmatprep.subr.bf16.mxu0 %v6980
    %11173 = vmatpush1.bf16.msra.mxu0 %v6979
    %11174 = vmatprep.subr.bf16.mxu0 %v6990
    %11175 = vmatpush1.bf16.msra.mxu0 %v6989
    %11176 = vmatprep.mubr.bf16.mxu0 %v202
    %11177 = vmatmul.mubr.bf16.gmra.mrb[0].mxu0 %v201
    %v11178 = vpop.f32.mrb[0].mxu0
    %v11179 = vadd.f32 %v11138, %v11178
    %v11180 = vpop.f32.mrb[0].mxu0
    %v11181 = vadd.f32 %v11140, %v11180
    %v11182 = vpop.f32.mrb[0].mxu0
    %v11183 = vpop.f32.mrb[0].mxu0
    %11184 = vdwg.mxu0
    %11185 = vmatprep.subr.bf16.mxu0 %v7000
    %11186 = vmatpush1.bf16.msra.mxu0 %v6999
    %11187 = vmatprep.subr.bf16.mxu0 %v7010
    %11188 = vmatpush1.bf16.msra.mxu0 %v7009
    %11189 = vmatprep.subr.bf16.mxu0 %v7020
    %11190 = vmatpush1.bf16.msra.mxu0 %v7019
    %11191 = vmatprep.subr.bf16.mxu0 %v7030
    %11192 = vmatpush1.bf16.msra.mxu0 %v7029
    %11193 = vmatprep.subr.bf16.mxu0 %v7040
    %11194 = vmatpush1.bf16.msra.mxu0 %v7039
    %11195 = vmatprep.subr.bf16.mxu0 %v7050
    %11196 = vmatpush1.bf16.msra.mxu0 %v7049
    %11197 = vmatprep.subr.bf16.mxu0 %v7060
    %11198 = vmatpush1.bf16.msra.mxu0 %v7059
    %11199 = vmatprep.subr.bf16.mxu0 %v7070
    %11200 = vmatpush1.bf16.msra.mxu0 %v7069
    %11201 = vmatprep.subr.bf16.mxu0 %v7080
    %11202 = vmatpush1.bf16.msra.mxu0 %v7079
    %11203 = vmatprep.subr.bf16.mxu0 %v7090
    %11204 = vmatpush1.bf16.msra.mxu0 %v7089
    %11205 = vmatprep.subr.bf16.mxu0 %v7100
    %11206 = vmatpush1.bf16.msra.mxu0 %v7099
    %11207 = vmatprep.subr.bf16.mxu0 %v7110
    %11208 = vmatpush1.bf16.msra.mxu0 %v7109
    %11209 = vmatprep.subr.bf16.mxu0 %v7120
    %11210 = vmatpush1.bf16.msra.mxu0 %v7119
    %11211 = vmatprep.subr.bf16.mxu0 %v7130
    %11212 = vmatpush1.bf16.msra.mxu0 %v7129
    %11213 = vmatprep.subr.bf16.mxu0 %v7140
    %11214 = vmatpush1.bf16.msra.mxu0 %v7139
    %11215 = vmatprep.subr.bf16.mxu0 %v7150
    %11216 = vmatpush1.bf16.msra.mxu0 %v7149
    %11217 = vmatprep.mubr.bf16.mxu0 %v204
    %11218 = vmatmul.mubr.bf16.gmra.mrb[0].mxu0 %v203
    %v11219 = vpop.f32.mrb[0].mxu0
    %v11220 = vadd.f32 %v11179, %v11219
    %v11221 = vpop.f32.mrb[0].mxu0
    %v11222 = vadd.f32 %v11181, %v11221
    %v11223 = vpop.f32.mrb[0].mxu0
    %v11224 = vpop.f32.mrb[0].mxu0
    %11225 = vdwg.mxu0
    %11226 = vmatprep.subr.bf16.mxu0 %v7160
    %11227 = vmatpush1.bf16.msra.mxu0 %v7159
    %11228 = vmatprep.subr.bf16.mxu0 %v7170
    %11229 = vmatpush1.bf16.msra.mxu0 %v7169
    %11230 = vmatprep.subr.bf16.mxu0 %v7180
    %11231 = vmatpush1.bf16.msra.mxu0 %v7179
    %11232 = vmatprep.subr.bf16.mxu0 %v7190
    %11233 = vmatpush1.bf16.msra.mxu0 %v7189
    %11234 = vmatprep.subr.bf16.mxu0 %v7200
    %11235 = vmatpush1.bf16.msra.mxu0 %v7199
    %11236 = vmatprep.subr.bf16.mxu0 %v7210
    %11237 = vmatpush1.bf16.msra.mxu0 %v7209
    %11238 = vmatprep.subr.bf16.mxu0 %v7220
    %11239 = vmatpush1.bf16.msra.mxu0 %v7219
    %11240 = vmatprep.subr.bf16.mxu0 %v7230
    %11241 = vmatpush1.bf16.msra.mxu0 %v7229
    %11242 = vmatprep.subr.bf16.mxu0 %v7240
    %11243 = vmatpush1.bf16.msra.mxu0 %v7239
    %11244 = vmatprep.subr.bf16.mxu0 %v7250
    %11245 = vmatpush1.bf16.msra.mxu0 %v7249
    %11246 = vmatprep.subr.bf16.mxu0 %v7260
    %11247 = vmatpush1.bf16.msra.mxu0 %v7259
    %11248 = vmatprep.subr.bf16.mxu0 %v7270
    %11249 = vmatpush1.bf16.msra.mxu0 %v7269
    %11250 = vmatprep.subr.bf16.mxu0 %v7280
    %11251 = vmatpush1.bf16.msra.mxu0 %v7279
    %11252 = vmatprep.subr.bf16.mxu0 %v7290
    %11253 = vmatpush1.bf16.msra.mxu0 %v7289
    %11254 = vmatprep.subr.bf16.mxu0 %v7300
    %11255 = vmatpush1.bf16.msra.mxu0 %v7299
    %11256 = vmatprep.subr.bf16.mxu0 %v7310
    %11257 = vmatpush1.bf16.msra.mxu0 %v7309
    %11258 = vmatprep.mubr.bf16.mxu0 %v206
    %11259 = vmatmul.mubr.bf16.gmra.mrb[0].mxu0 %v205
    %v11260 = vpop.f32.mrb[0].mxu0
    %v11261 = vadd.f32 %v11220, %v11260
    %v11262 = vpop.f32.mrb[0].mxu0
    %v11263 = vadd.f32 %v11222, %v11262
    %v11264 = vpop.f32.mrb[0].mxu0
    %v11265 = vpop.f32.mrb[0].mxu0
    %11266 = vdwg.mxu0
    %11267 = vmatprep.subr.bf16.mxu0 %v7320
    %11268 = vmatpush1.bf16.msra.mxu0 %v7319
    %11269 = vmatprep.subr.bf16.mxu0 %v7330
    %11270 = vmatpush1.bf16.msra.mxu0 %v7329
    %11271 = vmatprep.subr.bf16.mxu0 %v7340
    %11272 = vmatpush1.bf16.msra.mxu0 %v7339
    %11273 = vmatprep.subr.bf16.mxu0 %v7350
    %11274 = vmatpush1.bf16.msra.mxu0 %v7349
    %11275 = vmatprep.subr.bf16.mxu0 %v7360
    %11276 = vmatpush1.bf16.msra.mxu0 %v7359
    %11277 = vmatprep.subr.bf16.mxu0 %v7370
    %11278 = vmatpush1.bf16.msra.mxu0 %v7369
    %11279 = vmatprep.subr.bf16.mxu0 %v7380
    %11280 = vmatpush1.bf16.msra.mxu0 %v7379
    %11281 = vmatprep.subr.bf16.mxu0 %v7390
    %11282 = vmatpush1.bf16.msra.mxu0 %v7389
    %11283 = vmatprep.subr.bf16.mxu0 %v7400
    %11284 = vmatpush1.bf16.msra.mxu0 %v7399
    %11285 = vmatprep.subr.bf16.mxu0 %v7410
    %11286 = vmatpush1.bf16.msra.mxu0 %v7409
    %11287 = vmatprep.subr.bf16.mxu0 %v7420
    %11288 = vmatpush1.bf16.msra.mxu0 %v7419
    %11289 = vmatprep.subr.bf16.mxu0 %v7430
    %11290 = vmatpush1.bf16.msra.mxu0 %v7429
    %11291 = vmatprep.subr.bf16.mxu0 %v7440
    %11292 = vmatpush1.bf16.msra.mxu0 %v7439
    %11293 = vmatprep.subr.bf16.mxu0 %v7450
    %11294 = vmatpush1.bf16.msra.mxu0 %v7449
    %11295 = vmatprep.subr.bf16.mxu0 %v7460
    %11296 = vmatpush1.bf16.msra.mxu0 %v7459
    %11297 = vmatprep.subr.bf16.mxu0 %v7470
    %11298 = vmatpush1.bf16.msra.mxu0 %v7469
    %11299 = vmatprep.mubr.bf16.mxu0 %v208
    %11300 = vmatmul.mubr.bf16.gmra.mrb[0].mxu0 %v207
    %v11301 = vpop.f32.mrb[0].mxu0
    %v11302 = vadd.f32 %v11261, %v11301
    %v11303 = vpop.f32.mrb[0].mxu0
    %v11304 = vadd.f32 %v11263, %v11303
    %v11305 = vpop.f32.mrb[0].mxu0
    %v11306 = vpop.f32.mrb[0].mxu0
    %11307 = vdwg.mxu0
    %11308 = vmatprep.subr.bf16.mxu0 %v7480
    %11309 = vmatpush1.bf16.msra.mxu0 %v7479
    %11310 = vmatprep.subr.bf16.mxu0 %v7490
    %11311 = vmatpush1.bf16.msra.mxu0 %v7489
    %11312 = vmatprep.subr.bf16.mxu0 %v7500
    %11313 = vmatpush1.bf16.msra.mxu0 %v7499
    %11314 = vmatprep.subr.bf16.mxu0 %v7510
    %11315 = vmatpush1.bf16.msra.mxu0 %v7509
    %11316 = vmatprep.subr.bf16.mxu0 %v7520
    %11317 = vmatpush1.bf16.msra.mxu0 %v7519
    %11318 = vmatprep.subr.bf16.mxu0 %v7530
    %11319 = vmatpush1.bf16.msra.mxu0 %v7529
    %11320 = vmatprep.subr.bf16.mxu0 %v7540
    %11321 = vmatpush1.bf16.msra.mxu0 %v7539
    %11322 = vmatprep.subr.bf16.mxu0 %v7550
    %11323 = vmatpush1.bf16.msra.mxu0 %v7549
    %11324 = vmatprep.subr.bf16.mxu0 %v7560
    %11325 = vmatpush1.bf16.msra.mxu0 %v7559
    %11326 = vmatprep.subr.bf16.mxu0 %v7570
    %11327 = vmatpush1.bf16.msra.mxu0 %v7569
    %11328 = vmatprep.subr.bf16.mxu0 %v7580
    %11329 = vmatpush1.bf16.msra.mxu0 %v7579
    %11330 = vmatprep.subr.bf16.mxu0 %v7590
    %11331 = vmatpush1.bf16.msra.mxu0 %v7589
    %11332 = vmatprep.subr.bf16.mxu0 %v7600
    %11333 = vmatpush1.bf16.msra.mxu0 %v7599
    %11334 = vmatprep.subr.bf16.mxu0 %v7610
    %11335 = vmatpush1.bf16.msra.mxu0 %v7609
    %11336 = vmatprep.subr.bf16.mxu0 %v7620
    %11337 = vmatpush1.bf16.msra.mxu0 %v7619
    %11338 = vmatprep.subr.bf16.mxu0 %v7630
    %11339 = vmatpush1.bf16.msra.mxu0 %v7629
    %11340 = vmatprep.mubr.bf16.mxu0 %v210
    %11341 = vmatmul.mubr.bf16.gmra.mrb[0].mxu0 %v209
    %v11342 = vpop.f32.mrb[0].mxu0
    %v11343 = vadd.f32 %v11302, %v11342
    %v11344 = vpop.f32.mrb[0].mxu0
    %v11345 = vadd.f32 %v11304, %v11344
    %v11346 = vpop.f32.mrb[0].mxu0
    %v11347 = vpop.f32.mrb[0].mxu0
    %11348 = vdwg.mxu0
    %11349 = vmatprep.subr.bf16.mxu0 %v7640
    %11350 = vmatpush1.bf16.msra.mxu0 %v7639
    %11351 = vmatprep.subr.bf16.mxu0 %v7650
    %11352 = vmatpush1.bf16.msra.mxu0 %v7649
    %11353 = vmatprep.subr.bf16.mxu0 %v7660
    %11354 = vmatpush1.bf16.msra.mxu0 %v7659
    %11355 = vmatprep.subr.bf16.mxu0 %v7670
    %11356 = vmatpush1.bf16.msra.mxu0 %v7669
    %11357 = vmatprep.subr.bf16.mxu0 %v7680
    %11358 = vmatpush1.bf16.msra.mxu0 %v7679
    %11359 = vmatprep.subr.bf16.mxu0 %v7690
    %11360 = vmatpush1.bf16.msra.mxu0 %v7689
    %11361 = vmatprep.subr.bf16.mxu0 %v7700
    %11362 = vmatpush1.bf16.msra.mxu0 %v7699
    %11363 = vmatprep.subr.bf16.mxu0 %v7710
    %11364 = vmatpush1.bf16.msra.mxu0 %v7709
    %11365 = vmatprep.subr.bf16.mxu0 %v7720
    %11366 = vmatpush1.bf16.msra.mxu0 %v7719
    %11367 = vmatprep.subr.bf16.mxu0 %v7730
    %11368 = vmatpush1.bf16.msra.mxu0 %v7729
    %11369 = vmatprep.subr.bf16.mxu0 %v7740
    %11370 = vmatpush1.bf16.msra.mxu0 %v7739
    %11371 = vmatprep.subr.bf16.mxu0 %v7750
    %11372 = vmatpush1.bf16.msra.mxu0 %v7749
    %11373 = vmatprep.subr.bf16.mxu0 %v7760
    %11374 = vmatpush1.bf16.msra.mxu0 %v7759
    %11375 = vmatprep.subr.bf16.mxu0 %v7770
    %11376 = vmatpush1.bf16.msra.mxu0 %v7769
    %11377 = vmatprep.subr.bf16.mxu0 %v7780
    %11378 = vmatpush1.bf16.msra.mxu0 %v7779
    %11379 = vmatprep.subr.bf16.mxu0 %v7790
    %11380 = vmatpush1.bf16.msra.mxu0 %v7789
    %11381 = vmatprep.mubr.bf16.mxu0 %v212
    %11382 = vmatmul.mubr.bf16.gmra.mrb[0].mxu0 %v211
    %v11383 = vpop.f32.mrb[0].mxu0
    %v11384 = vadd.f32 %v11343, %v11383
    %v11385 = vpop.f32.mrb[0].mxu0
    %v11386 = vadd.f32 %v11345, %v11385
    %v11387 = vpop.f32.mrb[0].mxu0
    %v11388 = vpop.f32.mrb[0].mxu0
    %11389 = vdwg.mxu0
    %11390 = vmatprep.subr.bf16.mxu0 %v7800
    %11391 = vmatpush1.bf16.msra.mxu0 %v7799
    %11392 = vmatprep.subr.bf16.mxu0 %v7810
    %11393 = vmatpush1.bf16.msra.mxu0 %v7809
    %11394 = vmatprep.subr.bf16.mxu0 %v7820
    %11395 = vmatpush1.bf16.msra.mxu0 %v7819
    %11396 = vmatprep.subr.bf16.mxu0 %v7830
    %11397 = vmatpush1.bf16.msra.mxu0 %v7829
    %11398 = vmatprep.subr.bf16.mxu0 %v7840
    %11399 = vmatpush1.bf16.msra.mxu0 %v7839
    %11400 = vmatprep.subr.bf16.mxu0 %v7850
    %11401 = vmatpush1.bf16.msra.mxu0 %v7849
    %11402 = vmatprep.subr.bf16.mxu0 %v7860
    %11403 = vmatpush1.bf16.msra.mxu0 %v7859
    %11404 = vmatprep.subr.bf16.mxu0 %v7870
    %11405 = vmatpush1.bf16.msra.mxu0 %v7869
    %11406 = vmatprep.subr.bf16.mxu0 %v7880
    %11407 = vmatpush1.bf16.msra.mxu0 %v7879
    %11408 = vmatprep.subr.bf16.mxu0 %v7890
    %11409 = vmatpush1.bf16.msra.mxu0 %v7889
    %11410 = vmatprep.subr.bf16.mxu0 %v7900
    %11411 = vmatpush1.bf16.msra.mxu0 %v7899
    %11412 = vmatprep.subr.bf16.mxu0 %v7910
    %11413 = vmatpush1.bf16.msra.mxu0 %v7909
    %11414 = vmatprep.subr.bf16.mxu0 %v7920
    %11415 = vmatpush1.bf16.msra.mxu0 %v7919
    %11416 = vmatprep.subr.bf16.mxu0 %v7930
    %11417 = vmatpush1.bf16.msra.mxu0 %v7929
    %11418 = vmatprep.subr.bf16.mxu0 %v7940
    %11419 = vmatpush1.bf16.msra.mxu0 %v7939
    %11420 = vmatprep.subr.bf16.mxu0 %v7950
    %11421 = vmatpush1.bf16.msra.mxu0 %v7949
    %11422 = vmatprep.mubr.bf16.mxu0 %v214
    %11423 = vmatmul.mubr.bf16.gmra.mrb[0].mxu0 %v213
    %v11424 = vpop.f32.mrb[0].mxu0
    %v11425 = vadd.f32 %v11384, %v11424
    %v11426 = vpop.f32.mrb[0].mxu0
    %v11427 = vadd.f32 %v11386, %v11426
    %v11428 = vpop.f32.mrb[0].mxu0
    %v11429 = vpop.f32.mrb[0].mxu0
    %11430 = vdwg.mxu0
    %11431 = vmatprep.subr.bf16.mxu0 %v7960
    %11432 = vmatpush1.bf16.msra.mxu0 %v7959
    %11433 = vmatprep.subr.bf16.mxu0 %v7970
    %11434 = vmatpush1.bf16.msra.mxu0 %v7969
    %11435 = vmatprep.subr.bf16.mxu0 %v7980
    %11436 = vmatpush1.bf16.msra.mxu0 %v7979
    %11437 = vmatprep.subr.bf16.mxu0 %v7990
    %11438 = vmatpush1.bf16.msra.mxu0 %v7989
    %11439 = vmatprep.subr.bf16.mxu0 %v8000
    %11440 = vmatpush1.bf16.msra.mxu0 %v7999
    %11441 = vmatprep.subr.bf16.mxu0 %v8010
    %11442 = vmatpush1.bf16.msra.mxu0 %v8009
    %11443 = vmatprep.subr.bf16.mxu0 %v8020
    %11444 = vmatpush1.bf16.msra.mxu0 %v8019
    %11445 = vmatprep.subr.bf16.mxu0 %v8030
    %11446 = vmatpush1.bf16.msra.mxu0 %v8029
    %11447 = vmatprep.subr.bf16.mxu0 %v8040
    %11448 = vmatpush1.bf16.msra.mxu0 %v8039
    %11449 = vmatprep.subr.bf16.mxu0 %v8050
    %11450 = vmatpush1.bf16.msra.mxu0 %v8049
    %11451 = vmatprep.subr.bf16.mxu0 %v8060
    %11452 = vmatpush1.bf16.msra.mxu0 %v8059
    %11453 = vmatprep.subr.bf16.mxu0 %v8070
    %11454 = vmatpush1.bf16.msra.mxu0 %v8069
    %11455 = vmatprep.subr.bf16.mxu0 %v8080
    %11456 = vmatpush1.bf16.msra.mxu0 %v8079
    %11457 = vmatprep.subr.bf16.mxu0 %v8090
    %11458 = vmatpush1.bf16.msra.mxu0 %v8089
    %11459 = vmatprep.subr.bf16.mxu0 %v8100
    %11460 = vmatpush1.bf16.msra.mxu0 %v8099
    %11461 = vmatprep.subr.bf16.mxu0 %v8110
    %11462 = vmatpush1.bf16.msra.mxu0 %v8109
    %11463 = vmatprep.mubr.bf16.mxu0 %v216
    %11464 = vmatmul.mubr.bf16.gmra.mrb[0].mxu0 %v215
    %v11465 = vpop.f32.mrb[0].mxu0
    %v11466 = vadd.f32 %v11425, %v11465
    %v11467 = vpop.f32.mrb[0].mxu0
    %v11468 = vadd.f32 %v11427, %v11467
    %v11469 = vpop.f32.mrb[0].mxu0
    %v11470 = vpop.f32.mrb[0].mxu0
    %11471 = vdwg.mxu0
    %11472 = vmatprep.subr.bf16.mxu0 %v8120
    %11473 = vmatpush1.bf16.msra.mxu0 %v8119
    %11474 = vmatprep.subr.bf16.mxu0 %v8130
    %11475 = vmatpush1.bf16.msra.mxu0 %v8129
    %11476 = vmatprep.subr.bf16.mxu0 %v8140
    %11477 = vmatpush1.bf16.msra.mxu0 %v8139
    %11478 = vmatprep.subr.bf16.mxu0 %v8150
    %11479 = vmatpush1.bf16.msra.mxu0 %v8149
    %11480 = vmatprep.subr.bf16.mxu0 %v8160
    %11481 = vmatpush1.bf16.msra.mxu0 %v8159
    %11482 = vmatprep.subr.bf16.mxu0 %v8170
    %11483 = vmatpush1.bf16.msra.mxu0 %v8169
    %11484 = vmatprep.subr.bf16.mxu0 %v8180
    %11485 = vmatpush1.bf16.msra.mxu0 %v8179
    %11486 = vmatprep.subr.bf16.mxu0 %v8190
    %11487 = vmatpush1.bf16.msra.mxu0 %v8189
    %11488 = vmatprep.subr.bf16.mxu0 %v8200
    %11489 = vmatpush1.bf16.msra.mxu0 %v8199
    %11490 = vmatprep.subr.bf16.mxu0 %v8210
    %11491 = vmatpush1.bf16.msra.mxu0 %v8209
    %11492 = vmatprep.subr.bf16.mxu0 %v8220
    %11493 = vmatpush1.bf16.msra.mxu0 %v8219
    %11494 = vmatprep.subr.bf16.mxu0 %v8230
    %11495 = vmatpush1.bf16.msra.mxu0 %v8229
    %11496 = vmatprep.subr.bf16.mxu0 %v8240
    %11497 = vmatpush1.bf16.msra.mxu0 %v8239
    %11498 = vmatprep.subr.bf16.mxu0 %v8250
    %11499 = vmatpush1.bf16.msra.mxu0 %v8249
    %11500 = vmatprep.subr.bf16.mxu0 %v8260
    %11501 = vmatpush1.bf16.msra.mxu0 %v8259
    %11502 = vmatprep.subr.bf16.mxu0 %v8270
    %11503 = vmatpush1.bf16.msra.mxu0 %v8269
    %11504 = vmatprep.mubr.bf16.mxu0 %v218
    %11505 = vmatmul.mubr.bf16.gmra.mrb[0].mxu0 %v217
    %v11506 = vpop.f32.mrb[0].mxu0
    %v11507 = vadd.f32 %v11466, %v11506
    %v11508 = vpop.f32.mrb[0].mxu0
    %v11509 = vadd.f32 %v11468, %v11508
    %v11510 = vpop.f32.mrb[0].mxu0
    %v11511 = vpop.f32.mrb[0].mxu0
    %11512 = vdwg.mxu0
    %11513 = vmatprep.subr.bf16.mxu0 %v6682
    %11514 = vmatpush1.bf16.msra.mxu0 %v6681
    %11515 = vmatprep.subr.bf16.mxu0 %v6692
    %11516 = vmatpush1.bf16.msra.mxu0 %v6691
    %11517 = vmatprep.subr.bf16.mxu0 %v6702
    %11518 = vmatpush1.bf16.msra.mxu0 %v6701
    %11519 = vmatprep.subr.bf16.mxu0 %v6712
    %11520 = vmatpush1.bf16.msra.mxu0 %v6711
    %11521 = vmatprep.subr.bf16.mxu0 %v6722
    %11522 = vmatpush1.bf16.msra.mxu0 %v6721
    %11523 = vmatprep.subr.bf16.mxu0 %v6732
    %11524 = vmatpush1.bf16.msra.mxu0 %v6731
    %11525 = vmatprep.subr.bf16.mxu0 %v6742
    %11526 = vmatpush1.bf16.msra.mxu0 %v6741
    %11527 = vmatprep.subr.bf16.mxu0 %v6752
    %11528 = vmatpush1.bf16.msra.mxu0 %v6751
    %11529 = vmatprep.subr.bf16.mxu0 %v6762
    %11530 = vmatpush1.bf16.msra.mxu0 %v6761
    %11531 = vmatprep.subr.bf16.mxu0 %v6772
    %11532 = vmatpush1.bf16.msra.mxu0 %v6771
    %11533 = vmatprep.subr.bf16.mxu0 %v6782
    %11534 = vmatpush1.bf16.msra.mxu0 %v6781
    %11535 = vmatprep.subr.bf16.mxu0 %v6792
    %11536 = vmatpush1.bf16.msra.mxu0 %v6791
    %11537 = vmatprep.subr.bf16.mxu0 %v6802
    %11538 = vmatpush1.bf16.msra.mxu0 %v6801
    %11539 = vmatprep.subr.bf16.mxu0 %v6812
    %11540 = vmatpush1.bf16.msra.mxu0 %v6811
    %11541 = vmatprep.subr.bf16.mxu0 %v6822
    %11542 = vmatpush1.bf16.msra.mxu0 %v6821
    %11543 = vmatprep.subr.bf16.mxu0 %v6832
    %11544 = vmatpush1.bf16.msra.mxu0 %v6831
    %11545 = vmatprep.mubr.bf16.mxu0 %v200
    %11546 = vmatmul.mubr.bf16.gmra.mrb[0].mxu0 %v199
    %v11547 = vpop.f32.mrb[0].mxu0
    %v11548 = vadd.f32 %v1858, %v11547
    %v11549 = vpop.f32.mrb[0].mxu0
    %v11550 = vadd.f32 %v1862, %v11549
    %v11551 = vpop.f32.mrb[0].mxu0
    %v11552 = vpop.f32.mrb[0].mxu0
    %11553 = vdwg.mxu0
    %11554 = vmatprep.subr.bf16.mxu0 %v6842
    %11555 = vmatpush1.bf16.msra.mxu0 %v6841
    %11556 = vmatprep.subr.bf16.mxu0 %v6852
    %11557 = vmatpush1.bf16.msra.mxu0 %v6851
    %11558 = vmatprep.subr.bf16.mxu0 %v6862
    %11559 = vmatpush1.bf16.msra.mxu0 %v6861
    %11560 = vmatprep.subr.bf16.mxu0 %v6872
    %11561 = vmatpush1.bf16.msra.mxu0 %v6871
    %11562 = vmatprep.subr.bf16.mxu0 %v6882
    %11563 = vmatpush1.bf16.msra.mxu0 %v6881
    %11564 = vmatprep.subr.bf16.mxu0 %v6892
    %11565 = vmatpush1.bf16.msra.mxu0 %v6891
    %11566 = vmatprep.subr.bf16.mxu0 %v6902
    %11567 = vmatpush1.bf16.msra.mxu0 %v6901
    %11568 = vmatprep.subr.bf16.mxu0 %v6912
    %11569 = vmatpush1.bf16.msra.mxu0 %v6911
    %11570 = vmatprep.subr.bf16.mxu0 %v6922
    %11571 = vmatpush1.bf16.msra.mxu0 %v6921
    %11572 = vmatprep.subr.bf16.mxu0 %v6932
    %11573 = vmatpush1.bf16.msra.mxu0 %v6931
    %11574 = vmatprep.subr.bf16.mxu0 %v6942
    %11575 = vmatpush1.bf16.msra.mxu0 %v6941
    %11576 = vmatprep.subr.bf16.mxu0 %v6952
    %11577 = vmatpush1.bf16.msra.mxu0 %v6951
    %11578 = vmatprep.subr.bf16.mxu0 %v6962
    %11579 = vmatpush1.bf16.msra.mxu0 %v6961
    %11580 = vmatprep.subr.bf16.mxu0 %v6972
    %11581 = vmatpush1.bf16.msra.mxu0 %v6971
    %11582 = vmatprep.subr.bf16.mxu0 %v6982
    %11583 = vmatpush1.bf16.msra.mxu0 %v6981
    %11584 = vmatprep.subr.bf16.mxu0 %v6992
    %11585 = vmatpush1.bf16.msra.mxu0 %v6991
    %11586 = vmatprep.mubr.bf16.mxu0 %v202
    %11587 = vmatmul.mubr.bf16.gmra.mrb[0].mxu0 %v201
    %v11588 = vpop.f32.mrb[0].mxu0
    %v11589 = vadd.f32 %v11548, %v11588
    %v11590 = vpop.f32.mrb[0].mxu0
    %v11591 = vadd.f32 %v11550, %v11590
    %v11592 = vpop.f32.mrb[0].mxu0
    %v11593 = vpop.f32.mrb[0].mxu0
    %11594 = vdwg.mxu0
    %11595 = vmatprep.subr.bf16.mxu0 %v7002
    %11596 = vmatpush1.bf16.msra.mxu0 %v7001
    %11597 = vmatprep.subr.bf16.mxu0 %v7012
    %11598 = vmatpush1.bf16.msra.mxu0 %v7011
    %11599 = vmatprep.subr.bf16.mxu0 %v7022
    %11600 = vmatpush1.bf16.msra.mxu0 %v7021
    %11601 = vmatprep.subr.bf16.mxu0 %v7032
    %11602 = vmatpush1.bf16.msra.mxu0 %v7031
    %11603 = vmatprep.subr.bf16.mxu0 %v7042
    %11604 = vmatpush1.bf16.msra.mxu0 %v7041
    %11605 = vmatprep.subr.bf16.mxu0 %v7052
    %11606 = vmatpush1.bf16.msra.mxu0 %v7051
    %11607 = vmatprep.subr.bf16.mxu0 %v7062
    %11608 = vmatpush1.bf16.msra.mxu0 %v7061
    %11609 = vmatprep.subr.bf16.mxu0 %v7072
    %11610 = vmatpush1.bf16.msra.mxu0 %v7071
    %11611 = vmatprep.subr.bf16.mxu0 %v7082
    %11612 = vmatpush1.bf16.msra.mxu0 %v7081
    %11613 = vmatprep.subr.bf16.mxu0 %v7092
    %11614 = vmatpush1.bf16.msra.mxu0 %v7091
    %11615 = vmatprep.subr.bf16.mxu0 %v7102
    %11616 = vmatpush1.bf16.msra.mxu0 %v7101
    %11617 = vmatprep.subr.bf16.mxu0 %v7112
    %11618 = vmatpush1.bf16.msra.mxu0 %v7111
    %11619 = vmatprep.subr.bf16.mxu0 %v7122
    %11620 = vmatpush1.bf16.msra.mxu0 %v7121
    %11621 = vmatprep.subr.bf16.mxu0 %v7132
    %11622 = vmatpush1.bf16.msra.mxu0 %v7131
    %11623 = vmatprep.subr.bf16.mxu0 %v7142
    %11624 = vmatpush1.bf16.msra.mxu0 %v7141
    %11625 = vmatprep.subr.bf16.mxu0 %v7152
    %11626 = vmatpush1.bf16.msra.mxu0 %v7151
    %11627 = vmatprep.mubr.bf16.mxu0 %v204
    %11628 = vmatmul.mubr.bf16.gmra.mrb[0].mxu0 %v203
    %v11629 = vpop.f32.mrb[0].mxu0
    %v11630 = vadd.f32 %v11589, %v11629
    %v11631 = vpop.f32.mrb[0].mxu0
    %v11632 = vadd.f32 %v11591, %v11631
    %v11633 = vpop.f32.mrb[0].mxu0
    %v11634 = vpop.f32.mrb[0].mxu0
    %11635 = vdwg.mxu0
    %11636 = vmatprep.subr.bf16.mxu0 %v7162
    %11637 = vmatpush1.bf16.msra.mxu0 %v7161
    %11638 = vmatprep.subr.bf16.mxu0 %v7172
    %11639 = vmatpush1.bf16.msra.mxu0 %v7171
    %11640 = vmatprep.subr.bf16.mxu0 %v7182
    %11641 = vmatpush1.bf16.msra.mxu0 %v7181
    %11642 = vmatprep.subr.bf16.mxu0 %v7192
    %11643 = vmatpush1.bf16.msra.mxu0 %v7191
    %11644 = vmatprep.subr.bf16.mxu0 %v7202
    %11645 = vmatpush1.bf16.msra.mxu0 %v7201
    %11646 = vmatprep.subr.bf16.mxu0 %v7212
    %11647 = vmatpush1.bf16.msra.mxu0 %v7211
    %11648 = vmatprep.subr.bf16.mxu0 %v7222
    %11649 = vmatpush1.bf16.msra.mxu0 %v7221
    %11650 = vmatprep.subr.bf16.mxu0 %v7232
    %11651 = vmatpush1.bf16.msra.mxu0 %v7231
    %11652 = vmatprep.subr.bf16.mxu0 %v7242
    %11653 = vmatpush1.bf16.msra.mxu0 %v7241
    %11654 = vmatprep.subr.bf16.mxu0 %v7252
    %11655 = vmatpush1.bf16.msra.mxu0 %v7251
    %11656 = vmatprep.subr.bf16.mxu0 %v7262
    %11657 = vmatpush1.bf16.msra.mxu0 %v7261
    %11658 = vmatprep.subr.bf16.mxu0 %v7272
    %11659 = vmatpush1.bf16.msra.mxu0 %v7271
    %11660 = vmatprep.subr.bf16.mxu0 %v7282
    %11661 = vmatpush1.bf16.msra.mxu0 %v7281
    %11662 = vmatprep.subr.bf16.mxu0 %v7292
    %11663 = vmatpush1.bf16.msra.mxu0 %v7291
    %11664 = vmatprep.subr.bf16.mxu0 %v7302
    %11665 = vmatpush1.bf16.msra.mxu0 %v7301
    %11666 = vmatprep.subr.bf16.mxu0 %v7312
    %11667 = vmatpush1.bf16.msra.mxu0 %v7311
    %11668 = vmatprep.mubr.bf16.mxu0 %v206
    %11669 = vmatmul.mubr.bf16.gmra.mrb[0].mxu0 %v205
    %v11670 = vpop.f32.mrb[0].mxu0
    %v11671 = vadd.f32 %v11630, %v11670
    %v11672 = vpop.f32.mrb[0].mxu0
    %v11673 = vadd.f32 %v11632, %v11672
    %v11674 = vpop.f32.mrb[0].mxu0
    %v11675 = vpop.f32.mrb[0].mxu0
    %11676 = vdwg.mxu0
    %11677 = vmatprep.subr.bf16.mxu0 %v7322
    %11678 = vmatpush1.bf16.msra.mxu0 %v7321
    %11679 = vmatprep.subr.bf16.mxu0 %v7332
    %11680 = vmatpush1.bf16.msra.mxu0 %v7331
    %11681 = vmatprep.subr.bf16.mxu0 %v7342
    %11682 = vmatpush1.bf16.msra.mxu0 %v7341
    %11683 = vmatprep.subr.bf16.mxu0 %v7352
    %11684 = vmatpush1.bf16.msra.mxu0 %v7351
    %11685 = vmatprep.subr.bf16.mxu0 %v7362
    %11686 = vmatpush1.bf16.msra.mxu0 %v7361
    %11687 = vmatprep.subr.bf16.mxu0 %v7372
    %11688 = vmatpush1.bf16.msra.mxu0 %v7371
    %11689 = vmatprep.subr.bf16.mxu0 %v7382
    %11690 = vmatpush1.bf16.msra.mxu0 %v7381
    %11691 = vmatprep.subr.bf16.mxu0 %v7392
    %11692 = vmatpush1.bf16.msra.mxu0 %v7391
    %11693 = vmatprep.subr.bf16.mxu0 %v7402
    %11694 = vmatpush1.bf16.msra.mxu0 %v7401
    %11695 = vmatprep.subr.bf16.mxu0 %v7412
    %11696 = vmatpush1.bf16.msra.mxu0 %v7411
    %11697 = vmatprep.subr.bf16.mxu0 %v7422
    %11698 = vmatpush1.bf16.msra.mxu0 %v7421
    %11699 = vmatprep.subr.bf16.mxu0 %v7432
    %11700 = vmatpush1.bf16.msra.mxu0 %v7431
    %11701 = vmatprep.subr.bf16.mxu0 %v7442
    %11702 = vmatpush1.bf16.msra.mxu0 %v7441
    %11703 = vmatprep.subr.bf16.mxu0 %v7452
    %11704 = vmatpush1.bf16.msra.mxu0 %v7451
    %11705 = vmatprep.subr.bf16.mxu0 %v7462
    %11706 = vmatpush1.bf16.msra.mxu0 %v7461
    %11707 = vmatprep.subr.bf16.mxu0 %v7472
    %11708 = vmatpush1.bf16.msra.mxu0 %v7471
    %11709 = vmatprep.mubr.bf16.mxu0 %v208
    %11710 = vmatmul.mubr.bf16.gmra.mrb[0].mxu0 %v207
    %v11711 = vpop.f32.mrb[0].mxu0
    %v11712 = vadd.f32 %v11671, %v11711
    %v11713 = vpop.f32.mrb[0].mxu0
    %v11714 = vadd.f32 %v11673, %v11713
    %v11715 = vpop.f32.mrb[0].mxu0
    %v11716 = vpop.f32.mrb[0].mxu0
    %11717 = vdwg.mxu0
    %11718 = vmatprep.subr.bf16.mxu0 %v7482
    %11719 = vmatpush1.bf16.msra.mxu0 %v7481
    %11720 = vmatprep.subr.bf16.mxu0 %v7492
    %11721 = vmatpush1.bf16.msra.mxu0 %v7491
    %11722 = vmatprep.subr.bf16.mxu0 %v7502
    %11723 = vmatpush1.bf16.msra.mxu0 %v7501
    %11724 = vmatprep.subr.bf16.mxu0 %v7512
    %11725 = vmatpush1.bf16.msra.mxu0 %v7511
    %11726 = vmatprep.subr.bf16.mxu0 %v7522
    %11727 = vmatpush1.bf16.msra.mxu0 %v7521
    %11728 = vmatprep.subr.bf16.mxu0 %v7532
    %11729 = vmatpush1.bf16.msra.mxu0 %v7531
    %11730 = vmatprep.subr.bf16.mxu0 %v7542
    %11731 = vmatpush1.bf16.msra.mxu0 %v7541
    %11732 = vmatprep.subr.bf16.mxu0 %v7552
    %11733 = vmatpush1.bf16.msra.mxu0 %v7551
    %11734 = vmatprep.subr.bf16.mxu0 %v7562
    %11735 = vmatpush1.bf16.msra.mxu0 %v7561
    %11736 = vmatprep.subr.bf16.mxu0 %v7572
    %11737 = vmatpush1.bf16.msra.mxu0 %v7571
    %11738 = vmatprep.subr.bf16.mxu0 %v7582
    %11739 = vmatpush1.bf16.msra.mxu0 %v7581
    %11740 = vmatprep.subr.bf16.mxu0 %v7592
    %11741 = vmatpush1.bf16.msra.mxu0 %v7591
    %11742 = vmatprep.subr.bf16.mxu0 %v7602
    %11743 = vmatpush1.bf16.msra.mxu0 %v7601
    %11744 = vmatprep.subr.bf16.mxu0 %v7612
    %11745 = vmatpush1.bf16.msra.mxu0 %v7611
    %11746 = vmatprep.subr.bf16.mxu0 %v7622
    %11747 = vmatpush1.bf16.msra.mxu0 %v7621
    %11748 = vmatprep.subr.bf16.mxu0 %v7632
    %11749 = vmatpush1.bf16.msra.mxu0 %v7631
    %11750 = vmatprep.mubr.bf16.mxu0 %v210
    %11751 = vmatmul.mubr.bf16.gmra.mrb[0].mxu0 %v209
    %v11752 = vpop.f32.mrb[0].mxu0
    %v11753 = vadd.f32 %v11712, %v11752
    %v11754 = vpop.f32.mrb[0].mxu0
    %v11755 = vadd.f32 %v11714, %v11754
    %v11756 = vpop.f32.mrb[0].mxu0
    %v11757 = vpop.f32.mrb[0].mxu0
    %11758 = vdwg.mxu0
    %11759 = vmatprep.subr.bf16.mxu0 %v7642
    %11760 = vmatpush1.bf16.msra.mxu0 %v7641
    %11761 = vmatprep.subr.bf16.mxu0 %v7652
    %11762 = vmatpush1.bf16.msra.mxu0 %v7651
    %11763 = vmatprep.subr.bf16.mxu0 %v7662
    %11764 = vmatpush1.bf16.msra.mxu0 %v7661
    %11765 = vmatprep.subr.bf16.mxu0 %v7672
    %11766 = vmatpush1.bf16.msra.mxu0 %v7671
    %11767 = vmatprep.subr.bf16.mxu0 %v7682
    %11768 = vmatpush1.bf16.msra.mxu0 %v7681
    %11769 = vmatprep.subr.bf16.mxu0 %v7692
    %11770 = vmatpush1.bf16.msra.mxu0 %v7691
    %11771 = vmatprep.subr.bf16.mxu0 %v7702
    %11772 = vmatpush1.bf16.msra.mxu0 %v7701
    %11773 = vmatprep.subr.bf16.mxu0 %v7712
    %11774 = vmatpush1.bf16.msra.mxu0 %v7711
    %11775 = vmatprep.subr.bf16.mxu0 %v7722
    %11776 = vmatpush1.bf16.msra.mxu0 %v7721
    %11777 = vmatprep.subr.bf16.mxu0 %v7732
    %11778 = vmatpush1.bf16.msra.mxu0 %v7731
    %11779 = vmatprep.subr.bf16.mxu0 %v7742
    %11780 = vmatpush1.bf16.msra.mxu0 %v7741
    %11781 = vmatprep.subr.bf16.mxu0 %v7752
    %11782 = vmatpush1.bf16.msra.mxu0 %v7751
    %11783 = vmatprep.subr.bf16.mxu0 %v7762
    %11784 = vmatpush1.bf16.msra.mxu0 %v7761
    %11785 = vmatprep.subr.bf16.mxu0 %v7772
    %11786 = vmatpush1.bf16.msra.mxu0 %v7771
    %11787 = vmatprep.subr.bf16.mxu0 %v7782
    %11788 = vmatpush1.bf16.msra.mxu0 %v7781
    %11789 = vmatprep.subr.bf16.mxu0 %v7792
    %11790 = vmatpush1.bf16.msra.mxu0 %v7791
    %11791 = vmatprep.mubr.bf16.mxu0 %v212
    %11792 = vmatmul.mubr.bf16.gmra.mrb[0].mxu0 %v211
    %v11793 = vpop.f32.mrb[0].mxu0
    %v11794 = vadd.f32 %v11753, %v11793
    %v11795 = vpop.f32.mrb[0].mxu0
    %v11796 = vadd.f32 %v11755, %v11795
    %v11797 = vpop.f32.mrb[0].mxu0
    %v11798 = vpop.f32.mrb[0].mxu0
    %11799 = vdwg.mxu0
    %11800 = vmatprep.subr.bf16.mxu0 %v7802
    %11801 = vmatpush1.bf16.msra.mxu0 %v7801
    %11802 = vmatprep.subr.bf16.mxu0 %v7812
    %11803 = vmatpush1.bf16.msra.mxu0 %v7811
    %11804 = vmatprep.subr.bf16.mxu0 %v7822
    %11805 = vmatpush1.bf16.msra.mxu0 %v7821
    %11806 = vmatprep.subr.bf16.mxu0 %v7832
    %11807 = vmatpush1.bf16.msra.mxu0 %v7831
    %11808 = vmatprep.subr.bf16.mxu0 %v7842
    %11809 = vmatpush1.bf16.msra.mxu0 %v7841
    %11810 = vmatprep.subr.bf16.mxu0 %v7852
    %11811 = vmatpush1.bf16.msra.mxu0 %v7851
    %11812 = vmatprep.subr.bf16.mxu0 %v7862
    %11813 = vmatpush1.bf16.msra.mxu0 %v7861
    %11814 = vmatprep.subr.bf16.mxu0 %v7872
    %11815 = vmatpush1.bf16.msra.mxu0 %v7871
    %11816 = vmatprep.subr.bf16.mxu0 %v7882
    %11817 = vmatpush1.bf16.msra.mxu0 %v7881
    %11818 = vmatprep.subr.bf16.mxu0 %v7892
    %11819 = vmatpush1.bf16.msra.mxu0 %v7891
    %11820 = vmatprep.subr.bf16.mxu0 %v7902
    %11821 = vmatpush1.bf16.msra.mxu0 %v7901
    %11822 = vmatprep.subr.bf16.mxu0 %v7912
    %11823 = vmatpush1.bf16.msra.mxu0 %v7911
    %11824 = vmatprep.subr.bf16.mxu0 %v7922
    %11825 = vmatpush1.bf16.msra.mxu0 %v7921
    %11826 = vmatprep.subr.bf16.mxu0 %v7932
    %11827 = vmatpush1.bf16.msra.mxu0 %v7931
    %11828 = vmatprep.subr.bf16.mxu0 %v7942
    %11829 = vmatpush1.bf16.msra.mxu0 %v7941
    %11830 = vmatprep.subr.bf16.mxu0 %v7952
    %11831 = vmatpush1.bf16.msra.mxu0 %v7951
    %11832 = vmatprep.mubr.bf16.mxu0 %v214
    %11833 = vmatmul.mubr.bf16.gmra.mrb[0].mxu0 %v213
    %v11834 = vpop.f32.mrb[0].mxu0
    %v11835 = vadd.f32 %v11794, %v11834
    %v11836 = vpop.f32.mrb[0].mxu0
    %v11837 = vadd.f32 %v11796, %v11836
    %v11838 = vpop.f32.mrb[0].mxu0
    %v11839 = vpop.f32.mrb[0].mxu0
    %11840 = vdwg.mxu0
    %11841 = vmatprep.subr.bf16.mxu0 %v7962
    %11842 = vmatpush1.bf16.msra.mxu0 %v7961
    %11843 = vmatprep.subr.bf16.mxu0 %v7972
    %11844 = vmatpush1.bf16.msra.mxu0 %v7971
    %11845 = vmatprep.subr.bf16.mxu0 %v7982
    %11846 = vmatpush1.bf16.msra.mxu0 %v7981
    %11847 = vmatprep.subr.bf16.mxu0 %v7992
    %11848 = vmatpush1.bf16.msra.mxu0 %v7991
    %11849 = vmatprep.subr.bf16.mxu0 %v8002
    %11850 = vmatpush1.bf16.msra.mxu0 %v8001
    %11851 = vmatprep.subr.bf16.mxu0 %v8012
    %11852 = vmatpush1.bf16.msra.mxu0 %v8011
    %11853 = vmatprep.subr.bf16.mxu0 %v8022
    %11854 = vmatpush1.bf16.msra.mxu0 %v8021
    %11855 = vmatprep.subr.bf16.mxu0 %v8032
    %11856 = vmatpush1.bf16.msra.mxu0 %v8031
    %11857 = vmatprep.subr.bf16.mxu0 %v8042
    %11858 = vmatpush1.bf16.msra.mxu0 %v8041
    %11859 = vmatprep.subr.bf16.mxu0 %v8052
    %11860 = vmatpush1.bf16.msra.mxu0 %v8051
    %11861 = vmatprep.subr.bf16.mxu0 %v8062
    %11862 = vmatpush1.bf16.msra.mxu0 %v8061
    %11863 = vmatprep.subr.bf16.mxu0 %v8072
    %11864 = vmatpush1.bf16.msra.mxu0 %v8071
    %11865 = vmatprep.subr.bf16.mxu0 %v8082
    %11866 = vmatpush1.bf16.msra.mxu0 %v8081
    %11867 = vmatprep.subr.bf16.mxu0 %v8092
    %11868 = vmatpush1.bf16.msra.mxu0 %v8091
    %11869 = vmatprep.subr.bf16.mxu0 %v8102
    %11870 = vmatpush1.bf16.msra.mxu0 %v8101
    %11871 = vmatprep.subr.bf16.mxu0 %v8112
    %11872 = vmatpush1.bf16.msra.mxu0 %v8111
    %11873 = vmatprep.mubr.bf16.mxu0 %v216
    %11874 = vmatmul.mubr.bf16.gmra.mrb[0].mxu0 %v215
    %v11875 = vpop.f32.mrb[0].mxu0
    %v11876 = vadd.f32 %v11835, %v11875
    %v11877 = vpop.f32.mrb[0].mxu0
    %v11878 = vadd.f32 %v11837, %v11877
    %v11879 = vpop.f32.mrb[0].mxu0
    %v11880 = vpop.f32.mrb[0].mxu0
    %11881 = vdwg.mxu0
    %11882 = vmatprep.subr.bf16.mxu0 %v8122
    %11883 = vmatpush1.bf16.msra.mxu0 %v8121
    %11884 = vmatprep.subr.bf16.mxu0 %v8132
    %11885 = vmatpush1.bf16.msra.mxu0 %v8131
    %11886 = vmatprep.subr.bf16.mxu0 %v8142
    %11887 = vmatpush1.bf16.msra.mxu0 %v8141
    %11888 = vmatprep.subr.bf16.mxu0 %v8152
    %11889 = vmatpush1.bf16.msra.mxu0 %v8151
    %11890 = vmatprep.subr.bf16.mxu0 %v8162
    %11891 = vmatpush1.bf16.msra.mxu0 %v8161
    %11892 = vmatprep.subr.bf16.mxu0 %v8172
    %11893 = vmatpush1.bf16.msra.mxu0 %v8171
    %11894 = vmatprep.subr.bf16.mxu0 %v8182
    %11895 = vmatpush1.bf16.msra.mxu0 %v8181
    %11896 = vmatprep.subr.bf16.mxu0 %v8192
    %11897 = vmatpush1.bf16.msra.mxu0 %v8191
    %11898 = vmatprep.subr.bf16.mxu0 %v8202
    %11899 = vmatpush1.bf16.msra.mxu0 %v8201
    %11900 = vmatprep.subr.bf16.mxu0 %v8212
    %11901 = vmatpush1.bf16.msra.mxu0 %v8211
    %11902 = vmatprep.subr.bf16.mxu0 %v8222
    %11903 = vmatpush1.bf16.msra.mxu0 %v8221
    %11904 = vmatprep.subr.bf16.mxu0 %v8232
    %11905 = vmatpush1.bf16.msra.mxu0 %v8231
    %11906 = vmatprep.subr.bf16.mxu0 %v8242
    %11907 = vmatpush1.bf16.msra.mxu0 %v8241
    %11908 = vmatprep.subr.bf16.mxu0 %v8252
    %11909 = vmatpush1.bf16.msra.mxu0 %v8251
    %11910 = vmatprep.subr.bf16.mxu0 %v8262
    %11911 = vmatpush1.bf16.msra.mxu0 %v8261
    %11912 = vmatprep.subr.bf16.mxu0 %v8272
    %11913 = vmatpush1.bf16.msra.mxu0 %v8271
    %11914 = vmatprep.mubr.bf16.mxu0 %v218
    %11915 = vmatmul.mubr.bf16.gmra.mrb[0].mxu0 %v217
    %v11916 = vpop.f32.mrb[0].mxu0
    %v11917 = vadd.f32 %v11876, %v11916
    %v11918 = vpop.f32.mrb[0].mxu0
    %v11919 = vadd.f32 %v11878, %v11918
    %v11920 = vpop.f32.mrb[0].mxu0
    %v11921 = vpop.f32.mrb[0].mxu0
    %11922 = vdwg.mxu0
    %v11923 = vmax.f32 %v10277, 0.0
    %v11924 = vmax.f32 %v10279, 0.0
    %v11925 = vmax.f32 %v10687, 0.0
    %v11926 = vmax.f32 %v10689, 0.0
    %v11927 = vmax.f32 %v11097, 0.0
    %v11928 = vmax.f32 %v11099, 0.0
    %v11929 = vmax.f32 %v11507, 0.0
    %v11930 = vmax.f32 %v11509, 0.0
    %v11931 = vmax.f32 %v11917, 0.0
    %v11932 = vmax.f32 %v11919, 0.0
    %v11933 = vpack.c.bf16 %v11923, %v11923
    %v11934 = vpack.c.bf16 %v11924, %v11924
    %v11935 = vpack.c.bf16 %v11925, %v11925
    %v11936 = vpack.c.bf16 %v11926, %v11926
    %v11937 = vpack.c.bf16 %v11927, %v11927
    %v11938 = vpack.c.bf16 %v11928, %v11928
    %v11939 = vpack.c.bf16 %v11929, %v11929
    %v11940 = vpack.c.bf16 %v11930, %v11930
    %v11941 = vpack.c.bf16 %v11931, %v11931
    %v11942 = vpack.c.bf16 %v11932, %v11932
    %v11943 = vld [vmem:[#allocation8] sm:$0xf]
    %v11944 = vld [vmem:[#allocation8 + $0x4] sm:$0xf]
    %v11945 = vld [vmem:[#allocation8 + $0x8] sm:$0xf]
    %v11946 = vld [vmem:[#allocation8 + $0xc] sm:$0xf]
    %v11947 = vld [vmem:[#allocation8 + $0x10] sm:$0xf]
    %v11948 = vld [vmem:[#allocation8 + $0x14] sm:$0xf]
    %v11949 = vld [vmem:[#allocation8 + $0x18] sm:$0xf]
    %v11950 = vld [vmem:[#allocation8 + $0x1c] sm:$0xf]
    %v11951 = vld [vmem:[#allocation8 + $0x20] sm:$0xf]
    %v11952 = vld [vmem:[#allocation8 + $0x24] sm:$0xf]
    %v11953 = vld [vmem:[#allocation8 + $0x28] sm:$0xf]
    %v11954 = vld [vmem:[#allocation8 + $0x2c] sm:$0xf]
    %v11955 = vld [vmem:[#allocation8 + $0x30] sm:$0xf]
    %v11956 = vld [vmem:[#allocation8 + $0x34] sm:$0xf]
    %v11957 = vld [vmem:[#allocation8 + $0x38] sm:$0xf]
    %v11958 = vld [vmem:[#allocation8 + $0x3c] sm:$0xf]
    %v11959 = vld [vmem:[#allocation8 + $0x40] sm:$0xf]
    %v11960 = vld [vmem:[#allocation8 + $0x44] sm:$0xf]
    %v11961 = vld [vmem:[#allocation8 + $0x48] sm:$0xf]
    %v11962 = vld [vmem:[#allocation8 + $0x4c] sm:$0xf]
    %v11963 = vld [vmem:[#allocation8 + $0x50] sm:$0xf]
    %v11964 = vld [vmem:[#allocation8 + $0x54] sm:$0xf]
    %v11965 = vld [vmem:[#allocation8 + $0x58] sm:$0xf]
    %v11966 = vld [vmem:[#allocation8 + $0x5c] sm:$0xf]
    %v11967 = vld [vmem:[#allocation8 + $0x60] sm:$0xf]
    %v11968 = vld [vmem:[#allocation8 + $0x64] sm:$0xf]
    %v11969 = vld [vmem:[#allocation8 + $0x68] sm:$0xf]
    %v11970 = vld [vmem:[#allocation8 + $0x6c] sm:$0xf]
    %v11971 = vld [vmem:[#allocation8 + $0x70] sm:$0xf]
    %v11972 = vld [vmem:[#allocation8 + $0x74] sm:$0xf]
    %v11973 = vld [vmem:[#allocation8 + $0x78] sm:$0xf]
    %v11974 = vld [vmem:[#allocation8 + $0x7c] sm:$0xf]
    %v11975 = vld [vmem:[#allocation8 + $0x80] sm:$0xf]
    %v11976 = vld [vmem:[#allocation8 + $0x84] sm:$0xf]
    %v11977 = vld [vmem:[#allocation8 + $0x88] sm:$0xf]
    %v11978 = vld [vmem:[#allocation8 + $0x8c] sm:$0xf]
    %v11979 = vld [vmem:[#allocation8 + $0x90] sm:$0xf]
    %v11980 = vld [vmem:[#allocation8 + $0x94] sm:$0xf]
    %v11981 = vld [vmem:[#allocation8 + $0x98] sm:$0xf]
    %v11982 = vld [vmem:[#allocation8 + $0x9c] sm:$0xf]
    %v11983 = vld [vmem:[#allocation8 + $0xa0] sm:$0xf]
    %v11984 = vld [vmem:[#allocation8 + $0xa4] sm:$0xf]
    %v11985 = vld [vmem:[#allocation8 + $0xa8] sm:$0xf]
    %v11986 = vld [vmem:[#allocation8 + $0xac] sm:$0xf]
    %v11987 = vld [vmem:[#allocation8 + $0xb0] sm:$0xf]
    %v11988 = vld [vmem:[#allocation8 + $0xb4] sm:$0xf]
    %v11989 = vld [vmem:[#allocation8 + $0xb8] sm:$0xf]
    %v11990 = vld [vmem:[#allocation8 + $0xbc] sm:$0xf]
    %v11991 = vld [vmem:[#allocation8 + $0xc0] sm:$0xf]
    %v11992 = vld [vmem:[#allocation8 + $0xc4] sm:$0xf]
    %v11993 = vld [vmem:[#allocation8 + $0xc8] sm:$0xf]
    %v11994 = vld [vmem:[#allocation8 + $0xcc] sm:$0xf]
    %v11995 = vld [vmem:[#allocation8 + $0xd0] sm:$0xf]
    %v11996 = vld [vmem:[#allocation8 + $0xd4] sm:$0xf]
    %v11997 = vld [vmem:[#allocation8 + $0xd8] sm:$0xf]
    %v11998 = vld [vmem:[#allocation8 + $0xdc] sm:$0xf]
    %v11999 = vld [vmem:[#allocation8 + $0xe0] sm:$0xf]
    %v12000 = vld [vmem:[#allocation8 + $0xe4] sm:$0xf]
    %v12001 = vld [vmem:[#allocation8 + $0xe8] sm:$0xf]
    %v12002 = vld [vmem:[#allocation8 + $0xec] sm:$0xf]
    %v12003 = vld [vmem:[#allocation8 + $0xf0] sm:$0xf]
    %v12004 = vld [vmem:[#allocation8 + $0xf4] sm:$0xf]
    %v12005 = vld [vmem:[#allocation8 + $0xf8] sm:$0xf]
    %v12006 = vld [vmem:[#allocation8 + $0xfc] sm:$0xf]
    %v12007 = vld [vmem:[#allocation8 + $0x100] sm:$0xf]
    %v12008 = vld [vmem:[#allocation8 + $0x104] sm:$0xf]
    %v12009 = vld [vmem:[#allocation8 + $0x108] sm:$0xf]
    %v12010 = vld [vmem:[#allocation8 + $0x10c] sm:$0xf]
    %v12011 = vld [vmem:[#allocation8 + $0x110] sm:$0xf]
    %v12012 = vld [vmem:[#allocation8 + $0x114] sm:$0xf]
    %v12013 = vld [vmem:[#allocation8 + $0x118] sm:$0xf]
    %v12014 = vld [vmem:[#allocation8 + $0x11c] sm:$0xf]
    %v12015 = vld [vmem:[#allocation8 + $0x120] sm:$0xf]
    %v12016 = vld [vmem:[#allocation8 + $0x124] sm:$0xf]
    %v12017 = vld [vmem:[#allocation8 + $0x128] sm:$0xf]
    %v12018 = vld [vmem:[#allocation8 + $0x12c] sm:$0xf]
    %v12019 = vld [vmem:[#allocation8 + $0x130] sm:$0xf]
    %v12020 = vld [vmem:[#allocation8 + $0x134] sm:$0xf]
    %v12021 = vld [vmem:[#allocation8 + $0x138] sm:$0xf]
    %v12022 = vld [vmem:[#allocation8 + $0x13c] sm:$0xf]
    %v12023 = vld [vmem:[#allocation8 + $0x140] sm:$0xf]
    %v12024 = vld [vmem:[#allocation8 + $0x144] sm:$0xf]
    %v12025 = vld [vmem:[#allocation8 + $0x148] sm:$0xf]
    %v12026 = vld [vmem:[#allocation8 + $0x14c] sm:$0xf]
    %v12027 = vld [vmem:[#allocation8 + $0x150] sm:$0xf]
    %v12028 = vld [vmem:[#allocation8 + $0x154] sm:$0xf]
    %v12029 = vld [vmem:[#allocation8 + $0x158] sm:$0xf]
    %v12030 = vld [vmem:[#allocation8 + $0x15c] sm:$0xf]
    %v12031 = vld [vmem:[#allocation8 + $0x160] sm:$0xf]
    %v12032 = vld [vmem:[#allocation8 + $0x164] sm:$0xf]
    %v12033 = vld [vmem:[#allocation8 + $0x168] sm:$0xf]
    %v12034 = vld [vmem:[#allocation8 + $0x16c] sm:$0xf]
    %v12035 = vld [vmem:[#allocation8 + $0x170] sm:$0xf]
    %v12036 = vld [vmem:[#allocation8 + $0x174] sm:$0xf]
    %v12037 = vld [vmem:[#allocation8 + $0x178] sm:$0xf]
    %v12038 = vld [vmem:[#allocation8 + $0x17c] sm:$0xf]
    %v12039 = vld [vmem:[#allocation8 + $0x180] sm:$0xf]
    %v12040 = vld [vmem:[#allocation8 + $0x184] sm:$0xf]
    %v12041 = vld [vmem:[#allocation8 + $0x188] sm:$0xf]
    %v12042 = vld [vmem:[#allocation8 + $0x18c] sm:$0xf]
    %v12043 = vld [vmem:[#allocation8 + $0x190] sm:$0xf]
    %v12044 = vld [vmem:[#allocation8 + $0x194] sm:$0xf]
    %v12045 = vld [vmem:[#allocation8 + $0x198] sm:$0xf]
    %v12046 = vld [vmem:[#allocation8 + $0x19c] sm:$0xf]
    %v12047 = vld [vmem:[#allocation8 + $0x1a0] sm:$0xf]
    %v12048 = vld [vmem:[#allocation8 + $0x1a4] sm:$0xf]
    %v12049 = vld [vmem:[#allocation8 + $0x1a8] sm:$0xf]
    %v12050 = vld [vmem:[#allocation8 + $0x1ac] sm:$0xf]
    %v12051 = vld [vmem:[#allocation8 + $0x1b0] sm:$0xf]
    %v12052 = vld [vmem:[#allocation8 + $0x1b4] sm:$0xf]
    %v12053 = vld [vmem:[#allocation8 + $0x1b8] sm:$0xf]
    %v12054 = vld [vmem:[#allocation8 + $0x1bc] sm:$0xf]
    %v12055 = vld [vmem:[#allocation8 + $0x1c0] sm:$0xf]
    %v12056 = vld [vmem:[#allocation8 + $0x1c4] sm:$0xf]
    %v12057 = vld [vmem:[#allocation8 + $0x1c8] sm:$0xf]
    %v12058 = vld [vmem:[#allocation8 + $0x1cc] sm:$0xf]
    %v12059 = vld [vmem:[#allocation8 + $0x1d0] sm:$0xf]
    %v12060 = vld [vmem:[#allocation8 + $0x1d4] sm:$0xf]
    %v12061 = vld [vmem:[#allocation8 + $0x1d8] sm:$0xf]
    %v12062 = vld [vmem:[#allocation8 + $0x1dc] sm:$0xf]
    %v12063 = vld [vmem:[#allocation8 + $0x1e0] sm:$0xf]
    %v12064 = vld [vmem:[#allocation8 + $0x1e4] sm:$0xf]
    %v12065 = vld [vmem:[#allocation8 + $0x1e8] sm:$0xf]
    %v12066 = vld [vmem:[#allocation8 + $0x1ec] sm:$0xf]
    %v12067 = vld [vmem:[#allocation8 + $0x1f0] sm:$0xf]
    %v12068 = vld [vmem:[#allocation8 + $0x1f4] sm:$0xf]
    %v12069 = vld [vmem:[#allocation8 + $0x1f8] sm:$0xf]
    %v12070 = vld [vmem:[#allocation8 + $0x1fc] sm:$0xf]
    %v12071 = vld [vmem:[#allocation8 + $0x200] sm:$0xf]
    %v12072 = vld [vmem:[#allocation8 + $0x204] sm:$0xf]
    %v12073 = vld [vmem:[#allocation8 + $0x208] sm:$0xf]
    %v12074 = vld [vmem:[#allocation8 + $0x20c] sm:$0xf]
    %v12075 = vld [vmem:[#allocation8 + $0x210] sm:$0xf]
    %v12076 = vld [vmem:[#allocation8 + $0x214] sm:$0xf]
    %v12077 = vld [vmem:[#allocation8 + $0x218] sm:$0xf]
    %v12078 = vld [vmem:[#allocation8 + $0x21c] sm:$0xf]
    %v12079 = vld [vmem:[#allocation8 + $0x220] sm:$0xf]
    %v12080 = vld [vmem:[#allocation8 + $0x224] sm:$0xf]
    %v12081 = vld [vmem:[#allocation8 + $0x228] sm:$0xf]
    %v12082 = vld [vmem:[#allocation8 + $0x22c] sm:$0xf]
    %v12083 = vld [vmem:[#allocation8 + $0x230] sm:$0xf]
    %v12084 = vld [vmem:[#allocation8 + $0x234] sm:$0xf]
    %v12085 = vld [vmem:[#allocation8 + $0x238] sm:$0xf]
    %v12086 = vld [vmem:[#allocation8 + $0x23c] sm:$0xf]
    %v12087 = vld [vmem:[#allocation8 + $0x240] sm:$0xf]
    %v12088 = vld [vmem:[#allocation8 + $0x244] sm:$0xf]
    %v12089 = vld [vmem:[#allocation8 + $0x248] sm:$0xf]
    %v12090 = vld [vmem:[#allocation8 + $0x24c] sm:$0xf]
    %v12091 = vld [vmem:[#allocation8 + $0x250] sm:$0xf]
    %v12092 = vld [vmem:[#allocation8 + $0x254] sm:$0xf]
    %v12093 = vld [vmem:[#allocation8 + $0x258] sm:$0xf]
    %v12094 = vld [vmem:[#allocation8 + $0x25c] sm:$0xf]
    %v12095 = vld [vmem:[#allocation8 + $0x260] sm:$0xf]
    %v12096 = vld [vmem:[#allocation8 + $0x264] sm:$0xf]
    %v12097 = vld [vmem:[#allocation8 + $0x268] sm:$0xf]
    %v12098 = vld [vmem:[#allocation8 + $0x26c] sm:$0xf]
    %v12099 = vld [vmem:[#allocation8 + $0x270] sm:$0xf]
    %v12100 = vld [vmem:[#allocation8 + $0x274] sm:$0xf]
    %v12101 = vld [vmem:[#allocation8 + $0x278] sm:$0xf]
    %v12102 = vld [vmem:[#allocation8 + $0x27c] sm:$0xf]
    %v12103 = vld [vmem:[#allocation10] sm:$0x1]
    %v12105 = vlaneseq
    %v12106 = vshrl.u32 %v12105, 7
    %v12107 = vsub.s32 0, %v12106
    %v12108 = vrot.slane %v12103, %v12107
    %v12270 = vunpack.c.l.b16 %v11943
    %v12271 = vunpack.c.l.b16 %v11944
    %v12272 = vunpack.c.l.b16 %v11945
    %v12273 = vunpack.c.l.b16 %v11946
    %v12274 = vunpack.c.l.b16 %v11947
    %v12275 = vunpack.c.l.b16 %v11948
    %v12276 = vunpack.c.l.b16 %v11949
    %v12277 = vunpack.c.l.b16 %v11950
    %v12278 = vunpack.c.l.b16 %v11951
    %v12279 = vunpack.c.l.b16 %v11952
    %v12280 = vunpack.c.l.b16 %v11953
    %v12281 = vunpack.c.l.b16 %v11954
    %v12282 = vunpack.c.l.b16 %v11955
    %v12283 = vunpack.c.l.b16 %v11956
    %v12284 = vunpack.c.l.b16 %v11957
    %v12285 = vunpack.c.l.b16 %v11958
    %v12286 = vunpack.c.l.b16 %v11959
    %v12287 = vunpack.c.l.b16 %v11960
    %v12288 = vunpack.c.l.b16 %v11961
    %v12289 = vunpack.c.l.b16 %v11962
    %v12290 = vunpack.c.l.b16 %v11963
    %v12291 = vunpack.c.l.b16 %v11964
    %v12292 = vunpack.c.l.b16 %v11965
    %v12293 = vunpack.c.l.b16 %v11966
    %v12294 = vunpack.c.l.b16 %v11967
    %v12295 = vunpack.c.l.b16 %v11968
    %v12296 = vunpack.c.l.b16 %v11969
    %v12297 = vunpack.c.l.b16 %v11970
    %v12298 = vunpack.c.l.b16 %v11971
    %v12299 = vunpack.c.l.b16 %v11972
    %v12300 = vunpack.c.l.b16 %v11973
    %v12301 = vunpack.c.l.b16 %v11974
    %v12302 = vunpack.c.l.b16 %v11975
    %v12303 = vunpack.c.l.b16 %v11976
    %v12304 = vunpack.c.l.b16 %v11977
    %v12305 = vunpack.c.l.b16 %v11978
    %v12306 = vunpack.c.l.b16 %v11979
    %v12307 = vunpack.c.l.b16 %v11980
    %v12308 = vunpack.c.l.b16 %v11981
    %v12309 = vunpack.c.l.b16 %v11982
    %v12310 = vunpack.c.l.b16 %v11983
    %v12311 = vunpack.c.l.b16 %v11984
    %v12312 = vunpack.c.l.b16 %v11985
    %v12313 = vunpack.c.l.b16 %v11986
    %v12314 = vunpack.c.l.b16 %v11987
    %v12315 = vunpack.c.l.b16 %v11988
    %v12316 = vunpack.c.l.b16 %v11989
    %v12317 = vunpack.c.l.b16 %v11990
    %v12318 = vunpack.c.l.b16 %v11991
    %v12319 = vunpack.c.l.b16 %v11992
    %v12320 = vunpack.c.l.b16 %v11993
    %v12321 = vunpack.c.l.b16 %v11994
    %v12322 = vunpack.c.l.b16 %v11995
    %v12323 = vunpack.c.l.b16 %v11996
    %v12324 = vunpack.c.l.b16 %v11997
    %v12325 = vunpack.c.l.b16 %v11998
    %v12326 = vunpack.c.l.b16 %v11999
    %v12327 = vunpack.c.l.b16 %v12000
    %v12328 = vunpack.c.l.b16 %v12001
    %v12329 = vunpack.c.l.b16 %v12002
    %v12330 = vunpack.c.l.b16 %v12003
    %v12331 = vunpack.c.l.b16 %v12004
    %v12332 = vunpack.c.l.b16 %v12005
    %v12333 = vunpack.c.l.b16 %v12006
    %v12334 = vunpack.c.l.b16 %v12007
    %v12335 = vunpack.c.l.b16 %v12008
    %v12336 = vunpack.c.l.b16 %v12009
    %v12337 = vunpack.c.l.b16 %v12010
    %v12338 = vunpack.c.l.b16 %v12011
    %v12339 = vunpack.c.l.b16 %v12012
    %v12340 = vunpack.c.l.b16 %v12013
    %v12341 = vunpack.c.l.b16 %v12014
    %v12342 = vunpack.c.l.b16 %v12015
    %v12343 = vunpack.c.l.b16 %v12016
    %v12344 = vunpack.c.l.b16 %v12017
    %v12345 = vunpack.c.l.b16 %v12018
    %v12346 = vunpack.c.l.b16 %v12019
    %v12347 = vunpack.c.l.b16 %v12020
    %v12348 = vunpack.c.l.b16 %v12021
    %v12349 = vunpack.c.l.b16 %v12022
    %v12350 = vunpack.c.l.b16 %v12023
    %v12351 = vunpack.c.l.b16 %v12024
    %v12352 = vunpack.c.l.b16 %v12025
    %v12353 = vunpack.c.l.b16 %v12026
    %v12354 = vunpack.c.l.b16 %v12027
    %v12355 = vunpack.c.l.b16 %v12028
    %v12356 = vunpack.c.l.b16 %v12029
    %v12357 = vunpack.c.l.b16 %v12030
    %v12358 = vunpack.c.l.b16 %v12031
    %v12359 = vunpack.c.l.b16 %v12032
    %v12360 = vunpack.c.l.b16 %v12033
    %v12361 = vunpack.c.l.b16 %v12034
    %v12362 = vunpack.c.l.b16 %v12035
    %v12363 = vunpack.c.l.b16 %v12036
    %v12364 = vunpack.c.l.b16 %v12037
    %v12365 = vunpack.c.l.b16 %v12038
    %v12366 = vunpack.c.l.b16 %v12039
    %v12367 = vunpack.c.l.b16 %v12040
    %v12368 = vunpack.c.l.b16 %v12041
    %v12369 = vunpack.c.l.b16 %v12042
    %v12370 = vunpack.c.l.b16 %v12043
    %v12371 = vunpack.c.l.b16 %v12044
    %v12372 = vunpack.c.l.b16 %v12045
    %v12373 = vunpack.c.l.b16 %v12046
    %v12374 = vunpack.c.l.b16 %v12047
    %v12375 = vunpack.c.l.b16 %v12048
    %v12376 = vunpack.c.l.b16 %v12049
    %v12377 = vunpack.c.l.b16 %v12050
    %v12378 = vunpack.c.l.b16 %v12051
    %v12379 = vunpack.c.l.b16 %v12052
    %v12380 = vunpack.c.l.b16 %v12053
    %v12381 = vunpack.c.l.b16 %v12054
    %v12382 = vunpack.c.l.b16 %v12055
    %v12383 = vunpack.c.l.b16 %v12056
    %v12384 = vunpack.c.l.b16 %v12057
    %v12385 = vunpack.c.l.b16 %v12058
    %v12386 = vunpack.c.l.b16 %v12059
    %v12387 = vunpack.c.l.b16 %v12060
    %v12388 = vunpack.c.l.b16 %v12061
    %v12389 = vunpack.c.l.b16 %v12062
    %v12390 = vunpack.c.l.b16 %v12063
    %v12391 = vunpack.c.l.b16 %v12064
    %v12392 = vunpack.c.l.b16 %v12065
    %v12393 = vunpack.c.l.b16 %v12066
    %v12394 = vunpack.c.l.b16 %v12067
    %v12395 = vunpack.c.l.b16 %v12068
    %v12396 = vunpack.c.l.b16 %v12069
    %v12397 = vunpack.c.l.b16 %v12070
    %v12398 = vunpack.c.l.b16 %v12071
    %v12399 = vunpack.c.l.b16 %v12072
    %v12400 = vunpack.c.l.b16 %v12073
    %v12401 = vunpack.c.l.b16 %v12074
    %v12402 = vunpack.c.l.b16 %v12075
    %v12403 = vunpack.c.l.b16 %v12076
    %v12404 = vunpack.c.l.b16 %v12077
    %v12405 = vunpack.c.l.b16 %v12078
    %v12406 = vunpack.c.l.b16 %v12079
    %v12407 = vunpack.c.l.b16 %v12080
    %v12408 = vunpack.c.l.b16 %v12081
    %v12409 = vunpack.c.l.b16 %v12082
    %v12410 = vunpack.c.l.b16 %v12083
    %v12411 = vunpack.c.l.b16 %v12084
    %v12412 = vunpack.c.l.b16 %v12085
    %v12413 = vunpack.c.l.b16 %v12086
    %v12414 = vunpack.c.l.b16 %v12087
    %v12415 = vunpack.c.l.b16 %v12088
    %v12416 = vunpack.c.l.b16 %v12089
    %v12417 = vunpack.c.l.b16 %v12090
    %v12418 = vunpack.c.l.b16 %v12091
    %v12419 = vunpack.c.l.b16 %v12092
    %v12420 = vunpack.c.l.b16 %v12093
    %v12421 = vunpack.c.l.b16 %v12094
    %v12422 = vunpack.c.l.b16 %v12095
    %v12423 = vunpack.c.l.b16 %v12096
    %v12424 = vunpack.c.l.b16 %v12097
    %v12425 = vunpack.c.l.b16 %v12098
    %v12426 = vunpack.c.l.b16 %v12099
    %v12427 = vunpack.c.l.b16 %v12100
    %v12428 = vunpack.c.l.b16 %v12101
    %v12429 = vunpack.c.l.b16 %v12102
    %v12430 = vpack.c.b16 %v12271, %v12270
    %v12431 = vpack.c.b16 %v12273, %v12272
    %v12432 = vpack.c.b16 %v12275, %v12274
    %v12433 = vpack.c.b16 %v12277, %v12276
    %v12434 = vpack.c.b16 %v12279, %v12278
    %v12435 = vpack.c.b16 %v12281, %v12280
    %v12436 = vpack.c.b16 %v12283, %v12282
    %v12437 = vpack.c.b16 %v12285, %v12284
    %v12438 = vpack.c.b16 %v12287, %v12286
    %v12439 = vpack.c.b16 %v12289, %v12288
    %v12440 = vpack.c.b16 %v12291, %v12290
    %v12441 = vpack.c.b16 %v12293, %v12292
    %v12442 = vpack.c.b16 %v12295, %v12294
    %v12443 = vpack.c.b16 %v12297, %v12296
    %v12444 = vpack.c.b16 %v12299, %v12298
    %v12445 = vpack.c.b16 %v12301, %v12300
    %v12446 = vpack.c.b16 %v12303, %v12302
    %v12447 = vpack.c.b16 %v12305, %v12304
    %v12448 = vpack.c.b16 %v12307, %v12306
    %v12449 = vpack.c.b16 %v12309, %v12308
    %v12450 = vpack.c.b16 %v12311, %v12310
    %v12451 = vpack.c.b16 %v12313, %v12312
    %v12452 = vpack.c.b16 %v12315, %v12314
    %v12453 = vpack.c.b16 %v12317, %v12316
    %v12454 = vpack.c.b16 %v12319, %v12318
    %v12455 = vpack.c.b16 %v12321, %v12320
    %v12456 = vpack.c.b16 %v12323, %v12322
    %v12457 = vpack.c.b16 %v12325, %v12324
    %v12458 = vpack.c.b16 %v12327, %v12326
    %v12459 = vpack.c.b16 %v12329, %v12328
    %v12460 = vpack.c.b16 %v12331, %v12330
    %v12461 = vpack.c.b16 %v12333, %v12332
    %v12462 = vpack.c.b16 %v12335, %v12334
    %v12463 = vpack.c.b16 %v12337, %v12336
    %v12464 = vpack.c.b16 %v12339, %v12338
    %v12465 = vpack.c.b16 %v12341, %v12340
    %v12466 = vpack.c.b16 %v12343, %v12342
    %v12467 = vpack.c.b16 %v12345, %v12344
    %v12468 = vpack.c.b16 %v12347, %v12346
    %v12469 = vpack.c.b16 %v12349, %v12348
    %v12470 = vpack.c.b16 %v12351, %v12350
    %v12471 = vpack.c.b16 %v12353, %v12352
    %v12472 = vpack.c.b16 %v12355, %v12354
    %v12473 = vpack.c.b16 %v12357, %v12356
    %v12474 = vpack.c.b16 %v12359, %v12358
    %v12475 = vpack.c.b16 %v12361, %v12360
    %v12476 = vpack.c.b16 %v12363, %v12362
    %v12477 = vpack.c.b16 %v12365, %v12364
    %v12478 = vpack.c.b16 %v12367, %v12366
    %v12479 = vpack.c.b16 %v12369, %v12368
    %v12480 = vpack.c.b16 %v12371, %v12370
    %v12481 = vpack.c.b16 %v12373, %v12372
    %v12482 = vpack.c.b16 %v12375, %v12374
    %v12483 = vpack.c.b16 %v12377, %v12376
    %v12484 = vpack.c.b16 %v12379, %v12378
    %v12485 = vpack.c.b16 %v12381, %v12380
    %v12486 = vpack.c.b16 %v12383, %v12382
    %v12487 = vpack.c.b16 %v12385, %v12384
    %v12488 = vpack.c.b16 %v12387, %v12386
    %v12489 = vpack.c.b16 %v12389, %v12388
    %v12490 = vpack.c.b16 %v12391, %v12390
    %v12491 = vpack.c.b16 %v12393, %v12392
    %v12492 = vpack.c.b16 %v12395, %v12394
    %v12493 = vpack.c.b16 %v12397, %v12396
    %v12494 = vpack.c.b16 %v12399, %v12398
    %v12495 = vpack.c.b16 %v12401, %v12400
    %v12496 = vpack.c.b16 %v12403, %v12402
    %v12497 = vpack.c.b16 %v12405, %v12404
    %v12498 = vpack.c.b16 %v12407, %v12406
    %v12499 = vpack.c.b16 %v12409, %v12408
    %v12500 = vpack.c.b16 %v12411, %v12410
    %v12501 = vpack.c.b16 %v12413, %v12412
    %v12502 = vpack.c.b16 %v12415, %v12414
    %v12503 = vpack.c.b16 %v12417, %v12416
    %v12504 = vpack.c.b16 %v12419, %v12418
    %v12505 = vpack.c.b16 %v12421, %v12420
    %v12506 = vpack.c.b16 %v12423, %v12422
    %v12507 = vpack.c.b16 %v12425, %v12424
    %v12508 = vpack.c.b16 %v12427, %v12426
    %v12509 = vpack.c.b16 %v12429, %v12428
    %12590 = vmatprep.subr.bf16.mxu0 0
    %12591 = vmatpush1.bf16.msra.mxu0 %v12430
    %12592 = vmatprep.subr.bf16.mxu0 0
    %12593 = vmatpush1.bf16.msra.mxu0 %v12431
    %12594 = vmatprep.subr.bf16.mxu0 0
    %12595 = vmatpush1.bf16.msra.mxu0 %v12432
    %12596 = vmatprep.subr.bf16.mxu0 0
    %12597 = vmatpush1.bf16.msra.mxu0 %v12433
    %12598 = vmatprep.subr.bf16.mxu0 0
    %12599 = vmatpush1.bf16.msra.mxu0 %v12434
    %12600 = vmatprep.subr.bf16.mxu0 0
    %12601 = vmatpush1.bf16.msra.mxu0 %v12435
    %12602 = vmatprep.subr.bf16.mxu0 0
    %12603 = vmatpush1.bf16.msra.mxu0 %v12436
    %12604 = vmatprep.subr.bf16.mxu0 0
    %12605 = vmatpush1.bf16.msra.mxu0 %v12437
    %12606 = vmatprep.subr.bf16.mxu0 0
    %12607 = vmatpush1.bf16.msra.mxu0 %v12438
    %12608 = vmatprep.subr.bf16.mxu0 0
    %12609 = vmatpush1.bf16.msra.mxu0 %v12439
    %12610 = vmatprep.subr.bf16.mxu0 0
    %12611 = vmatpush1.bf16.msra.mxu0 %v12440
    %12612 = vmatprep.subr.bf16.mxu0 0
    %12613 = vmatpush1.bf16.msra.mxu0 %v12441
    %12614 = vmatprep.subr.bf16.mxu0 0
    %12615 = vmatpush1.bf16.msra.mxu0 %v12442
    %12616 = vmatprep.subr.bf16.mxu0 0
    %12617 = vmatpush1.bf16.msra.mxu0 %v12443
    %12618 = vmatprep.subr.bf16.mxu0 0
    %12619 = vmatpush1.bf16.msra.mxu0 %v12444
    %12620 = vmatprep.subr.bf16.mxu0 0
    %12621 = vmatpush1.bf16.msra.mxu0 %v12445
    %12622 = vmatprep.mubr.bf16.mxu0 %v11934
    %12623 = vmatmul.mubr.bf16.gmra.mrb[0].mxu0 %v11933
    %v12624 = vpop.f32.mrb[0].mxu0
    %v12625 = vadd.f32 %v12108, %v12624
    %v12626 = vpop.f32.mrb[0].mxu0
    %v12627 = vpop.f32.mrb[0].mxu0
    %v12628 = vpop.f32.mrb[0].mxu0
    %12629 = vdwg.mxu0
    %12630 = vmatprep.subr.bf16.mxu0 0
    %12631 = vmatpush1.bf16.msra.mxu0 %v12446
    %12632 = vmatprep.subr.bf16.mxu0 0
    %12633 = vmatpush1.bf16.msra.mxu0 %v12447
    %12634 = vmatprep.subr.bf16.mxu0 0
    %12635 = vmatpush1.bf16.msra.mxu0 %v12448
    %12636 = vmatprep.subr.bf16.mxu0 0
    %12637 = vmatpush1.bf16.msra.mxu0 %v12449
    %12638 = vmatprep.subr.bf16.mxu0 0
    %12639 = vmatpush1.bf16.msra.mxu0 %v12450
    %12640 = vmatprep.subr.bf16.mxu0 0
    %12641 = vmatpush1.bf16.msra.mxu0 %v12451
    %12642 = vmatprep.subr.bf16.mxu0 0
    %12643 = vmatpush1.bf16.msra.mxu0 %v12452
    %12644 = vmatprep.subr.bf16.mxu0 0
    %12645 = vmatpush1.bf16.msra.mxu0 %v12453
    %12646 = vmatprep.subr.bf16.mxu0 0
    %12647 = vmatpush1.bf16.msra.mxu0 %v12454
    %12648 = vmatprep.subr.bf16.mxu0 0
    %12649 = vmatpush1.bf16.msra.mxu0 %v12455
    %12650 = vmatprep.subr.bf16.mxu0 0
    %12651 = vmatpush1.bf16.msra.mxu0 %v12456
    %12652 = vmatprep.subr.bf16.mxu0 0
    %12653 = vmatpush1.bf16.msra.mxu0 %v12457
    %12654 = vmatprep.subr.bf16.mxu0 0
    %12655 = vmatpush1.bf16.msra.mxu0 %v12458
    %12656 = vmatprep.subr.bf16.mxu0 0
    %12657 = vmatpush1.bf16.msra.mxu0 %v12459
    %12658 = vmatprep.subr.bf16.mxu0 0
    %12659 = vmatpush1.bf16.msra.mxu0 %v12460
    %12660 = vmatprep.subr.bf16.mxu0 0
    %12661 = vmatpush1.bf16.msra.mxu0 %v12461
    %12662 = vmatprep.mubr.bf16.mxu0 %v11936
    %12663 = vmatmul.mubr.bf16.gmra.mrb[0].mxu0 %v11935
    %v12664 = vpop.f32.mrb[0].mxu0
    %v12665 = vadd.f32 %v12625, %v12664
    %v12666 = vpop.f32.mrb[0].mxu0
    %v12667 = vpop.f32.mrb[0].mxu0
    %v12668 = vpop.f32.mrb[0].mxu0
    %12669 = vdwg.mxu0
    %12670 = vmatprep.subr.bf16.mxu0 0
    %12671 = vmatpush1.bf16.msra.mxu0 %v12462
    %12672 = vmatprep.subr.bf16.mxu0 0
    %12673 = vmatpush1.bf16.msra.mxu0 %v12463
    %12674 = vmatprep.subr.bf16.mxu0 0
    %12675 = vmatpush1.bf16.msra.mxu0 %v12464
    %12676 = vmatprep.subr.bf16.mxu0 0
    %12677 = vmatpush1.bf16.msra.mxu0 %v12465
    %12678 = vmatprep.subr.bf16.mxu0 0
    %12679 = vmatpush1.bf16.msra.mxu0 %v12466
    %12680 = vmatprep.subr.bf16.mxu0 0
    %12681 = vmatpush1.bf16.msra.mxu0 %v12467
    %12682 = vmatprep.subr.bf16.mxu0 0
    %12683 = vmatpush1.bf16.msra.mxu0 %v12468
    %12684 = vmatprep.subr.bf16.mxu0 0
    %12685 = vmatpush1.bf16.msra.mxu0 %v12469
    %12686 = vmatprep.subr.bf16.mxu0 0
    %12687 = vmatpush1.bf16.msra.mxu0 %v12470
    %12688 = vmatprep.subr.bf16.mxu0 0
    %12689 = vmatpush1.bf16.msra.mxu0 %v12471
    %12690 = vmatprep.subr.bf16.mxu0 0
    %12691 = vmatpush1.bf16.msra.mxu0 %v12472
    %12692 = vmatprep.subr.bf16.mxu0 0
    %12693 = vmatpush1.bf16.msra.mxu0 %v12473
    %12694 = vmatprep.subr.bf16.mxu0 0
    %12695 = vmatpush1.bf16.msra.mxu0 %v12474
    %12696 = vmatprep.subr.bf16.mxu0 0
    %12697 = vmatpush1.bf16.msra.mxu0 %v12475
    %12698 = vmatprep.subr.bf16.mxu0 0
    %12699 = vmatpush1.bf16.msra.mxu0 %v12476
    %12700 = vmatprep.subr.bf16.mxu0 0
    %12701 = vmatpush1.bf16.msra.mxu0 %v12477
    %12702 = vmatprep.mubr.bf16.mxu0 %v11938
    %12703 = vmatmul.mubr.bf16.gmra.mrb[0].mxu0 %v11937
    %v12704 = vpop.f32.mrb[0].mxu0
    %v12705 = vadd.f32 %v12665, %v12704
    %v12706 = vpop.f32.mrb[0].mxu0
    %v12707 = vpop.f32.mrb[0].mxu0
    %v12708 = vpop.f32.mrb[0].mxu0
    %12709 = vdwg.mxu0
    %12710 = vmatprep.subr.bf16.mxu0 0
    %12711 = vmatpush1.bf16.msra.mxu0 %v12478
    %12712 = vmatprep.subr.bf16.mxu0 0
    %12713 = vmatpush1.bf16.msra.mxu0 %v12479
    %12714 = vmatprep.subr.bf16.mxu0 0
    %12715 = vmatpush1.bf16.msra.mxu0 %v12480
    %12716 = vmatprep.subr.bf16.mxu0 0
    %12717 = vmatpush1.bf16.msra.mxu0 %v12481
    %12718 = vmatprep.subr.bf16.mxu0 0
    %12719 = vmatpush1.bf16.msra.mxu0 %v12482
    %12720 = vmatprep.subr.bf16.mxu0 0
    %12721 = vmatpush1.bf16.msra.mxu0 %v12483
    %12722 = vmatprep.subr.bf16.mxu0 0
    %12723 = vmatpush1.bf16.msra.mxu0 %v12484
    %12724 = vmatprep.subr.bf16.mxu0 0
    %12725 = vmatpush1.bf16.msra.mxu0 %v12485
    %12726 = vmatprep.subr.bf16.mxu0 0
    %12727 = vmatpush1.bf16.msra.mxu0 %v12486
    %12728 = vmatprep.subr.bf16.mxu0 0
    %12729 = vmatpush1.bf16.msra.mxu0 %v12487
    %12730 = vmatprep.subr.bf16.mxu0 0
    %12731 = vmatpush1.bf16.msra.mxu0 %v12488
    %12732 = vmatprep.subr.bf16.mxu0 0
    %12733 = vmatpush1.bf16.msra.mxu0 %v12489
    %12734 = vmatprep.subr.bf16.mxu0 0
    %12735 = vmatpush1.bf16.msra.mxu0 %v12490
    %12736 = vmatprep.subr.bf16.mxu0 0
    %12737 = vmatpush1.bf16.msra.mxu0 %v12491
    %12738 = vmatprep.subr.bf16.mxu0 0
    %12739 = vmatpush1.bf16.msra.mxu0 %v12492
    %12740 = vmatprep.subr.bf16.mxu0 0
    %12741 = vmatpush1.bf16.msra.mxu0 %v12493
    %12742 = vmatprep.mubr.bf16.mxu0 %v11940
    %12743 = vmatmul.mubr.bf16.gmra.mrb[0].mxu0 %v11939
    %v12744 = vpop.f32.mrb[0].mxu0
    %v12745 = vadd.f32 %v12705, %v12744
    %v12746 = vpop.f32.mrb[0].mxu0
    %v12747 = vpop.f32.mrb[0].mxu0
    %v12748 = vpop.f32.mrb[0].mxu0
    %12749 = vdwg.mxu0
    %12750 = vmatprep.subr.bf16.mxu0 0
    %12751 = vmatpush1.bf16.msra.mxu0 %v12494
    %12752 = vmatprep.subr.bf16.mxu0 0
    %12753 = vmatpush1.bf16.msra.mxu0 %v12495
    %12754 = vmatprep.subr.bf16.mxu0 0
    %12755 = vmatpush1.bf16.msra.mxu0 %v12496
    %12756 = vmatprep.subr.bf16.mxu0 0
    %12757 = vmatpush1.bf16.msra.mxu0 %v12497
    %12758 = vmatprep.subr.bf16.mxu0 0
    %12759 = vmatpush1.bf16.msra.mxu0 %v12498
    %12760 = vmatprep.subr.bf16.mxu0 0
    %12761 = vmatpush1.bf16.msra.mxu0 %v12499
    %12762 = vmatprep.subr.bf16.mxu0 0
    %12763 = vmatpush1.bf16.msra.mxu0 %v12500
    %12764 = vmatprep.subr.bf16.mxu0 0
    %12765 = vmatpush1.bf16.msra.mxu0 %v12501
    %12766 = vmatprep.subr.bf16.mxu0 0
    %12767 = vmatpush1.bf16.msra.mxu0 %v12502
    %12768 = vmatprep.subr.bf16.mxu0 0
    %12769 = vmatpush1.bf16.msra.mxu0 %v12503
    %12770 = vmatprep.subr.bf16.mxu0 0
    %12771 = vmatpush1.bf16.msra.mxu0 %v12504
    %12772 = vmatprep.subr.bf16.mxu0 0
    %12773 = vmatpush1.bf16.msra.mxu0 %v12505
    %12774 = vmatprep.subr.bf16.mxu0 0
    %12775 = vmatpush1.bf16.msra.mxu0 %v12506
    %12776 = vmatprep.subr.bf16.mxu0 0
    %12777 = vmatpush1.bf16.msra.mxu0 %v12507
    %12778 = vmatprep.subr.bf16.mxu0 0
    %12779 = vmatpush1.bf16.msra.mxu0 %v12508
    %12780 = vmatprep.subr.bf16.mxu0 0
    %12781 = vmatpush1.bf16.msra.mxu0 %v12509
    %12782 = vmatprep.mubr.bf16.mxu0 %v11942
    %12783 = vmatmul.mubr.bf16.gmra.mrb[0].mxu0 %v11941
    %v12784 = vpop.f32.mrb[0].mxu0
    %v12785 = vadd.f32 %v12745, %v12784
    %v12786 = vpop.f32.mrb[0].mxu0
    %v12787 = vpop.f32.mrb[0].mxu0
    %v12788 = vpop.f32.mrb[0].mxu0
    %12789 = vdwg.mxu0
    %12790 = vst [vmem:[#allocation11] sm:$0x3] %v12785
    // Predicated region
    $region42: #{ecg_classifier_forward.1} parent=1 // pred_check
      _
    $region43: #{ecg_classifier_forward.1} parent=1 // pred_check_branch
      %12792 = sbr.rel (0) target = $region45
    $region44: #{ecg_classifier_forward.1} parent=1 // pred_region
      %s12794 = ssub.s32 32, 32
      %12795 = vsyncadd [#allocation4], %s12794
      %s12797 = sshll.u32 [#allocation11], 4
      %s12798 = int_to_ptr.vmem [resolvable:$true] %s12797
      %12800 = dma.vmem_to_hbm [thread:$0]  %s12798, 32, %s5, [#allocation4]
    $region45: #{ecg_classifier_forward.1} parent=1 // pred_fallthru
      _
    // Predicated region
    $region46: #{ecg_classifier_forward.1} parent=1 // pred_check
      _
    $region47: #{ecg_classifier_forward.1} parent=1 // pred_check_branch
      %12802 = sbr.rel (0) target = $region49
    $region48: #{ecg_classifier_forward.1} parent=1 // pred_region
      %12803 = dma.done [#allocation4], 32
    $region49: #{ecg_classifier_forward.1} parent=1 // pred_fallthru
      _
    %12804 = vsyncpa [#allocation3], 1
    %12805 = vsyncpa [#allocation6], 1
    %12806 = vsyncpa [#allocation9], 1
    %12807 = vsyncpa [#allocation4], 1

</llo_original>
